<compile_context>
chip_gen: v7x
topology: tpu7x:2x2x1
jax: 0.10.0
libtpu: 0.0.40
codegen_flags: <defaults>
</compile_context>

<pallas_src>
import jax
import jax.numpy as jnp
from jax.experimental import pallas as pl
from jax.experimental.pallas import tpu as pltpu

BN_EPS = 1e-5
LANE = 128                                # conv output channels padded to lane width
KPACK = 16                                # bf16 (16,128) tile: K (input-channel) alignment
TILE_VMEM_BUDGET = 24 * 1024 * 1024       # per-tile working-set target
VMEM_LIMIT = 48 * 1024 * 1024             # scoped VMEM limit (headroom under v7x's 64 MiB)


def _round_up(x, m):
    return (x + m - 1) // m * m


def _pick_tile_h(h, w, c, n, budget=TILE_VMEM_BUDGET):
    """Largest divisor of h whose per-tile footprint (heaviest pass: double-buffered
    bf16 blocks + f32 window/accumulator scratch) fits the budget; prefer >= 2 total
    grid tiles so v7x's two TensorCores both get work.  Degrades to TH=1 worst case."""
    per_row = max(1, w * c * 32)          # rough bytes per tile row in pass 2
    cap = max(1, budget // per_row)
    divs = [d for d in range(1, h + 1) if h % d == 0 and d <= cap]
    if not divs:
        return 1
    min_hb = 1 if n >= 2 else 2
    good = [d for d in divs if h // d >= min_hb]
    return max(good) if good else max(divs)


def _conv3x3(window, w_ref, th, w):
    """3x3 'valid' conv of `window` (th+2, w+2, C) bf16 against w_ref (9, C, Cout) bf16.

    Nine accumulating K=C MXU matmuls into an f32 accumulator: no 9x im2col patch
    matrix is ever materialized (VMEM stays ~tile-sized; on v7x the chained
    accumulation maps onto the MRB).  Returns (th*w, Cout) float32.
    """
    c = window.shape[-1]
    acc = None
    t = 0
    for dy in range(3):                    # static unroll over the 9 taps
        for dx in range(3):
            tap = window[dy:dy + th, dx:dx + w, :].reshape(th * w, c)
            part = jnp.dot(tap, w_ref[t], preferred_element_type=jnp.float32)
            acc = part if acc is None else acc + part
            t += 1
    return acc


def _partial_stats(acc):
    # per-tile [sum, sum_sq] partials for the train-mode BN batch statistics (f32)
    return jnp.concatenate(
        [jnp.sum(acc, axis=0, keepdims=True),
         jnp.sum(acc * acc, axis=0, keepdims=True)], axis=0)


def _conv1_kernel(xt_ref, xm_ref, xb_ref, w1_ref, y1_ref, st_ref, win_ref):
    # xt/xm/xb : (1, 1|TH, W, Cinp) f32    halo row above / TH body rows / halo row below
    # w1_ref   : (9, Cinp, Cop)    bf16    resident (constant index_map)
    # y1_ref   : (1, TH, W, Cop)   bf16    raw conv1 output (unpadded, lane-dense)
    # st_ref   : (1, 1, 2, Cop)    f32     per-tile [sum, sum_sq] for BN1
    # win_ref  : (TH+2, W+2, Cinp) f32     VMEM scratch: zero-padded input window
    i = pl.program_id(1)
    nhb = pl.num_programs(1)
    th, w = xm_ref.shape[1], xm_ref.shape[2]
    cop = w1_ref.shape[-1]

    # Assemble the zero-padded window in VMEM.  Halo rows outside the image are
    # conv1's zero padding (cheap 1-row scaling, no full-tile mask).
    zcol = jnp.zeros((th + 2, 1, win_ref.shape[-1]), jnp.float32)
    win_ref[:, 0:1, :] = zcol
    win_ref[:, w + 1:w + 2, :] = zcol
    win_ref[0:1, 1:w + 1, :] = xt_ref[0] * (i > 0).astype(jnp.float32)
    win_ref[1:th + 1, 1:w + 1, :] = xm_ref[0]
    win_ref[th + 1:th + 2, 1:w + 1, :] = xb_ref[0] * (i < nhb - 1).astype(jnp.float32)

    win = win_ref[...].astype(jnp.bfloat16)        # single cast before the 9 taps
    acc = _conv3x3(win, w1_ref, th, w)             # (th*w, cop) f32
    st_ref[0, 0] = _partial_stats(acc)
    y1_ref[0] = acc.reshape(th, w, cop).astype(y1_ref.dtype)


def _conv2_kernel(yt_ref, ym_ref, yb_ref, bn1_ref, w2_ref, y2_ref, st_ref, win_ref):
    # yt/ym/yb : raw conv1 rows (bf16) with a 1-row halo above/below
    # bn1_ref  : (2, Cop) f32     folded BN1 [scale, shift]          (resident)
    # w2_ref   : (9, Cop, Cop) bf16                                  (resident)
    # y2_ref   : (1, TH, W, Cop) bf16   raw conv2 output
    # st_ref   : (1, 1, 2, Cop)  f32    per-tile [sum, sum_sq] for BN2
    # win_ref  : (TH+2, W+2, Cop) f32   VMEM scratch: BN1+ReLU activation window
    i = pl.program_id(1)
    nhb = pl.num_programs(1)
    th, w, cop = ym_ref.shape[1], ym_ref.shape[2], ym_ref.shape[3]

    scale = bn1_ref[0:1, :].reshape(1, 1, cop)
    shift = bn1_ref[1:2, :].reshape(1, 1, cop)

    def bn_relu(rows_bf16):
        return jnp.maximum(rows_bf16.astype(jnp.float32) * scale + shift, 0.0)

    # conv2's zero padding lives in *activation* space: zero border columns, and
    # zero the halo rows AFTER BN+ReLU when they fall outside the image.
    zcol = jnp.zeros((th + 2, 1, cop), jnp.float32)
    win_ref[:, 0:1, :] = zcol
    win_ref[:, w + 1:w + 2, :] = zcol
    win_ref[0:1, 1:w + 1, :] = bn_relu(yt_ref[0]) * (i > 0).astype(jnp.float32)
    win_ref[1:th + 1, 1:w + 1, :] = bn_relu(ym_ref[0])
    win_ref[th + 1:th + 2, 1:w + 1, :] = (
        bn_relu(yb_ref[0]) * (i < nhb - 1).astype(jnp.float32))

    win = win_ref[...].astype(jnp.bfloat16)        # single cast before the 9 taps
    acc = _conv3x3(win, w2_ref, th, w)             # (th*w, cop) f32
    st_ref[0, 0] = _partial_stats(acc)
    y2_ref[0] = acc.reshape(th, w, cop).astype(y2_ref.dtype)


def _bn_relu_kernel(y_ref, bn_ref, o_ref):
    # y_ref: (1, TH, W, Cop) bf16 ; o_ref: (1, TH, W, Cout) f32 (only real channels)
    cout = o_ref.shape[-1]
    cop = y_ref.shape[-1]
    scale = bn_ref[0:1, :].reshape(1, 1, 1, cop)
    shift = bn_ref[1:2, :].reshape(1, 1, 1, cop)
    val = jnp.maximum(y_ref[...].astype(jnp.float32) * scale + shift, 0.0)
    o_ref[...] = val[..., :cout].astype(o_ref.dtype)


def _fold_bn(stats, gamma, beta, count):
    """Combine per-tile [sum, sum_sq] partials and fold biased batch mean/var with
    gamma/beta into per-channel scale/shift so that BN(x) = x * scale + shift."""
    # TODO(synk): mean-centered / compensated combine if N*H*W grows enough for the
    # E[x^2]-E[x]^2 cancellation to matter at f32.
    tot = jnp.sum(stats, axis=(0, 1))              # (2, C)
    mean = tot[0] / count
    var = tot[1] / count - mean * mean
    scale = gamma * jax.lax.rsqrt(var + BN_EPS)
    shift = beta - mean * scale
    return jnp.stack([scale, shift], axis=0)       # (2, C) f32


@jax.jit
def double_conv(x_nchw, params):
    """DoubleConv forward. x_nchw: (N, Cin, H, W) f32 -> (N, Cout, H, W) f32."""
    N, Cin, H, W = x_nchw.shape
    Cout = params["w1"].shape[0]
    Cinp = _round_up(Cin, KPACK)       # small K-alignment pad only (NOT 128)
    Cop = _round_up(Cout, LANE)        # lane-dense conv outputs
    TH = _pick_tile_h(H, W, Cop, N)
    HB = H // TH
    f32, bf16 = jnp.float32, jnp.bfloat16

    # NCHW -> NHWC; pad only the channel dim to Cinp (no spatial padding in HBM).
    # TODO(synk): accept/return NHWC end-to-end so the boundary transposes fuse away.
    x = jnp.transpose(x_nchw, (0, 2, 3, 1)).astype(f32)
    x = jnp.pad(x, ((0, 0), (0, 0), (0, 0), (0, Cinp - Cin)))

    # Weights -> (tap, cin, cout) layout, bf16.  Conv biases are dropped on purpose:
    # a per-channel constant added before train-mode BN cancels exactly.
    w1 = jnp.transpose(params["w1"], (2, 3, 1, 0))                  # (3,3,Cin,Cout)
    w1 = jnp.pad(w1, ((0, 0), (0, 0), (0, Cinp - Cin), (0, Cop - Cout)))
    w1 = w1.reshape(9, Cinp, Cop).astype(bf16)
    w2 = jnp.transpose(params["w2"], (2, 3, 1, 0))                  # (3,3,Cout,Cout)
    w2 = jnp.pad(w2, ((0, 0), (0, 0), (0, Cop - Cout), (0, Cop - Cout)))
    w2 = w2.reshape(9, Cop, Cop).astype(bf16)

    g1 = jnp.pad(params["gamma1"].astype(f32), (0, Cop - Cout))
    be1 = jnp.pad(params["beta1"].astype(f32), (0, Cop - Cout))
    g2 = jnp.pad(params["gamma2"].astype(f32), (0, Cop - Cout))
    be2 = jnp.pad(params["beta2"].astype(f32), (0, Cop - Cout))

    grid = (N, HB)
    cparams = pltpu.CompilerParams(
        dimension_semantics=("parallel", "parallel"),
        vmem_limit_bytes=VMEM_LIMIT)

    def mid_spec(c):
        return pl.BlockSpec((1, TH, W, c), lambda n, i: (n, i, 0, 0))

    def top_spec(c):
        return pl.BlockSpec((1, 1, W, c),
                            lambda n, i: (n, jnp.maximum(i * TH - 1, 0), 0, 0))

    def bot_spec(c):
        return pl.BlockSpec((1, 1, W, c),
                            lambda n, i: (n, jnp.minimum((i + 1) * TH, H - 1), 0, 0))

    def const_spec(shape):
        # TODO(synk): pipeline_mode=pl.Buffered(1) to single-buffer resident weights
        # (matters for v7x's 64 MiB VMEM at Cop=512).
        return pl.BlockSpec(shape, lambda n, i: (0,) * len(shape))

    stat_spec = pl.BlockSpec((1, 1, 2, Cop), lambda n, i: (n, i, 0, 0))
    stat_shape = jax.ShapeDtypeStruct((N, HB, 2, Cop), f32)

    # ---- pass 1: conv1 (+ BN1 partial stats); bf16, unpadded intermediate ---------
    y1, st1 = pl.pallas_call(
        _conv1_kernel,
        grid=grid,
        in_specs=[top_spec(Cinp), mid_spec(Cinp), bot_spec(Cinp),
                  const_spec((9, Cinp, Cop))],
        out_specs=(mid_spec(Cop), stat_spec),
        out_shape=(jax.ShapeDtypeStruct((N, H, W, Cop), bf16), stat_shape),
        scratch_shapes=[pltpu.VMEM((TH + 2, W + 2, Cinp), f32)],
        compiler_params=cparams,
    )(x, x, x, w1)

    bn1 = _fold_bn(st1, g1, be1, N * H * W)

    # ---- pass 2: BN1+ReLU (folded) -> conv2 (+ BN2 partial stats); bf16 output ----
    y2, st2 = pl.pallas_call(
        _conv2_kernel,
        grid=grid,
        in_specs=[top_spec(Cop), mid_spec(Cop), bot_spec(Cop),
                  const_spec((2, Cop)), const_spec((9, Cop, Cop))],
        out_specs=(mid_spec(Cop), stat_spec),
        out_shape=(jax.ShapeDtypeStruct((N, H, W, Cop), bf16), stat_shape),
        scratch_shapes=[pltpu.VMEM((TH + 2, W + 2, Cop), f32)],
        compiler_params=cparams,
    )(y1, y1, y1, bn1, w2)

    bn2 = _fold_bn(st2, g2, be2, N * H * W)

    # ---- pass 3: BN2 + ReLU, writing only the Cout real channels -------------------
    out = pl.pallas_call(
        _bn_relu_kernel,
        grid=grid,
        in_specs=[mid_spec(Cop), const_spec((2, Cop))],
        out_specs=pl.BlockSpec((1, TH, W, Cout), lambda n, i: (n, i, 0, 0)),
        out_shape=jax.ShapeDtypeStruct((N, H, W, Cout), f32),
        compiler_params=cparams,
    )(y2, bn2)

    # back to NCHW to match the PyTorch module's interface
    return jnp.transpose(out, (0, 3, 1, 2))


def _reference(x_nchw, params):
    """Pure-JAX f32 reference (lax conv + batch-stat BN + ReLU), NCHW throughout."""
    def conv(x, w, b):
        y = jax.lax.conv_general_dilated(
            x, w, window_strides=(1, 1), padding=((1, 1), (1, 1)),
            dimension_numbers=("NCHW", "OIHW", "NCHW"))
        return y + b[None, :, None, None]

    def bn_relu(y, gamma, beta):
        mean = jnp.mean(y, axis=(0, 2, 3), keepdims=True)
        var = jnp.mean((y - mean) ** 2, axis=(0, 2, 3), keepdims=True)
        yhat = (y - mean) * jax.lax.rsqrt(var + BN_EPS)
        return jnp.maximum(yhat * gamma[None, :, None, None]
                           + beta[None, :, None, None], 0.0)

    h = bn_relu(conv(x_nchw, params["w1"], params["b1"]),
                params["gamma1"], params["beta1"])
    h = bn_relu(conv(h, params["w2"], params["b2"]),
                params["gamma2"], params["beta2"])
    return h


def _init_params(key, in_ch, out_ch):
    ks = jax.random.split(key, 8)
    return {
        "w1": 0.1 * jax.random.normal(ks[0], (out_ch, in_ch, 3, 3), jnp.float32),
        "b1": 0.1 * jax.random.normal(ks[1], (out_ch,), jnp.float32),
        "gamma1": 1.0 + 0.1 * jax.random.normal(ks[2], (out_ch,), jnp.float32),
        "beta1": 0.1 * jax.random.normal(ks[3], (out_ch,), jnp.float32),
        "w2": 0.1 * jax.random.normal(ks[4], (out_ch, out_ch, 3, 3), jnp.float32),
        "b2": 0.1 * jax.random.normal(ks[5], (out_ch,), jnp.float32),
        "gamma2": 1.0 + 0.1 * jax.random.normal(ks[6], (out_ch,), jnp.float32),
        "beta2": 0.1 * jax.random.normal(ks[7], (out_ch,), jnp.float32),
    }


if __name__ == "__main__":
    key = jax.random.PRNGKey(0)
    k_x, k_p = jax.random.split(key)

    N, Cin, Cout, H, W = 2, 4, 8, 16, 16
    x = jax.random.normal(k_x, (N, Cin, H, W), jnp.float32)
    params = _init_params(k_p, Cin, Cout)

    out = jax.block_until_ready(double_conv(x, params))
    ref = jax.block_until_ready(_reference(x, params))

    assert out.shape == (N, Cout, H, W)
    # bf16 MXU operands + bf16 intermediates (f32 accumulation and BN math) =>
    # tolerance looser than pure f32.
    assert jnp.allclose(out, ref, atol=5e-2, rtol=5e-2), "mismatch vs JAX reference"

    print("KERNEL_OK")
</pallas_src>

<mosaic_0001>
module attributes {stable_mosaic.version = 11 : i64} {
  func.func @_conv1_kernel(%arg0: i32, %arg1: i32, %arg2: memref<1x1x16x16xf32, #tpu.memory_space<vmem>>, %arg3: memref<1x16x16x16xf32, #tpu.memory_space<vmem>>, %arg4: memref<1x1x16x16xf32, #tpu.memory_space<vmem>>, %arg5: memref<9x16x128xbf16, #tpu.memory_space<vmem>>, %arg6: memref<1x16x16x128xbf16, #tpu.memory_space<vmem>>, %arg7: memref<1x1x2x128xf32, #tpu.memory_space<vmem>>, %arg8: memref<18x18x16xf32, #tpu.memory_space<vmem>>) attributes {dimension_semantics = [#tpu.dimension_semantics<parallel>, #tpu.dimension_semantics<parallel>], iteration_bounds = array<i64: 2, 1>, scalar_prefetch = 0 : i64, scratch_operands = 1 : i64, tpu.core_type = #tpu.core_type<tc>, window_params = [{transform_indices = @transform_0, window_bounds = array<i64: 1, 1, 16, 16>}, {transform_indices = @transform_1, window_bounds = array<i64: 1, 16, 16, 16>}, {transform_indices = @transform_2, window_bounds = array<i64: 1, 1, 16, 16>}, {pipeline_mode = #tpu.pipeline_mode<synchronous>, transform_indices = @transform_3, window_bounds = array<i64: 9, 16, 128>}, {transform_indices = @transform_4, window_bounds = array<i64: 1, 16, 16, 128>}, {transform_indices = @transform_5, window_bounds = array<i64: 1, 1, 2, 128>}]} {
    %cst = arith.constant 0.000000e+00 : f32
    %0 = vector.broadcast %cst : f32 to vector<18x1x16xf32>
    %c0 = arith.constant 0 : index
    %c0_0 = arith.constant 0 : index
    %c0_1 = arith.constant 0 : index
    %1 = vector.load %arg8[%c0, %c0_0, %c0_1] : memref<18x18x16xf32, #tpu.memory_space<vmem>>, vector<18x1x16xf32>
    tpu.vector_store %arg8[%c0, %c0_0, %c0_1], %0 {strides = array<i32>} : memref<18x18x16xf32, #tpu.memory_space<vmem>>, vector<18x1x16xf32>,
    %c0_2 = arith.constant 0 : index
    %c17 = arith.constant 17 : index
    %c0_3 = arith.constant 0 : index
    %2 = vector.load %arg8[%c0_2, %c17, %c0_3] : memref<18x18x16xf32, #tpu.memory_space<vmem>>, vector<18x1x16xf32>
    tpu.vector_store %arg8[%c0_2, %c17, %c0_3], %0 {strides = array<i32>} : memref<18x18x16xf32, #tpu.memory_space<vmem>>, vector<18x1x16xf32>,
    %c0_4 = arith.constant 0 : index
    %c0_5 = arith.constant 0 : index
    %c0_6 = arith.constant 0 : index
    %c0_7 = arith.constant 0 : index
    %3 = vector.load %arg2[%c0_4, %c0_5, %c0_6, %c0_7] : memref<1x1x16x16xf32, #tpu.memory_space<vmem>>, vector<1x1x16x16xf32>
    %4 = vector.shape_cast %3 : vector<1x1x16x16xf32> to vector<1x16x16xf32>
    %c0_i32 = arith.constant 0 : i32
    %5 = arith.cmpi sgt, %arg1, %c0_i32 : i32
    %6 = arith.extui %5 : i1 to i32
    %7 = arith.sitofp %6 : i32 to f32
    %8 = vector.broadcast %7 : f32 to vector<1x16x16xf32>
    %9 = arith.mulf %4, %8 : vector<1x16x16xf32>
    %c0_8 = arith.constant 0 : index
    %c1 = arith.constant 1 : index
    %c0_9 = arith.constant 0 : index
    %10 = vector.load %arg8[%c0_8, %c1, %c0_9] : memref<18x18x16xf32, #tpu.memory_space<vmem>>, vector<1x16x16xf32>
    tpu.vector_store %arg8[%c0_8, %c1, %c0_9], %9 {strides = array<i32>} : memref<18x18x16xf32, #tpu.memory_space<vmem>>, vector<1x16x16xf32>,
    %c0_10 = arith.constant 0 : index
    %c0_11 = arith.constant 0 : index
    %c0_12 = arith.constant 0 : index
    %c0_13 = arith.constant 0 : index
    %11 = vector.load %arg3[%c0_10, %c0_11, %c0_12, %c0_13] : memref<1x16x16x16xf32, #tpu.memory_space<vmem>>, vector<1x16x16x16xf32>
    %12 = vector.shape_cast %11 : vector<1x16x16x16xf32> to vector<16x16x16xf32>
    %c1_14 = arith.constant 1 : index
    %c1_15 = arith.constant 1 : index
    %c0_16 = arith.constant 0 : index
    %13 = vector.load %arg8[%c1_14, %c1_15, %c0_16] : memref<18x18x16xf32, #tpu.memory_space<vmem>>, vector<16x16x16xf32>
    tpu.vector_store %arg8[%c1_14, %c1_15, %c0_16], %12 {strides = array<i32>} : memref<18x18x16xf32, #tpu.memory_space<vmem>>, vector<16x16x16xf32>,
    %c0_17 = arith.constant 0 : index
    %c0_18 = arith.constant 0 : index
    %c0_19 = arith.constant 0 : index
    %c0_20 = arith.constant 0 : index
    %14 = vector.load %arg4[%c0_17, %c0_18, %c0_19, %c0_20] : memref<1x1x16x16xf32, #tpu.memory_space<vmem>>, vector<1x1x16x16xf32>
    %15 = vector.shape_cast %14 : vector<1x1x16x16xf32> to vector<1x16x16xf32>
    %c0_i32_21 = arith.constant 0 : i32
    %16 = arith.cmpi slt, %arg1, %c0_i32_21 : i32
    %17 = arith.extui %16 : i1 to i32
    %18 = arith.sitofp %17 : i32 to f32
    %19 = vector.broadcast %18 : f32 to vector<1x16x16xf32>
    %20 = arith.mulf %15, %19 : vector<1x16x16xf32>
    %c17_22 = arith.constant 17 : index
    %c1_23 = arith.constant 1 : index
    %c0_24 = arith.constant 0 : index
    %21 = vector.load %arg8[%c17_22, %c1_23, %c0_24] : memref<18x18x16xf32, #tpu.memory_space<vmem>>, vector<1x16x16xf32>
    tpu.vector_store %arg8[%c17_22, %c1_23, %c0_24], %20 {strides = array<i32>} : memref<18x18x16xf32, #tpu.memory_space<vmem>>, vector<1x16x16xf32>,
    %c0_25 = arith.constant 0 : index
    %c0_26 = arith.constant 0 : index
    %c0_27 = arith.constant 0 : index
    %22 = vector.load %arg8[%c0_25, %c0_26, %c0_27] : memref<18x18x16xf32, #tpu.memory_space<vmem>>, vector<18x18x16xf32>
    %23 = arith.truncf %22 : vector<18x18x16xf32> to vector<18x18x16xbf16>
    %24 = vector.extract_strided_slice %23 {offsets = [0, 0, 0], sizes = [16, 16, 16], strides = [1, 1, 1]} : vector<18x18x16xbf16> to vector<16x16x16xbf16>
    %25 = vector.shape_cast %24 : vector<16x16x16xbf16> to vector<256x16xbf16>
    %c0_28 = arith.constant 0 : index
    %c0_29 = arith.constant 0 : index
    %c0_30 = arith.constant 0 : index
    %26 = vector.load %arg5[%c0_28, %c0_29, %c0_30] : memref<9x16x128xbf16, #tpu.memory_space<vmem>>, vector<1x16x128xbf16>
    %27 = vector.shape_cast %26 : vector<1x16x128xbf16> to vector<16x128xbf16>
    %cst_31 = arith.constant dense<0.000000e+00> : vector<256x128xf32>
    %28 = tpu.matmul %25, %27, %cst_31 {dimension_numbers = #tpu.dot_dimension_numbers<[1], [0], [0], [1], [0, 0, 1, 1], [], []>} : vector<256x16xbf16>, vector<16x128xbf16>, vector<256x128xf32> -> vector<256x128xf32>
    %29 = vector.extract_strided_slice %23 {offsets = [0, 1, 0], sizes = [16, 16, 16], strides = [1, 1, 1]} : vector<18x18x16xbf16> to vector<16x16x16xbf16>
    %30 = vector.shape_cast %29 : vector<16x16x16xbf16> to vector<256x16xbf16>
    %c1_32 = arith.constant 1 : index
    %c0_33 = arith.constant 0 : index
    %c0_34 = arith.constant 0 : index
    %31 = vector.load %arg5[%c1_32, %c0_33, %c0_34] : memref<9x16x128xbf16, #tpu.memory_space<vmem>>, vector<1x16x128xbf16>
    %32 = vector.shape_cast %31 : vector<1x16x128xbf16> to vector<16x128xbf16>
    %cst_35 = arith.constant dense<0.000000e+00> : vector<256x128xf32>
    %33 = tpu.matmul %30, %32, %cst_35 {dimension_numbers = #tpu.dot_dimension_numbers<[1], [0], [0], [1], [0, 0, 1, 1], [], []>} : vector<256x16xbf16>, vector<16x128xbf16>, vector<256x128xf32> -> vector<256x128xf32>
    %34 = arith.addf %28, %33 : vector<256x128xf32>
    %35 = vector.extract_strided_slice %23 {offsets = [0, 2, 0], sizes = [16, 16, 16], strides = [1, 1, 1]} : vector<18x18x16xbf16> to vector<16x16x16xbf16>
    %36 = vector.shape_cast %35 : vector<16x16x16xbf16> to vector<256x16xbf16>
    %c2 = arith.constant 2 : index
    %c0_36 = arith.constant 0 : index
    %c0_37 = arith.constant 0 : index
    %37 = vector.load %arg5[%c2, %c0_36, %c0_37] : memref<9x16x128xbf16, #tpu.memory_space<vmem>>, vector<1x16x128xbf16>
    %38 = vector.shape_cast %37 : vector<1x16x128xbf16> to vector<16x128xbf16>
    %cst_38 = arith.constant dense<0.000000e+00> : vector<256x128xf32>
    %39 = tpu.matmul %36, %38, %cst_38 {dimension_numbers = #tpu.dot_dimension_numbers<[1], [0], [0], [1], [0, 0, 1, 1], [], []>} : vector<256x16xbf16>, vector<16x128xbf16>, vector<256x128xf32> -> vector<256x128xf32>
    %40 = arith.addf %34, %39 : vector<256x128xf32>
    %41 = vector.extract_strided_slice %23 {offsets = [1, 0, 0], sizes = [16, 16, 16], strides = [1, 1, 1]} : vector<18x18x16xbf16> to vector<16x16x16xbf16>
    %42 = vector.shape_cast %41 : vector<16x16x16xbf16> to vector<256x16xbf16>
    %c3 = arith.constant 3 : index
    %c0_39 = arith.constant 0 : index
    %c0_40 = arith.constant 0 : index
    %43 = vector.load %arg5[%c3, %c0_39, %c0_40] : memref<9x16x128xbf16, #tpu.memory_space<vmem>>, vector<1x16x128xbf16>
    %44 = vector.shape_cast %43 : vector<1x16x128xbf16> to vector<16x128xbf16>
    %cst_41 = arith.constant dense<0.000000e+00> : vector<256x128xf32>
    %45 = tpu.matmul %42, %44, %cst_41 {dimension_numbers = #tpu.dot_dimension_numbers<[1], [0], [0], [1], [0, 0, 1, 1], [], []>} : vector<256x16xbf16>, vector<16x128xbf16>, vector<256x128xf32> -> vector<256x128xf32>
    %46 = arith.addf %40, %45 : vector<256x128xf32>
    %47 = vector.extract_strided_slice %23 {offsets = [1, 1, 0], sizes = [16, 16, 16], strides = [1, 1, 1]} : vector<18x18x16xbf16> to vector<16x16x16xbf16>
    %48 = vector.shape_cast %47 : vector<16x16x16xbf16> to vector<256x16xbf16>
    %c4 = arith.constant 4 : index
    %c0_42 = arith.constant 0 : index
    %c0_43 = arith.constant 0 : index
    %49 = vector.load %arg5[%c4, %c0_42, %c0_43] : memref<9x16x128xbf16, #tpu.memory_space<vmem>>, vector<1x16x128xbf16>
    %50 = vector.shape_cast %49 : vector<1x16x128xbf16> to vector<16x128xbf16>
    %cst_44 = arith.constant dense<0.000000e+00> : vector<256x128xf32>
    %51 = tpu.matmul %48, %50, %cst_44 {dimension_numbers = #tpu.dot_dimension_numbers<[1], [0], [0], [1], [0, 0, 1, 1], [], []>} : vector<256x16xbf16>, vector<16x128xbf16>, vector<256x128xf32> -> vector<256x128xf32>
    %52 = arith.addf %46, %51 : vector<256x128xf32>
    %53 = vector.extract_strided_slice %23 {offsets = [1, 2, 0], sizes = [16, 16, 16], strides = [1, 1, 1]} : vector<18x18x16xbf16> to vector<16x16x16xbf16>
    %54 = vector.shape_cast %53 : vector<16x16x16xbf16> to vector<256x16xbf16>
    %c5 = arith.constant 5 : index
    %c0_45 = arith.constant 0 : index
    %c0_46 = arith.constant 0 : index
    %55 = vector.load %arg5[%c5, %c0_45, %c0_46] : memref<9x16x128xbf16, #tpu.memory_space<vmem>>, vector<1x16x128xbf16>
    %56 = vector.shape_cast %55 : vector<1x16x128xbf16> to vector<16x128xbf16>
    %cst_47 = arith.constant dense<0.000000e+00> : vector<256x128xf32>
    %57 = tpu.matmul %54, %56, %cst_47 {dimension_numbers = #tpu.dot_dimension_numbers<[1], [0], [0], [1], [0, 0, 1, 1], [], []>} : vector<256x16xbf16>, vector<16x128xbf16>, vector<256x128xf32> -> vector<256x128xf32>
    %58 = arith.addf %52, %57 : vector<256x128xf32>
    %59 = vector.extract_strided_slice %23 {offsets = [2, 0, 0], sizes = [16, 16, 16], strides = [1, 1, 1]} : vector<18x18x16xbf16> to vector<16x16x16xbf16>
    %60 = vector.shape_cast %59 : vector<16x16x16xbf16> to vector<256x16xbf16>
    %c6 = arith.constant 6 : index
    %c0_48 = arith.constant 0 : index
    %c0_49 = arith.constant 0 : index
    %61 = vector.load %arg5[%c6, %c0_48, %c0_49] : memref<9x16x128xbf16, #tpu.memory_space<vmem>>, vector<1x16x128xbf16>
    %62 = vector.shape_cast %61 : vector<1x16x128xbf16> to vector<16x128xbf16>
    %cst_50 = arith.constant dense<0.000000e+00> : vector<256x128xf32>
    %63 = tpu.matmul %60, %62, %cst_50 {dimension_numbers = #tpu.dot_dimension_numbers<[1], [0], [0], [1], [0, 0, 1, 1], [], []>} : vector<256x16xbf16>, vector<16x128xbf16>, vector<256x128xf32> -> vector<256x128xf32>
    %64 = arith.addf %58, %63 : vector<256x128xf32>
    %65 = vector.extract_strided_slice %23 {offsets = [2, 1, 0], sizes = [16, 16, 16], strides = [1, 1, 1]} : vector<18x18x16xbf16> to vector<16x16x16xbf16>
    %66 = vector.shape_cast %65 : vector<16x16x16xbf16> to vector<256x16xbf16>
    %c7 = arith.constant 7 : index
    %c0_51 = arith.constant 0 : index
    %c0_52 = arith.constant 0 : index
    %67 = vector.load %arg5[%c7, %c0_51, %c0_52] : memref<9x16x128xbf16, #tpu.memory_space<vmem>>, vector<1x16x128xbf16>
    %68 = vector.shape_cast %67 : vector<1x16x128xbf16> to vector<16x128xbf16>
    %cst_53 = arith.constant dense<0.000000e+00> : vector<256x128xf32>
    %69 = tpu.matmul %66, %68, %cst_53 {dimension_numbers = #tpu.dot_dimension_numbers<[1], [0], [0], [1], [0, 0, 1, 1], [], []>} : vector<256x16xbf16>, vector<16x128xbf16>, vector<256x128xf32> -> vector<256x128xf32>
    %70 = arith.addf %64, %69 : vector<256x128xf32>
    %71 = vector.extract_strided_slice %23 {offsets = [2, 2, 0], sizes = [16, 16, 16], strides = [1, 1, 1]} : vector<18x18x16xbf16> to vector<16x16x16xbf16>
    %72 = vector.shape_cast %71 : vector<16x16x16xbf16> to vector<256x16xbf16>
    %c8 = arith.constant 8 : index
    %c0_54 = arith.constant 0 : index
    %c0_55 = arith.constant 0 : index
    %73 = vector.load %arg5[%c8, %c0_54, %c0_55] : memref<9x16x128xbf16, #tpu.memory_space<vmem>>, vector<1x16x128xbf16>
    %74 = vector.shape_cast %73 : vector<1x16x128xbf16> to vector<16x128xbf16>
    %cst_56 = arith.constant dense<0.000000e+00> : vector<256x128xf32>
    %75 = tpu.matmul %72, %74, %cst_56 {dimension_numbers = #tpu.dot_dimension_numbers<[1], [0], [0], [1], [0, 0, 1, 1], [], []>} : vector<256x16xbf16>, vector<16x128xbf16>, vector<256x128xf32> -> vector<256x128xf32>
    %76 = arith.addf %70, %75 : vector<256x128xf32>
    %cst_57 = arith.constant dense<0.000000e+00> : vector<128xf32>
    %77 = vector.multi_reduction <add>, %76, %cst_57 [0] : vector<256x128xf32> to vector<128xf32>
    %78 = vector.shape_cast %77 : vector<128xf32> to vector<1x128xf32>
    %79 = arith.mulf %76, %76 : vector<256x128xf32>
    %cst_58 = arith.constant dense<0.000000e+00> : vector<128xf32>
    %80 = vector.multi_reduction <add>, %79, %cst_58 [0] : vector<256x128xf32> to vector<128xf32>
    %81 = vector.shape_cast %80 : vector<128xf32> to vector<1x128xf32>
    %82 = tpu.concatenate %78, %81 in 0 : vector<1x128xf32>, vector<1x128xf32> -> vector<2x128xf32>
    %c0_59 = arith.constant 0 : index
    %c0_60 = arith.constant 0 : index
    %c0_61 = arith.constant 0 : index
    %c0_62 = arith.constant 0 : index
    %83 = vector.load %arg7[%c0_59, %c0_60, %c0_61, %c0_62] : memref<1x1x2x128xf32, #tpu.memory_space<vmem>>, vector<1x1x2x128xf32>
    %84 = vector.shape_cast %83 : vector<1x1x2x128xf32> to vector<2x128xf32>
    %85 = vector.shape_cast %82 : vector<2x128xf32> to vector<1x1x2x128xf32>
    tpu.vector_store %arg7[%c0_59, %c0_60, %c0_61, %c0_62], %85 {strides = array<i32>} : memref<1x1x2x128xf32, #tpu.memory_space<vmem>>, vector<1x1x2x128xf32>,
    %86 = vector.shape_cast %76 : vector<256x128xf32> to vector<16x16x128xf32>
    %87 = arith.truncf %86 : vector<16x16x128xf32> to vector<16x16x128xbf16>
    %c0_63 = arith.constant 0 : index
    %c0_64 = arith.constant 0 : index
    %c0_65 = arith.constant 0 : index
    %c0_66 = arith.constant 0 : index
    %88 = vector.load %arg6[%c0_63, %c0_64, %c0_65, %c0_66] : memref<1x16x16x128xbf16, #tpu.memory_space<vmem>>, vector<1x16x16x128xbf16>
    %89 = vector.shape_cast %88 : vector<1x16x16x128xbf16> to vector<16x16x128xbf16>
    %90 = vector.shape_cast %87 : vector<16x16x128xbf16> to vector<1x16x16x128xbf16>
    tpu.vector_store %arg6[%c0_63, %c0_64, %c0_65, %c0_66], %90 {strides = array<i32>} : memref<1x16x16x128xbf16, #tpu.memory_space<vmem>>, vector<1x16x16x128xbf16>,
    return
  }
  func.func @transform_0(%arg0: i32, %arg1: i32) -> (i32, i32, i32, i32) {
    %c16_i32 = arith.constant 16 : i32
    %0 = arith.muli %arg1, %c16_i32 : i32
    %c1_i32 = arith.constant 1 : i32
    %1 = arith.subi %0, %c1_i32 : i32
    %c0_i32 = arith.constant 0 : i32
    %2 = arith.maxsi %1, %c0_i32 : i32
    %c0_i32_0 = arith.constant 0 : i32
    %c0_i32_1 = arith.constant 0 : i32
    %c0_i32_2 = arith.constant 0 : i32
    return %arg0, %2, %c0_i32_0, %c0_i32_1 : i32, i32, i32, i32
  }
  func.func @transform_1(%arg0: i32, %arg1: i32) -> (i32, i32, i32, i32) {
    %c0_i32 = arith.constant 0 : i32
    %c0_i32_0 = arith.constant 0 : i32
    %c0_i32_1 = arith.constant 0 : i32
    return %arg0, %arg1, %c0_i32, %c0_i32_0 : i32, i32, i32, i32
  }
  func.func @transform_2(%arg0: i32, %arg1: i32) -> (i32, i32, i32, i32) {
    %c1_i32 = arith.constant 1 : i32
    %0 = arith.addi %arg1, %c1_i32 : i32
    %c16_i32 = arith.constant 16 : i32
    %1 = arith.muli %0, %c16_i32 : i32
    %c15_i32 = arith.constant 15 : i32
    %2 = arith.minsi %1, %c15_i32 : i32
    %c0_i32 = arith.constant 0 : i32
    %c0_i32_0 = arith.constant 0 : i32
    %c0_i32_1 = arith.constant 0 : i32
    return %arg0, %2, %c0_i32, %c0_i32_0 : i32, i32, i32, i32
  }
  func.func @transform_3(%arg0: i32, %arg1: i32) -> (i32, i32, i32) {
    %c0_i32 = arith.constant 0 : i32
    %c0_i32_0 = arith.constant 0 : i32
    %c0_i32_1 = arith.constant 0 : i32
    %c0_i32_2 = arith.constant 0 : i32
    return %c0_i32, %c0_i32_0, %c0_i32_1 : i32, i32, i32
  }
  func.func @transform_4(%arg0: i32, %arg1: i32) -> (i32, i32, i32, i32) {
    %c0_i32 = arith.constant 0 : i32
    %c0_i32_0 = arith.constant 0 : i32
    %c0_i32_1 = arith.constant 0 : i32
    return %arg0, %arg1, %c0_i32, %c0_i32_0 : i32, i32, i32, i32
  }
  func.func @transform_5(%arg0: i32, %arg1: i32) -> (i32, i32, i32, i32) {
    %c0_i32 = arith.constant 0 : i32
    %c0_i32_0 = arith.constant 0 : i32
    %c0_i32_1 = arith.constant 0 : i32
    return %arg0, %arg1, %c0_i32, %c0_i32_0 : i32, i32, i32, i32
  }
}

module attributes {stable_mosaic.version = 11 : i64} {
  func.func @_conv2_kernel(%arg0: i32, %arg1: i32, %arg2: memref<1x1x16x128xbf16, #tpu.memory_space<vmem>>, %arg3: memref<1x16x16x128xbf16, #tpu.memory_space<vmem>>, %arg4: memref<1x1x16x128xbf16, #tpu.memory_space<vmem>>, %arg5: memref<2x128xf32, #tpu.memory_space<vmem>>, %arg6: memref<9x128x128xbf16, #tpu.memory_space<vmem>>, %arg7: memref<1x16x16x128xbf16, #tpu.memory_space<vmem>>, %arg8: memref<1x1x2x128xf32, #tpu.memory_space<vmem>>, %arg9: memref<18x18x128xf32, #tpu.memory_space<vmem>>) attributes {dimension_semantics = [#tpu.dimension_semantics<parallel>, #tpu.dimension_semantics<parallel>], iteration_bounds = array<i64: 2, 1>, scalar_prefetch = 0 : i64, scratch_operands = 1 : i64, tpu.core_type = #tpu.core_type<tc>, window_params = [{transform_indices = @transform_0, window_bounds = array<i64: 1, 1, 16, 128>}, {transform_indices = @transform_1, window_bounds = array<i64: 1, 16, 16, 128>}, {transform_indices = @transform_2, window_bounds = array<i64: 1, 1, 16, 128>}, {pipeline_mode = #tpu.pipeline_mode<synchronous>, transform_indices = @transform_3, window_bounds = array<i64: 2, 128>}, {pipeline_mode = #tpu.pipeline_mode<synchronous>, transform_indices = @transform_4, window_bounds = array<i64: 9, 128, 128>}, {transform_indices = @transform_5, window_bounds = array<i64: 1, 16, 16, 128>}, {transform_indices = @transform_6, window_bounds = array<i64: 1, 1, 2, 128>}]} {
    %c0 = arith.constant 0 : index
    %c0_0 = arith.constant 0 : index
    %0 = vector.load %arg5[%c0, %c0_0] : memref<2x128xf32, #tpu.memory_space<vmem>>, vector<1x128xf32>
    %1 = vector.shape_cast %0 : vector<1x128xf32> to vector<1x1x128xf32>
    %c1 = arith.constant 1 : index
    %c0_1 = arith.constant 0 : index
    %2 = vector.load %arg5[%c1, %c0_1] : memref<2x128xf32, #tpu.memory_space<vmem>>, vector<1x128xf32>
    %3 = vector.shape_cast %2 : vector<1x128xf32> to vector<1x1x128xf32>
    %cst = arith.constant 0.000000e+00 : f32
    %4 = vector.broadcast %cst : f32 to vector<18x1x128xf32>
    %c0_2 = arith.constant 0 : index
    %c0_3 = arith.constant 0 : index
    %c0_4 = arith.constant 0 : index
    %5 = vector.load %arg9[%c0_2, %c0_3, %c0_4] : memref<18x18x128xf32, #tpu.memory_space<vmem>>, vector<18x1x128xf32>
    tpu.vector_store %arg9[%c0_2, %c0_3, %c0_4], %4 {strides = array<i32>} : memref<18x18x128xf32, #tpu.memory_space<vmem>>, vector<18x1x128xf32>,
    %c0_5 = arith.constant 0 : index
    %c17 = arith.constant 17 : index
    %c0_6 = arith.constant 0 : index
    %6 = vector.load %arg9[%c0_5, %c17, %c0_6] : memref<18x18x128xf32, #tpu.memory_space<vmem>>, vector<18x1x128xf32>
    tpu.vector_store %arg9[%c0_5, %c17, %c0_6], %4 {strides = array<i32>} : memref<18x18x128xf32, #tpu.memory_space<vmem>>, vector<18x1x128xf32>,
    %c0_7 = arith.constant 0 : index
    %c0_8 = arith.constant 0 : index
    %c0_9 = arith.constant 0 : index
    %c0_10 = arith.constant 0 : index
    %7 = vector.load %arg2[%c0_7, %c0_8, %c0_9, %c0_10] : memref<1x1x16x128xbf16, #tpu.memory_space<vmem>>, vector<1x1x16x128xbf16>
    %8 = vector.shape_cast %7 : vector<1x1x16x128xbf16> to vector<1x16x128xbf16>
    %9 = arith.extf %8 : vector<1x16x128xbf16> to vector<1x16x128xf32>
    %10 = vector.broadcast %1 : vector<1x1x128xf32> to vector<1x16x128xf32>
    %11 = arith.mulf %9, %10 : vector<1x16x128xf32>
    %12 = vector.broadcast %3 : vector<1x1x128xf32> to vector<1x16x128xf32>
    %13 = arith.addf %11, %12 : vector<1x16x128xf32>
    %cst_11 = arith.constant 0.000000e+00 : f32
    %14 = vector.broadcast %cst_11 : f32 to vector<1x16x128xf32>
    %15 = arith.maximumf %13, %14 : vector<1x16x128xf32>
    %c0_i32 = arith.constant 0 : i32
    %16 = arith.cmpi sgt, %arg1, %c0_i32 : i32
    %17 = arith.extui %16 : i1 to i32
    %18 = arith.sitofp %17 : i32 to f32
    %19 = vector.broadcast %18 : f32 to vector<1x16x128xf32>
    %20 = arith.mulf %15, %19 : vector<1x16x128xf32>
    %c0_12 = arith.constant 0 : index
    %c1_13 = arith.constant 1 : index
    %c0_14 = arith.constant 0 : index
    %21 = vector.load %arg9[%c0_12, %c1_13, %c0_14] : memref<18x18x128xf32, #tpu.memory_space<vmem>>, vector<1x16x128xf32>
    tpu.vector_store %arg9[%c0_12, %c1_13, %c0_14], %20 {strides = array<i32>} : memref<18x18x128xf32, #tpu.memory_space<vmem>>, vector<1x16x128xf32>,
    %c0_15 = arith.constant 0 : index
    %c0_16 = arith.constant 0 : index
    %c0_17 = arith.constant 0 : index
    %c0_18 = arith.constant 0 : index
    %22 = vector.load %arg3[%c0_15, %c0_16, %c0_17, %c0_18] : memref<1x16x16x128xbf16, #tpu.memory_space<vmem>>, vector<1x16x16x128xbf16>
    %23 = vector.shape_cast %22 : vector<1x16x16x128xbf16> to vector<16x16x128xbf16>
    %24 = arith.extf %23 : vector<16x16x128xbf16> to vector<16x16x128xf32>
    %25 = vector.broadcast %1 : vector<1x1x128xf32> to vector<16x16x128xf32>
    %26 = arith.mulf %24, %25 : vector<16x16x128xf32>
    %27 = vector.broadcast %3 : vector<1x1x128xf32> to vector<16x16x128xf32>
    %28 = arith.addf %26, %27 : vector<16x16x128xf32>
    %cst_19 = arith.constant 0.000000e+00 : f32
    %29 = vector.broadcast %cst_19 : f32 to vector<16x16x128xf32>
    %30 = arith.maximumf %28, %29 : vector<16x16x128xf32>
    %c1_20 = arith.constant 1 : index
    %c1_21 = arith.constant 1 : index
    %c0_22 = arith.constant 0 : index
    %31 = vector.load %arg9[%c1_20, %c1_21, %c0_22] : memref<18x18x128xf32, #tpu.memory_space<vmem>>, vector<16x16x128xf32>
    tpu.vector_store %arg9[%c1_20, %c1_21, %c0_22], %30 {strides = array<i32>} : memref<18x18x128xf32, #tpu.memory_space<vmem>>, vector<16x16x128xf32>,
    %c0_23 = arith.constant 0 : index
    %c0_24 = arith.constant 0 : index
    %c0_25 = arith.constant 0 : index
    %c0_26 = arith.constant 0 : index
    %32 = vector.load %arg4[%c0_23, %c0_24, %c0_25, %c0_26] : memref<1x1x16x128xbf16, #tpu.memory_space<vmem>>, vector<1x1x16x128xbf16>
    %33 = vector.shape_cast %32 : vector<1x1x16x128xbf16> to vector<1x16x128xbf16>
    %34 = arith.extf %33 : vector<1x16x128xbf16> to vector<1x16x128xf32>
    %35 = vector.broadcast %1 : vector<1x1x128xf32> to vector<1x16x128xf32>
    %36 = arith.mulf %34, %35 : vector<1x16x128xf32>
    %37 = vector.broadcast %3 : vector<1x1x128xf32> to vector<1x16x128xf32>
    %38 = arith.addf %36, %37 : vector<1x16x128xf32>
    %cst_27 = arith.constant 0.000000e+00 : f32
    %39 = vector.broadcast %cst_27 : f32 to vector<1x16x128xf32>
    %40 = arith.maximumf %38, %39 : vector<1x16x128xf32>
    %c0_i32_28 = arith.constant 0 : i32
    %41 = arith.cmpi slt, %arg1, %c0_i32_28 : i32
    %42 = arith.extui %41 : i1 to i32
    %43 = arith.sitofp %42 : i32 to f32
    %44 = vector.broadcast %43 : f32 to vector<1x16x128xf32>
    %45 = arith.mulf %40, %44 : vector<1x16x128xf32>
    %c17_29 = arith.constant 17 : index
    %c1_30 = arith.constant 1 : index
    %c0_31 = arith.constant 0 : index
    %46 = vector.load %arg9[%c17_29, %c1_30, %c0_31] : memref<18x18x128xf32, #tpu.memory_space<vmem>>, vector<1x16x128xf32>
    tpu.vector_store %arg9[%c17_29, %c1_30, %c0_31], %45 {strides = array<i32>} : memref<18x18x128xf32, #tpu.memory_space<vmem>>, vector<1x16x128xf32>,
    %c0_32 = arith.constant 0 : index
    %c0_33 = arith.constant 0 : index
    %c0_34 = arith.constant 0 : index
    %47 = vector.load %arg9[%c0_32, %c0_33, %c0_34] : memref<18x18x128xf32, #tpu.memory_space<vmem>>, vector<18x18x128xf32>
    %48 = arith.truncf %47 : vector<18x18x128xf32> to vector<18x18x128xbf16>
    %49 = vector.extract_strided_slice %48 {offsets = [0, 0, 0], sizes = [16, 16, 128], strides = [1, 1, 1]} : vector<18x18x128xbf16> to vector<16x16x128xbf16>
    %50 = vector.shape_cast %49 : vector<16x16x128xbf16> to vector<256x128xbf16>
    %c0_35 = arith.constant 0 : index
    %c0_36 = arith.constant 0 : index
    %c0_37 = arith.constant 0 : index
    %51 = vector.load %arg6[%c0_35, %c0_36, %c0_37] : memref<9x128x128xbf16, #tpu.memory_space<vmem>>, vector<1x128x128xbf16>
    %52 = vector.shape_cast %51 : vector<1x128x128xbf16> to vector<128x128xbf16>
    %cst_38 = arith.constant dense<0.000000e+00> : vector<256x128xf32>
    %53 = tpu.matmul %50, %52, %cst_38 {dimension_numbers = #tpu.dot_dimension_numbers<[1], [0], [0], [1], [0, 0, 1, 1], [], []>} : vector<256x128xbf16>, vector<128x128xbf16>, vector<256x128xf32> -> vector<256x128xf32>
    %54 = vector.extract_strided_slice %48 {offsets = [0, 1, 0], sizes = [16, 16, 128], strides = [1, 1, 1]} : vector<18x18x128xbf16> to vector<16x16x128xbf16>
    %55 = vector.shape_cast %54 : vector<16x16x128xbf16> to vector<256x128xbf16>
    %c1_39 = arith.constant 1 : index
    %c0_40 = arith.constant 0 : index
    %c0_41 = arith.constant 0 : index
    %56 = vector.load %arg6[%c1_39, %c0_40, %c0_41] : memref<9x128x128xbf16, #tpu.memory_space<vmem>>, vector<1x128x128xbf16>
    %57 = vector.shape_cast %56 : vector<1x128x128xbf16> to vector<128x128xbf16>
    %cst_42 = arith.constant dense<0.000000e+00> : vector<256x128xf32>
    %58 = tpu.matmul %55, %57, %cst_42 {dimension_numbers = #tpu.dot_dimension_numbers<[1], [0], [0], [1], [0, 0, 1, 1], [], []>} : vector<256x128xbf16>, vector<128x128xbf16>, vector<256x128xf32> -> vector<256x128xf32>
    %59 = arith.addf %53, %58 : vector<256x128xf32>
    %60 = vector.extract_strided_slice %48 {offsets = [0, 2, 0], sizes = [16, 16, 128], strides = [1, 1, 1]} : vector<18x18x128xbf16> to vector<16x16x128xbf16>
    %61 = vector.shape_cast %60 : vector<16x16x128xbf16> to vector<256x128xbf16>
    %c2 = arith.constant 2 : index
    %c0_43 = arith.constant 0 : index
    %c0_44 = arith.constant 0 : index
    %62 = vector.load %arg6[%c2, %c0_43, %c0_44] : memref<9x128x128xbf16, #tpu.memory_space<vmem>>, vector<1x128x128xbf16>
    %63 = vector.shape_cast %62 : vector<1x128x128xbf16> to vector<128x128xbf16>
    %cst_45 = arith.constant dense<0.000000e+00> : vector<256x128xf32>
    %64 = tpu.matmul %61, %63, %cst_45 {dimension_numbers = #tpu.dot_dimension_numbers<[1], [0], [0], [1], [0, 0, 1, 1], [], []>} : vector<256x128xbf16>, vector<128x128xbf16>, vector<256x128xf32> -> vector<256x128xf32>
    %65 = arith.addf %59, %64 : vector<256x128xf32>
    %66 = vector.extract_strided_slice %48 {offsets = [1, 0, 0], sizes = [16, 16, 128], strides = [1, 1, 1]} : vector<18x18x128xbf16> to vector<16x16x128xbf16>
    %67 = vector.shape_cast %66 : vector<16x16x128xbf16> to vector<256x128xbf16>
    %c3 = arith.constant 3 : index
    %c0_46 = arith.constant 0 : index
    %c0_47 = arith.constant 0 : index
    %68 = vector.load %arg6[%c3, %c0_46, %c0_47] : memref<9x128x128xbf16, #tpu.memory_space<vmem>>, vector<1x128x128xbf16>
    %69 = vector.shape_cast %68 : vector<1x128x128xbf16> to vector<128x128xbf16>
    %cst_48 = arith.constant dense<0.000000e+00> : vector<256x128xf32>
    %70 = tpu.matmul %67, %69, %cst_48 {dimension_numbers = #tpu.dot_dimension_numbers<[1], [0], [0], [1], [0, 0, 1, 1], [], []>} : vector<256x128xbf16>, vector<128x128xbf16>, vector<256x128xf32> -> vector<256x128xf32>
    %71 = arith.addf %65, %70 : vector<256x128xf32>
    %72 = vector.extract_strided_slice %48 {offsets = [1, 1, 0], sizes = [16, 16, 128], strides = [1, 1, 1]} : vector<18x18x128xbf16> to vector<16x16x128xbf16>
    %73 = vector.shape_cast %72 : vector<16x16x128xbf16> to vector<256x128xbf16>
    %c4 = arith.constant 4 : index
    %c0_49 = arith.constant 0 : index
    %c0_50 = arith.constant 0 : index
    %74 = vector.load %arg6[%c4, %c0_49, %c0_50] : memref<9x128x128xbf16, #tpu.memory_space<vmem>>, vector<1x128x128xbf16>
    %75 = vector.shape_cast %74 : vector<1x128x128xbf16> to vector<128x128xbf16>
    %cst_51 = arith.constant dense<0.000000e+00> : vector<256x128xf32>
    %76 = tpu.matmul %73, %75, %cst_51 {dimension_numbers = #tpu.dot_dimension_numbers<[1], [0], [0], [1], [0, 0, 1, 1], [], []>} : vector<256x128xbf16>, vector<128x128xbf16>, vector<256x128xf32> -> vector<256x128xf32>
    %77 = arith.addf %71, %76 : vector<256x128xf32>
    %78 = vector.extract_strided_slice %48 {offsets = [1, 2, 0], sizes = [16, 16, 128], strides = [1, 1, 1]} : vector<18x18x128xbf16> to vector<16x16x128xbf16>
    %79 = vector.shape_cast %78 : vector<16x16x128xbf16> to vector<256x128xbf16>
    %c5 = arith.constant 5 : index
    %c0_52 = arith.constant 0 : index
    %c0_53 = arith.constant 0 : index
    %80 = vector.load %arg6[%c5, %c0_52, %c0_53] : memref<9x128x128xbf16, #tpu.memory_space<vmem>>, vector<1x128x128xbf16>
    %81 = vector.shape_cast %80 : vector<1x128x128xbf16> to vector<128x128xbf16>
    %cst_54 = arith.constant dense<0.000000e+00> : vector<256x128xf32>
    %82 = tpu.matmul %79, %81, %cst_54 {dimension_numbers = #tpu.dot_dimension_numbers<[1], [0], [0], [1], [0, 0, 1, 1], [], []>} : vector<256x128xbf16>, vector<128x128xbf16>, vector<256x128xf32> -> vector<256x128xf32>
    %83 = arith.addf %77, %82 : vector<256x128xf32>
    %84 = vector.extract_strided_slice %48 {offsets = [2, 0, 0], sizes = [16, 16, 128], strides = [1, 1, 1]} : vector<18x18x128xbf16> to vector<16x16x128xbf16>
    %85 = vector.shape_cast %84 : vector<16x16x128xbf16> to vector<256x128xbf16>
    %c6 = arith.constant 6 : index
    %c0_55 = arith.constant 0 : index
    %c0_56 = arith.constant 0 : index
    %86 = vector.load %arg6[%c6, %c0_55, %c0_56] : memref<9x128x128xbf16, #tpu.memory_space<vmem>>, vector<1x128x128xbf16>
    %87 = vector.shape_cast %86 : vector<1x128x128xbf16> to vector<128x128xbf16>
    %cst_57 = arith.constant dense<0.000000e+00> : vector<256x128xf32>
    %88 = tpu.matmul %85, %87, %cst_57 {dimension_numbers = #tpu.dot_dimension_numbers<[1], [0], [0], [1], [0, 0, 1, 1], [], []>} : vector<256x128xbf16>, vector<128x128xbf16>, vector<256x128xf32> -> vector<256x128xf32>
    %89 = arith.addf %83, %88 : vector<256x128xf32>
    %90 = vector.extract_strided_slice %48 {offsets = [2, 1, 0], sizes = [16, 16, 128], strides = [1, 1, 1]} : vector<18x18x128xbf16> to vector<16x16x128xbf16>
    %91 = vector.shape_cast %90 : vector<16x16x128xbf16> to vector<256x128xbf16>
    %c7 = arith.constant 7 : index
    %c0_58 = arith.constant 0 : index
    %c0_59 = arith.constant 0 : index
    %92 = vector.load %arg6[%c7, %c0_58, %c0_59] : memref<9x128x128xbf16, #tpu.memory_space<vmem>>, vector<1x128x128xbf16>
    %93 = vector.shape_cast %92 : vector<1x128x128xbf16> to vector<128x128xbf16>
    %cst_60 = arith.constant dense<0.000000e+00> : vector<256x128xf32>
    %94 = tpu.matmul %91, %93, %cst_60 {dimension_numbers = #tpu.dot_dimension_numbers<[1], [0], [0], [1], [0, 0, 1, 1], [], []>} : vector<256x128xbf16>, vector<128x128xbf16>, vector<256x128xf32> -> vector<256x128xf32>
    %95 = arith.addf %89, %94 : vector<256x128xf32>
    %96 = vector.extract_strided_slice %48 {offsets = [2, 2, 0], sizes = [16, 16, 128], strides = [1, 1, 1]} : vector<18x18x128xbf16> to vector<16x16x128xbf16>
    %97 = vector.shape_cast %96 : vector<16x16x128xbf16> to vector<256x128xbf16>
    %c8 = arith.constant 8 : index
    %c0_61 = arith.constant 0 : index
    %c0_62 = arith.constant 0 : index
    %98 = vector.load %arg6[%c8, %c0_61, %c0_62] : memref<9x128x128xbf16, #tpu.memory_space<vmem>>, vector<1x128x128xbf16>
    %99 = vector.shape_cast %98 : vector<1x128x128xbf16> to vector<128x128xbf16>
    %cst_63 = arith.constant dense<0.000000e+00> : vector<256x128xf32>
    %100 = tpu.matmul %97, %99, %cst_63 {dimension_numbers = #tpu.dot_dimension_numbers<[1], [0], [0], [1], [0, 0, 1, 1], [], []>} : vector<256x128xbf16>, vector<128x128xbf16>, vector<256x128xf32> -> vector<256x128xf32>
    %101 = arith.addf %95, %100 : vector<256x128xf32>
    %cst_64 = arith.constant dense<0.000000e+00> : vector<128xf32>
    %102 = vector.multi_reduction <add>, %101, %cst_64 [0] : vector<256x128xf32> to vector<128xf32>
    %103 = vector.shape_cast %102 : vector<128xf32> to vector<1x128xf32>
    %104 = arith.mulf %101, %101 : vector<256x128xf32>
    %cst_65 = arith.constant dense<0.000000e+00> : vector<128xf32>
    %105 = vector.multi_reduction <add>, %104, %cst_65 [0] : vector<256x128xf32> to vector<128xf32>
    %106 = vector.shape_cast %105 : vector<128xf32> to vector<1x128xf32>
    %107 = tpu.concatenate %103, %106 in 0 : vector<1x128xf32>, vector<1x128xf32> -> vector<2x128xf32>
    %c0_66 = arith.constant 0 : index
    %c0_67 = arith.constant 0 : index
    %c0_68 = arith.constant 0 : index
    %c0_69 = arith.constant 0 : index
    %108 = vector.load %arg8[%c0_66, %c0_67, %c0_68, %c0_69] : memref<1x1x2x128xf32, #tpu.memory_space<vmem>>, vector<1x1x2x128xf32>
    %109 = vector.shape_cast %108 : vector<1x1x2x128xf32> to vector<2x128xf32>
    %110 = vector.shape_cast %107 : vector<2x128xf32> to vector<1x1x2x128xf32>
    tpu.vector_store %arg8[%c0_66, %c0_67, %c0_68, %c0_69], %110 {strides = array<i32>} : memref<1x1x2x128xf32, #tpu.memory_space<vmem>>, vector<1x1x2x128xf32>,
    %111 = vector.shape_cast %101 : vector<256x128xf32> to vector<16x16x128xf32>
    %112 = arith.truncf %111 : vector<16x16x128xf32> to vector<16x16x128xbf16>
    %c0_70 = arith.constant 0 : index
    %c0_71 = arith.constant 0 : index
    %c0_72 = arith.constant 0 : index
    %c0_73 = arith.constant 0 : index
    %113 = vector.load %arg7[%c0_70, %c0_71, %c0_72, %c0_73] : memref<1x16x16x128xbf16, #tpu.memory_space<vmem>>, vector<1x16x16x128xbf16>
    %114 = vector.shape_cast %113 : vector<1x16x16x128xbf16> to vector<16x16x128xbf16>
    %115 = vector.shape_cast %112 : vector<16x16x128xbf16> to vector<1x16x16x128xbf16>
    tpu.vector_store %arg7[%c0_70, %c0_71, %c0_72, %c0_73], %115 {strides = array<i32>} : memref<1x16x16x128xbf16, #tpu.memory_space<vmem>>, vector<1x16x16x128xbf16>,
    return
  }
  func.func @transform_0(%arg0: i32, %arg1: i32) -> (i32, i32, i32, i32) {
    %c16_i32 = arith.constant 16 : i32
    %0 = arith.muli %arg1, %c16_i32 : i32
    %c1_i32 = arith.constant 1 : i32
    %1 = arith.subi %0, %c1_i32 : i32
    %c0_i32 = arith.constant 0 : i32
    %2 = arith.maxsi %1, %c0_i32 : i32
    %c0_i32_0 = arith.constant 0 : i32
    %c0_i32_1 = arith.constant 0 : i32
    %c0_i32_2 = arith.constant 0 : i32
    return %arg0, %2, %c0_i32_0, %c0_i32_1 : i32, i32, i32, i32
  }
  func.func @transform_1(%arg0: i32, %arg1: i32) -> (i32, i32, i32, i32) {
    %c0_i32 = arith.constant 0 : i32
    %c0_i32_0 = arith.constant 0 : i32
    %c0_i32_1 = arith.constant 0 : i32
    return %arg0, %arg1, %c0_i32, %c0_i32_0 : i32, i32, i32, i32
  }
  func.func @transform_2(%arg0: i32, %arg1: i32) -> (i32, i32, i32, i32) {
    %c1_i32 = arith.constant 1 : i32
    %0 = arith.addi %arg1, %c1_i32 : i32
    %c16_i32 = arith.constant 16 : i32
    %1 = arith.muli %0, %c16_i32 : i32
    %c15_i32 = arith.constant 15 : i32
    %2 = arith.minsi %1, %c15_i32 : i32
    %c0_i32 = arith.constant 0 : i32
    %c0_i32_0 = arith.constant 0 : i32
    %c0_i32_1 = arith.constant 0 : i32
    return %arg0, %2, %c0_i32, %c0_i32_0 : i32, i32, i32, i32
  }
  func.func @transform_3(%arg0: i32, %arg1: i32) -> (i32, i32) {
    %c0_i32 = arith.constant 0 : i32
    %c0_i32_0 = arith.constant 0 : i32
    %c0_i32_1 = arith.constant 0 : i32
    return %c0_i32, %c0_i32_0 : i32, i32
  }
  func.func @transform_4(%arg0: i32, %arg1: i32) -> (i32, i32, i32) {
    %c0_i32 = arith.constant 0 : i32
    %c0_i32_0 = arith.constant 0 : i32
    %c0_i32_1 = arith.constant 0 : i32
    %c0_i32_2 = arith.constant 0 : i32
    return %c0_i32, %c0_i32_0, %c0_i32_1 : i32, i32, i32
  }
  func.func @transform_5(%arg0: i32, %arg1: i32) -> (i32, i32, i32, i32) {
    %c0_i32 = arith.constant 0 : i32
    %c0_i32_0 = arith.constant 0 : i32
    %c0_i32_1 = arith.constant 0 : i32
    return %arg0, %arg1, %c0_i32, %c0_i32_0 : i32, i32, i32, i32
  }
  func.func @transform_6(%arg0: i32, %arg1: i32) -> (i32, i32, i32, i32) {
    %c0_i32 = arith.constant 0 : i32
    %c0_i32_0 = arith.constant 0 : i32
    %c0_i32_1 = arith.constant 0 : i32
    return %arg0, %arg1, %c0_i32, %c0_i32_0 : i32, i32, i32, i32
  }
}

module attributes {stable_mosaic.version = 11 : i64} {
  func.func @_bn_relu_kernel(%arg0: i32, %arg1: i32, %arg2: memref<1x16x16x128xbf16, #tpu.memory_space<vmem>>, %arg3: memref<2x128xf32, #tpu.memory_space<vmem>>, %arg4: memref<1x16x16x8xf32, #tpu.memory_space<vmem>>) attributes {dimension_semantics = [#tpu.dimension_semantics<parallel>, #tpu.dimension_semantics<parallel>], iteration_bounds = array<i64: 2, 1>, scalar_prefetch = 0 : i64, scratch_operands = 0 : i64, tpu.core_type = #tpu.core_type<tc>, window_params = [{transform_indices = @transform_0, window_bounds = array<i64: 1, 16, 16, 128>}, {pipeline_mode = #tpu.pipeline_mode<synchronous>, transform_indices = @transform_1, window_bounds = array<i64: 2, 128>}, {transform_indices = @transform_2, window_bounds = array<i64: 1, 16, 16, 8>}]} {
    %c0 = arith.constant 0 : index
    %c0_0 = arith.constant 0 : index
    %0 = vector.load %arg3[%c0, %c0_0] : memref<2x128xf32, #tpu.memory_space<vmem>>, vector<1x128xf32>
    %1 = vector.shape_cast %0 : vector<1x128xf32> to vector<1x1x1x128xf32>
    %c1 = arith.constant 1 : index
    %c0_1 = arith.constant 0 : index
    %2 = vector.load %arg3[%c1, %c0_1] : memref<2x128xf32, #tpu.memory_space<vmem>>, vector<1x128xf32>
    %3 = vector.shape_cast %2 : vector<1x128xf32> to vector<1x1x1x128xf32>
    %c0_2 = arith.constant 0 : index
    %c0_3 = arith.constant 0 : index
    %c0_4 = arith.constant 0 : index
    %c0_5 = arith.constant 0 : index
    %4 = vector.load %arg2[%c0_2, %c0_3, %c0_4, %c0_5] : memref<1x16x16x128xbf16, #tpu.memory_space<vmem>>, vector<1x16x16x128xbf16>
    %5 = arith.extf %4 : vector<1x16x16x128xbf16> to vector<1x16x16x128xf32>
    %6 = vector.broadcast %1 : vector<1x1x1x128xf32> to vector<1x16x16x128xf32>
    %7 = arith.mulf %5, %6 : vector<1x16x16x128xf32>
    %8 = vector.broadcast %3 : vector<1x1x1x128xf32> to vector<1x16x16x128xf32>
    %9 = arith.addf %7, %8 : vector<1x16x16x128xf32>
    %cst = arith.constant 0.000000e+00 : f32
    %10 = vector.broadcast %cst : f32 to vector<1x16x16x128xf32>
    %11 = arith.maximumf %9, %10 : vector<1x16x16x128xf32>
    %12 = vector.extract_strided_slice %11 {offsets = [0, 0, 0, 0], sizes = [1, 16, 16, 8], strides = [1, 1, 1, 1]} : vector<1x16x16x128xf32> to vector<1x16x16x8xf32>
    %c0_6 = arith.constant 0 : index
    %c0_7 = arith.constant 0 : index
    %c0_8 = arith.constant 0 : index
    %c0_9 = arith.constant 0 : index
    %13 = vector.load %arg4[%c0_6, %c0_7, %c0_8, %c0_9] : memref<1x16x16x8xf32, #tpu.memory_space<vmem>>, vector<1x16x16x8xf32>
    tpu.vector_store %arg4[%c0_6, %c0_7, %c0_8, %c0_9], %12 {strides = array<i32>} : memref<1x16x16x8xf32, #tpu.memory_space<vmem>>, vector<1x16x16x8xf32>,
    return
  }
  func.func @transform_0(%arg0: i32, %arg1: i32) -> (i32, i32, i32, i32) {
    %c0_i32 = arith.constant 0 : i32
    %c0_i32_0 = arith.constant 0 : i32
    %c0_i32_1 = arith.constant 0 : i32
    return %arg0, %arg1, %c0_i32, %c0_i32_0 : i32, i32, i32, i32
  }
  func.func @transform_1(%arg0: i32, %arg1: i32) -> (i32, i32) {
    %c0_i32 = arith.constant 0 : i32
    %c0_i32_0 = arith.constant 0 : i32
    %c0_i32_1 = arith.constant 0 : i32
    return %c0_i32, %c0_i32_0 : i32, i32
  }
  func.func @transform_2(%arg0: i32, %arg1: i32) -> (i32, i32, i32, i32) {
    %c0_i32 = arith.constant 0 : i32
    %c0_i32_0 = arith.constant 0 : i32
    %c0_i32_1 = arith.constant 0 : i32
    return %arg0, %arg1, %c0_i32, %c0_i32_0 : i32, i32, i32, i32
  }
}

</mosaic_0001>

<llo_original>
// kernel: double_conv.5
$region0: #{double_conv.5}
  #allocation0 [shape = 'u32[]', space=smem, size = 0x4, offset = 0x4, fixed_abs, tag = 'smem constant byte address 0x4 - core index']
  #allocation1 [shape = 'u32[144,128]{1,0:T(1,128)}', space=vmem, size = 0x12000, scoped, tag = 'internal scratch']
  %s0 = inlined_call_operand.vmem [shape: bf16[2,16,16,128], index: 0, kind: input, shape index: {}]
  %s1 = inlined_call_operand.vmem [shape: f32[2,128], index: 1, kind: input, shape index: {}]
  %s2 = inlined_call_operand.vmem [shape: f32[2,16,16,8], index: 2, kind: output, shape index: {}]
  %s3 = sld [smem:[#allocation0]]
  $region41: #{double_conv.5} parent=0
    _
  %s5 = ssub.s32 1, %s3
  %s6 = scalar_select 0, %s5, %s3
  loop: start=0, step=1, limit=4
  $region2: #{double_conv.5} parent=0 // loop_pre_header
    _
  $region3: #{double_conv.5} parent=0 // loop_header
    %s8 = sphi 0, %s12
    %p9 = scmp.ge.s32.totalorder %s8, 4
    %s15 = sphi 0, %s27
    %s16 = sphi 0, %s23
    %s17 = sphi 0, %s15
    %s18 = sphi 0, %s16
    %s19 = sphi 0, %s17
    %s20 = sphi 0, %s18
    %s32 = sphi 0, %s34
    %s35 = sphi 0, %s32
    %s36 = sphi 0, %s35
    %s52 = sphi 0, %s36
    %s56 = sphi 0, %s56
    %s58 = sphi 0, %s56
    %s59 = sphi 0, %s58
    %s73 = sphi 0, %s59
    %s81 = sphi 0, %s83
    %s84 = sphi 0, %s81
    %s85 = sphi 0, %s84
    %s101 = sphi 0, %s85
  $region4: #{double_conv.5} parent=0 // loop_header_branch
    %11 = sbr.rel (%p9) target = $region8
  $region5: #{double_conv.5} parent=0 // loop_body
    %s13 = ssub.s32 %s8, 1
    %s14 = ssub.s32 %s8, 2
    %s21 = sadd.s32 1, %s16
    %p22 = scmp.ge.s32.totalorder %s21, 1
    %s23 = scalar_select %p22, 0, %s21
    %s24 = sadd.s32 1, %s15
    %s25 = scalar_select %p22, %s24, %s15
    %p26 = scmp.ge.s32.totalorder %s25, 2
    %s27 = scalar_select %p26, 0, %s25
    %s28 = ssub.s32 %s15, %s27
    %s29 = ssub.s32 %s16, %s23
    %s30 = sor.u32 %s28, %s29
    %p31 = scmp.eq.s32.totalorder %s30, 0
    %s33 = sadd.s32 %s32, 1
    %s34 = scalar_select %p31, %s32, %s33
    %p37 = pneg %p31
    %p38 = scmp.eq.s32.totalorder %s8, 1
    %p39 = por %p37, %p38
    %p40 = scmp.ne.s32.totalorder %s32, %s35
    %p41 = scmp.eq.s32.totalorder %s8, 0
    %p42 = por %p40, %p41
    %p43 = scmp.ne.s32.totalorder %s32, %s35
    %p44 = scmp.eq.s32.totalorder %s13, 1
    %p45 = por %p43, %p44
    %p46 = scmp.ne.s32.totalorder %s35, %s36
    %p47 = scmp.eq.s32.totalorder %s13, 0
    %p48 = por %p46, %p47
    %p49 = scmp.ne.s32.totalorder %s35, %s36
    %p50 = scmp.eq.s32.totalorder %s14, 1
    %p51 = por %p49, %p50
    %p53 = scmp.ne.s32.totalorder %s36, %s52
    %p54 = scmp.eq.s32.totalorder %s14, 0
    %p55 = por %p53, %p54
    %s57 = sadd.s32 %s56, 1
    %p60 = scmp.eq.s32.totalorder %s8, 1
    %p61 = scmp.ne.s32.totalorder %s56, %s58
    %p62 = scmp.eq.s32.totalorder %s8, 0
    %p63 = por %p61, %p62
    %p64 = scmp.ne.s32.totalorder %s56, %s58
    %p65 = scmp.eq.s32.totalorder %s13, 1
    %p66 = por %p64, %p65
    %p67 = scmp.ne.s32.totalorder %s58, %s59
    %p68 = scmp.eq.s32.totalorder %s13, 0
    %p69 = por %p67, %p68
    %p70 = scmp.ne.s32.totalorder %s58, %s59
    %p71 = scmp.eq.s32.totalorder %s14, 1
    %p72 = por %p70, %p71
    %p74 = scmp.ne.s32.totalorder %s59, %s73
    %p75 = scmp.eq.s32.totalorder %s14, 0
    %p76 = por %p74, %p75
    %s77 = ssub.s32 %s15, %s27
    %s78 = ssub.s32 %s16, %s23
    %s79 = sor.u32 %s77, %s78
    %p80 = scmp.eq.s32.totalorder %s79, 0
    %s82 = sadd.s32 %s81, 1
    %s83 = scalar_select %p80, %s81, %s82
    %p86 = pneg %p80
    %p87 = scmp.eq.s32.totalorder %s8, 1
    %p88 = por %p86, %p87
    %p89 = scmp.ne.s32.totalorder %s81, %s84
    %p90 = scmp.eq.s32.totalorder %s8, 0
    %p91 = por %p89, %p90
    %p92 = scmp.ne.s32.totalorder %s81, %s84
    %p93 = scmp.eq.s32.totalorder %s13, 1
    %p94 = por %p92, %p93
    %p95 = scmp.ne.s32.totalorder %s84, %s85
    %p96 = scmp.eq.s32.totalorder %s13, 0
    %p97 = por %p95, %p96
    %p98 = scmp.ne.s32.totalorder %s84, %s85
    %p99 = scmp.eq.s32.totalorder %s14, 1
    %p100 = por %p98, %p99
    %p102 = scmp.ne.s32.totalorder %s85, %s101
    %p103 = scmp.eq.s32.totalorder %s14, 0
    %p104 = por %p102, %p103
    %p105 = scmp.le.s32.totalorder 1, %s8
    %p106 = scmp.lt.s32.totalorder %s8, 3
    %p107 = pnand %p105, %p106
    %p108 = pneg %p107
    // Predicated region
    $region9: #{double_conv.5} parent=5 // pred_check
      _
    $region10: #{double_conv.5} parent=5 // pred_check_branch
      %110 = sbr.rel (%p107) target = $region12
    $region11: #{double_conv.5} parent=5 // pred_region
      %s111 = ssub.s32 %s8, 1
      // Predicated region
      $region13: #{double_conv.5} parent=11 // pred_check
        %p112 = pneg %p69
      $region14: #{double_conv.5} parent=11 // pred_check_branch
        %114 = sbr.rel (%p112) target = $region16
      $region15: #{double_conv.5} parent=11 // pred_region
        _
      $region16: #{double_conv.5} parent=11 // pred_fallthru
        _
    $region12: #{double_conv.5} parent=5 // pred_fallthru
      _
    %p115 = scmp.lt.s32.totalorder %s8, 2
    // Predicated region
    $region17: #{double_conv.5} parent=5 // pred_check
      %p116 = pneg %p115
    $region18: #{double_conv.5} parent=5 // pred_check_branch
      %118 = sbr.rel (%p116) target = $region20
    $region19: #{double_conv.5} parent=5 // pred_region
      // Predicated region
      $region21: #{double_conv.5} parent=19 // pred_check
        %p119 = pneg %p42
      $region22: #{double_conv.5} parent=19 // pred_check_branch
        %121 = sbr.rel (%p119) target = $region24
      $region23: #{double_conv.5} parent=19 // pred_region
        %s122 = smul.u32 16, %s16
        %p123 = scmp.lt.s32.totalorder %s15, 1
        %s124 = scalar_select %p123, %s15, 1
        %p125 = scmp.lt.s32.totalorder %s122, 15
        %s126 = scalar_select %p125, %s122, 15
        %s127 = smul.addr %s126, 2
        %s128 = smul.addr %s124, 32
        %s129 = sadd.s32 %s127, %s128
        %s130 = smul.addr %s129, 4
        %s131 = scalar_lea.vmem %s0, %s130
        %s132 = smul.u32 16, %s16
      $region24: #{double_conv.5} parent=19 // pred_fallthru
        _
    $region20: #{double_conv.5} parent=5 // pred_fallthru
      _
    %p133 = scmp.le.s32.totalorder 1, %s8
    %p134 = scmp.lt.s32.totalorder %s8, 3
    %p135 = pnand %p133, %p134
    %p136 = pneg %p135
    // Predicated region
    $region25: #{double_conv.5} parent=5 // pred_check
      _
    $region26: #{double_conv.5} parent=5 // pred_check_branch
      %138 = sbr.rel (%p135) target = $region28
    $region27: #{double_conv.5} parent=5 // pred_region
      %s139 = ssub.s32 %s8, 1
      %s140 = smul.u32 16, %s18
      %p141 = scmp.lt.s32.totalorder %s17, 1
      %s142 = scalar_select %p141, %s17, 1
      %p143 = scmp.lt.s32.totalorder %s140, 15
      %s144 = scalar_select %p143, %s140, 15
      %s145 = smul.addr %s144, 2
      %s146 = smul.addr %s142, 32
      %s147 = sadd.s32 %s145, %s146
      %s148 = smul.addr %s147, 4
      %s149 = scalar_lea.vmem %s0, %s148
      %p150 = pneg %p48
      %p151 = pneg %p45
      %p152 = pneg %p69
      %p153 = pneg %p66
      %p154 = pneg %p97
      %p155 = pneg %p94
      %s156 = smul.u32 16, %s18
      %p157 = scmp.lt.s32.totalorder %s17, 1
      %s158 = scalar_select %p157, %s17, 1
      %p159 = scmp.lt.s32.totalorder %s156, 15
      %s160 = scalar_select %p159, %s156, 15
      %s161 = smul.addr %s160, 2
      %s162 = smul.addr %s158, 32
      %s163 = sadd.s32 %s161, %s162
      %s164 = smul.addr %s163, 8
      %s165 = scalar_lea.vmem %s2, %s164
      %s166 = smul.u32 16, %s18
      %p167 = scmp.lt.s32.totalorder %s17, 1
      %s168 = scalar_select %p167, %s17, 1
      %p169 = scmp.lt.s32.totalorder %s166, 15
      %s170 = scalar_select %p169, %s166, 15
      %s171 = smul.addr %s170, 2
      %s172 = smul.addr %s168, 32
      %s173 = sadd.s32 %s171, %s172
      %s174 = smul.addr %s173, 4
      %s175 = scalar_lea.vmem %s0, %s174
      %s176 = smul.u32 16, %s18
      %s177 = smul.u32 16, %s18
      %p178 = scmp.lt.s32.totalorder %s17, 1
      %s179 = scalar_select %p178, %s17, 1
      %p180 = scmp.lt.s32.totalorder %s177, 15
      %s181 = scalar_select %p180, %s177, 15
      %s182 = smul.addr %s181, 2
      %s183 = smul.addr %s179, 32
      %s184 = sadd.s32 %s182, %s183
      %s185 = smul.addr %s184, 8
      %s186 = scalar_lea.vmem %s2, %s185
      %s187 = smul.u32 16, %s18
      %v188 = vld [vmem:[%s1] sm:$0x1]
      %v189 = vld [vmem:[%s1 + $0x1] sm:$0x1]
      %v190 = vld [vmem:[%s175] sm:$0xf]
      %v191 = vld [vmem:[%s175 + $0x4] sm:$0xf]
      %v192 = vld [vmem:[%s175 + $0x8] sm:$0xf]
      %v193 = vld [vmem:[%s175 + $0xc] sm:$0xf]
      %v194 = vld [vmem:[%s175 + $0x10] sm:$0xf]
      %v195 = vld [vmem:[%s175 + $0x14] sm:$0xf]
      %v196 = vld [vmem:[%s175 + $0x18] sm:$0xf]
      %v197 = vld [vmem:[%s175 + $0x1c] sm:$0xf]
      %v198 = vld [vmem:[%s175 + $0x20] sm:$0xf]
      %v199 = vld [vmem:[%s175 + $0x24] sm:$0xf]
      %v200 = vld [vmem:[%s175 + $0x28] sm:$0xf]
      %v201 = vld [vmem:[%s175 + $0x2c] sm:$0xf]
      %v202 = vld [vmem:[%s175 + $0x30] sm:$0xf]
      %v203 = vld [vmem:[%s175 + $0x34] sm:$0xf]
      %v204 = vld [vmem:[%s175 + $0x38] sm:$0xf]
      %v205 = vld [vmem:[%s175 + $0x3c] sm:$0xf]
      %v206 = vld [vmem:[%s175 + $0x40] sm:$0xf]
      %v207 = vld [vmem:[%s175 + $0x44] sm:$0xf]
      %v208 = vld [vmem:[%s175 + $0x48] sm:$0xf]
      %v209 = vld [vmem:[%s175 + $0x4c] sm:$0xf]
      %v210 = vld [vmem:[%s175 + $0x50] sm:$0xf]
      %v211 = vld [vmem:[%s175 + $0x54] sm:$0xf]
      %v212 = vld [vmem:[%s175 + $0x58] sm:$0xf]
      %v213 = vld [vmem:[%s175 + $0x5c] sm:$0xf]
      %v214 = vld [vmem:[%s175 + $0x60] sm:$0xf]
      %v215 = vld [vmem:[%s175 + $0x64] sm:$0xf]
      %v216 = vld [vmem:[%s175 + $0x68] sm:$0xf]
      %v217 = vld [vmem:[%s175 + $0x6c] sm:$0xf]
      %v218 = vld [vmem:[%s175 + $0x70] sm:$0xf]
      %v219 = vld [vmem:[%s175 + $0x74] sm:$0xf]
      %v220 = vld [vmem:[%s175 + $0x78] sm:$0xf]
      %v221 = vld [vmem:[%s175 + $0x7c] sm:$0xf]
      %v222 = vunpack.c.l.bf16 %v190
      %v223 = vunpack.c.l.bf16 %v191
      %v224 = vunpack.c.l.bf16 %v192
      %v225 = vunpack.c.l.bf16 %v193
      %v226 = vunpack.c.l.bf16 %v194
      %v227 = vunpack.c.l.bf16 %v195
      %v228 = vunpack.c.l.bf16 %v196
      %v229 = vunpack.c.l.bf16 %v197
      %v230 = vunpack.c.l.bf16 %v198
      %v231 = vunpack.c.l.bf16 %v199
      %v232 = vunpack.c.l.bf16 %v200
      %v233 = vunpack.c.l.bf16 %v201
      %v234 = vunpack.c.l.bf16 %v202
      %v235 = vunpack.c.l.bf16 %v203
      %v236 = vunpack.c.l.bf16 %v204
      %v237 = vunpack.c.l.bf16 %v205
      %v238 = vunpack.c.l.bf16 %v206
      %v239 = vunpack.c.l.bf16 %v207
      %v240 = vunpack.c.l.bf16 %v208
      %v241 = vunpack.c.l.bf16 %v209
      %v242 = vunpack.c.l.bf16 %v210
      %v243 = vunpack.c.l.bf16 %v211
      %v244 = vunpack.c.l.bf16 %v212
      %v245 = vunpack.c.l.bf16 %v213
      %v246 = vunpack.c.l.bf16 %v214
      %v247 = vunpack.c.l.bf16 %v215
      %v248 = vunpack.c.l.bf16 %v216
      %v249 = vunpack.c.l.bf16 %v217
      %v250 = vunpack.c.l.bf16 %v218
      %v251 = vunpack.c.l.bf16 %v219
      %v252 = vunpack.c.l.bf16 %v220
      %v253 = vunpack.c.l.bf16 %v221
      %v254 = vlaneseq
      %v255 = vshrl.u32 %v254, 7
      %v256 = vsub.s32 0, %v255
      %v257 = vrot.slane %v188, %v256
      %v258 = vmul.f32 %v222, %v257
      %v259 = vmul.f32 %v223, %v257
      %v260 = vmul.f32 %v224, %v257
      %v261 = vmul.f32 %v225, %v257
      %v262 = vmul.f32 %v226, %v257
      %v263 = vmul.f32 %v227, %v257
      %v264 = vmul.f32 %v228, %v257
      %v265 = vmul.f32 %v229, %v257
      %v266 = vmul.f32 %v230, %v257
      %v267 = vmul.f32 %v231, %v257
      %v268 = vmul.f32 %v232, %v257
      %v269 = vmul.f32 %v233, %v257
      %v270 = vmul.f32 %v234, %v257
      %v271 = vmul.f32 %v235, %v257
      %v272 = vmul.f32 %v236, %v257
      %v273 = vmul.f32 %v237, %v257
      %v274 = vmul.f32 %v238, %v257
      %v275 = vmul.f32 %v239, %v257
      %v276 = vmul.f32 %v240, %v257
      %v277 = vmul.f32 %v241, %v257
      %v278 = vmul.f32 %v242, %v257
      %v279 = vmul.f32 %v243, %v257
      %v280 = vmul.f32 %v244, %v257
      %v281 = vmul.f32 %v245, %v257
      %v282 = vmul.f32 %v246, %v257
      %v283 = vmul.f32 %v247, %v257
      %v284 = vmul.f32 %v248, %v257
      %v285 = vmul.f32 %v249, %v257
      %v286 = vmul.f32 %v250, %v257
      %v287 = vmul.f32 %v251, %v257
      %v288 = vmul.f32 %v252, %v257
      %v289 = vmul.f32 %v253, %v257
      %v290 = vlaneseq
      %v291 = vshrl.u32 %v290, 7
      %v292 = vsub.s32 0, %v291
      %v293 = vrot.slane %v189, %v292
      %v294 = vadd.f32 %v258, %v293
      %v295 = vadd.f32 %v259, %v293
      %v296 = vadd.f32 %v260, %v293
      %v297 = vadd.f32 %v261, %v293
      %v298 = vadd.f32 %v262, %v293
      %v299 = vadd.f32 %v263, %v293
      %v300 = vadd.f32 %v264, %v293
      %v301 = vadd.f32 %v265, %v293
      %v302 = vadd.f32 %v266, %v293
      %v303 = vadd.f32 %v267, %v293
      %v304 = vadd.f32 %v268, %v293
      %v305 = vadd.f32 %v269, %v293
      %v306 = vadd.f32 %v270, %v293
      %v307 = vadd.f32 %v271, %v293
      %v308 = vadd.f32 %v272, %v293
      %v309 = vadd.f32 %v273, %v293
      %v310 = vadd.f32 %v274, %v293
      %v311 = vadd.f32 %v275, %v293
      %v312 = vadd.f32 %v276, %v293
      %v313 = vadd.f32 %v277, %v293
      %v314 = vadd.f32 %v278, %v293
      %v315 = vadd.f32 %v279, %v293
      %v316 = vadd.f32 %v280, %v293
      %v317 = vadd.f32 %v281, %v293
      %v318 = vadd.f32 %v282, %v293
      %v319 = vadd.f32 %v283, %v293
      %v320 = vadd.f32 %v284, %v293
      %v321 = vadd.f32 %v285, %v293
      %v322 = vadd.f32 %v286, %v293
      %v323 = vadd.f32 %v287, %v293
      %v324 = vadd.f32 %v288, %v293
      %v325 = vadd.f32 %v289, %v293
      %v326 = vmax.f32 %v294, 0.0
      %v327 = vmax.f32 %v295, 0.0
      %v328 = vmax.f32 %v296, 0.0
      %v329 = vmax.f32 %v297, 0.0
      %v330 = vmax.f32 %v298, 0.0
      %v331 = vmax.f32 %v299, 0.0
      %v332 = vmax.f32 %v300, 0.0
      %v333 = vmax.f32 %v301, 0.0
      %v334 = vmax.f32 %v302, 0.0
      %v335 = vmax.f32 %v303, 0.0
      %v336 = vmax.f32 %v304, 0.0
      %v337 = vmax.f32 %v305, 0.0
      %v338 = vmax.f32 %v306, 0.0
      %v339 = vmax.f32 %v307, 0.0
      %v340 = vmax.f32 %v308, 0.0
      %v341 = vmax.f32 %v309, 0.0
      %v342 = vmax.f32 %v310, 0.0
      %v343 = vmax.f32 %v311, 0.0
      %v344 = vmax.f32 %v312, 0.0
      %v345 = vmax.f32 %v313, 0.0
      %v346 = vmax.f32 %v314, 0.0
      %v347 = vmax.f32 %v315, 0.0
      %v348 = vmax.f32 %v316, 0.0
      %v349 = vmax.f32 %v317, 0.0
      %v350 = vmax.f32 %v318, 0.0
      %v351 = vmax.f32 %v319, 0.0
      %v352 = vmax.f32 %v320, 0.0
      %v353 = vmax.f32 %v321, 0.0
      %v354 = vmax.f32 %v322, 0.0
      %v355 = vmax.f32 %v323, 0.0
      %v356 = vmax.f32 %v324, 0.0
      %v357 = vmax.f32 %v325, 0.0
      %vm358 = vcmask 64512
      %359 = vst.msk [vmem:[%s186] sm:$0xff] %vm358, %v326
      %360 = vst.msk [vmem:[%s186 + $0x8] sm:$0xff] %vm358, %v327
      %361 = vst.msk [vmem:[%s186 + $0x10] sm:$0xff] %vm358, %v328
      %362 = vst.msk [vmem:[%s186 + $0x18] sm:$0xff] %vm358, %v329
      %363 = vst.msk [vmem:[%s186 + $0x20] sm:$0xff] %vm358, %v330
      %364 = vst.msk [vmem:[%s186 + $0x28] sm:$0xff] %vm358, %v331
      %365 = vst.msk [vmem:[%s186 + $0x30] sm:$0xff] %vm358, %v332
      %366 = vst.msk [vmem:[%s186 + $0x38] sm:$0xff] %vm358, %v333
      %367 = vst.msk [vmem:[%s186 + $0x40] sm:$0xff] %vm358, %v334
      %368 = vst.msk [vmem:[%s186 + $0x48] sm:$0xff] %vm358, %v335
      %369 = vst.msk [vmem:[%s186 + $0x50] sm:$0xff] %vm358, %v336
      %370 = vst.msk [vmem:[%s186 + $0x58] sm:$0xff] %vm358, %v337
      %371 = vst.msk [vmem:[%s186 + $0x60] sm:$0xff] %vm358, %v338
      %372 = vst.msk [vmem:[%s186 + $0x68] sm:$0xff] %vm358, %v339
      %373 = vst.msk [vmem:[%s186 + $0x70] sm:$0xff] %vm358, %v340
      %374 = vst.msk [vmem:[%s186 + $0x78] sm:$0xff] %vm358, %v341
      %375 = vst.msk [vmem:[%s186 + $0x80] sm:$0xff] %vm358, %v342
      %376 = vst.msk [vmem:[%s186 + $0x88] sm:$0xff] %vm358, %v343
      %377 = vst.msk [vmem:[%s186 + $0x90] sm:$0xff] %vm358, %v344
      %378 = vst.msk [vmem:[%s186 + $0x98] sm:$0xff] %vm358, %v345
      %379 = vst.msk [vmem:[%s186 + $0xa0] sm:$0xff] %vm358, %v346
      %380 = vst.msk [vmem:[%s186 + $0xa8] sm:$0xff] %vm358, %v347
      %381 = vst.msk [vmem:[%s186 + $0xb0] sm:$0xff] %vm358, %v348
      %382 = vst.msk [vmem:[%s186 + $0xb8] sm:$0xff] %vm358, %v349
      %383 = vst.msk [vmem:[%s186 + $0xc0] sm:$0xff] %vm358, %v350
      %384 = vst.msk [vmem:[%s186 + $0xc8] sm:$0xff] %vm358, %v351
      %385 = vst.msk [vmem:[%s186 + $0xd0] sm:$0xff] %vm358, %v352
      %386 = vst.msk [vmem:[%s186 + $0xd8] sm:$0xff] %vm358, %v353
      %387 = vst.msk [vmem:[%s186 + $0xe0] sm:$0xff] %vm358, %v354
      %388 = vst.msk [vmem:[%s186 + $0xe8] sm:$0xff] %vm358, %v355
      %389 = vst.msk [vmem:[%s186 + $0xf0] sm:$0xff] %vm358, %v356
      %390 = vst.msk [vmem:[%s186 + $0xf8] sm:$0xff] %vm358, %v357
      %s391 = smul.u32 16, %s18
      %p392 = scmp.lt.s32.totalorder %s17, 1
      %s393 = scalar_select %p392, %s17, 1
      %p394 = scmp.lt.s32.totalorder %s391, 15
      %s395 = scalar_select %p394, %s391, 15
      %s396 = smul.addr %s395, 2
      %s397 = smul.addr %s393, 32
      %s398 = sadd.s32 %s396, %s397
      %s399 = smul.addr %s398, 8
      %s400 = scalar_lea.vmem %s2, %s399
      // Predicated region
      $region29: #{double_conv.5} parent=27 // pred_check
        %p401 = pneg %p94
      $region30: #{double_conv.5} parent=27 // pred_check_branch
        %403 = sbr.rel (%p401) target = $region32
      $region31: #{double_conv.5} parent=27 // pred_region
        %s404 = smul.u32 16, %s18
      $region32: #{double_conv.5} parent=27 // pred_fallthru
        _
    $region28: #{double_conv.5} parent=5 // pred_fallthru
      _
    %p405 = scmp.le.s32.totalorder 2, %s8
    // Predicated region
    $region33: #{double_conv.5} parent=5 // pred_check
      %p406 = pneg %p405
    $region34: #{double_conv.5} parent=5 // pred_check_branch
      %408 = sbr.rel (%p406) target = $region36
    $region35: #{double_conv.5} parent=5 // pred_region
      %s409 = ssub.s32 %s8, 2
      // Predicated region
      $region37: #{double_conv.5} parent=35 // pred_check
        %p410 = pneg %p100
      $region38: #{double_conv.5} parent=35 // pred_check_branch
        %412 = sbr.rel (%p410) target = $region40
      $region39: #{double_conv.5} parent=35 // pred_region
        %s413 = smul.u32 16, %s20
        %p414 = scmp.lt.s32.totalorder %s19, 1
        %s415 = scalar_select %p414, %s19, 1
        %p416 = scmp.lt.s32.totalorder %s413, 15
        %s417 = scalar_select %p416, %s413, 15
        %s418 = smul.addr %s417, 2
        %s419 = smul.addr %s415, 32
        %s420 = sadd.s32 %s418, %s419
        %s421 = smul.addr %s420, 8
        %s422 = scalar_lea.vmem %s2, %s421
      $region40: #{double_conv.5} parent=35 // pred_fallthru
        _
    $region36: #{double_conv.5} parent=5 // pred_fallthru
      _
  $region6: #{double_conv.5} parent=0 // loop_footer
    %s12 = sadd.s32 1, %s8
  $region7: #{double_conv.5} parent=0 // loop_footer_branch
    %7 = sbr.rel target = $region3
  $region8: #{double_conv.5} parent=0 // loop_exit
    _

// kernel: double_conv.3
$region0: #{double_conv.3}
  #allocation0 [shape = 'u32[]', space=smem, size = 0x4, offset = 0x4, fixed_abs, tag = 'smem constant byte address 0x4 - core index']
  #allocation1 [shape = 'u32[144,128]{1,0:T(1,128)}', space=vmem, size = 0x12000, scoped, tag = 'internal scratch']
  #allocation2 [shape = 'f32[18,18,16]{2,1,0:T(8,128)}', space=vmem, size = 0x36000, scoped, tag = 'scratch operand']
  %s0 = inlined_call_operand.vmem [shape: f32[2,16,16,16], index: 0, kind: input, shape index: {}, may-alias: {0,1,2}]
  %s1 = inlined_call_operand.vmem [shape: f32[2,16,16,16], index: 1, kind: input, shape index: {}, may-alias: {0,1,2}]
  %s2 = inlined_call_operand.vmem [shape: f32[2,16,16,16], index: 2, kind: input, shape index: {}, may-alias: {0,1,2}]
  %s3 = inlined_call_operand.vmem [shape: bf16[9,16,128], index: 3, kind: input, shape index: {}]
  %s4 = inlined_call_operand.vmem [shape: bf16[2,16,16,128], index: 4, kind: output, shape index: {0}]
  %s5 = inlined_call_operand.vmem [shape: f32[2,1,2,128], index: 5, kind: output, shape index: {1}]
  %6 = xla_tuple %s4, %s5
  %s7 = sld [smem:[#allocation0]]
  $region57: #{double_conv.3} parent=0
    _
  %s9 = ssub.s32 1, %s7
  %s10 = scalar_select 0, %s9, %s7
  loop: start=0, step=1, limit=4
  $region2: #{double_conv.3} parent=0 // loop_pre_header
    _
  $region3: #{double_conv.3} parent=0 // loop_header
    %s12 = sphi 0, %s16
    %p13 = scmp.ge.s32.totalorder %s12, 4
    %s19 = sphi 0, %s31
    %s20 = sphi 0, %s27
    %s21 = sphi 0, %s19
    %s22 = sphi 0, %s20
    %s23 = sphi 0, %s21
    %s24 = sphi 0, %s22
    %s44 = sphi 0, %s46
    %s47 = sphi 0, %s44
    %s48 = sphi 0, %s47
    %s64 = sphi 0, %s48
    %s72 = sphi 0, %s74
    %s75 = sphi 0, %s72
    %s76 = sphi 0, %s75
    %s92 = sphi 0, %s76
    %s108 = sphi 0, %s110
    %s111 = sphi 0, %s108
    %s112 = sphi 0, %s111
    %s128 = sphi 0, %s112
    %s132 = sphi 0, %s132
    %s134 = sphi 0, %s132
    %s135 = sphi 0, %s134
    %s149 = sphi 0, %s135
    %s157 = sphi 0, %s159
    %s160 = sphi 0, %s157
    %s161 = sphi 0, %s160
    %s177 = sphi 0, %s161
    %s185 = sphi 0, %s187
    %s188 = sphi 0, %s185
    %s189 = sphi 0, %s188
    %s205 = sphi 0, %s189
  $region4: #{double_conv.3} parent=0 // loop_header_branch
    %15 = sbr.rel (%p13) target = $region8
  $region5: #{double_conv.3} parent=0 // loop_body
    %s17 = ssub.s32 %s12, 1
    %s18 = ssub.s32 %s12, 2
    %s25 = sadd.s32 1, %s20
    %p26 = scmp.ge.s32.totalorder %s25, 1
    %s27 = scalar_select %p26, 0, %s25
    %s28 = sadd.s32 1, %s19
    %s29 = scalar_select %p26, %s28, %s19
    %p30 = scmp.ge.s32.totalorder %s29, 2
    %s31 = scalar_select %p30, 0, %s29
    %s32 = smul.u32 %s20, 16
    %s33 = ssub.s32 %s32, 1
    %p34 = scmp.gt.s32.totalorder %s33, 0
    %s35 = scalar_select %p34, %s33, 0
    %s36 = smul.u32 %s27, 16
    %s37 = ssub.s32 %s36, 1
    %p38 = scmp.gt.s32.totalorder %s37, 0
    %s39 = scalar_select %p38, %s37, 0
    %s40 = ssub.s32 %s19, %s31
    %s41 = ssub.s32 %s35, %s39
    %s42 = sor.u32 %s40, %s41
    %p43 = scmp.eq.s32.totalorder %s42, 0
    %s45 = sadd.s32 %s44, 1
    %s46 = scalar_select %p43, %s44, %s45
    %p49 = pneg %p43
    %p50 = scmp.eq.s32.totalorder %s12, 1
    %p51 = por %p49, %p50
    %p52 = scmp.ne.s32.totalorder %s44, %s47
    %p53 = scmp.eq.s32.totalorder %s12, 0
    %p54 = por %p52, %p53
    %p55 = scmp.ne.s32.totalorder %s44, %s47
    %p56 = scmp.eq.s32.totalorder %s17, 1
    %p57 = por %p55, %p56
    %p58 = scmp.ne.s32.totalorder %s47, %s48
    %p59 = scmp.eq.s32.totalorder %s17, 0
    %p60 = por %p58, %p59
    %p61 = scmp.ne.s32.totalorder %s47, %s48
    %p62 = scmp.eq.s32.totalorder %s18, 1
    %p63 = por %p61, %p62
    %p65 = scmp.ne.s32.totalorder %s48, %s64
    %p66 = scmp.eq.s32.totalorder %s18, 0
    %p67 = por %p65, %p66
    %s68 = ssub.s32 %s19, %s31
    %s69 = ssub.s32 %s20, %s27
    %s70 = sor.u32 %s68, %s69
    %p71 = scmp.eq.s32.totalorder %s70, 0
    %s73 = sadd.s32 %s72, 1
    %s74 = scalar_select %p71, %s72, %s73
    %p77 = pneg %p71
    %p78 = scmp.eq.s32.totalorder %s12, 1
    %p79 = por %p77, %p78
    %p80 = scmp.ne.s32.totalorder %s72, %s75
    %p81 = scmp.eq.s32.totalorder %s12, 0
    %p82 = por %p80, %p81
    %p83 = scmp.ne.s32.totalorder %s72, %s75
    %p84 = scmp.eq.s32.totalorder %s17, 1
    %p85 = por %p83, %p84
    %p86 = scmp.ne.s32.totalorder %s75, %s76
    %p87 = scmp.eq.s32.totalorder %s17, 0
    %p88 = por %p86, %p87
    %p89 = scmp.ne.s32.totalorder %s75, %s76
    %p90 = scmp.eq.s32.totalorder %s18, 1
    %p91 = por %p89, %p90
    %p93 = scmp.ne.s32.totalorder %s76, %s92
    %p94 = scmp.eq.s32.totalorder %s18, 0
    %p95 = por %p93, %p94
    %s96 = sadd.s32 %s20, 1
    %s97 = smul.u32 %s96, 16
    %p98 = scmp.lt.s32.totalorder %s97, 15
    %s99 = scalar_select %p98, %s97, 15
    %s100 = sadd.s32 %s27, 1
    %s101 = smul.u32 %s100, 16
    %p102 = scmp.lt.s32.totalorder %s101, 15
    %s103 = scalar_select %p102, %s101, 15
    %s104 = ssub.s32 %s19, %s31
    %s105 = ssub.s32 %s99, %s103
    %s106 = sor.u32 %s104, %s105
    %p107 = scmp.eq.s32.totalorder %s106, 0
    %s109 = sadd.s32 %s108, 1
    %s110 = scalar_select %p107, %s108, %s109
    %p113 = pneg %p107
    %p114 = scmp.eq.s32.totalorder %s12, 1
    %p115 = por %p113, %p114
    %p116 = scmp.ne.s32.totalorder %s108, %s111
    %p117 = scmp.eq.s32.totalorder %s12, 0
    %p118 = por %p116, %p117
    %p119 = scmp.ne.s32.totalorder %s108, %s111
    %p120 = scmp.eq.s32.totalorder %s17, 1
    %p121 = por %p119, %p120
    %p122 = scmp.ne.s32.totalorder %s111, %s112
    %p123 = scmp.eq.s32.totalorder %s17, 0
    %p124 = por %p122, %p123
    %p125 = scmp.ne.s32.totalorder %s111, %s112
    %p126 = scmp.eq.s32.totalorder %s18, 1
    %p127 = por %p125, %p126
    %p129 = scmp.ne.s32.totalorder %s112, %s128
    %p130 = scmp.eq.s32.totalorder %s18, 0
    %p131 = por %p129, %p130
    %s133 = sadd.s32 %s132, 1
    %p136 = scmp.eq.s32.totalorder %s12, 1
    %p137 = scmp.ne.s32.totalorder %s132, %s134
    %p138 = scmp.eq.s32.totalorder %s12, 0
    %p139 = por %p137, %p138
    %p140 = scmp.ne.s32.totalorder %s132, %s134
    %p141 = scmp.eq.s32.totalorder %s17, 1
    %p142 = por %p140, %p141
    %p143 = scmp.ne.s32.totalorder %s134, %s135
    %p144 = scmp.eq.s32.totalorder %s17, 0
    %p145 = por %p143, %p144
    %p146 = scmp.ne.s32.totalorder %s134, %s135
    %p147 = scmp.eq.s32.totalorder %s18, 1
    %p148 = por %p146, %p147
    %p150 = scmp.ne.s32.totalorder %s135, %s149
    %p151 = scmp.eq.s32.totalorder %s18, 0
    %p152 = por %p150, %p151
    %s153 = ssub.s32 %s19, %s31
    %s154 = ssub.s32 %s20, %s27
    %s155 = sor.u32 %s153, %s154
    %p156 = scmp.eq.s32.totalorder %s155, 0
    %s158 = sadd.s32 %s157, 1
    %s159 = scalar_select %p156, %s157, %s158
    %p162 = pneg %p156
    %p163 = scmp.eq.s32.totalorder %s12, 1
    %p164 = por %p162, %p163
    %p165 = scmp.ne.s32.totalorder %s157, %s160
    %p166 = scmp.eq.s32.totalorder %s12, 0
    %p167 = por %p165, %p166
    %p168 = scmp.ne.s32.totalorder %s157, %s160
    %p169 = scmp.eq.s32.totalorder %s17, 1
    %p170 = por %p168, %p169
    %p171 = scmp.ne.s32.totalorder %s160, %s161
    %p172 = scmp.eq.s32.totalorder %s17, 0
    %p173 = por %p171, %p172
    %p174 = scmp.ne.s32.totalorder %s160, %s161
    %p175 = scmp.eq.s32.totalorder %s18, 1
    %p176 = por %p174, %p175
    %p178 = scmp.ne.s32.totalorder %s161, %s177
    %p179 = scmp.eq.s32.totalorder %s18, 0
    %p180 = por %p178, %p179
    %s181 = ssub.s32 %s19, %s31
    %s182 = ssub.s32 %s20, %s27
    %s183 = sor.u32 %s181, %s182
    %p184 = scmp.eq.s32.totalorder %s183, 0
    %s186 = sadd.s32 %s185, 1
    %s187 = scalar_select %p184, %s185, %s186
    %p190 = pneg %p184
    %p191 = scmp.eq.s32.totalorder %s12, 1
    %p192 = por %p190, %p191
    %p193 = scmp.ne.s32.totalorder %s185, %s188
    %p194 = scmp.eq.s32.totalorder %s12, 0
    %p195 = por %p193, %p194
    %p196 = scmp.ne.s32.totalorder %s185, %s188
    %p197 = scmp.eq.s32.totalorder %s17, 1
    %p198 = por %p196, %p197
    %p199 = scmp.ne.s32.totalorder %s188, %s189
    %p200 = scmp.eq.s32.totalorder %s17, 0
    %p201 = por %p199, %p200
    %p202 = scmp.ne.s32.totalorder %s188, %s189
    %p203 = scmp.eq.s32.totalorder %s18, 1
    %p204 = por %p202, %p203
    %p206 = scmp.ne.s32.totalorder %s189, %s205
    %p207 = scmp.eq.s32.totalorder %s18, 0
    %p208 = por %p206, %p207
    %p209 = scmp.le.s32.totalorder 1, %s12
    %p210 = scmp.lt.s32.totalorder %s12, 3
    %p211 = pnand %p209, %p210
    %p212 = pneg %p211
    // Predicated region
    $region9: #{double_conv.3} parent=5 // pred_check
      _
    $region10: #{double_conv.3} parent=5 // pred_check_branch
      %214 = sbr.rel (%p211) target = $region12
    $region11: #{double_conv.3} parent=5 // pred_region
      %s215 = ssub.s32 %s12, 1
      // Predicated region
      $region13: #{double_conv.3} parent=11 // pred_check
        %p216 = pneg %p145
      $region14: #{double_conv.3} parent=11 // pred_check_branch
        %218 = sbr.rel (%p216) target = $region16
      $region15: #{double_conv.3} parent=11 // pred_region
        _
      $region16: #{double_conv.3} parent=11 // pred_fallthru
        _
    $region12: #{double_conv.3} parent=5 // pred_fallthru
      _
    %p219 = scmp.lt.s32.totalorder %s12, 2
    // Predicated region
    $region17: #{double_conv.3} parent=5 // pred_check
      %p220 = pneg %p219
    $region18: #{double_conv.3} parent=5 // pred_check_branch
      %222 = sbr.rel (%p220) target = $region20
    $region19: #{double_conv.3} parent=5 // pred_region
      // Predicated region
      $region21: #{double_conv.3} parent=19 // pred_check
        %p223 = pneg %p54
      $region22: #{double_conv.3} parent=19 // pred_check_branch
        %225 = sbr.rel (%p223) target = $region24
      $region23: #{double_conv.3} parent=19 // pred_region
        %s226 = smul.u32 %s20, 16
        %s227 = ssub.s32 %s226, 1
        %p228 = scmp.gt.s32.totalorder %s227, 0
        %s229 = scalar_select %p228, %s227, 0
        %p230 = scmp.lt.s32.totalorder %s19, 1
        %s231 = scalar_select %p230, %s19, 1
        %p232 = scmp.lt.s32.totalorder %s229, 15
        %s233 = scalar_select %p232, %s229, 15
        %s234 = smul.addr %s233, 2
        %s235 = smul.addr %s231, 32
        %s236 = sadd.s32 %s234, %s235
        %s237 = smul.addr %s236, 8
        %s238 = scalar_lea.vmem %s0, %s237
        %s239 = smul.u32 %s20, 16
        %s240 = ssub.s32 %s239, 1
        %p241 = scmp.gt.s32.totalorder %s240, 0
        %s242 = scalar_select %p241, %s240, 0
      $region24: #{double_conv.3} parent=19 // pred_fallthru
        _
      // Predicated region
      $region25: #{double_conv.3} parent=19 // pred_check
        %p243 = pneg %p82
      $region26: #{double_conv.3} parent=19 // pred_check_branch
        %245 = sbr.rel (%p243) target = $region28
      $region27: #{double_conv.3} parent=19 // pred_region
        %s246 = smul.u32 16, %s20
        %p247 = scmp.lt.s32.totalorder %s19, 1
        %s248 = scalar_select %p247, %s19, 1
        %p249 = scmp.lt.s32.totalorder %s246, 15
        %s250 = scalar_select %p249, %s246, 15
        %s251 = smul.addr %s250, 2
        %s252 = smul.addr %s248, 32
        %s253 = sadd.s32 %s251, %s252
        %s254 = smul.addr %s253, 8
        %s255 = scalar_lea.vmem %s1, %s254
        %s256 = smul.u32 16, %s20
      $region28: #{double_conv.3} parent=19 // pred_fallthru
        _
      // Predicated region
      $region29: #{double_conv.3} parent=19 // pred_check
        %p257 = pneg %p118
      $region30: #{double_conv.3} parent=19 // pred_check_branch
        %259 = sbr.rel (%p257) target = $region32
      $region31: #{double_conv.3} parent=19 // pred_region
        %s260 = sadd.s32 %s20, 1
        %s261 = smul.u32 %s260, 16
        %p262 = scmp.lt.s32.totalorder %s261, 15
        %s263 = scalar_select %p262, %s261, 15
        %p264 = scmp.lt.s32.totalorder %s19, 1
        %s265 = scalar_select %p264, %s19, 1
        %p266 = scmp.lt.s32.totalorder %s263, 15
        %s267 = scalar_select %p266, %s263, 15
        %s268 = smul.addr %s267, 2
        %s269 = smul.addr %s265, 32
        %s270 = sadd.s32 %s268, %s269
        %s271 = smul.addr %s270, 8
        %s272 = scalar_lea.vmem %s2, %s271
        %s273 = sadd.s32 %s20, 1
        %s274 = smul.u32 %s273, 16
        %p275 = scmp.lt.s32.totalorder %s274, 15
        %s276 = scalar_select %p275, %s274, 15
      $region32: #{double_conv.3} parent=19 // pred_fallthru
        _
    $region20: #{double_conv.3} parent=5 // pred_fallthru
      _
    %p277 = scmp.le.s32.totalorder 1, %s12
    %p278 = scmp.lt.s32.totalorder %s12, 3
    %p279 = pnand %p277, %p278
    %p280 = pneg %p279
    // Predicated region
    $region33: #{double_conv.3} parent=5 // pred_check
      _
    $region34: #{double_conv.3} parent=5 // pred_check_branch
      %282 = sbr.rel (%p279) target = $region36
    $region35: #{double_conv.3} parent=5 // pred_region
      %s283 = ssub.s32 %s12, 1
      %s284 = smul.u32 %s22, 16
      %s285 = ssub.s32 %s284, 1
      %p286 = scmp.gt.s32.totalorder %s285, 0
      %s287 = scalar_select %p286, %s285, 0
      %p288 = scmp.lt.s32.totalorder %s21, 1
      %s289 = scalar_select %p288, %s21, 1
      %p290 = scmp.lt.s32.totalorder %s287, 15
      %s291 = scalar_select %p290, %s287, 15
      %s292 = smul.addr %s291, 2
      %s293 = smul.addr %s289, 32
      %s294 = sadd.s32 %s292, %s293
      %s295 = smul.addr %s294, 8
      %s296 = scalar_lea.vmem %s0, %s295
      %p297 = pneg %p60
      %p298 = pneg %p57
      %s299 = smul.u32 16, %s22
      %p300 = scmp.lt.s32.totalorder %s21, 1
      %s301 = scalar_select %p300, %s21, 1
      %p302 = scmp.lt.s32.totalorder %s299, 15
      %s303 = scalar_select %p302, %s299, 15
      %s304 = smul.addr %s303, 2
      %s305 = smul.addr %s301, 32
      %s306 = sadd.s32 %s304, %s305
      %s307 = smul.addr %s306, 8
      %s308 = scalar_lea.vmem %s1, %s307
      %p309 = pneg %p88
      %p310 = pneg %p85
      %s311 = sadd.s32 %s22, 1
      %s312 = smul.u32 %s311, 16
      %p313 = scmp.lt.s32.totalorder %s312, 15
      %s314 = scalar_select %p313, %s312, 15
      %p315 = scmp.lt.s32.totalorder %s21, 1
      %s316 = scalar_select %p315, %s21, 1
      %p317 = scmp.lt.s32.totalorder %s314, 15
      %s318 = scalar_select %p317, %s314, 15
      %s319 = smul.addr %s318, 2
      %s320 = smul.addr %s316, 32
      %s321 = sadd.s32 %s319, %s320
      %s322 = smul.addr %s321, 8
      %s323 = scalar_lea.vmem %s2, %s322
      %p324 = pneg %p124
      %p325 = pneg %p121
      %p326 = pneg %p145
      %p327 = pneg %p142
      %p328 = pneg %p173
      %p329 = pneg %p170
      %s330 = smul.u32 16, %s22
      %p331 = scmp.lt.s32.totalorder %s21, 1
      %s332 = scalar_select %p331, %s21, 1
      %p333 = scmp.lt.s32.totalorder %s330, 15
      %s334 = scalar_select %p333, %s330, 15
      %s335 = smul.addr %s334, 2
      %s336 = smul.addr %s332, 32
      %s337 = sadd.s32 %s335, %s336
      %s338 = smul.addr %s337, 4
      %s339 = scalar_lea.vmem %s4, %s338
      %p340 = pneg %p201
      %p341 = pneg %p198
      %p342 = scmp.lt.s32.totalorder %s21, 1
      %s343 = scalar_select %p342, %s21, 1
      %p344 = scmp.lt.s32.totalorder %s22, 0
      %s345 = scalar_select %p344, %s22, 0
      %s346 = sadd.s32 %s345, %s343
      %s347 = smul.addr %s346, 2
      %s348 = scalar_lea.vmem %s5, %s347
      %s349 = smul.u32 %s22, 16
      %s350 = ssub.s32 %s349, 1
      %p351 = scmp.gt.s32.totalorder %s350, 0
      %s352 = scalar_select %p351, %s350, 0
      %p353 = scmp.lt.s32.totalorder %s21, 1
      %s354 = scalar_select %p353, %s21, 1
      %p355 = scmp.lt.s32.totalorder %s352, 15
      %s356 = scalar_select %p355, %s352, 15
      %s357 = smul.addr %s356, 2
      %s358 = smul.addr %s354, 32
      %s359 = sadd.s32 %s357, %s358
      %s360 = smul.addr %s359, 8
      %s361 = scalar_lea.vmem %s0, %s360
      %s362 = smul.u32 %s22, 16
      %s363 = ssub.s32 %s362, 1
      %p364 = scmp.gt.s32.totalorder %s363, 0
      %s365 = scalar_select %p364, %s363, 0
      %s366 = smul.u32 16, %s22
      %p367 = scmp.lt.s32.totalorder %s21, 1
      %s368 = scalar_select %p367, %s21, 1
      %p369 = scmp.lt.s32.totalorder %s366, 15
      %s370 = scalar_select %p369, %s366, 15
      %s371 = smul.addr %s370, 2
      %s372 = smul.addr %s368, 32
      %s373 = sadd.s32 %s371, %s372
      %s374 = smul.addr %s373, 8
      %s375 = scalar_lea.vmem %s1, %s374
      %s376 = smul.u32 16, %s22
      %s377 = sadd.s32 %s22, 1
      %s378 = smul.u32 %s377, 16
      %p379 = scmp.lt.s32.totalorder %s378, 15
      %s380 = scalar_select %p379, %s378, 15
      %p381 = scmp.lt.s32.totalorder %s21, 1
      %s382 = scalar_select %p381, %s21, 1
      %p383 = scmp.lt.s32.totalorder %s380, 15
      %s384 = scalar_select %p383, %s380, 15
      %s385 = smul.addr %s384, 2
      %s386 = smul.addr %s382, 32
      %s387 = sadd.s32 %s385, %s386
      %s388 = smul.addr %s387, 8
      %s389 = scalar_lea.vmem %s2, %s388
      %s390 = sadd.s32 %s22, 1
      %s391 = smul.u32 %s390, 16
      %p392 = scmp.lt.s32.totalorder %s391, 15
      %s393 = scalar_select %p392, %s391, 15
      %s394 = smul.u32 16, %s22
      %p395 = scmp.lt.s32.totalorder %s21, 1
      %s396 = scalar_select %p395, %s21, 1
      %p397 = scmp.lt.s32.totalorder %s394, 15
      %s398 = scalar_select %p397, %s394, 15
      %s399 = smul.addr %s398, 2
      %s400 = smul.addr %s396, 32
      %s401 = sadd.s32 %s399, %s400
      %s402 = smul.addr %s401, 4
      %s403 = scalar_lea.vmem %s4, %s402
      %s404 = smul.u32 16, %s22
      %p405 = scmp.lt.s32.totalorder %s21, 1
      %s406 = scalar_select %p405, %s21, 1
      %p407 = scmp.lt.s32.totalorder %s22, 0
      %s408 = scalar_select %p407, %s22, 0
      %s409 = sadd.s32 %s408, %s406
      %s410 = smul.addr %s409, 2
      %s411 = scalar_lea.vmem %s5, %s410
      %vm413 = vcmask 122880
      %414 = vst.msk [vmem:[#allocation2] sm:$0x1] %vm413, 0.0
      %415 = vst.msk [vmem:[#allocation2 + $0x18] sm:$0x1] %vm413, 0.0
      %416 = vst.msk [vmem:[#allocation2 + $0x30] sm:$0x1] %vm413, 0.0
      %417 = vst.msk [vmem:[#allocation2 + $0x48] sm:$0x1] %vm413, 0.0
      %418 = vst.msk [vmem:[#allocation2 + $0x60] sm:$0x1] %vm413, 0.0
      %419 = vst.msk [vmem:[#allocation2 + $0x78] sm:$0x1] %vm413, 0.0
      %420 = vst.msk [vmem:[#allocation2 + $0x90] sm:$0x1] %vm413, 0.0
      %421 = vst.msk [vmem:[#allocation2 + $0xa8] sm:$0x1] %vm413, 0.0
      %422 = vst.msk [vmem:[#allocation2 + $0xc0] sm:$0x1] %vm413, 0.0
      %423 = vst.msk [vmem:[#allocation2 + $0xd8] sm:$0x1] %vm413, 0.0
      %424 = vst.msk [vmem:[#allocation2 + $0xf0] sm:$0x1] %vm413, 0.0
      %425 = vst.msk [vmem:[#allocation2 + $0x108] sm:$0x1] %vm413, 0.0
      %426 = vst.msk [vmem:[#allocation2 + $0x120] sm:$0x1] %vm413, 0.0
      %427 = vst.msk [vmem:[#allocation2 + $0x138] sm:$0x1] %vm413, 0.0
      %428 = vst.msk [vmem:[#allocation2 + $0x150] sm:$0x1] %vm413, 0.0
      %429 = vst.msk [vmem:[#allocation2 + $0x168] sm:$0x1] %vm413, 0.0
      %430 = vst.msk [vmem:[#allocation2 + $0x180] sm:$0x1] %vm413, 0.0
      %431 = vst.msk [vmem:[#allocation2 + $0x198] sm:$0x1] %vm413, 0.0
      %432 = vst.msk [vmem:[#allocation2 + $0x11] sm:$0x1] %vm413, 0.0
      %433 = vst.msk [vmem:[#allocation2 + $0x29] sm:$0x1] %vm413, 0.0
      %434 = vst.msk [vmem:[#allocation2 + $0x41] sm:$0x1] %vm413, 0.0
      %435 = vst.msk [vmem:[#allocation2 + $0x59] sm:$0x1] %vm413, 0.0
      %436 = vst.msk [vmem:[#allocation2 + $0x71] sm:$0x1] %vm413, 0.0
      %437 = vst.msk [vmem:[#allocation2 + $0x89] sm:$0x1] %vm413, 0.0
      %438 = vst.msk [vmem:[#allocation2 + $0xa1] sm:$0x1] %vm413, 0.0
      %439 = vst.msk [vmem:[#allocation2 + $0xb9] sm:$0x1] %vm413, 0.0
      %440 = vst.msk [vmem:[#allocation2 + $0xd1] sm:$0x1] %vm413, 0.0
      %441 = vst.msk [vmem:[#allocation2 + $0xe9] sm:$0x1] %vm413, 0.0
      %442 = vst.msk [vmem:[#allocation2 + $0x101] sm:$0x1] %vm413, 0.0
      %443 = vst.msk [vmem:[#allocation2 + $0x119] sm:$0x1] %vm413, 0.0
      %444 = vst.msk [vmem:[#allocation2 + $0x131] sm:$0x1] %vm413, 0.0
      %445 = vst.msk [vmem:[#allocation2 + $0x149] sm:$0x1] %vm413, 0.0
      %446 = vst.msk [vmem:[#allocation2 + $0x161] sm:$0x1] %vm413, 0.0
      %447 = vst.msk [vmem:[#allocation2 + $0x179] sm:$0x1] %vm413, 0.0
      %448 = vst.msk [vmem:[#allocation2 + $0x191] sm:$0x1] %vm413, 0.0
      %449 = vst.msk [vmem:[#allocation2 + $0x1a9] sm:$0x1] %vm413, 0.0
      %v450 = vld [vmem:[%s361] sm:$0xff]
      %v451 = vld [vmem:[%s361 + $0x8] sm:$0xff]
      %p452 = scmp.gt.s32.totalorder %s22, 0
      %s453 = scalar_select %p452, 1, 0
      %s454 = scvt.s32.f32 %s453
      %v455 = vstv %s454
      %v456 = vmul.f32 %v450, %v455
      %v457 = vmul.f32 %v451, %v455
      %vm458 = vcmask 130048
      %459 = vst.msk [vmem:[#allocation2 + $0x1] sm:$0xff] %vm458, %v456
      %460 = vst.msk [vmem:[#allocation2 + $0x9] sm:$0xff] %vm458, %v457
      %v461 = vld [vmem:[%s375] sm:$0xff]
      %v462 = vld [vmem:[%s375 + $0x8] sm:$0xff]
      %v463 = vld [vmem:[%s375 + $0x10] sm:$0xff]
      %v464 = vld [vmem:[%s375 + $0x18] sm:$0xff]
      %v465 = vld [vmem:[%s375 + $0x20] sm:$0xff]
      %v466 = vld [vmem:[%s375 + $0x28] sm:$0xff]
      %v467 = vld [vmem:[%s375 + $0x30] sm:$0xff]
      %v468 = vld [vmem:[%s375 + $0x38] sm:$0xff]
      %v469 = vld [vmem:[%s375 + $0x40] sm:$0xff]
      %v470 = vld [vmem:[%s375 + $0x48] sm:$0xff]
      %v471 = vld [vmem:[%s375 + $0x50] sm:$0xff]
      %v472 = vld [vmem:[%s375 + $0x58] sm:$0xff]
      %v473 = vld [vmem:[%s375 + $0x60] sm:$0xff]
      %v474 = vld [vmem:[%s375 + $0x68] sm:$0xff]
      %v475 = vld [vmem:[%s375 + $0x70] sm:$0xff]
      %v476 = vld [vmem:[%s375 + $0x78] sm:$0xff]
      %v477 = vld [vmem:[%s375 + $0x80] sm:$0xff]
      %v478 = vld [vmem:[%s375 + $0x88] sm:$0xff]
      %v479 = vld [vmem:[%s375 + $0x90] sm:$0xff]
      %v480 = vld [vmem:[%s375 + $0x98] sm:$0xff]
      %v481 = vld [vmem:[%s375 + $0xa0] sm:$0xff]
      %v482 = vld [vmem:[%s375 + $0xa8] sm:$0xff]
      %v483 = vld [vmem:[%s375 + $0xb0] sm:$0xff]
      %v484 = vld [vmem:[%s375 + $0xb8] sm:$0xff]
      %v485 = vld [vmem:[%s375 + $0xc0] sm:$0xff]
      %v486 = vld [vmem:[%s375 + $0xc8] sm:$0xff]
      %v487 = vld [vmem:[%s375 + $0xd0] sm:$0xff]
      %v488 = vld [vmem:[%s375 + $0xd8] sm:$0xff]
      %v489 = vld [vmem:[%s375 + $0xe0] sm:$0xff]
      %v490 = vld [vmem:[%s375 + $0xe8] sm:$0xff]
      %v491 = vld [vmem:[%s375 + $0xf0] sm:$0xff]
      %v492 = vld [vmem:[%s375 + $0xf8] sm:$0xff]
      %s493 = scalar_lea.vmem [#allocation2], 24
      %494 = vst.msk [vmem:[%s493 + $0x1] sm:$0xff] %vm458, %v461
      %495 = vst.msk [vmem:[%s493 + $0x9] sm:$0xff] %vm458, %v462
      %496 = vst.msk [vmem:[%s493 + $0x19] sm:$0xff] %vm458, %v463
      %497 = vst.msk [vmem:[%s493 + $0x21] sm:$0xff] %vm458, %v464
      %498 = vst.msk [vmem:[%s493 + $0x31] sm:$0xff] %vm458, %v465
      %499 = vst.msk [vmem:[%s493 + $0x39] sm:$0xff] %vm458, %v466
      %500 = vst.msk [vmem:[%s493 + $0x49] sm:$0xff] %vm458, %v467
      %501 = vst.msk [vmem:[%s493 + $0x51] sm:$0xff] %vm458, %v468
      %502 = vst.msk [vmem:[%s493 + $0x61] sm:$0xff] %vm458, %v469
      %503 = vst.msk [vmem:[%s493 + $0x69] sm:$0xff] %vm458, %v470
      %504 = vst.msk [vmem:[%s493 + $0x79] sm:$0xff] %vm458, %v471
      %505 = vst.msk [vmem:[%s493 + $0x81] sm:$0xff] %vm458, %v472
      %506 = vst.msk [vmem:[%s493 + $0x91] sm:$0xff] %vm458, %v473
      %507 = vst.msk [vmem:[%s493 + $0x99] sm:$0xff] %vm458, %v474
      %508 = vst.msk [vmem:[%s493 + $0xa9] sm:$0xff] %vm458, %v475
      %509 = vst.msk [vmem:[%s493 + $0xb1] sm:$0xff] %vm458, %v476
      %510 = vst.msk [vmem:[%s493 + $0xc1] sm:$0xff] %vm458, %v477
      %511 = vst.msk [vmem:[%s493 + $0xc9] sm:$0xff] %vm458, %v478
      %512 = vst.msk [vmem:[%s493 + $0xd9] sm:$0xff] %vm458, %v479
      %513 = vst.msk [vmem:[%s493 + $0xe1] sm:$0xff] %vm458, %v480
      %514 = vst.msk [vmem:[%s493 + $0xf1] sm:$0xff] %vm458, %v481
      %515 = vst.msk [vmem:[%s493 + $0xf9] sm:$0xff] %vm458, %v482
      %516 = vst.msk [vmem:[%s493 + $0x109] sm:$0xff] %vm458, %v483
      %517 = vst.msk [vmem:[%s493 + $0x111] sm:$0xff] %vm458, %v484
      %518 = vst.msk [vmem:[%s493 + $0x121] sm:$0xff] %vm458, %v485
      %519 = vst.msk [vmem:[%s493 + $0x129] sm:$0xff] %vm458, %v486
      %520 = vst.msk [vmem:[%s493 + $0x139] sm:$0xff] %vm458, %v487
      %521 = vst.msk [vmem:[%s493 + $0x141] sm:$0xff] %vm458, %v488
      %522 = vst.msk [vmem:[%s493 + $0x151] sm:$0xff] %vm458, %v489
      %523 = vst.msk [vmem:[%s493 + $0x159] sm:$0xff] %vm458, %v490
      %524 = vst.msk [vmem:[%s493 + $0x169] sm:$0xff] %vm458, %v491
      %525 = vst.msk [vmem:[%s493 + $0x171] sm:$0xff] %vm458, %v492
      %v526 = vld [vmem:[%s389] sm:$0xff]
      %v527 = vld [vmem:[%s389 + $0x8] sm:$0xff]
      %p528 = scmp.lt.s32.totalorder %s22, 0
      %s529 = scalar_select %p528, 1, 0
      %s530 = scvt.s32.f32 %s529
      %v531 = vstv %s530
      %v532 = vmul.f32 %v526, %v531
      %v533 = vmul.f32 %v527, %v531
      %s534 = scalar_lea.vmem [#allocation2], 408
      %535 = vst.msk [vmem:[%s534 + $0x1] sm:$0xff] %vm458, %v532
      %536 = vst.msk [vmem:[%s534 + $0x9] sm:$0xff] %vm458, %v533
      %v537 = vld [vmem:[#allocation2] sm:$0xff]
      %v538 = vld [vmem:[#allocation2 + $0x8] sm:$0xff]
      %v539 = vld [vmem:[#allocation2 + $0x10] sm:$0x3]
      %v540 = vld [vmem:[#allocation2 + $0x18] sm:$0xff]
      %v541 = vld [vmem:[#allocation2 + $0x20] sm:$0xff]
      %v542 = vld [vmem:[#allocation2 + $0x28] sm:$0x3]
      %v543 = vld [vmem:[#allocation2 + $0x30] sm:$0xff]
      %v544 = vld [vmem:[#allocation2 + $0x38] sm:$0xff]
      %v545 = vld [vmem:[#allocation2 + $0x40] sm:$0x3]
      %v546 = vld [vmem:[#allocation2 + $0x48] sm:$0xff]
      %v547 = vld [vmem:[#allocation2 + $0x50] sm:$0xff]
      %v548 = vld [vmem:[#allocation2 + $0x58] sm:$0x3]
      %v549 = vld [vmem:[#allocation2 + $0x60] sm:$0xff]
      %v550 = vld [vmem:[#allocation2 + $0x68] sm:$0xff]
      %v551 = vld [vmem:[#allocation2 + $0x70] sm:$0x3]
      %v552 = vld [vmem:[#allocation2 + $0x78] sm:$0xff]
      %v553 = vld [vmem:[#allocation2 + $0x80] sm:$0xff]
      %v554 = vld [vmem:[#allocation2 + $0x88] sm:$0x3]
      %v555 = vld [vmem:[#allocation2 + $0x90] sm:$0xff]
      %v556 = vld [vmem:[#allocation2 + $0x98] sm:$0xff]
      %v557 = vld [vmem:[#allocation2 + $0xa0] sm:$0x3]
      %v558 = vld [vmem:[#allocation2 + $0xa8] sm:$0xff]
      %v559 = vld [vmem:[#allocation2 + $0xb0] sm:$0xff]
      %v560 = vld [vmem:[#allocation2 + $0xb8] sm:$0x3]
      %v561 = vld [vmem:[#allocation2 + $0xc0] sm:$0xff]
      %v562 = vld [vmem:[#allocation2 + $0xc8] sm:$0xff]
      %v563 = vld [vmem:[#allocation2 + $0xd0] sm:$0x3]
      %v564 = vld [vmem:[#allocation2 + $0xd8] sm:$0xff]
      %v565 = vld [vmem:[#allocation2 + $0xe0] sm:$0xff]
      %v566 = vld [vmem:[#allocation2 + $0xe8] sm:$0x3]
      %v567 = vld [vmem:[#allocation2 + $0xf0] sm:$0xff]
      %v568 = vld [vmem:[#allocation2 + $0xf8] sm:$0xff]
      %v569 = vld [vmem:[#allocation2 + $0x100] sm:$0x3]
      %v570 = vld [vmem:[#allocation2 + $0x108] sm:$0xff]
      %v571 = vld [vmem:[#allocation2 + $0x110] sm:$0xff]
      %v572 = vld [vmem:[#allocation2 + $0x118] sm:$0x3]
      %v573 = vld [vmem:[#allocation2 + $0x120] sm:$0xff]
      %v574 = vld [vmem:[#allocation2 + $0x128] sm:$0xff]
      %v575 = vld [vmem:[#allocation2 + $0x130] sm:$0x3]
      %v576 = vld [vmem:[#allocation2 + $0x138] sm:$0xff]
      %v577 = vld [vmem:[#allocation2 + $0x140] sm:$0xff]
      %v578 = vld [vmem:[#allocation2 + $0x148] sm:$0x3]
      %v579 = vld [vmem:[#allocation2 + $0x150] sm:$0xff]
      %v580 = vld [vmem:[#allocation2 + $0x158] sm:$0xff]
      %v581 = vld [vmem:[#allocation2 + $0x160] sm:$0x3]
      %v582 = vld [vmem:[#allocation2 + $0x168] sm:$0xff]
      %v583 = vld [vmem:[#allocation2 + $0x170] sm:$0xff]
      %v584 = vld [vmem:[#allocation2 + $0x178] sm:$0x3]
      %v585 = vld [vmem:[#allocation2 + $0x180] sm:$0xff]
      %v586 = vld [vmem:[#allocation2 + $0x188] sm:$0xff]
      %v587 = vld [vmem:[#allocation2 + $0x190] sm:$0x3]
      %v588 = vld [vmem:[#allocation2 + $0x198] sm:$0xff]
      %v589 = vld [vmem:[#allocation2 + $0x1a0] sm:$0xff]
      %v590 = vld [vmem:[#allocation2 + $0x1a8] sm:$0x3]
      %v591 = vpack.c.bf16 %v538, %v537
      %v592 = vpack.c.bf16 %v539, %v539
      %v593 = vpack.c.bf16 %v541, %v540
      %v594 = vpack.c.bf16 %v542, %v542
      %v595 = vpack.c.bf16 %v544, %v543
      %v596 = vpack.c.bf16 %v545, %v545
      %v597 = vpack.c.bf16 %v547, %v546
      %v598 = vpack.c.bf16 %v548, %v548
      %v599 = vpack.c.bf16 %v550, %v549
      %v600 = vpack.c.bf16 %v551, %v551
      %v601 = vpack.c.bf16 %v553, %v552
      %v602 = vpack.c.bf16 %v554, %v554
      %v603 = vpack.c.bf16 %v556, %v555
      %v604 = vpack.c.bf16 %v557, %v557
      %v605 = vpack.c.bf16 %v559, %v558
      %v606 = vpack.c.bf16 %v560, %v560
      %v607 = vpack.c.bf16 %v562, %v561
      %v608 = vpack.c.bf16 %v563, %v563
      %v609 = vpack.c.bf16 %v565, %v564
      %v610 = vpack.c.bf16 %v566, %v566
      %v611 = vpack.c.bf16 %v568, %v567
      %v612 = vpack.c.bf16 %v569, %v569
      %v613 = vpack.c.bf16 %v571, %v570
      %v614 = vpack.c.bf16 %v572, %v572
      %v615 = vpack.c.bf16 %v574, %v573
      %v616 = vpack.c.bf16 %v575, %v575
      %v617 = vpack.c.bf16 %v577, %v576
      %v618 = vpack.c.bf16 %v578, %v578
      %v619 = vpack.c.bf16 %v580, %v579
      %v620 = vpack.c.bf16 %v581, %v581
      %v621 = vpack.c.bf16 %v583, %v582
      %v622 = vpack.c.bf16 %v584, %v584
      %v623 = vpack.c.bf16 %v586, %v585
      %v624 = vpack.c.bf16 %v587, %v587
      %v625 = vpack.c.bf16 %v589, %v588
      %v626 = vpack.c.bf16 %v590, %v590
      %v627 = vld [vmem:[%s3] sm:$0xf]
      %v628 = vld [vmem:[%s3 + $0x4] sm:$0xf]
      %vm629 = vsmask.f32 7424
      %v631 = vshrl.u32 %v591, 16
      %v633 = vshll.u32 %v591, 16
      %v635 = vrot.slane %v633, 1
      %v636 = vor.u32 %v631, %v635
      %v638 = vshll.u32 %v592, 16
      %v640 = vrot.slane %v638, 1
      %v641 = vsel %vm629, %v636, %v640
      %v643 = vshrl.u32 %v593, 16
      %v645 = vshll.u32 %v593, 16
      %v647 = vrot.slane %v645, 1
      %v648 = vor.u32 %v643, %v647
      %v650 = vshll.u32 %v594, 16
      %v652 = vrot.slane %v650, 1
      %v653 = vsel %vm629, %v648, %v652
      %v655 = vshrl.u32 %v595, 16
      %v657 = vshll.u32 %v595, 16
      %v659 = vrot.slane %v657, 1
      %v660 = vor.u32 %v655, %v659
      %v662 = vshll.u32 %v596, 16
      %v664 = vrot.slane %v662, 1
      %v665 = vsel %vm629, %v660, %v664
      %v667 = vshrl.u32 %v597, 16
      %v669 = vshll.u32 %v597, 16
      %v671 = vrot.slane %v669, 1
      %v672 = vor.u32 %v667, %v671
      %v674 = vshll.u32 %v598, 16
      %v676 = vrot.slane %v674, 1
      %v677 = vsel %vm629, %v672, %v676
      %v679 = vshrl.u32 %v599, 16
      %v681 = vshll.u32 %v599, 16
      %v683 = vrot.slane %v681, 1
      %v684 = vor.u32 %v679, %v683
      %v686 = vshll.u32 %v600, 16
      %v688 = vrot.slane %v686, 1
      %v689 = vsel %vm629, %v684, %v688
      %v691 = vshrl.u32 %v601, 16
      %v693 = vshll.u32 %v601, 16
      %v695 = vrot.slane %v693, 1
      %v696 = vor.u32 %v691, %v695
      %v698 = vshll.u32 %v602, 16
      %v700 = vrot.slane %v698, 1
      %v701 = vsel %vm629, %v696, %v700
      %v703 = vshrl.u32 %v603, 16
      %v705 = vshll.u32 %v603, 16
      %v707 = vrot.slane %v705, 1
      %v708 = vor.u32 %v703, %v707
      %v710 = vshll.u32 %v604, 16
      %v712 = vrot.slane %v710, 1
      %v713 = vsel %vm629, %v708, %v712
      %v715 = vshrl.u32 %v605, 16
      %v717 = vshll.u32 %v605, 16
      %v719 = vrot.slane %v717, 1
      %v720 = vor.u32 %v715, %v719
      %v722 = vshll.u32 %v606, 16
      %v724 = vrot.slane %v722, 1
      %v725 = vsel %vm629, %v720, %v724
      %v727 = vshrl.u32 %v607, 16
      %v729 = vshll.u32 %v607, 16
      %v731 = vrot.slane %v729, 1
      %v732 = vor.u32 %v727, %v731
      %v734 = vshll.u32 %v608, 16
      %v736 = vrot.slane %v734, 1
      %v737 = vsel %vm629, %v732, %v736
      %v739 = vshrl.u32 %v609, 16
      %v741 = vshll.u32 %v609, 16
      %v743 = vrot.slane %v741, 1
      %v744 = vor.u32 %v739, %v743
      %v746 = vshll.u32 %v610, 16
      %v748 = vrot.slane %v746, 1
      %v749 = vsel %vm629, %v744, %v748
      %v751 = vshrl.u32 %v611, 16
      %v753 = vshll.u32 %v611, 16
      %v755 = vrot.slane %v753, 1
      %v756 = vor.u32 %v751, %v755
      %v758 = vshll.u32 %v612, 16
      %v760 = vrot.slane %v758, 1
      %v761 = vsel %vm629, %v756, %v760
      %v763 = vshrl.u32 %v613, 16
      %v765 = vshll.u32 %v613, 16
      %v767 = vrot.slane %v765, 1
      %v768 = vor.u32 %v763, %v767
      %v770 = vshll.u32 %v614, 16
      %v772 = vrot.slane %v770, 1
      %v773 = vsel %vm629, %v768, %v772
      %v775 = vshrl.u32 %v615, 16
      %v777 = vshll.u32 %v615, 16
      %v779 = vrot.slane %v777, 1
      %v780 = vor.u32 %v775, %v779
      %v782 = vshll.u32 %v616, 16
      %v784 = vrot.slane %v782, 1
      %v785 = vsel %vm629, %v780, %v784
      %v787 = vshrl.u32 %v617, 16
      %v789 = vshll.u32 %v617, 16
      %v791 = vrot.slane %v789, 1
      %v792 = vor.u32 %v787, %v791
      %v794 = vshll.u32 %v618, 16
      %v796 = vrot.slane %v794, 1
      %v797 = vsel %vm629, %v792, %v796
      %v799 = vshrl.u32 %v619, 16
      %v801 = vshll.u32 %v619, 16
      %v803 = vrot.slane %v801, 1
      %v804 = vor.u32 %v799, %v803
      %v806 = vshll.u32 %v620, 16
      %v808 = vrot.slane %v806, 1
      %v809 = vsel %vm629, %v804, %v808
      %v811 = vshrl.u32 %v621, 16
      %v813 = vshll.u32 %v621, 16
      %v815 = vrot.slane %v813, 1
      %v816 = vor.u32 %v811, %v815
      %v818 = vshll.u32 %v622, 16
      %v820 = vrot.slane %v818, 1
      %v821 = vsel %vm629, %v816, %v820
      %s822 = scalar_lea.vmem %s3, 8
      %v823 = vld [vmem:[%s822] sm:$0xf]
      %v824 = vld [vmem:[%s822 + $0x4] sm:$0xf]
      %v827 = vunpack.c.l.b16 %v823
      %v828 = vunpack.c.l.b16 %v824
      %v829 = vpack.c.b16 %v828, %v827
      %v832 = vsel %vm458, %v641, 0
      %v835 = vsel %vm458, %v653, 0
      %v838 = vsel %vm458, %v665, 0
      %v841 = vsel %vm458, %v677, 0
      %v844 = vsel %vm458, %v689, 0
      %v847 = vsel %vm458, %v701, 0
      %v850 = vsel %vm458, %v713, 0
      %v853 = vsel %vm458, %v725, 0
      %v856 = vsel %vm458, %v737, 0
      %v859 = vsel %vm458, %v749, 0
      %v862 = vsel %vm458, %v761, 0
      %v865 = vsel %vm458, %v773, 0
      %v868 = vsel %vm458, %v785, 0
      %v871 = vsel %vm458, %v797, 0
      %v874 = vsel %vm458, %v809, 0
      %v877 = vsel %vm458, %v821, 0
      %879 = vmatprep.subr.bf16.mxu0 0
      %880 = vmatpush1.bf16.msra.mxu0 %v829
      %881 = vmatprep.subr.bf16.mxu0 0
      %882 = vmatpush1.bf16.msra.mxu0 0
      %883 = vmatprep.subr.bf16.mxu0 0
      %884 = vmatpush1.bf16.msra.mxu0 0
      %885 = vmatprep.subr.bf16.mxu0 0
      %886 = vmatpush1.bf16.msra.mxu0 0
      %887 = vmatprep.subr.bf16.mxu0 0
      %888 = vmatpush1.bf16.msra.mxu0 0
      %889 = vmatprep.subr.bf16.mxu0 0
      %890 = vmatpush1.bf16.msra.mxu0 0
      %891 = vmatprep.subr.bf16.mxu0 0
      %892 = vmatpush1.bf16.msra.mxu0 0
      %893 = vmatprep.subr.bf16.mxu0 0
      %894 = vmatpush1.bf16.msra.mxu0 0
      %895 = vmatprep.subr.bf16.mxu0 0
      %896 = vmatpush1.bf16.msra.mxu0 0
      %897 = vmatprep.subr.bf16.mxu0 0
      %898 = vmatpush1.bf16.msra.mxu0 0
      %899 = vmatprep.subr.bf16.mxu0 0
      %900 = vmatpush1.bf16.msra.mxu0 0
      %901 = vmatprep.subr.bf16.mxu0 0
      %902 = vmatpush1.bf16.msra.mxu0 0
      %903 = vmatprep.subr.bf16.mxu0 0
      %904 = vmatpush1.bf16.msra.mxu0 0
      %905 = vmatprep.subr.bf16.mxu0 0
      %906 = vmatpush1.bf16.msra.mxu0 0
      %907 = vmatprep.subr.bf16.mxu0 0
      %908 = vmatpush1.bf16.msra.mxu0 0
      %909 = vmatprep.subr.bf16.mxu0 0
      %910 = vmatpush1.bf16.msra.mxu0 0
      %911 = vmatprep.mubr.bf16.mxu0 0
      %912 = vmatmul.mubr.bf16.gmra.mrb[0].mxu0 %v832
      %v913 = vpop.f32.mrb[0].mxu0
      %v914 = vadd.f32 0.0, %v913
      %v915 = vpop.f32.mrb[0].mxu0
      %v916 = vpop.f32.mrb[0].mxu0
      %v917 = vadd.f32 0.0, %v916
      %v918 = vpop.f32.mrb[0].mxu0
      %919 = vmatprep.mubr.bf16.mxu0 0
      %920 = vmatmul.mubr.bf16.gmra.mrb[0].mxu0 %v835
      %v921 = vpop.f32.mrb[0].mxu0
      %v922 = vadd.f32 0.0, %v921
      %v923 = vpop.f32.mrb[0].mxu0
      %v924 = vpop.f32.mrb[0].mxu0
      %v925 = vadd.f32 0.0, %v924
      %v926 = vpop.f32.mrb[0].mxu0
      %927 = vmatprep.mubr.bf16.mxu0 0
      %928 = vmatmul.mubr.bf16.gmra.mrb[0].mxu0 %v838
      %v929 = vpop.f32.mrb[0].mxu0
      %v930 = vadd.f32 0.0, %v929
      %v931 = vpop.f32.mrb[0].mxu0
      %v932 = vpop.f32.mrb[0].mxu0
      %v933 = vadd.f32 0.0, %v932
      %v934 = vpop.f32.mrb[0].mxu0
      %935 = vmatprep.mubr.bf16.mxu0 0
      %936 = vmatmul.mubr.bf16.gmra.mrb[0].mxu0 %v841
      %v937 = vpop.f32.mrb[0].mxu0
      %v938 = vadd.f32 0.0, %v937
      %v939 = vpop.f32.mrb[0].mxu0
      %v940 = vpop.f32.mrb[0].mxu0
      %v941 = vadd.f32 0.0, %v940
      %v942 = vpop.f32.mrb[0].mxu0
      %943 = vmatprep.mubr.bf16.mxu0 0
      %944 = vmatmul.mubr.bf16.gmra.mrb[0].mxu0 %v844
      %v945 = vpop.f32.mrb[0].mxu0
      %v946 = vadd.f32 0.0, %v945
      %v947 = vpop.f32.mrb[0].mxu0
      %v948 = vpop.f32.mrb[0].mxu0
      %v949 = vadd.f32 0.0, %v948
      %v950 = vpop.f32.mrb[0].mxu0
      %951 = vmatprep.mubr.bf16.mxu0 0
      %952 = vmatmul.mubr.bf16.gmra.mrb[0].mxu0 %v847
      %v953 = vpop.f32.mrb[0].mxu0
      %v954 = vadd.f32 0.0, %v953
      %v955 = vpop.f32.mrb[0].mxu0
      %v956 = vpop.f32.mrb[0].mxu0
      %v957 = vadd.f32 0.0, %v956
      %v958 = vpop.f32.mrb[0].mxu0
      %959 = vmatprep.mubr.bf16.mxu0 0
      %960 = vmatmul.mubr.bf16.gmra.mrb[0].mxu0 %v850
      %v961 = vpop.f32.mrb[0].mxu0
      %v962 = vadd.f32 0.0, %v961
      %v963 = vpop.f32.mrb[0].mxu0
      %v964 = vpop.f32.mrb[0].mxu0
      %v965 = vadd.f32 0.0, %v964
      %v966 = vpop.f32.mrb[0].mxu0
      %967 = vmatprep.mubr.bf16.mxu0 0
      %968 = vmatmul.mubr.bf16.gmra.mrb[0].mxu0 %v853
      %v969 = vpop.f32.mrb[0].mxu0
      %v970 = vadd.f32 0.0, %v969
      %v971 = vpop.f32.mrb[0].mxu0
      %v972 = vpop.f32.mrb[0].mxu0
      %v973 = vadd.f32 0.0, %v972
      %v974 = vpop.f32.mrb[0].mxu0
      %975 = vmatprep.mubr.bf16.mxu0 0
      %976 = vmatmul.mubr.bf16.gmra.mrb[0].mxu0 %v856
      %v977 = vpop.f32.mrb[0].mxu0
      %v978 = vadd.f32 0.0, %v977
      %v979 = vpop.f32.mrb[0].mxu0
      %v980 = vpop.f32.mrb[0].mxu0
      %v981 = vadd.f32 0.0, %v980
      %v982 = vpop.f32.mrb[0].mxu0
      %983 = vmatprep.mubr.bf16.mxu0 0
      %984 = vmatmul.mubr.bf16.gmra.mrb[0].mxu0 %v859
      %v985 = vpop.f32.mrb[0].mxu0
      %v986 = vadd.f32 0.0, %v985
      %v987 = vpop.f32.mrb[0].mxu0
      %v988 = vpop.f32.mrb[0].mxu0
      %v989 = vadd.f32 0.0, %v988
      %v990 = vpop.f32.mrb[0].mxu0
      %991 = vmatprep.mubr.bf16.mxu0 0
      %992 = vmatmul.mubr.bf16.gmra.mrb[0].mxu0 %v862
      %v993 = vpop.f32.mrb[0].mxu0
      %v994 = vadd.f32 0.0, %v993
      %v995 = vpop.f32.mrb[0].mxu0
      %v996 = vpop.f32.mrb[0].mxu0
      %v997 = vadd.f32 0.0, %v996
      %v998 = vpop.f32.mrb[0].mxu0
      %999 = vmatprep.mubr.bf16.mxu0 0
      %1000 = vmatmul.mubr.bf16.gmra.mrb[0].mxu0 %v865
      %v1001 = vpop.f32.mrb[0].mxu0
      %v1002 = vadd.f32 0.0, %v1001
      %v1003 = vpop.f32.mrb[0].mxu0
      %v1004 = vpop.f32.mrb[0].mxu0
      %v1005 = vadd.f32 0.0, %v1004
      %v1006 = vpop.f32.mrb[0].mxu0
      %1007 = vmatprep.mubr.bf16.mxu0 0
      %1008 = vmatmul.mubr.bf16.gmra.mrb[0].mxu0 %v868
      %v1009 = vpop.f32.mrb[0].mxu0
      %v1010 = vadd.f32 0.0, %v1009
      %v1011 = vpop.f32.mrb[0].mxu0
      %v1012 = vpop.f32.mrb[0].mxu0
      %v1013 = vadd.f32 0.0, %v1012
      %v1014 = vpop.f32.mrb[0].mxu0
      %1015 = vmatprep.mubr.bf16.mxu0 0
      %1016 = vmatmul.mubr.bf16.gmra.mrb[0].mxu0 %v871
      %v1017 = vpop.f32.mrb[0].mxu0
      %v1018 = vadd.f32 0.0, %v1017
      %v1019 = vpop.f32.mrb[0].mxu0
      %v1020 = vpop.f32.mrb[0].mxu0
      %v1021 = vadd.f32 0.0, %v1020
      %v1022 = vpop.f32.mrb[0].mxu0
      %1023 = vmatprep.mubr.bf16.mxu0 0
      %1024 = vmatmul.mubr.bf16.gmra.mrb[0].mxu0 %v874
      %v1025 = vpop.f32.mrb[0].mxu0
      %v1026 = vadd.f32 0.0, %v1025
      %v1027 = vpop.f32.mrb[0].mxu0
      %v1028 = vpop.f32.mrb[0].mxu0
      %v1029 = vadd.f32 0.0, %v1028
      %v1030 = vpop.f32.mrb[0].mxu0
      %1031 = vmatprep.mubr.bf16.mxu0 0
      %1032 = vmatmul.mubr.bf16.gmra.mrb[0].mxu0 %v877
      %v1033 = vpop.f32.mrb[0].mxu0
      %v1034 = vadd.f32 0.0, %v1033
      %v1035 = vpop.f32.mrb[0].mxu0
      %v1036 = vpop.f32.mrb[0].mxu0
      %v1037 = vadd.f32 0.0, %v1036
      %v1038 = vpop.f32.mrb[0].mxu0
      %1039 = vdwg.mxu0
      %v1042 = vunpack.c.l.b16 %v627
      %v1043 = vunpack.c.l.b16 %v628
      %v1044 = vpack.c.b16 %v1043, %v1042
      %v1046 = vsel %vm458, %v591, 0
      %v1048 = vsel %vm458, %v593, 0
      %v1050 = vsel %vm458, %v595, 0
      %v1052 = vsel %vm458, %v597, 0
      %v1054 = vsel %vm458, %v599, 0
      %v1056 = vsel %vm458, %v601, 0
      %v1058 = vsel %vm458, %v603, 0
      %v1060 = vsel %vm458, %v605, 0
      %v1062 = vsel %vm458, %v607, 0
      %v1064 = vsel %vm458, %v609, 0
      %v1066 = vsel %vm458, %v611, 0
      %v1068 = vsel %vm458, %v613, 0
      %v1070 = vsel %vm458, %v615, 0
      %v1072 = vsel %vm458, %v617, 0
      %v1074 = vsel %vm458, %v619, 0
      %v1076 = vsel %vm458, %v621, 0
      %1078 = vmatprep.subr.bf16.mxu0 0
      %1079 = vmatpush1.bf16.msra.mxu0 %v1044
      %1080 = vmatprep.subr.bf16.mxu0 0
      %1081 = vmatpush1.bf16.msra.mxu0 0
      %1082 = vmatprep.subr.bf16.mxu0 0
      %1083 = vmatpush1.bf16.msra.mxu0 0
      %1084 = vmatprep.subr.bf16.mxu0 0
      %1085 = vmatpush1.bf16.msra.mxu0 0
      %1086 = vmatprep.subr.bf16.mxu0 0
      %1087 = vmatpush1.bf16.msra.mxu0 0
      %1088 = vmatprep.subr.bf16.mxu0 0
      %1089 = vmatpush1.bf16.msra.mxu0 0
      %1090 = vmatprep.subr.bf16.mxu0 0
      %1091 = vmatpush1.bf16.msra.mxu0 0
      %1092 = vmatprep.subr.bf16.mxu0 0
      %1093 = vmatpush1.bf16.msra.mxu0 0
      %1094 = vmatprep.subr.bf16.mxu0 0
      %1095 = vmatpush1.bf16.msra.mxu0 0
      %1096 = vmatprep.subr.bf16.mxu0 0
      %1097 = vmatpush1.bf16.msra.mxu0 0
      %1098 = vmatprep.subr.bf16.mxu0 0
      %1099 = vmatpush1.bf16.msra.mxu0 0
      %1100 = vmatprep.subr.bf16.mxu0 0
      %1101 = vmatpush1.bf16.msra.mxu0 0
      %1102 = vmatprep.subr.bf16.mxu0 0
      %1103 = vmatpush1.bf16.msra.mxu0 0
      %1104 = vmatprep.subr.bf16.mxu0 0
      %1105 = vmatpush1.bf16.msra.mxu0 0
      %1106 = vmatprep.subr.bf16.mxu0 0
      %1107 = vmatpush1.bf16.msra.mxu0 0
      %1108 = vmatprep.subr.bf16.mxu0 0
      %1109 = vmatpush1.bf16.msra.mxu0 0
      %1110 = vmatprep.mubr.bf16.mxu0 0
      %1111 = vmatmul.mubr.bf16.gmra.mrb[0].mxu0 %v1046
      %v1112 = vpop.f32.mrb[0].mxu0
      %v1113 = vadd.f32 %v914, %v1112
      %v1114 = vpop.f32.mrb[0].mxu0
      %v1115 = vpop.f32.mrb[0].mxu0
      %v1116 = vadd.f32 %v917, %v1115
      %v1117 = vpop.f32.mrb[0].mxu0
      %1118 = vmatprep.mubr.bf16.mxu0 0
      %1119 = vmatmul.mubr.bf16.gmra.mrb[0].mxu0 %v1048
      %v1120 = vpop.f32.mrb[0].mxu0
      %v1121 = vadd.f32 %v922, %v1120
      %v1122 = vpop.f32.mrb[0].mxu0
      %v1123 = vpop.f32.mrb[0].mxu0
      %v1124 = vadd.f32 %v925, %v1123
      %v1125 = vpop.f32.mrb[0].mxu0
      %1126 = vmatprep.mubr.bf16.mxu0 0
      %1127 = vmatmul.mubr.bf16.gmra.mrb[0].mxu0 %v1050
      %v1128 = vpop.f32.mrb[0].mxu0
      %v1129 = vadd.f32 %v930, %v1128
      %v1130 = vpop.f32.mrb[0].mxu0
      %v1131 = vpop.f32.mrb[0].mxu0
      %v1132 = vadd.f32 %v933, %v1131
      %v1133 = vpop.f32.mrb[0].mxu0
      %1134 = vmatprep.mubr.bf16.mxu0 0
      %1135 = vmatmul.mubr.bf16.gmra.mrb[0].mxu0 %v1052
      %v1136 = vpop.f32.mrb[0].mxu0
      %v1137 = vadd.f32 %v938, %v1136
      %v1138 = vpop.f32.mrb[0].mxu0
      %v1139 = vpop.f32.mrb[0].mxu0
      %v1140 = vadd.f32 %v941, %v1139
      %v1141 = vpop.f32.mrb[0].mxu0
      %1142 = vmatprep.mubr.bf16.mxu0 0
      %1143 = vmatmul.mubr.bf16.gmra.mrb[0].mxu0 %v1054
      %v1144 = vpop.f32.mrb[0].mxu0
      %v1145 = vadd.f32 %v946, %v1144
      %v1146 = vpop.f32.mrb[0].mxu0
      %v1147 = vpop.f32.mrb[0].mxu0
      %v1148 = vadd.f32 %v949, %v1147
      %v1149 = vpop.f32.mrb[0].mxu0
      %1150 = vmatprep.mubr.bf16.mxu0 0
      %1151 = vmatmul.mubr.bf16.gmra.mrb[0].mxu0 %v1056
      %v1152 = vpop.f32.mrb[0].mxu0
      %v1153 = vadd.f32 %v954, %v1152
      %v1154 = vpop.f32.mrb[0].mxu0
      %v1155 = vpop.f32.mrb[0].mxu0
      %v1156 = vadd.f32 %v957, %v1155
      %v1157 = vpop.f32.mrb[0].mxu0
      %1158 = vmatprep.mubr.bf16.mxu0 0
      %1159 = vmatmul.mubr.bf16.gmra.mrb[0].mxu0 %v1058
      %v1160 = vpop.f32.mrb[0].mxu0
      %v1161 = vadd.f32 %v962, %v1160
      %v1162 = vpop.f32.mrb[0].mxu0
      %v1163 = vpop.f32.mrb[0].mxu0
      %v1164 = vadd.f32 %v965, %v1163
      %v1165 = vpop.f32.mrb[0].mxu0
      %1166 = vmatprep.mubr.bf16.mxu0 0
      %1167 = vmatmul.mubr.bf16.gmra.mrb[0].mxu0 %v1060
      %v1168 = vpop.f32.mrb[0].mxu0
      %v1169 = vadd.f32 %v970, %v1168
      %v1170 = vpop.f32.mrb[0].mxu0
      %v1171 = vpop.f32.mrb[0].mxu0
      %v1172 = vadd.f32 %v973, %v1171
      %v1173 = vpop.f32.mrb[0].mxu0
      %1174 = vmatprep.mubr.bf16.mxu0 0
      %1175 = vmatmul.mubr.bf16.gmra.mrb[0].mxu0 %v1062
      %v1176 = vpop.f32.mrb[0].mxu0
      %v1177 = vadd.f32 %v978, %v1176
      %v1178 = vpop.f32.mrb[0].mxu0
      %v1179 = vpop.f32.mrb[0].mxu0
      %v1180 = vadd.f32 %v981, %v1179
      %v1181 = vpop.f32.mrb[0].mxu0
      %1182 = vmatprep.mubr.bf16.mxu0 0
      %1183 = vmatmul.mubr.bf16.gmra.mrb[0].mxu0 %v1064
      %v1184 = vpop.f32.mrb[0].mxu0
      %v1185 = vadd.f32 %v986, %v1184
      %v1186 = vpop.f32.mrb[0].mxu0
      %v1187 = vpop.f32.mrb[0].mxu0
      %v1188 = vadd.f32 %v989, %v1187
      %v1189 = vpop.f32.mrb[0].mxu0
      %1190 = vmatprep.mubr.bf16.mxu0 0
      %1191 = vmatmul.mubr.bf16.gmra.mrb[0].mxu0 %v1066
      %v1192 = vpop.f32.mrb[0].mxu0
      %v1193 = vadd.f32 %v994, %v1192
      %v1194 = vpop.f32.mrb[0].mxu0
      %v1195 = vpop.f32.mrb[0].mxu0
      %v1196 = vadd.f32 %v997, %v1195
      %v1197 = vpop.f32.mrb[0].mxu0
      %1198 = vmatprep.mubr.bf16.mxu0 0
      %1199 = vmatmul.mubr.bf16.gmra.mrb[0].mxu0 %v1068
      %v1200 = vpop.f32.mrb[0].mxu0
      %v1201 = vadd.f32 %v1002, %v1200
      %v1202 = vpop.f32.mrb[0].mxu0
      %v1203 = vpop.f32.mrb[0].mxu0
      %v1204 = vadd.f32 %v1005, %v1203
      %v1205 = vpop.f32.mrb[0].mxu0
      %1206 = vmatprep.mubr.bf16.mxu0 0
      %1207 = vmatmul.mubr.bf16.gmra.mrb[0].mxu0 %v1070
      %v1208 = vpop.f32.mrb[0].mxu0
      %v1209 = vadd.f32 %v1010, %v1208
      %v1210 = vpop.f32.mrb[0].mxu0
      %v1211 = vpop.f32.mrb[0].mxu0
      %v1212 = vadd.f32 %v1013, %v1211
      %v1213 = vpop.f32.mrb[0].mxu0
      %1214 = vmatprep.mubr.bf16.mxu0 0
      %1215 = vmatmul.mubr.bf16.gmra.mrb[0].mxu0 %v1072
      %v1216 = vpop.f32.mrb[0].mxu0
      %v1217 = vadd.f32 %v1018, %v1216
      %v1218 = vpop.f32.mrb[0].mxu0
      %v1219 = vpop.f32.mrb[0].mxu0
      %v1220 = vadd.f32 %v1021, %v1219
      %v1221 = vpop.f32.mrb[0].mxu0
      %1222 = vmatprep.mubr.bf16.mxu0 0
      %1223 = vmatmul.mubr.bf16.gmra.mrb[0].mxu0 %v1074
      %v1224 = vpop.f32.mrb[0].mxu0
      %v1225 = vadd.f32 %v1026, %v1224
      %v1226 = vpop.f32.mrb[0].mxu0
      %v1227 = vpop.f32.mrb[0].mxu0
      %v1228 = vadd.f32 %v1029, %v1227
      %v1229 = vpop.f32.mrb[0].mxu0
      %1230 = vmatprep.mubr.bf16.mxu0 0
      %1231 = vmatmul.mubr.bf16.gmra.mrb[0].mxu0 %v1076
      %v1232 = vpop.f32.mrb[0].mxu0
      %v1233 = vadd.f32 %v1034, %v1232
      %v1234 = vpop.f32.mrb[0].mxu0
      %v1235 = vpop.f32.mrb[0].mxu0
      %v1236 = vadd.f32 %v1037, %v1235
      %v1237 = vpop.f32.mrb[0].mxu0
      %1238 = vdwg.mxu0
      %vm1271 = vcmask 1046528
      %v1272 = vrot.slane %v591, 1
      %v1273 = vrot.slane %v592, 1
      %v1274 = vsel %vm1271, %v1272, %v1273
      %v1275 = vrot.slane %v593, 1
      %v1276 = vrot.slane %v594, 1
      %v1277 = vsel %vm1271, %v1275, %v1276
      %v1278 = vrot.slane %v595, 1
      %v1279 = vrot.slane %v596, 1
      %v1280 = vsel %vm1271, %v1278, %v1279
      %v1281 = vrot.slane %v597, 1
      %v1282 = vrot.slane %v598, 1
      %v1283 = vsel %vm1271, %v1281, %v1282
      %v1284 = vrot.slane %v599, 1
      %v1285 = vrot.slane %v600, 1
      %v1286 = vsel %vm1271, %v1284, %v1285
      %v1287 = vrot.slane %v601, 1
      %v1288 = vrot.slane %v602, 1
      %v1289 = vsel %vm1271, %v1287, %v1288
      %v1290 = vrot.slane %v603, 1
      %v1291 = vrot.slane %v604, 1
      %v1292 = vsel %vm1271, %v1290, %v1291
      %v1293 = vrot.slane %v605, 1
      %v1294 = vrot.slane %v606, 1
      %v1295 = vsel %vm1271, %v1293, %v1294
      %v1296 = vrot.slane %v607, 1
      %v1297 = vrot.slane %v608, 1
      %v1298 = vsel %vm1271, %v1296, %v1297
      %v1299 = vrot.slane %v609, 1
      %v1300 = vrot.slane %v610, 1
      %v1301 = vsel %vm1271, %v1299, %v1300
      %v1302 = vrot.slane %v611, 1
      %v1303 = vrot.slane %v612, 1
      %v1304 = vsel %vm1271, %v1302, %v1303
      %v1305 = vrot.slane %v613, 1
      %v1306 = vrot.slane %v614, 1
      %v1307 = vsel %vm1271, %v1305, %v1306
      %v1308 = vrot.slane %v615, 1
      %v1309 = vrot.slane %v616, 1
      %v1310 = vsel %vm1271, %v1308, %v1309
      %v1311 = vrot.slane %v617, 1
      %v1312 = vrot.slane %v618, 1
      %v1313 = vsel %vm1271, %v1311, %v1312
      %v1314 = vrot.slane %v619, 1
      %v1315 = vrot.slane %v620, 1
      %v1316 = vsel %vm1271, %v1314, %v1315
      %v1317 = vrot.slane %v621, 1
      %v1318 = vrot.slane %v622, 1
      %v1319 = vsel %vm1271, %v1317, %v1318
      %s1320 = scalar_lea.vmem %s3, 16
      %v1321 = vld [vmem:[%s1320] sm:$0xf]
      %v1322 = vld [vmem:[%s1320 + $0x4] sm:$0xf]
      %v1325 = vunpack.c.l.b16 %v1321
      %v1326 = vunpack.c.l.b16 %v1322
      %v1327 = vpack.c.b16 %v1326, %v1325
      %v1330 = vsel %vm458, %v1274, 0
      %v1333 = vsel %vm458, %v1277, 0
      %v1336 = vsel %vm458, %v1280, 0
      %v1339 = vsel %vm458, %v1283, 0
      %v1342 = vsel %vm458, %v1286, 0
      %v1345 = vsel %vm458, %v1289, 0
      %v1348 = vsel %vm458, %v1292, 0
      %v1351 = vsel %vm458, %v1295, 0
      %v1354 = vsel %vm458, %v1298, 0
      %v1357 = vsel %vm458, %v1301, 0
      %v1360 = vsel %vm458, %v1304, 0
      %v1363 = vsel %vm458, %v1307, 0
      %v1366 = vsel %vm458, %v1310, 0
      %v1369 = vsel %vm458, %v1313, 0
      %v1372 = vsel %vm458, %v1316, 0
      %v1375 = vsel %vm458, %v1319, 0
      %1377 = vmatprep.subr.bf16.mxu0 0
      %1378 = vmatpush1.bf16.msra.mxu0 %v1327
      %1379 = vmatprep.subr.bf16.mxu0 0
      %1380 = vmatpush1.bf16.msra.mxu0 0
      %1381 = vmatprep.subr.bf16.mxu0 0
      %1382 = vmatpush1.bf16.msra.mxu0 0
      %1383 = vmatprep.subr.bf16.mxu0 0
      %1384 = vmatpush1.bf16.msra.mxu0 0
      %1385 = vmatprep.subr.bf16.mxu0 0
      %1386 = vmatpush1.bf16.msra.mxu0 0
      %1387 = vmatprep.subr.bf16.mxu0 0
      %1388 = vmatpush1.bf16.msra.mxu0 0
      %1389 = vmatprep.subr.bf16.mxu0 0
      %1390 = vmatpush1.bf16.msra.mxu0 0
      %1391 = vmatprep.subr.bf16.mxu0 0
      %1392 = vmatpush1.bf16.msra.mxu0 0
      %1393 = vmatprep.subr.bf16.mxu0 0
      %1394 = vmatpush1.bf16.msra.mxu0 0
      %1395 = vmatprep.subr.bf16.mxu0 0
      %1396 = vmatpush1.bf16.msra.mxu0 0
      %1397 = vmatprep.subr.bf16.mxu0 0
      %1398 = vmatpush1.bf16.msra.mxu0 0
      %1399 = vmatprep.subr.bf16.mxu0 0
      %1400 = vmatpush1.bf16.msra.mxu0 0
      %1401 = vmatprep.subr.bf16.mxu0 0
      %1402 = vmatpush1.bf16.msra.mxu0 0
      %1403 = vmatprep.subr.bf16.mxu0 0
      %1404 = vmatpush1.bf16.msra.mxu0 0
      %1405 = vmatprep.subr.bf16.mxu0 0
      %1406 = vmatpush1.bf16.msra.mxu0 0
      %1407 = vmatprep.subr.bf16.mxu0 0
      %1408 = vmatpush1.bf16.msra.mxu0 0
      %1409 = vmatprep.mubr.bf16.mxu0 0
      %1410 = vmatmul.mubr.bf16.gmra.mrb[0].mxu0 %v1330
      %v1411 = vpop.f32.mrb[0].mxu0
      %v1412 = vadd.f32 0.0, %v1411
      %v1413 = vpop.f32.mrb[0].mxu0
      %v1414 = vpop.f32.mrb[0].mxu0
      %v1415 = vadd.f32 0.0, %v1414
      %v1416 = vpop.f32.mrb[0].mxu0
      %1417 = vmatprep.mubr.bf16.mxu0 0
      %1418 = vmatmul.mubr.bf16.gmra.mrb[0].mxu0 %v1333
      %v1419 = vpop.f32.mrb[0].mxu0
      %v1420 = vadd.f32 0.0, %v1419
      %v1421 = vpop.f32.mrb[0].mxu0
      %v1422 = vpop.f32.mrb[0].mxu0
      %v1423 = vadd.f32 0.0, %v1422
      %v1424 = vpop.f32.mrb[0].mxu0
      %1425 = vmatprep.mubr.bf16.mxu0 0
      %1426 = vmatmul.mubr.bf16.gmra.mrb[0].mxu0 %v1336
      %v1427 = vpop.f32.mrb[0].mxu0
      %v1428 = vadd.f32 0.0, %v1427
      %v1429 = vpop.f32.mrb[0].mxu0
      %v1430 = vpop.f32.mrb[0].mxu0
      %v1431 = vadd.f32 0.0, %v1430
      %v1432 = vpop.f32.mrb[0].mxu0
      %1433 = vmatprep.mubr.bf16.mxu0 0
      %1434 = vmatmul.mubr.bf16.gmra.mrb[0].mxu0 %v1339
      %v1435 = vpop.f32.mrb[0].mxu0
      %v1436 = vadd.f32 0.0, %v1435
      %v1437 = vpop.f32.mrb[0].mxu0
      %v1438 = vpop.f32.mrb[0].mxu0
      %v1439 = vadd.f32 0.0, %v1438
      %v1440 = vpop.f32.mrb[0].mxu0
      %1441 = vmatprep.mubr.bf16.mxu0 0
      %1442 = vmatmul.mubr.bf16.gmra.mrb[0].mxu0 %v1342
      %v1443 = vpop.f32.mrb[0].mxu0
      %v1444 = vadd.f32 0.0, %v1443
      %v1445 = vpop.f32.mrb[0].mxu0
      %v1446 = vpop.f32.mrb[0].mxu0
      %v1447 = vadd.f32 0.0, %v1446
      %v1448 = vpop.f32.mrb[0].mxu0
      %1449 = vmatprep.mubr.bf16.mxu0 0
      %1450 = vmatmul.mubr.bf16.gmra.mrb[0].mxu0 %v1345
      %v1451 = vpop.f32.mrb[0].mxu0
      %v1452 = vadd.f32 0.0, %v1451
      %v1453 = vpop.f32.mrb[0].mxu0
      %v1454 = vpop.f32.mrb[0].mxu0
      %v1455 = vadd.f32 0.0, %v1454
      %v1456 = vpop.f32.mrb[0].mxu0
      %1457 = vmatprep.mubr.bf16.mxu0 0
      %1458 = vmatmul.mubr.bf16.gmra.mrb[0].mxu0 %v1348
      %v1459 = vpop.f32.mrb[0].mxu0
      %v1460 = vadd.f32 0.0, %v1459
      %v1461 = vpop.f32.mrb[0].mxu0
      %v1462 = vpop.f32.mrb[0].mxu0
      %v1463 = vadd.f32 0.0, %v1462
      %v1464 = vpop.f32.mrb[0].mxu0
      %1465 = vmatprep.mubr.bf16.mxu0 0
      %1466 = vmatmul.mubr.bf16.gmra.mrb[0].mxu0 %v1351
      %v1467 = vpop.f32.mrb[0].mxu0
      %v1468 = vadd.f32 0.0, %v1467
      %v1469 = vpop.f32.mrb[0].mxu0
      %v1470 = vpop.f32.mrb[0].mxu0
      %v1471 = vadd.f32 0.0, %v1470
      %v1472 = vpop.f32.mrb[0].mxu0
      %1473 = vmatprep.mubr.bf16.mxu0 0
      %1474 = vmatmul.mubr.bf16.gmra.mrb[0].mxu0 %v1354
      %v1475 = vpop.f32.mrb[0].mxu0
      %v1476 = vadd.f32 0.0, %v1475
      %v1477 = vpop.f32.mrb[0].mxu0
      %v1478 = vpop.f32.mrb[0].mxu0
      %v1479 = vadd.f32 0.0, %v1478
      %v1480 = vpop.f32.mrb[0].mxu0
      %1481 = vmatprep.mubr.bf16.mxu0 0
      %1482 = vmatmul.mubr.bf16.gmra.mrb[0].mxu0 %v1357
      %v1483 = vpop.f32.mrb[0].mxu0
      %v1484 = vadd.f32 0.0, %v1483
      %v1485 = vpop.f32.mrb[0].mxu0
      %v1486 = vpop.f32.mrb[0].mxu0
      %v1487 = vadd.f32 0.0, %v1486
      %v1488 = vpop.f32.mrb[0].mxu0
      %1489 = vmatprep.mubr.bf16.mxu0 0
      %1490 = vmatmul.mubr.bf16.gmra.mrb[0].mxu0 %v1360
      %v1491 = vpop.f32.mrb[0].mxu0
      %v1492 = vadd.f32 0.0, %v1491
      %v1493 = vpop.f32.mrb[0].mxu0
      %v1494 = vpop.f32.mrb[0].mxu0
      %v1495 = vadd.f32 0.0, %v1494
      %v1496 = vpop.f32.mrb[0].mxu0
      %1497 = vmatprep.mubr.bf16.mxu0 0
      %1498 = vmatmul.mubr.bf16.gmra.mrb[0].mxu0 %v1363
      %v1499 = vpop.f32.mrb[0].mxu0
      %v1500 = vadd.f32 0.0, %v1499
      %v1501 = vpop.f32.mrb[0].mxu0
      %v1502 = vpop.f32.mrb[0].mxu0
      %v1503 = vadd.f32 0.0, %v1502
      %v1504 = vpop.f32.mrb[0].mxu0
      %1505 = vmatprep.mubr.bf16.mxu0 0
      %1506 = vmatmul.mubr.bf16.gmra.mrb[0].mxu0 %v1366
      %v1507 = vpop.f32.mrb[0].mxu0
      %v1508 = vadd.f32 0.0, %v1507
      %v1509 = vpop.f32.mrb[0].mxu0
      %v1510 = vpop.f32.mrb[0].mxu0
      %v1511 = vadd.f32 0.0, %v1510
      %v1512 = vpop.f32.mrb[0].mxu0
      %1513 = vmatprep.mubr.bf16.mxu0 0
      %1514 = vmatmul.mubr.bf16.gmra.mrb[0].mxu0 %v1369
      %v1515 = vpop.f32.mrb[0].mxu0
      %v1516 = vadd.f32 0.0, %v1515
      %v1517 = vpop.f32.mrb[0].mxu0
      %v1518 = vpop.f32.mrb[0].mxu0
      %v1519 = vadd.f32 0.0, %v1518
      %v1520 = vpop.f32.mrb[0].mxu0
      %1521 = vmatprep.mubr.bf16.mxu0 0
      %1522 = vmatmul.mubr.bf16.gmra.mrb[0].mxu0 %v1372
      %v1523 = vpop.f32.mrb[0].mxu0
      %v1524 = vadd.f32 0.0, %v1523
      %v1525 = vpop.f32.mrb[0].mxu0
      %v1526 = vpop.f32.mrb[0].mxu0
      %v1527 = vadd.f32 0.0, %v1526
      %v1528 = vpop.f32.mrb[0].mxu0
      %1529 = vmatprep.mubr.bf16.mxu0 0
      %1530 = vmatmul.mubr.bf16.gmra.mrb[0].mxu0 %v1375
      %v1531 = vpop.f32.mrb[0].mxu0
      %v1532 = vadd.f32 0.0, %v1531
      %v1533 = vpop.f32.mrb[0].mxu0
      %v1534 = vpop.f32.mrb[0].mxu0
      %v1535 = vadd.f32 0.0, %v1534
      %v1536 = vpop.f32.mrb[0].mxu0
      %1537 = vdwg.mxu0
      %v1538 = vadd.f32 %v1113, %v1412
      %v1539 = vadd.f32 %v1116, %v1415
      %v1540 = vadd.f32 %v1121, %v1420
      %v1541 = vadd.f32 %v1124, %v1423
      %v1542 = vadd.f32 %v1129, %v1428
      %v1543 = vadd.f32 %v1132, %v1431
      %v1544 = vadd.f32 %v1137, %v1436
      %v1545 = vadd.f32 %v1140, %v1439
      %v1546 = vadd.f32 %v1145, %v1444
      %v1547 = vadd.f32 %v1148, %v1447
      %v1548 = vadd.f32 %v1153, %v1452
      %v1549 = vadd.f32 %v1156, %v1455
      %v1550 = vadd.f32 %v1161, %v1460
      %v1551 = vadd.f32 %v1164, %v1463
      %v1552 = vadd.f32 %v1169, %v1468
      %v1553 = vadd.f32 %v1172, %v1471
      %v1554 = vadd.f32 %v1177, %v1476
      %v1555 = vadd.f32 %v1180, %v1479
      %v1556 = vadd.f32 %v1185, %v1484
      %v1557 = vadd.f32 %v1188, %v1487
      %v1558 = vadd.f32 %v1193, %v1492
      %v1559 = vadd.f32 %v1196, %v1495
      %v1560 = vadd.f32 %v1201, %v1500
      %v1561 = vadd.f32 %v1204, %v1503
      %v1562 = vadd.f32 %v1209, %v1508
      %v1563 = vadd.f32 %v1212, %v1511
      %v1564 = vadd.f32 %v1217, %v1516
      %v1565 = vadd.f32 %v1220, %v1519
      %v1566 = vadd.f32 %v1225, %v1524
      %v1567 = vadd.f32 %v1228, %v1527
      %v1568 = vadd.f32 %v1233, %v1532
      %v1569 = vadd.f32 %v1236, %v1535
      %s1570 = scalar_lea.vmem %s3, 24
      %v1571 = vld [vmem:[%s1570] sm:$0xf]
      %v1572 = vld [vmem:[%s1570 + $0x4] sm:$0xf]
      %v1575 = vunpack.c.l.b16 %v1571
      %v1576 = vunpack.c.l.b16 %v1572
      %v1577 = vpack.c.b16 %v1576, %v1575
      %v1580 = vsel %vm458, %v623, 0
      %1582 = vmatprep.subr.bf16.mxu0 0
      %1583 = vmatpush1.bf16.msra.mxu0 %v1577
      %1584 = vmatprep.subr.bf16.mxu0 0
      %1585 = vmatpush1.bf16.msra.mxu0 0
      %1586 = vmatprep.subr.bf16.mxu0 0
      %1587 = vmatpush1.bf16.msra.mxu0 0
      %1588 = vmatprep.subr.bf16.mxu0 0
      %1589 = vmatpush1.bf16.msra.mxu0 0
      %1590 = vmatprep.subr.bf16.mxu0 0
      %1591 = vmatpush1.bf16.msra.mxu0 0
      %1592 = vmatprep.subr.bf16.mxu0 0
      %1593 = vmatpush1.bf16.msra.mxu0 0
      %1594 = vmatprep.subr.bf16.mxu0 0
      %1595 = vmatpush1.bf16.msra.mxu0 0
      %1596 = vmatprep.subr.bf16.mxu0 0
      %1597 = vmatpush1.bf16.msra.mxu0 0
      %1598 = vmatprep.subr.bf16.mxu0 0
      %1599 = vmatpush1.bf16.msra.mxu0 0
      %1600 = vmatprep.subr.bf16.mxu0 0
      %1601 = vmatpush1.bf16.msra.mxu0 0
      %1602 = vmatprep.subr.bf16.mxu0 0
      %1603 = vmatpush1.bf16.msra.mxu0 0
      %1604 = vmatprep.subr.bf16.mxu0 0
      %1605 = vmatpush1.bf16.msra.mxu0 0
      %1606 = vmatprep.subr.bf16.mxu0 0
      %1607 = vmatpush1.bf16.msra.mxu0 0
      %1608 = vmatprep.subr.bf16.mxu0 0
      %1609 = vmatpush1.bf16.msra.mxu0 0
      %1610 = vmatprep.subr.bf16.mxu0 0
      %1611 = vmatpush1.bf16.msra.mxu0 0
      %1612 = vmatprep.subr.bf16.mxu0 0
      %1613 = vmatpush1.bf16.msra.mxu0 0
      %1614 = vmatprep.mubr.bf16.mxu0 0
      %1615 = vmatmul.mubr.bf16.gmra.mrb[0].mxu0 %v1048
      %v1616 = vpop.f32.mrb[0].mxu0
      %v1617 = vadd.f32 0.0, %v1616
      %v1618 = vpop.f32.mrb[0].mxu0
      %v1619 = vpop.f32.mrb[0].mxu0
      %v1620 = vadd.f32 0.0, %v1619
      %v1621 = vpop.f32.mrb[0].mxu0
      %1622 = vmatprep.mubr.bf16.mxu0 0
      %1623 = vmatmul.mubr.bf16.gmra.mrb[0].mxu0 %v1050
      %v1624 = vpop.f32.mrb[0].mxu0
      %v1625 = vadd.f32 0.0, %v1624
      %v1626 = vpop.f32.mrb[0].mxu0
      %v1627 = vpop.f32.mrb[0].mxu0
      %v1628 = vadd.f32 0.0, %v1627
      %v1629 = vpop.f32.mrb[0].mxu0
      %1630 = vmatprep.mubr.bf16.mxu0 0
      %1631 = vmatmul.mubr.bf16.gmra.mrb[0].mxu0 %v1052
      %v1632 = vpop.f32.mrb[0].mxu0
      %v1633 = vadd.f32 0.0, %v1632
      %v1634 = vpop.f32.mrb[0].mxu0
      %v1635 = vpop.f32.mrb[0].mxu0
      %v1636 = vadd.f32 0.0, %v1635
      %v1637 = vpop.f32.mrb[0].mxu0
      %1638 = vmatprep.mubr.bf16.mxu0 0
      %1639 = vmatmul.mubr.bf16.gmra.mrb[0].mxu0 %v1054
      %v1640 = vpop.f32.mrb[0].mxu0
      %v1641 = vadd.f32 0.0, %v1640
      %v1642 = vpop.f32.mrb[0].mxu0
      %v1643 = vpop.f32.mrb[0].mxu0
      %v1644 = vadd.f32 0.0, %v1643
      %v1645 = vpop.f32.mrb[0].mxu0
      %1646 = vmatprep.mubr.bf16.mxu0 0
      %1647 = vmatmul.mubr.bf16.gmra.mrb[0].mxu0 %v1056
      %v1648 = vpop.f32.mrb[0].mxu0
      %v1649 = vadd.f32 0.0, %v1648
      %v1650 = vpop.f32.mrb[0].mxu0
      %v1651 = vpop.f32.mrb[0].mxu0
      %v1652 = vadd.f32 0.0, %v1651
      %v1653 = vpop.f32.mrb[0].mxu0
      %1654 = vmatprep.mubr.bf16.mxu0 0
      %1655 = vmatmul.mubr.bf16.gmra.mrb[0].mxu0 %v1058
      %v1656 = vpop.f32.mrb[0].mxu0
      %v1657 = vadd.f32 0.0, %v1656
      %v1658 = vpop.f32.mrb[0].mxu0
      %v1659 = vpop.f32.mrb[0].mxu0
      %v1660 = vadd.f32 0.0, %v1659
      %v1661 = vpop.f32.mrb[0].mxu0
      %1662 = vmatprep.mubr.bf16.mxu0 0
      %1663 = vmatmul.mubr.bf16.gmra.mrb[0].mxu0 %v1060
      %v1664 = vpop.f32.mrb[0].mxu0
      %v1665 = vadd.f32 0.0, %v1664
      %v1666 = vpop.f32.mrb[0].mxu0
      %v1667 = vpop.f32.mrb[0].mxu0
      %v1668 = vadd.f32 0.0, %v1667
      %v1669 = vpop.f32.mrb[0].mxu0
      %1670 = vmatprep.mubr.bf16.mxu0 0
      %1671 = vmatmul.mubr.bf16.gmra.mrb[0].mxu0 %v1062
      %v1672 = vpop.f32.mrb[0].mxu0
      %v1673 = vadd.f32 0.0, %v1672
      %v1674 = vpop.f32.mrb[0].mxu0
      %v1675 = vpop.f32.mrb[0].mxu0
      %v1676 = vadd.f32 0.0, %v1675
      %v1677 = vpop.f32.mrb[0].mxu0
      %1678 = vmatprep.mubr.bf16.mxu0 0
      %1679 = vmatmul.mubr.bf16.gmra.mrb[0].mxu0 %v1064
      %v1680 = vpop.f32.mrb[0].mxu0
      %v1681 = vadd.f32 0.0, %v1680
      %v1682 = vpop.f32.mrb[0].mxu0
      %v1683 = vpop.f32.mrb[0].mxu0
      %v1684 = vadd.f32 0.0, %v1683
      %v1685 = vpop.f32.mrb[0].mxu0
      %1686 = vmatprep.mubr.bf16.mxu0 0
      %1687 = vmatmul.mubr.bf16.gmra.mrb[0].mxu0 %v1066
      %v1688 = vpop.f32.mrb[0].mxu0
      %v1689 = vadd.f32 0.0, %v1688
      %v1690 = vpop.f32.mrb[0].mxu0
      %v1691 = vpop.f32.mrb[0].mxu0
      %v1692 = vadd.f32 0.0, %v1691
      %v1693 = vpop.f32.mrb[0].mxu0
      %1694 = vmatprep.mubr.bf16.mxu0 0
      %1695 = vmatmul.mubr.bf16.gmra.mrb[0].mxu0 %v1068
      %v1696 = vpop.f32.mrb[0].mxu0
      %v1697 = vadd.f32 0.0, %v1696
      %v1698 = vpop.f32.mrb[0].mxu0
      %v1699 = vpop.f32.mrb[0].mxu0
      %v1700 = vadd.f32 0.0, %v1699
      %v1701 = vpop.f32.mrb[0].mxu0
      %1702 = vmatprep.mubr.bf16.mxu0 0
      %1703 = vmatmul.mubr.bf16.gmra.mrb[0].mxu0 %v1070
      %v1704 = vpop.f32.mrb[0].mxu0
      %v1705 = vadd.f32 0.0, %v1704
      %v1706 = vpop.f32.mrb[0].mxu0
      %v1707 = vpop.f32.mrb[0].mxu0
      %v1708 = vadd.f32 0.0, %v1707
      %v1709 = vpop.f32.mrb[0].mxu0
      %1710 = vmatprep.mubr.bf16.mxu0 0
      %1711 = vmatmul.mubr.bf16.gmra.mrb[0].mxu0 %v1072
      %v1712 = vpop.f32.mrb[0].mxu0
      %v1713 = vadd.f32 0.0, %v1712
      %v1714 = vpop.f32.mrb[0].mxu0
      %v1715 = vpop.f32.mrb[0].mxu0
      %v1716 = vadd.f32 0.0, %v1715
      %v1717 = vpop.f32.mrb[0].mxu0
      %1718 = vmatprep.mubr.bf16.mxu0 0
      %1719 = vmatmul.mubr.bf16.gmra.mrb[0].mxu0 %v1074
      %v1720 = vpop.f32.mrb[0].mxu0
      %v1721 = vadd.f32 0.0, %v1720
      %v1722 = vpop.f32.mrb[0].mxu0
      %v1723 = vpop.f32.mrb[0].mxu0
      %v1724 = vadd.f32 0.0, %v1723
      %v1725 = vpop.f32.mrb[0].mxu0
      %1726 = vmatprep.mubr.bf16.mxu0 0
      %1727 = vmatmul.mubr.bf16.gmra.mrb[0].mxu0 %v1076
      %v1728 = vpop.f32.mrb[0].mxu0
      %v1729 = vadd.f32 0.0, %v1728
      %v1730 = vpop.f32.mrb[0].mxu0
      %v1731 = vpop.f32.mrb[0].mxu0
      %v1732 = vadd.f32 0.0, %v1731
      %v1733 = vpop.f32.mrb[0].mxu0
      %1734 = vmatprep.mubr.bf16.mxu0 0
      %1735 = vmatmul.mubr.bf16.gmra.mrb[0].mxu0 %v1580
      %v1736 = vpop.f32.mrb[0].mxu0
      %v1737 = vadd.f32 0.0, %v1736
      %v1738 = vpop.f32.mrb[0].mxu0
      %v1739 = vpop.f32.mrb[0].mxu0
      %v1740 = vadd.f32 0.0, %v1739
      %v1741 = vpop.f32.mrb[0].mxu0
      %1742 = vdwg.mxu0
      %v1743 = vadd.f32 %v1538, %v1617
      %v1744 = vadd.f32 %v1539, %v1620
      %v1745 = vadd.f32 %v1540, %v1625
      %v1746 = vadd.f32 %v1541, %v1628
      %v1747 = vadd.f32 %v1542, %v1633
      %v1748 = vadd.f32 %v1543, %v1636
      %v1749 = vadd.f32 %v1544, %v1641
      %v1750 = vadd.f32 %v1545, %v1644
      %v1751 = vadd.f32 %v1546, %v1649
      %v1752 = vadd.f32 %v1547, %v1652
      %v1753 = vadd.f32 %v1548, %v1657
      %v1754 = vadd.f32 %v1549, %v1660
      %v1755 = vadd.f32 %v1550, %v1665
      %v1756 = vadd.f32 %v1551, %v1668
      %v1757 = vadd.f32 %v1552, %v1673
      %v1758 = vadd.f32 %v1553, %v1676
      %v1759 = vadd.f32 %v1554, %v1681
      %v1760 = vadd.f32 %v1555, %v1684
      %v1761 = vadd.f32 %v1556, %v1689
      %v1762 = vadd.f32 %v1557, %v1692
      %v1763 = vadd.f32 %v1558, %v1697
      %v1764 = vadd.f32 %v1559, %v1700
      %v1765 = vadd.f32 %v1560, %v1705
      %v1766 = vadd.f32 %v1561, %v1708
      %v1767 = vadd.f32 %v1562, %v1713
      %v1768 = vadd.f32 %v1563, %v1716
      %v1769 = vadd.f32 %v1564, %v1721
      %v1770 = vadd.f32 %v1565, %v1724
      %v1771 = vadd.f32 %v1566, %v1729
      %v1772 = vadd.f32 %v1567, %v1732
      %v1773 = vadd.f32 %v1568, %v1737
      %v1774 = vadd.f32 %v1569, %v1740
      %v1775 = vshrl.u32 %v623, 16
      %v1777 = vshll.u32 %v623, 16
      %v1779 = vrot.slane %v1777, 1
      %v1780 = vor.u32 %v1775, %v1779
      %v1782 = vshll.u32 %v624, 16
      %v1784 = vrot.slane %v1782, 1
      %v1785 = vsel %vm629, %v1780, %v1784
      %s1786 = scalar_lea.vmem %s3, 32
      %v1787 = vld [vmem:[%s1786] sm:$0xf]
      %v1788 = vld [vmem:[%s1786 + $0x4] sm:$0xf]
      %v1791 = vunpack.c.l.b16 %v1787
      %v1792 = vunpack.c.l.b16 %v1788
      %v1793 = vpack.c.b16 %v1792, %v1791
      %v1796 = vsel %vm458, %v1785, 0
      %1798 = vmatprep.subr.bf16.mxu0 0
      %1799 = vmatpush1.bf16.msra.mxu0 %v1793
      %1800 = vmatprep.subr.bf16.mxu0 0
      %1801 = vmatpush1.bf16.msra.mxu0 0
      %1802 = vmatprep.subr.bf16.mxu0 0
      %1803 = vmatpush1.bf16.msra.mxu0 0
      %1804 = vmatprep.subr.bf16.mxu0 0
      %1805 = vmatpush1.bf16.msra.mxu0 0
      %1806 = vmatprep.subr.bf16.mxu0 0
      %1807 = vmatpush1.bf16.msra.mxu0 0
      %1808 = vmatprep.subr.bf16.mxu0 0
      %1809 = vmatpush1.bf16.msra.mxu0 0
      %1810 = vmatprep.subr.bf16.mxu0 0
      %1811 = vmatpush1.bf16.msra.mxu0 0
      %1812 = vmatprep.subr.bf16.mxu0 0
      %1813 = vmatpush1.bf16.msra.mxu0 0
      %1814 = vmatprep.subr.bf16.mxu0 0
      %1815 = vmatpush1.bf16.msra.mxu0 0
      %1816 = vmatprep.subr.bf16.mxu0 0
      %1817 = vmatpush1.bf16.msra.mxu0 0
      %1818 = vmatprep.subr.bf16.mxu0 0
      %1819 = vmatpush1.bf16.msra.mxu0 0
      %1820 = vmatprep.subr.bf16.mxu0 0
      %1821 = vmatpush1.bf16.msra.mxu0 0
      %1822 = vmatprep.subr.bf16.mxu0 0
      %1823 = vmatpush1.bf16.msra.mxu0 0
      %1824 = vmatprep.subr.bf16.mxu0 0
      %1825 = vmatpush1.bf16.msra.mxu0 0
      %1826 = vmatprep.subr.bf16.mxu0 0
      %1827 = vmatpush1.bf16.msra.mxu0 0
      %1828 = vmatprep.subr.bf16.mxu0 0
      %1829 = vmatpush1.bf16.msra.mxu0 0
      %1830 = vmatprep.mubr.bf16.mxu0 0
      %1831 = vmatmul.mubr.bf16.gmra.mrb[0].mxu0 %v835
      %v1832 = vpop.f32.mrb[0].mxu0
      %v1833 = vadd.f32 0.0, %v1832
      %v1834 = vpop.f32.mrb[0].mxu0
      %v1835 = vpop.f32.mrb[0].mxu0
      %v1836 = vadd.f32 0.0, %v1835
      %v1837 = vpop.f32.mrb[0].mxu0
      %1838 = vmatprep.mubr.bf16.mxu0 0
      %1839 = vmatmul.mubr.bf16.gmra.mrb[0].mxu0 %v838
      %v1840 = vpop.f32.mrb[0].mxu0
      %v1841 = vadd.f32 0.0, %v1840
      %v1842 = vpop.f32.mrb[0].mxu0
      %v1843 = vpop.f32.mrb[0].mxu0
      %v1844 = vadd.f32 0.0, %v1843
      %v1845 = vpop.f32.mrb[0].mxu0
      %1846 = vmatprep.mubr.bf16.mxu0 0
      %1847 = vmatmul.mubr.bf16.gmra.mrb[0].mxu0 %v841
      %v1848 = vpop.f32.mrb[0].mxu0
      %v1849 = vadd.f32 0.0, %v1848
      %v1850 = vpop.f32.mrb[0].mxu0
      %v1851 = vpop.f32.mrb[0].mxu0
      %v1852 = vadd.f32 0.0, %v1851
      %v1853 = vpop.f32.mrb[0].mxu0
      %1854 = vmatprep.mubr.bf16.mxu0 0
      %1855 = vmatmul.mubr.bf16.gmra.mrb[0].mxu0 %v844
      %v1856 = vpop.f32.mrb[0].mxu0
      %v1857 = vadd.f32 0.0, %v1856
      %v1858 = vpop.f32.mrb[0].mxu0
      %v1859 = vpop.f32.mrb[0].mxu0
      %v1860 = vadd.f32 0.0, %v1859
      %v1861 = vpop.f32.mrb[0].mxu0
      %1862 = vmatprep.mubr.bf16.mxu0 0
      %1863 = vmatmul.mubr.bf16.gmra.mrb[0].mxu0 %v847
      %v1864 = vpop.f32.mrb[0].mxu0
      %v1865 = vadd.f32 0.0, %v1864
      %v1866 = vpop.f32.mrb[0].mxu0
      %v1867 = vpop.f32.mrb[0].mxu0
      %v1868 = vadd.f32 0.0, %v1867
      %v1869 = vpop.f32.mrb[0].mxu0
      %1870 = vmatprep.mubr.bf16.mxu0 0
      %1871 = vmatmul.mubr.bf16.gmra.mrb[0].mxu0 %v850
      %v1872 = vpop.f32.mrb[0].mxu0
      %v1873 = vadd.f32 0.0, %v1872
      %v1874 = vpop.f32.mrb[0].mxu0
      %v1875 = vpop.f32.mrb[0].mxu0
      %v1876 = vadd.f32 0.0, %v1875
      %v1877 = vpop.f32.mrb[0].mxu0
      %1878 = vmatprep.mubr.bf16.mxu0 0
      %1879 = vmatmul.mubr.bf16.gmra.mrb[0].mxu0 %v853
      %v1880 = vpop.f32.mrb[0].mxu0
      %v1881 = vadd.f32 0.0, %v1880
      %v1882 = vpop.f32.mrb[0].mxu0
      %v1883 = vpop.f32.mrb[0].mxu0
      %v1884 = vadd.f32 0.0, %v1883
      %v1885 = vpop.f32.mrb[0].mxu0
      %1886 = vmatprep.mubr.bf16.mxu0 0
      %1887 = vmatmul.mubr.bf16.gmra.mrb[0].mxu0 %v856
      %v1888 = vpop.f32.mrb[0].mxu0
      %v1889 = vadd.f32 0.0, %v1888
      %v1890 = vpop.f32.mrb[0].mxu0
      %v1891 = vpop.f32.mrb[0].mxu0
      %v1892 = vadd.f32 0.0, %v1891
      %v1893 = vpop.f32.mrb[0].mxu0
      %1894 = vmatprep.mubr.bf16.mxu0 0
      %1895 = vmatmul.mubr.bf16.gmra.mrb[0].mxu0 %v859
      %v1896 = vpop.f32.mrb[0].mxu0
      %v1897 = vadd.f32 0.0, %v1896
      %v1898 = vpop.f32.mrb[0].mxu0
      %v1899 = vpop.f32.mrb[0].mxu0
      %v1900 = vadd.f32 0.0, %v1899
      %v1901 = vpop.f32.mrb[0].mxu0
      %1902 = vmatprep.mubr.bf16.mxu0 0
      %1903 = vmatmul.mubr.bf16.gmra.mrb[0].mxu0 %v862
      %v1904 = vpop.f32.mrb[0].mxu0
      %v1905 = vadd.f32 0.0, %v1904
      %v1906 = vpop.f32.mrb[0].mxu0
      %v1907 = vpop.f32.mrb[0].mxu0
      %v1908 = vadd.f32 0.0, %v1907
      %v1909 = vpop.f32.mrb[0].mxu0
      %1910 = vmatprep.mubr.bf16.mxu0 0
      %1911 = vmatmul.mubr.bf16.gmra.mrb[0].mxu0 %v865
      %v1912 = vpop.f32.mrb[0].mxu0
      %v1913 = vadd.f32 0.0, %v1912
      %v1914 = vpop.f32.mrb[0].mxu0
      %v1915 = vpop.f32.mrb[0].mxu0
      %v1916 = vadd.f32 0.0, %v1915
      %v1917 = vpop.f32.mrb[0].mxu0
      %1918 = vmatprep.mubr.bf16.mxu0 0
      %1919 = vmatmul.mubr.bf16.gmra.mrb[0].mxu0 %v868
      %v1920 = vpop.f32.mrb[0].mxu0
      %v1921 = vadd.f32 0.0, %v1920
      %v1922 = vpop.f32.mrb[0].mxu0
      %v1923 = vpop.f32.mrb[0].mxu0
      %v1924 = vadd.f32 0.0, %v1923
      %v1925 = vpop.f32.mrb[0].mxu0
      %1926 = vmatprep.mubr.bf16.mxu0 0
      %1927 = vmatmul.mubr.bf16.gmra.mrb[0].mxu0 %v871
      %v1928 = vpop.f32.mrb[0].mxu0
      %v1929 = vadd.f32 0.0, %v1928
      %v1930 = vpop.f32.mrb[0].mxu0
      %v1931 = vpop.f32.mrb[0].mxu0
      %v1932 = vadd.f32 0.0, %v1931
      %v1933 = vpop.f32.mrb[0].mxu0
      %1934 = vmatprep.mubr.bf16.mxu0 0
      %1935 = vmatmul.mubr.bf16.gmra.mrb[0].mxu0 %v874
      %v1936 = vpop.f32.mrb[0].mxu0
      %v1937 = vadd.f32 0.0, %v1936
      %v1938 = vpop.f32.mrb[0].mxu0
      %v1939 = vpop.f32.mrb[0].mxu0
      %v1940 = vadd.f32 0.0, %v1939
      %v1941 = vpop.f32.mrb[0].mxu0
      %1942 = vmatprep.mubr.bf16.mxu0 0
      %1943 = vmatmul.mubr.bf16.gmra.mrb[0].mxu0 %v877
      %v1944 = vpop.f32.mrb[0].mxu0
      %v1945 = vadd.f32 0.0, %v1944
      %v1946 = vpop.f32.mrb[0].mxu0
      %v1947 = vpop.f32.mrb[0].mxu0
      %v1948 = vadd.f32 0.0, %v1947
      %v1949 = vpop.f32.mrb[0].mxu0
      %1950 = vmatprep.mubr.bf16.mxu0 0
      %1951 = vmatmul.mubr.bf16.gmra.mrb[0].mxu0 %v1796
      %v1952 = vpop.f32.mrb[0].mxu0
      %v1953 = vadd.f32 0.0, %v1952
      %v1954 = vpop.f32.mrb[0].mxu0
      %v1955 = vpop.f32.mrb[0].mxu0
      %v1956 = vadd.f32 0.0, %v1955
      %v1957 = vpop.f32.mrb[0].mxu0
      %1958 = vdwg.mxu0
      %v1959 = vadd.f32 %v1743, %v1833
      %v1960 = vadd.f32 %v1744, %v1836
      %v1961 = vadd.f32 %v1745, %v1841
      %v1962 = vadd.f32 %v1746, %v1844
      %v1963 = vadd.f32 %v1747, %v1849
      %v1964 = vadd.f32 %v1748, %v1852
      %v1965 = vadd.f32 %v1749, %v1857
      %v1966 = vadd.f32 %v1750, %v1860
      %v1967 = vadd.f32 %v1751, %v1865
      %v1968 = vadd.f32 %v1752, %v1868
      %v1969 = vadd.f32 %v1753, %v1873
      %v1970 = vadd.f32 %v1754, %v1876
      %v1971 = vadd.f32 %v1755, %v1881
      %v1972 = vadd.f32 %v1756, %v1884
      %v1973 = vadd.f32 %v1757, %v1889
      %v1974 = vadd.f32 %v1758, %v1892
      %v1975 = vadd.f32 %v1759, %v1897
      %v1976 = vadd.f32 %v1760, %v1900
      %v1977 = vadd.f32 %v1761, %v1905
      %v1978 = vadd.f32 %v1762, %v1908
      %v1979 = vadd.f32 %v1763, %v1913
      %v1980 = vadd.f32 %v1764, %v1916
      %v1981 = vadd.f32 %v1765, %v1921
      %v1982 = vadd.f32 %v1766, %v1924
      %v1983 = vadd.f32 %v1767, %v1929
      %v1984 = vadd.f32 %v1768, %v1932
      %v1985 = vadd.f32 %v1769, %v1937
      %v1986 = vadd.f32 %v1770, %v1940
      %v1987 = vadd.f32 %v1771, %v1945
      %v1988 = vadd.f32 %v1772, %v1948
      %v1989 = vadd.f32 %v1773, %v1953
      %v1990 = vadd.f32 %v1774, %v1956
      %v1993 = vrot.slane %v623, 1
      %v1994 = vrot.slane %v624, 1
      %v1995 = vsel %vm1271, %v1993, %v1994
      %s1996 = scalar_lea.vmem %s3, 40
      %v1997 = vld [vmem:[%s1996] sm:$0xf]
      %v1998 = vld [vmem:[%s1996 + $0x4] sm:$0xf]
      %v2001 = vunpack.c.l.b16 %v1997
      %v2002 = vunpack.c.l.b16 %v1998
      %v2003 = vpack.c.b16 %v2002, %v2001
      %v2006 = vsel %vm458, %v1995, 0
      %2008 = vmatprep.subr.bf16.mxu0 0
      %2009 = vmatpush1.bf16.msra.mxu0 %v2003
      %2010 = vmatprep.subr.bf16.mxu0 0
      %2011 = vmatpush1.bf16.msra.mxu0 0
      %2012 = vmatprep.subr.bf16.mxu0 0
      %2013 = vmatpush1.bf16.msra.mxu0 0
      %2014 = vmatprep.subr.bf16.mxu0 0
      %2015 = vmatpush1.bf16.msra.mxu0 0
      %2016 = vmatprep.subr.bf16.mxu0 0
      %2017 = vmatpush1.bf16.msra.mxu0 0
      %2018 = vmatprep.subr.bf16.mxu0 0
      %2019 = vmatpush1.bf16.msra.mxu0 0
      %2020 = vmatprep.subr.bf16.mxu0 0
      %2021 = vmatpush1.bf16.msra.mxu0 0
      %2022 = vmatprep.subr.bf16.mxu0 0
      %2023 = vmatpush1.bf16.msra.mxu0 0
      %2024 = vmatprep.subr.bf16.mxu0 0
      %2025 = vmatpush1.bf16.msra.mxu0 0
      %2026 = vmatprep.subr.bf16.mxu0 0
      %2027 = vmatpush1.bf16.msra.mxu0 0
      %2028 = vmatprep.subr.bf16.mxu0 0
      %2029 = vmatpush1.bf16.msra.mxu0 0
      %2030 = vmatprep.subr.bf16.mxu0 0
      %2031 = vmatpush1.bf16.msra.mxu0 0
      %2032 = vmatprep.subr.bf16.mxu0 0
      %2033 = vmatpush1.bf16.msra.mxu0 0
      %2034 = vmatprep.subr.bf16.mxu0 0
      %2035 = vmatpush1.bf16.msra.mxu0 0
      %2036 = vmatprep.subr.bf16.mxu0 0
      %2037 = vmatpush1.bf16.msra.mxu0 0
      %2038 = vmatprep.subr.bf16.mxu0 0
      %2039 = vmatpush1.bf16.msra.mxu0 0
      %2040 = vmatprep.mubr.bf16.mxu0 0
      %2041 = vmatmul.mubr.bf16.gmra.mrb[0].mxu0 %v1333
      %v2042 = vpop.f32.mrb[0].mxu0
      %v2043 = vadd.f32 0.0, %v2042
      %v2044 = vpop.f32.mrb[0].mxu0
      %v2045 = vpop.f32.mrb[0].mxu0
      %v2046 = vadd.f32 0.0, %v2045
      %v2047 = vpop.f32.mrb[0].mxu0
      %2048 = vmatprep.mubr.bf16.mxu0 0
      %2049 = vmatmul.mubr.bf16.gmra.mrb[0].mxu0 %v1336
      %v2050 = vpop.f32.mrb[0].mxu0
      %v2051 = vadd.f32 0.0, %v2050
      %v2052 = vpop.f32.mrb[0].mxu0
      %v2053 = vpop.f32.mrb[0].mxu0
      %v2054 = vadd.f32 0.0, %v2053
      %v2055 = vpop.f32.mrb[0].mxu0
      %2056 = vmatprep.mubr.bf16.mxu0 0
      %2057 = vmatmul.mubr.bf16.gmra.mrb[0].mxu0 %v1339
      %v2058 = vpop.f32.mrb[0].mxu0
      %v2059 = vadd.f32 0.0, %v2058
      %v2060 = vpop.f32.mrb[0].mxu0
      %v2061 = vpop.f32.mrb[0].mxu0
      %v2062 = vadd.f32 0.0, %v2061
      %v2063 = vpop.f32.mrb[0].mxu0
      %2064 = vmatprep.mubr.bf16.mxu0 0
      %2065 = vmatmul.mubr.bf16.gmra.mrb[0].mxu0 %v1342
      %v2066 = vpop.f32.mrb[0].mxu0
      %v2067 = vadd.f32 0.0, %v2066
      %v2068 = vpop.f32.mrb[0].mxu0
      %v2069 = vpop.f32.mrb[0].mxu0
      %v2070 = vadd.f32 0.0, %v2069
      %v2071 = vpop.f32.mrb[0].mxu0
      %2072 = vmatprep.mubr.bf16.mxu0 0
      %2073 = vmatmul.mubr.bf16.gmra.mrb[0].mxu0 %v1345
      %v2074 = vpop.f32.mrb[0].mxu0
      %v2075 = vadd.f32 0.0, %v2074
      %v2076 = vpop.f32.mrb[0].mxu0
      %v2077 = vpop.f32.mrb[0].mxu0
      %v2078 = vadd.f32 0.0, %v2077
      %v2079 = vpop.f32.mrb[0].mxu0
      %2080 = vmatprep.mubr.bf16.mxu0 0
      %2081 = vmatmul.mubr.bf16.gmra.mrb[0].mxu0 %v1348
      %v2082 = vpop.f32.mrb[0].mxu0
      %v2083 = vadd.f32 0.0, %v2082
      %v2084 = vpop.f32.mrb[0].mxu0
      %v2085 = vpop.f32.mrb[0].mxu0
      %v2086 = vadd.f32 0.0, %v2085
      %v2087 = vpop.f32.mrb[0].mxu0
      %2088 = vmatprep.mubr.bf16.mxu0 0
      %2089 = vmatmul.mubr.bf16.gmra.mrb[0].mxu0 %v1351
      %v2090 = vpop.f32.mrb[0].mxu0
      %v2091 = vadd.f32 0.0, %v2090
      %v2092 = vpop.f32.mrb[0].mxu0
      %v2093 = vpop.f32.mrb[0].mxu0
      %v2094 = vadd.f32 0.0, %v2093
      %v2095 = vpop.f32.mrb[0].mxu0
      %2096 = vmatprep.mubr.bf16.mxu0 0
      %2097 = vmatmul.mubr.bf16.gmra.mrb[0].mxu0 %v1354
      %v2098 = vpop.f32.mrb[0].mxu0
      %v2099 = vadd.f32 0.0, %v2098
      %v2100 = vpop.f32.mrb[0].mxu0
      %v2101 = vpop.f32.mrb[0].mxu0
      %v2102 = vadd.f32 0.0, %v2101
      %v2103 = vpop.f32.mrb[0].mxu0
      %2104 = vmatprep.mubr.bf16.mxu0 0
      %2105 = vmatmul.mubr.bf16.gmra.mrb[0].mxu0 %v1357
      %v2106 = vpop.f32.mrb[0].mxu0
      %v2107 = vadd.f32 0.0, %v2106
      %v2108 = vpop.f32.mrb[0].mxu0
      %v2109 = vpop.f32.mrb[0].mxu0
      %v2110 = vadd.f32 0.0, %v2109
      %v2111 = vpop.f32.mrb[0].mxu0
      %2112 = vmatprep.mubr.bf16.mxu0 0
      %2113 = vmatmul.mubr.bf16.gmra.mrb[0].mxu0 %v1360
      %v2114 = vpop.f32.mrb[0].mxu0
      %v2115 = vadd.f32 0.0, %v2114
      %v2116 = vpop.f32.mrb[0].mxu0
      %v2117 = vpop.f32.mrb[0].mxu0
      %v2118 = vadd.f32 0.0, %v2117
      %v2119 = vpop.f32.mrb[0].mxu0
      %2120 = vmatprep.mubr.bf16.mxu0 0
      %2121 = vmatmul.mubr.bf16.gmra.mrb[0].mxu0 %v1363
      %v2122 = vpop.f32.mrb[0].mxu0
      %v2123 = vadd.f32 0.0, %v2122
      %v2124 = vpop.f32.mrb[0].mxu0
      %v2125 = vpop.f32.mrb[0].mxu0
      %v2126 = vadd.f32 0.0, %v2125
      %v2127 = vpop.f32.mrb[0].mxu0
      %2128 = vmatprep.mubr.bf16.mxu0 0
      %2129 = vmatmul.mubr.bf16.gmra.mrb[0].mxu0 %v1366
      %v2130 = vpop.f32.mrb[0].mxu0
      %v2131 = vadd.f32 0.0, %v2130
      %v2132 = vpop.f32.mrb[0].mxu0
      %v2133 = vpop.f32.mrb[0].mxu0
      %v2134 = vadd.f32 0.0, %v2133
      %v2135 = vpop.f32.mrb[0].mxu0
      %2136 = vmatprep.mubr.bf16.mxu0 0
      %2137 = vmatmul.mubr.bf16.gmra.mrb[0].mxu0 %v1369
      %v2138 = vpop.f32.mrb[0].mxu0
      %v2139 = vadd.f32 0.0, %v2138
      %v2140 = vpop.f32.mrb[0].mxu0
      %v2141 = vpop.f32.mrb[0].mxu0
      %v2142 = vadd.f32 0.0, %v2141
      %v2143 = vpop.f32.mrb[0].mxu0
      %2144 = vmatprep.mubr.bf16.mxu0 0
      %2145 = vmatmul.mubr.bf16.gmra.mrb[0].mxu0 %v1372
      %v2146 = vpop.f32.mrb[0].mxu0
      %v2147 = vadd.f32 0.0, %v2146
      %v2148 = vpop.f32.mrb[0].mxu0
      %v2149 = vpop.f32.mrb[0].mxu0
      %v2150 = vadd.f32 0.0, %v2149
      %v2151 = vpop.f32.mrb[0].mxu0
      %2152 = vmatprep.mubr.bf16.mxu0 0
      %2153 = vmatmul.mubr.bf16.gmra.mrb[0].mxu0 %v1375
      %v2154 = vpop.f32.mrb[0].mxu0
      %v2155 = vadd.f32 0.0, %v2154
      %v2156 = vpop.f32.mrb[0].mxu0
      %v2157 = vpop.f32.mrb[0].mxu0
      %v2158 = vadd.f32 0.0, %v2157
      %v2159 = vpop.f32.mrb[0].mxu0
      %2160 = vmatprep.mubr.bf16.mxu0 0
      %2161 = vmatmul.mubr.bf16.gmra.mrb[0].mxu0 %v2006
      %v2162 = vpop.f32.mrb[0].mxu0
      %v2163 = vadd.f32 0.0, %v2162
      %v2164 = vpop.f32.mrb[0].mxu0
      %v2165 = vpop.f32.mrb[0].mxu0
      %v2166 = vadd.f32 0.0, %v2165
      %v2167 = vpop.f32.mrb[0].mxu0
      %2168 = vdwg.mxu0
      %v2169 = vadd.f32 %v1959, %v2043
      %v2170 = vadd.f32 %v1960, %v2046
      %v2171 = vadd.f32 %v1961, %v2051
      %v2172 = vadd.f32 %v1962, %v2054
      %v2173 = vadd.f32 %v1963, %v2059
      %v2174 = vadd.f32 %v1964, %v2062
      %v2175 = vadd.f32 %v1965, %v2067
      %v2176 = vadd.f32 %v1966, %v2070
      %v2177 = vadd.f32 %v1967, %v2075
      %v2178 = vadd.f32 %v1968, %v2078
      %v2179 = vadd.f32 %v1969, %v2083
      %v2180 = vadd.f32 %v1970, %v2086
      %v2181 = vadd.f32 %v1971, %v2091
      %v2182 = vadd.f32 %v1972, %v2094
      %v2183 = vadd.f32 %v1973, %v2099
      %v2184 = vadd.f32 %v1974, %v2102
      %v2185 = vadd.f32 %v1975, %v2107
      %v2186 = vadd.f32 %v1976, %v2110
      %v2187 = vadd.f32 %v1977, %v2115
      %v2188 = vadd.f32 %v1978, %v2118
      %v2189 = vadd.f32 %v1979, %v2123
      %v2190 = vadd.f32 %v1980, %v2126
      %v2191 = vadd.f32 %v1981, %v2131
      %v2192 = vadd.f32 %v1982, %v2134
      %v2193 = vadd.f32 %v1983, %v2139
      %v2194 = vadd.f32 %v1984, %v2142
      %v2195 = vadd.f32 %v1985, %v2147
      %v2196 = vadd.f32 %v1986, %v2150
      %v2197 = vadd.f32 %v1987, %v2155
      %v2198 = vadd.f32 %v1988, %v2158
      %v2199 = vadd.f32 %v1989, %v2163
      %v2200 = vadd.f32 %v1990, %v2166
      %s2201 = scalar_lea.vmem %s3, 48
      %v2202 = vld [vmem:[%s2201] sm:$0xf]
      %v2203 = vld [vmem:[%s2201 + $0x4] sm:$0xf]
      %v2206 = vunpack.c.l.b16 %v2202
      %v2207 = vunpack.c.l.b16 %v2203
      %v2208 = vpack.c.b16 %v2207, %v2206
      %v2211 = vsel %vm458, %v625, 0
      %2213 = vmatprep.subr.bf16.mxu0 0
      %2214 = vmatpush1.bf16.msra.mxu0 %v2208
      %2215 = vmatprep.subr.bf16.mxu0 0
      %2216 = vmatpush1.bf16.msra.mxu0 0
      %2217 = vmatprep.subr.bf16.mxu0 0
      %2218 = vmatpush1.bf16.msra.mxu0 0
      %2219 = vmatprep.subr.bf16.mxu0 0
      %2220 = vmatpush1.bf16.msra.mxu0 0
      %2221 = vmatprep.subr.bf16.mxu0 0
      %2222 = vmatpush1.bf16.msra.mxu0 0
      %2223 = vmatprep.subr.bf16.mxu0 0
      %2224 = vmatpush1.bf16.msra.mxu0 0
      %2225 = vmatprep.subr.bf16.mxu0 0
      %2226 = vmatpush1.bf16.msra.mxu0 0
      %2227 = vmatprep.subr.bf16.mxu0 0
      %2228 = vmatpush1.bf16.msra.mxu0 0
      %2229 = vmatprep.subr.bf16.mxu0 0
      %2230 = vmatpush1.bf16.msra.mxu0 0
      %2231 = vmatprep.subr.bf16.mxu0 0
      %2232 = vmatpush1.bf16.msra.mxu0 0
      %2233 = vmatprep.subr.bf16.mxu0 0
      %2234 = vmatpush1.bf16.msra.mxu0 0
      %2235 = vmatprep.subr.bf16.mxu0 0
      %2236 = vmatpush1.bf16.msra.mxu0 0
      %2237 = vmatprep.subr.bf16.mxu0 0
      %2238 = vmatpush1.bf16.msra.mxu0 0
      %2239 = vmatprep.subr.bf16.mxu0 0
      %2240 = vmatpush1.bf16.msra.mxu0 0
      %2241 = vmatprep.subr.bf16.mxu0 0
      %2242 = vmatpush1.bf16.msra.mxu0 0
      %2243 = vmatprep.subr.bf16.mxu0 0
      %2244 = vmatpush1.bf16.msra.mxu0 0
      %2245 = vmatprep.mubr.bf16.mxu0 0
      %2246 = vmatmul.mubr.bf16.gmra.mrb[0].mxu0 %v1050
      %v2247 = vpop.f32.mrb[0].mxu0
      %v2248 = vadd.f32 0.0, %v2247
      %v2249 = vpop.f32.mrb[0].mxu0
      %v2250 = vpop.f32.mrb[0].mxu0
      %v2251 = vadd.f32 0.0, %v2250
      %v2252 = vpop.f32.mrb[0].mxu0
      %2253 = vmatprep.mubr.bf16.mxu0 0
      %2254 = vmatmul.mubr.bf16.gmra.mrb[0].mxu0 %v1052
      %v2255 = vpop.f32.mrb[0].mxu0
      %v2256 = vadd.f32 0.0, %v2255
      %v2257 = vpop.f32.mrb[0].mxu0
      %v2258 = vpop.f32.mrb[0].mxu0
      %v2259 = vadd.f32 0.0, %v2258
      %v2260 = vpop.f32.mrb[0].mxu0
      %2261 = vmatprep.mubr.bf16.mxu0 0
      %2262 = vmatmul.mubr.bf16.gmra.mrb[0].mxu0 %v1054
      %v2263 = vpop.f32.mrb[0].mxu0
      %v2264 = vadd.f32 0.0, %v2263
      %v2265 = vpop.f32.mrb[0].mxu0
      %v2266 = vpop.f32.mrb[0].mxu0
      %v2267 = vadd.f32 0.0, %v2266
      %v2268 = vpop.f32.mrb[0].mxu0
      %2269 = vmatprep.mubr.bf16.mxu0 0
      %2270 = vmatmul.mubr.bf16.gmra.mrb[0].mxu0 %v1056
      %v2271 = vpop.f32.mrb[0].mxu0
      %v2272 = vadd.f32 0.0, %v2271
      %v2273 = vpop.f32.mrb[0].mxu0
      %v2274 = vpop.f32.mrb[0].mxu0
      %v2275 = vadd.f32 0.0, %v2274
      %v2276 = vpop.f32.mrb[0].mxu0
      %2277 = vmatprep.mubr.bf16.mxu0 0
      %2278 = vmatmul.mubr.bf16.gmra.mrb[0].mxu0 %v1058
      %v2279 = vpop.f32.mrb[0].mxu0
      %v2280 = vadd.f32 0.0, %v2279
      %v2281 = vpop.f32.mrb[0].mxu0
      %v2282 = vpop.f32.mrb[0].mxu0
      %v2283 = vadd.f32 0.0, %v2282
      %v2284 = vpop.f32.mrb[0].mxu0
      %2285 = vmatprep.mubr.bf16.mxu0 0
      %2286 = vmatmul.mubr.bf16.gmra.mrb[0].mxu0 %v1060
      %v2287 = vpop.f32.mrb[0].mxu0
      %v2288 = vadd.f32 0.0, %v2287
      %v2289 = vpop.f32.mrb[0].mxu0
      %v2290 = vpop.f32.mrb[0].mxu0
      %v2291 = vadd.f32 0.0, %v2290
      %v2292 = vpop.f32.mrb[0].mxu0
      %2293 = vmatprep.mubr.bf16.mxu0 0
      %2294 = vmatmul.mubr.bf16.gmra.mrb[0].mxu0 %v1062
      %v2295 = vpop.f32.mrb[0].mxu0
      %v2296 = vadd.f32 0.0, %v2295
      %v2297 = vpop.f32.mrb[0].mxu0
      %v2298 = vpop.f32.mrb[0].mxu0
      %v2299 = vadd.f32 0.0, %v2298
      %v2300 = vpop.f32.mrb[0].mxu0
      %2301 = vmatprep.mubr.bf16.mxu0 0
      %2302 = vmatmul.mubr.bf16.gmra.mrb[0].mxu0 %v1064
      %v2303 = vpop.f32.mrb[0].mxu0
      %v2304 = vadd.f32 0.0, %v2303
      %v2305 = vpop.f32.mrb[0].mxu0
      %v2306 = vpop.f32.mrb[0].mxu0
      %v2307 = vadd.f32 0.0, %v2306
      %v2308 = vpop.f32.mrb[0].mxu0
      %2309 = vmatprep.mubr.bf16.mxu0 0
      %2310 = vmatmul.mubr.bf16.gmra.mrb[0].mxu0 %v1066
      %v2311 = vpop.f32.mrb[0].mxu0
      %v2312 = vadd.f32 0.0, %v2311
      %v2313 = vpop.f32.mrb[0].mxu0
      %v2314 = vpop.f32.mrb[0].mxu0
      %v2315 = vadd.f32 0.0, %v2314
      %v2316 = vpop.f32.mrb[0].mxu0
      %2317 = vmatprep.mubr.bf16.mxu0 0
      %2318 = vmatmul.mubr.bf16.gmra.mrb[0].mxu0 %v1068
      %v2319 = vpop.f32.mrb[0].mxu0
      %v2320 = vadd.f32 0.0, %v2319
      %v2321 = vpop.f32.mrb[0].mxu0
      %v2322 = vpop.f32.mrb[0].mxu0
      %v2323 = vadd.f32 0.0, %v2322
      %v2324 = vpop.f32.mrb[0].mxu0
      %2325 = vmatprep.mubr.bf16.mxu0 0
      %2326 = vmatmul.mubr.bf16.gmra.mrb[0].mxu0 %v1070
      %v2327 = vpop.f32.mrb[0].mxu0
      %v2328 = vadd.f32 0.0, %v2327
      %v2329 = vpop.f32.mrb[0].mxu0
      %v2330 = vpop.f32.mrb[0].mxu0
      %v2331 = vadd.f32 0.0, %v2330
      %v2332 = vpop.f32.mrb[0].mxu0
      %2333 = vmatprep.mubr.bf16.mxu0 0
      %2334 = vmatmul.mubr.bf16.gmra.mrb[0].mxu0 %v1072
      %v2335 = vpop.f32.mrb[0].mxu0
      %v2336 = vadd.f32 0.0, %v2335
      %v2337 = vpop.f32.mrb[0].mxu0
      %v2338 = vpop.f32.mrb[0].mxu0
      %v2339 = vadd.f32 0.0, %v2338
      %v2340 = vpop.f32.mrb[0].mxu0
      %2341 = vmatprep.mubr.bf16.mxu0 0
      %2342 = vmatmul.mubr.bf16.gmra.mrb[0].mxu0 %v1074
      %v2343 = vpop.f32.mrb[0].mxu0
      %v2344 = vadd.f32 0.0, %v2343
      %v2345 = vpop.f32.mrb[0].mxu0
      %v2346 = vpop.f32.mrb[0].mxu0
      %v2347 = vadd.f32 0.0, %v2346
      %v2348 = vpop.f32.mrb[0].mxu0
      %2349 = vmatprep.mubr.bf16.mxu0 0
      %2350 = vmatmul.mubr.bf16.gmra.mrb[0].mxu0 %v1076
      %v2351 = vpop.f32.mrb[0].mxu0
      %v2352 = vadd.f32 0.0, %v2351
      %v2353 = vpop.f32.mrb[0].mxu0
      %v2354 = vpop.f32.mrb[0].mxu0
      %v2355 = vadd.f32 0.0, %v2354
      %v2356 = vpop.f32.mrb[0].mxu0
      %2357 = vmatprep.mubr.bf16.mxu0 0
      %2358 = vmatmul.mubr.bf16.gmra.mrb[0].mxu0 %v1580
      %v2359 = vpop.f32.mrb[0].mxu0
      %v2360 = vadd.f32 0.0, %v2359
      %v2361 = vpop.f32.mrb[0].mxu0
      %v2362 = vpop.f32.mrb[0].mxu0
      %v2363 = vadd.f32 0.0, %v2362
      %v2364 = vpop.f32.mrb[0].mxu0
      %2365 = vmatprep.mubr.bf16.mxu0 0
      %2366 = vmatmul.mubr.bf16.gmra.mrb[0].mxu0 %v2211
      %v2367 = vpop.f32.mrb[0].mxu0
      %v2368 = vadd.f32 0.0, %v2367
      %v2369 = vpop.f32.mrb[0].mxu0
      %v2370 = vpop.f32.mrb[0].mxu0
      %v2371 = vadd.f32 0.0, %v2370
      %v2372 = vpop.f32.mrb[0].mxu0
      %2373 = vdwg.mxu0
      %v2374 = vadd.f32 %v2169, %v2248
      %v2375 = vadd.f32 %v2170, %v2251
      %v2376 = vadd.f32 %v2171, %v2256
      %v2377 = vadd.f32 %v2172, %v2259
      %v2378 = vadd.f32 %v2173, %v2264
      %v2379 = vadd.f32 %v2174, %v2267
      %v2380 = vadd.f32 %v2175, %v2272
      %v2381 = vadd.f32 %v2176, %v2275
      %v2382 = vadd.f32 %v2177, %v2280
      %v2383 = vadd.f32 %v2178, %v2283
      %v2384 = vadd.f32 %v2179, %v2288
      %v2385 = vadd.f32 %v2180, %v2291
      %v2386 = vadd.f32 %v2181, %v2296
      %v2387 = vadd.f32 %v2182, %v2299
      %v2388 = vadd.f32 %v2183, %v2304
      %v2389 = vadd.f32 %v2184, %v2307
      %v2390 = vadd.f32 %v2185, %v2312
      %v2391 = vadd.f32 %v2186, %v2315
      %v2392 = vadd.f32 %v2187, %v2320
      %v2393 = vadd.f32 %v2188, %v2323
      %v2394 = vadd.f32 %v2189, %v2328
      %v2395 = vadd.f32 %v2190, %v2331
      %v2396 = vadd.f32 %v2191, %v2336
      %v2397 = vadd.f32 %v2192, %v2339
      %v2398 = vadd.f32 %v2193, %v2344
      %v2399 = vadd.f32 %v2194, %v2347
      %v2400 = vadd.f32 %v2195, %v2352
      %v2401 = vadd.f32 %v2196, %v2355
      %v2402 = vadd.f32 %v2197, %v2360
      %v2403 = vadd.f32 %v2198, %v2363
      %v2404 = vadd.f32 %v2199, %v2368
      %v2405 = vadd.f32 %v2200, %v2371
      %v2406 = vshrl.u32 %v625, 16
      %v2408 = vshll.u32 %v625, 16
      %v2410 = vrot.slane %v2408, 1
      %v2411 = vor.u32 %v2406, %v2410
      %v2413 = vshll.u32 %v626, 16
      %v2415 = vrot.slane %v2413, 1
      %v2416 = vsel %vm629, %v2411, %v2415
      %s2417 = scalar_lea.vmem %s3, 56
      %v2418 = vld [vmem:[%s2417] sm:$0xf]
      %v2419 = vld [vmem:[%s2417 + $0x4] sm:$0xf]
      %v2422 = vunpack.c.l.b16 %v2418
      %v2423 = vunpack.c.l.b16 %v2419
      %v2424 = vpack.c.b16 %v2423, %v2422
      %v2427 = vsel %vm458, %v2416, 0
      %2429 = vmatprep.subr.bf16.mxu0 0
      %2430 = vmatpush1.bf16.msra.mxu0 %v2424
      %2431 = vmatprep.subr.bf16.mxu0 0
      %2432 = vmatpush1.bf16.msra.mxu0 0
      %2433 = vmatprep.subr.bf16.mxu0 0
      %2434 = vmatpush1.bf16.msra.mxu0 0
      %2435 = vmatprep.subr.bf16.mxu0 0
      %2436 = vmatpush1.bf16.msra.mxu0 0
      %2437 = vmatprep.subr.bf16.mxu0 0
      %2438 = vmatpush1.bf16.msra.mxu0 0
      %2439 = vmatprep.subr.bf16.mxu0 0
      %2440 = vmatpush1.bf16.msra.mxu0 0
      %2441 = vmatprep.subr.bf16.mxu0 0
      %2442 = vmatpush1.bf16.msra.mxu0 0
      %2443 = vmatprep.subr.bf16.mxu0 0
      %2444 = vmatpush1.bf16.msra.mxu0 0
      %2445 = vmatprep.subr.bf16.mxu0 0
      %2446 = vmatpush1.bf16.msra.mxu0 0
      %2447 = vmatprep.subr.bf16.mxu0 0
      %2448 = vmatpush1.bf16.msra.mxu0 0
      %2449 = vmatprep.subr.bf16.mxu0 0
      %2450 = vmatpush1.bf16.msra.mxu0 0
      %2451 = vmatprep.subr.bf16.mxu0 0
      %2452 = vmatpush1.bf16.msra.mxu0 0
      %2453 = vmatprep.subr.bf16.mxu0 0
      %2454 = vmatpush1.bf16.msra.mxu0 0
      %2455 = vmatprep.subr.bf16.mxu0 0
      %2456 = vmatpush1.bf16.msra.mxu0 0
      %2457 = vmatprep.subr.bf16.mxu0 0
      %2458 = vmatpush1.bf16.msra.mxu0 0
      %2459 = vmatprep.subr.bf16.mxu0 0
      %2460 = vmatpush1.bf16.msra.mxu0 0
      %2461 = vmatprep.mubr.bf16.mxu0 0
      %2462 = vmatmul.mubr.bf16.gmra.mrb[0].mxu0 %v838
      %v2463 = vpop.f32.mrb[0].mxu0
      %v2464 = vadd.f32 0.0, %v2463
      %v2465 = vpop.f32.mrb[0].mxu0
      %v2466 = vpop.f32.mrb[0].mxu0
      %v2467 = vadd.f32 0.0, %v2466
      %v2468 = vpop.f32.mrb[0].mxu0
      %2469 = vmatprep.mubr.bf16.mxu0 0
      %2470 = vmatmul.mubr.bf16.gmra.mrb[0].mxu0 %v841
      %v2471 = vpop.f32.mrb[0].mxu0
      %v2472 = vadd.f32 0.0, %v2471
      %v2473 = vpop.f32.mrb[0].mxu0
      %v2474 = vpop.f32.mrb[0].mxu0
      %v2475 = vadd.f32 0.0, %v2474
      %v2476 = vpop.f32.mrb[0].mxu0
      %2477 = vmatprep.mubr.bf16.mxu0 0
      %2478 = vmatmul.mubr.bf16.gmra.mrb[0].mxu0 %v844
      %v2479 = vpop.f32.mrb[0].mxu0
      %v2480 = vadd.f32 0.0, %v2479
      %v2481 = vpop.f32.mrb[0].mxu0
      %v2482 = vpop.f32.mrb[0].mxu0
      %v2483 = vadd.f32 0.0, %v2482
      %v2484 = vpop.f32.mrb[0].mxu0
      %2485 = vmatprep.mubr.bf16.mxu0 0
      %2486 = vmatmul.mubr.bf16.gmra.mrb[0].mxu0 %v847
      %v2487 = vpop.f32.mrb[0].mxu0
      %v2488 = vadd.f32 0.0, %v2487
      %v2489 = vpop.f32.mrb[0].mxu0
      %v2490 = vpop.f32.mrb[0].mxu0
      %v2491 = vadd.f32 0.0, %v2490
      %v2492 = vpop.f32.mrb[0].mxu0
      %2493 = vmatprep.mubr.bf16.mxu0 0
      %2494 = vmatmul.mubr.bf16.gmra.mrb[0].mxu0 %v850
      %v2495 = vpop.f32.mrb[0].mxu0
      %v2496 = vadd.f32 0.0, %v2495
      %v2497 = vpop.f32.mrb[0].mxu0
      %v2498 = vpop.f32.mrb[0].mxu0
      %v2499 = vadd.f32 0.0, %v2498
      %v2500 = vpop.f32.mrb[0].mxu0
      %2501 = vmatprep.mubr.bf16.mxu0 0
      %2502 = vmatmul.mubr.bf16.gmra.mrb[0].mxu0 %v853
      %v2503 = vpop.f32.mrb[0].mxu0
      %v2504 = vadd.f32 0.0, %v2503
      %v2505 = vpop.f32.mrb[0].mxu0
      %v2506 = vpop.f32.mrb[0].mxu0
      %v2507 = vadd.f32 0.0, %v2506
      %v2508 = vpop.f32.mrb[0].mxu0
      %2509 = vmatprep.mubr.bf16.mxu0 0
      %2510 = vmatmul.mubr.bf16.gmra.mrb[0].mxu0 %v856
      %v2511 = vpop.f32.mrb[0].mxu0
      %v2512 = vadd.f32 0.0, %v2511
      %v2513 = vpop.f32.mrb[0].mxu0
      %v2514 = vpop.f32.mrb[0].mxu0
      %v2515 = vadd.f32 0.0, %v2514
      %v2516 = vpop.f32.mrb[0].mxu0
      %2517 = vmatprep.mubr.bf16.mxu0 0
      %2518 = vmatmul.mubr.bf16.gmra.mrb[0].mxu0 %v859
      %v2519 = vpop.f32.mrb[0].mxu0
      %v2520 = vadd.f32 0.0, %v2519
      %v2521 = vpop.f32.mrb[0].mxu0
      %v2522 = vpop.f32.mrb[0].mxu0
      %v2523 = vadd.f32 0.0, %v2522
      %v2524 = vpop.f32.mrb[0].mxu0
      %2525 = vmatprep.mubr.bf16.mxu0 0
      %2526 = vmatmul.mubr.bf16.gmra.mrb[0].mxu0 %v862
      %v2527 = vpop.f32.mrb[0].mxu0
      %v2528 = vadd.f32 0.0, %v2527
      %v2529 = vpop.f32.mrb[0].mxu0
      %v2530 = vpop.f32.mrb[0].mxu0
      %v2531 = vadd.f32 0.0, %v2530
      %v2532 = vpop.f32.mrb[0].mxu0
      %2533 = vmatprep.mubr.bf16.mxu0 0
      %2534 = vmatmul.mubr.bf16.gmra.mrb[0].mxu0 %v865
      %v2535 = vpop.f32.mrb[0].mxu0
      %v2536 = vadd.f32 0.0, %v2535
      %v2537 = vpop.f32.mrb[0].mxu0
      %v2538 = vpop.f32.mrb[0].mxu0
      %v2539 = vadd.f32 0.0, %v2538
      %v2540 = vpop.f32.mrb[0].mxu0
      %2541 = vmatprep.mubr.bf16.mxu0 0
      %2542 = vmatmul.mubr.bf16.gmra.mrb[0].mxu0 %v868
      %v2543 = vpop.f32.mrb[0].mxu0
      %v2544 = vadd.f32 0.0, %v2543
      %v2545 = vpop.f32.mrb[0].mxu0
      %v2546 = vpop.f32.mrb[0].mxu0
      %v2547 = vadd.f32 0.0, %v2546
      %v2548 = vpop.f32.mrb[0].mxu0
      %2549 = vmatprep.mubr.bf16.mxu0 0
      %2550 = vmatmul.mubr.bf16.gmra.mrb[0].mxu0 %v871
      %v2551 = vpop.f32.mrb[0].mxu0
      %v2552 = vadd.f32 0.0, %v2551
      %v2553 = vpop.f32.mrb[0].mxu0
      %v2554 = vpop.f32.mrb[0].mxu0
      %v2555 = vadd.f32 0.0, %v2554
      %v2556 = vpop.f32.mrb[0].mxu0
      %2557 = vmatprep.mubr.bf16.mxu0 0
      %2558 = vmatmul.mubr.bf16.gmra.mrb[0].mxu0 %v874
      %v2559 = vpop.f32.mrb[0].mxu0
      %v2560 = vadd.f32 0.0, %v2559
      %v2561 = vpop.f32.mrb[0].mxu0
      %v2562 = vpop.f32.mrb[0].mxu0
      %v2563 = vadd.f32 0.0, %v2562
      %v2564 = vpop.f32.mrb[0].mxu0
      %2565 = vmatprep.mubr.bf16.mxu0 0
      %2566 = vmatmul.mubr.bf16.gmra.mrb[0].mxu0 %v877
      %v2567 = vpop.f32.mrb[0].mxu0
      %v2568 = vadd.f32 0.0, %v2567
      %v2569 = vpop.f32.mrb[0].mxu0
      %v2570 = vpop.f32.mrb[0].mxu0
      %v2571 = vadd.f32 0.0, %v2570
      %v2572 = vpop.f32.mrb[0].mxu0
      %2573 = vmatprep.mubr.bf16.mxu0 0
      %2574 = vmatmul.mubr.bf16.gmra.mrb[0].mxu0 %v1796
      %v2575 = vpop.f32.mrb[0].mxu0
      %v2576 = vadd.f32 0.0, %v2575
      %v2577 = vpop.f32.mrb[0].mxu0
      %v2578 = vpop.f32.mrb[0].mxu0
      %v2579 = vadd.f32 0.0, %v2578
      %v2580 = vpop.f32.mrb[0].mxu0
      %2581 = vmatprep.mubr.bf16.mxu0 0
      %2582 = vmatmul.mubr.bf16.gmra.mrb[0].mxu0 %v2427
      %v2583 = vpop.f32.mrb[0].mxu0
      %v2584 = vadd.f32 0.0, %v2583
      %v2585 = vpop.f32.mrb[0].mxu0
      %v2586 = vpop.f32.mrb[0].mxu0
      %v2587 = vadd.f32 0.0, %v2586
      %v2588 = vpop.f32.mrb[0].mxu0
      %2589 = vdwg.mxu0
      %v2590 = vadd.f32 %v2374, %v2464
      %v2591 = vadd.f32 %v2375, %v2467
      %v2592 = vadd.f32 %v2376, %v2472
      %v2593 = vadd.f32 %v2377, %v2475
      %v2594 = vadd.f32 %v2378, %v2480
      %v2595 = vadd.f32 %v2379, %v2483
      %v2596 = vadd.f32 %v2380, %v2488
      %v2597 = vadd.f32 %v2381, %v2491
      %v2598 = vadd.f32 %v2382, %v2496
      %v2599 = vadd.f32 %v2383, %v2499
      %v2600 = vadd.f32 %v2384, %v2504
      %v2601 = vadd.f32 %v2385, %v2507
      %v2602 = vadd.f32 %v2386, %v2512
      %v2603 = vadd.f32 %v2387, %v2515
      %v2604 = vadd.f32 %v2388, %v2520
      %v2605 = vadd.f32 %v2389, %v2523
      %v2606 = vadd.f32 %v2390, %v2528
      %v2607 = vadd.f32 %v2391, %v2531
      %v2608 = vadd.f32 %v2392, %v2536
      %v2609 = vadd.f32 %v2393, %v2539
      %v2610 = vadd.f32 %v2394, %v2544
      %v2611 = vadd.f32 %v2395, %v2547
      %v2612 = vadd.f32 %v2396, %v2552
      %v2613 = vadd.f32 %v2397, %v2555
      %v2614 = vadd.f32 %v2398, %v2560
      %v2615 = vadd.f32 %v2399, %v2563
      %v2616 = vadd.f32 %v2400, %v2568
      %v2617 = vadd.f32 %v2401, %v2571
      %v2618 = vadd.f32 %v2402, %v2576
      %v2619 = vadd.f32 %v2403, %v2579
      %v2620 = vadd.f32 %v2404, %v2584
      %v2621 = vadd.f32 %v2405, %v2587
      %v2624 = vrot.slane %v625, 1
      %v2625 = vrot.slane %v626, 1
      %v2626 = vsel %vm1271, %v2624, %v2625
      %s2627 = scalar_lea.vmem %s3, 64
      %v2628 = vld [vmem:[%s2627] sm:$0xf]
      %v2629 = vld [vmem:[%s2627 + $0x4] sm:$0xf]
      %v2632 = vunpack.c.l.b16 %v2628
      %v2633 = vunpack.c.l.b16 %v2629
      %v2634 = vpack.c.b16 %v2633, %v2632
      %v2637 = vsel %vm458, %v2626, 0
      %2639 = vmatprep.subr.bf16.mxu0 0
      %2640 = vmatpush1.bf16.msra.mxu0 %v2634
      %2641 = vmatprep.subr.bf16.mxu0 0
      %2642 = vmatpush1.bf16.msra.mxu0 0
      %2643 = vmatprep.subr.bf16.mxu0 0
      %2644 = vmatpush1.bf16.msra.mxu0 0
      %2645 = vmatprep.subr.bf16.mxu0 0
      %2646 = vmatpush1.bf16.msra.mxu0 0
      %2647 = vmatprep.subr.bf16.mxu0 0
      %2648 = vmatpush1.bf16.msra.mxu0 0
      %2649 = vmatprep.subr.bf16.mxu0 0
      %2650 = vmatpush1.bf16.msra.mxu0 0
      %2651 = vmatprep.subr.bf16.mxu0 0
      %2652 = vmatpush1.bf16.msra.mxu0 0
      %2653 = vmatprep.subr.bf16.mxu0 0
      %2654 = vmatpush1.bf16.msra.mxu0 0
      %2655 = vmatprep.subr.bf16.mxu0 0
      %2656 = vmatpush1.bf16.msra.mxu0 0
      %2657 = vmatprep.subr.bf16.mxu0 0
      %2658 = vmatpush1.bf16.msra.mxu0 0
      %2659 = vmatprep.subr.bf16.mxu0 0
      %2660 = vmatpush1.bf16.msra.mxu0 0
      %2661 = vmatprep.subr.bf16.mxu0 0
      %2662 = vmatpush1.bf16.msra.mxu0 0
      %2663 = vmatprep.subr.bf16.mxu0 0
      %2664 = vmatpush1.bf16.msra.mxu0 0
      %2665 = vmatprep.subr.bf16.mxu0 0
      %2666 = vmatpush1.bf16.msra.mxu0 0
      %2667 = vmatprep.subr.bf16.mxu0 0
      %2668 = vmatpush1.bf16.msra.mxu0 0
      %2669 = vmatprep.subr.bf16.mxu0 0
      %2670 = vmatpush1.bf16.msra.mxu0 0
      %2671 = vmatprep.mubr.bf16.mxu0 0
      %2672 = vmatmul.mubr.bf16.gmra.mrb[0].mxu0 %v1336
      %v2673 = vpop.f32.mrb[0].mxu0
      %v2674 = vadd.f32 0.0, %v2673
      %v2675 = vpop.f32.mrb[0].mxu0
      %v2676 = vpop.f32.mrb[0].mxu0
      %v2677 = vadd.f32 0.0, %v2676
      %v2678 = vpop.f32.mrb[0].mxu0
      %2679 = vmatprep.mubr.bf16.mxu0 0
      %2680 = vmatmul.mubr.bf16.gmra.mrb[0].mxu0 %v1339
      %v2681 = vpop.f32.mrb[0].mxu0
      %v2682 = vadd.f32 0.0, %v2681
      %v2683 = vpop.f32.mrb[0].mxu0
      %v2684 = vpop.f32.mrb[0].mxu0
      %v2685 = vadd.f32 0.0, %v2684
      %v2686 = vpop.f32.mrb[0].mxu0
      %2687 = vmatprep.mubr.bf16.mxu0 0
      %2688 = vmatmul.mubr.bf16.gmra.mrb[0].mxu0 %v1342
      %v2689 = vpop.f32.mrb[0].mxu0
      %v2690 = vadd.f32 0.0, %v2689
      %v2691 = vpop.f32.mrb[0].mxu0
      %v2692 = vpop.f32.mrb[0].mxu0
      %v2693 = vadd.f32 0.0, %v2692
      %v2694 = vpop.f32.mrb[0].mxu0
      %2695 = vmatprep.mubr.bf16.mxu0 0
      %2696 = vmatmul.mubr.bf16.gmra.mrb[0].mxu0 %v1345
      %v2697 = vpop.f32.mrb[0].mxu0
      %v2698 = vadd.f32 0.0, %v2697
      %v2699 = vpop.f32.mrb[0].mxu0
      %v2700 = vpop.f32.mrb[0].mxu0
      %v2701 = vadd.f32 0.0, %v2700
      %v2702 = vpop.f32.mrb[0].mxu0
      %2703 = vmatprep.mubr.bf16.mxu0 0
      %2704 = vmatmul.mubr.bf16.gmra.mrb[0].mxu0 %v1348
      %v2705 = vpop.f32.mrb[0].mxu0
      %v2706 = vadd.f32 0.0, %v2705
      %v2707 = vpop.f32.mrb[0].mxu0
      %v2708 = vpop.f32.mrb[0].mxu0
      %v2709 = vadd.f32 0.0, %v2708
      %v2710 = vpop.f32.mrb[0].mxu0
      %2711 = vmatprep.mubr.bf16.mxu0 0
      %2712 = vmatmul.mubr.bf16.gmra.mrb[0].mxu0 %v1351
      %v2713 = vpop.f32.mrb[0].mxu0
      %v2714 = vadd.f32 0.0, %v2713
      %v2715 = vpop.f32.mrb[0].mxu0
      %v2716 = vpop.f32.mrb[0].mxu0
      %v2717 = vadd.f32 0.0, %v2716
      %v2718 = vpop.f32.mrb[0].mxu0
      %2719 = vmatprep.mubr.bf16.mxu0 0
      %2720 = vmatmul.mubr.bf16.gmra.mrb[0].mxu0 %v1354
      %v2721 = vpop.f32.mrb[0].mxu0
      %v2722 = vadd.f32 0.0, %v2721
      %v2723 = vpop.f32.mrb[0].mxu0
      %v2724 = vpop.f32.mrb[0].mxu0
      %v2725 = vadd.f32 0.0, %v2724
      %v2726 = vpop.f32.mrb[0].mxu0
      %2727 = vmatprep.mubr.bf16.mxu0 0
      %2728 = vmatmul.mubr.bf16.gmra.mrb[0].mxu0 %v1357
      %v2729 = vpop.f32.mrb[0].mxu0
      %v2730 = vadd.f32 0.0, %v2729
      %v2731 = vpop.f32.mrb[0].mxu0
      %v2732 = vpop.f32.mrb[0].mxu0
      %v2733 = vadd.f32 0.0, %v2732
      %v2734 = vpop.f32.mrb[0].mxu0
      %2735 = vmatprep.mubr.bf16.mxu0 0
      %2736 = vmatmul.mubr.bf16.gmra.mrb[0].mxu0 %v1360
      %v2737 = vpop.f32.mrb[0].mxu0
      %v2738 = vadd.f32 0.0, %v2737
      %v2739 = vpop.f32.mrb[0].mxu0
      %v2740 = vpop.f32.mrb[0].mxu0
      %v2741 = vadd.f32 0.0, %v2740
      %v2742 = vpop.f32.mrb[0].mxu0
      %2743 = vmatprep.mubr.bf16.mxu0 0
      %2744 = vmatmul.mubr.bf16.gmra.mrb[0].mxu0 %v1363
      %v2745 = vpop.f32.mrb[0].mxu0
      %v2746 = vadd.f32 0.0, %v2745
      %v2747 = vpop.f32.mrb[0].mxu0
      %v2748 = vpop.f32.mrb[0].mxu0
      %v2749 = vadd.f32 0.0, %v2748
      %v2750 = vpop.f32.mrb[0].mxu0
      %2751 = vmatprep.mubr.bf16.mxu0 0
      %2752 = vmatmul.mubr.bf16.gmra.mrb[0].mxu0 %v1366
      %v2753 = vpop.f32.mrb[0].mxu0
      %v2754 = vadd.f32 0.0, %v2753
      %v2755 = vpop.f32.mrb[0].mxu0
      %v2756 = vpop.f32.mrb[0].mxu0
      %v2757 = vadd.f32 0.0, %v2756
      %v2758 = vpop.f32.mrb[0].mxu0
      %2759 = vmatprep.mubr.bf16.mxu0 0
      %2760 = vmatmul.mubr.bf16.gmra.mrb[0].mxu0 %v1369
      %v2761 = vpop.f32.mrb[0].mxu0
      %v2762 = vadd.f32 0.0, %v2761
      %v2763 = vpop.f32.mrb[0].mxu0
      %v2764 = vpop.f32.mrb[0].mxu0
      %v2765 = vadd.f32 0.0, %v2764
      %v2766 = vpop.f32.mrb[0].mxu0
      %2767 = vmatprep.mubr.bf16.mxu0 0
      %2768 = vmatmul.mubr.bf16.gmra.mrb[0].mxu0 %v1372
      %v2769 = vpop.f32.mrb[0].mxu0
      %v2770 = vadd.f32 0.0, %v2769
      %v2771 = vpop.f32.mrb[0].mxu0
      %v2772 = vpop.f32.mrb[0].mxu0
      %v2773 = vadd.f32 0.0, %v2772
      %v2774 = vpop.f32.mrb[0].mxu0
      %2775 = vmatprep.mubr.bf16.mxu0 0
      %2776 = vmatmul.mubr.bf16.gmra.mrb[0].mxu0 %v1375
      %v2777 = vpop.f32.mrb[0].mxu0
      %v2778 = vadd.f32 0.0, %v2777
      %v2779 = vpop.f32.mrb[0].mxu0
      %v2780 = vpop.f32.mrb[0].mxu0
      %v2781 = vadd.f32 0.0, %v2780
      %v2782 = vpop.f32.mrb[0].mxu0
      %2783 = vmatprep.mubr.bf16.mxu0 0
      %2784 = vmatmul.mubr.bf16.gmra.mrb[0].mxu0 %v2006
      %v2785 = vpop.f32.mrb[0].mxu0
      %v2786 = vadd.f32 0.0, %v2785
      %v2787 = vpop.f32.mrb[0].mxu0
      %v2788 = vpop.f32.mrb[0].mxu0
      %v2789 = vadd.f32 0.0, %v2788
      %v2790 = vpop.f32.mrb[0].mxu0
      %2791 = vmatprep.mubr.bf16.mxu0 0
      %2792 = vmatmul.mubr.bf16.gmra.mrb[0].mxu0 %v2637
      %v2793 = vpop.f32.mrb[0].mxu0
      %v2794 = vadd.f32 0.0, %v2793
      %v2795 = vpop.f32.mrb[0].mxu0
      %v2796 = vpop.f32.mrb[0].mxu0
      %v2797 = vadd.f32 0.0, %v2796
      %v2798 = vpop.f32.mrb[0].mxu0
      %2799 = vdwg.mxu0
      %v2800 = vadd.f32 %v2590, %v2674
      %v2801 = vadd.f32 %v2591, %v2677
      %v2802 = vadd.f32 %v2592, %v2682
      %v2803 = vadd.f32 %v2593, %v2685
      %v2804 = vadd.f32 %v2594, %v2690
      %v2805 = vadd.f32 %v2595, %v2693
      %v2806 = vadd.f32 %v2596, %v2698
      %v2807 = vadd.f32 %v2597, %v2701
      %v2808 = vadd.f32 %v2598, %v2706
      %v2809 = vadd.f32 %v2599, %v2709
      %v2810 = vadd.f32 %v2600, %v2714
      %v2811 = vadd.f32 %v2601, %v2717
      %v2812 = vadd.f32 %v2602, %v2722
      %v2813 = vadd.f32 %v2603, %v2725
      %v2814 = vadd.f32 %v2604, %v2730
      %v2815 = vadd.f32 %v2605, %v2733
      %v2816 = vadd.f32 %v2606, %v2738
      %v2817 = vadd.f32 %v2607, %v2741
      %v2818 = vadd.f32 %v2608, %v2746
      %v2819 = vadd.f32 %v2609, %v2749
      %v2820 = vadd.f32 %v2610, %v2754
      %v2821 = vadd.f32 %v2611, %v2757
      %v2822 = vadd.f32 %v2612, %v2762
      %v2823 = vadd.f32 %v2613, %v2765
      %v2824 = vadd.f32 %v2614, %v2770
      %v2825 = vadd.f32 %v2615, %v2773
      %v2826 = vadd.f32 %v2616, %v2778
      %v2827 = vadd.f32 %v2617, %v2781
      %v2828 = vadd.f32 %v2618, %v2786
      %v2829 = vadd.f32 %v2619, %v2789
      %v2830 = vadd.f32 %v2620, %v2794
      %v2831 = vadd.f32 %v2621, %v2797
      %v2832 = vadd.f32 %v2800, %v2801
      %v2833 = vadd.f32 %v2832, %v2802
      %v2834 = vadd.f32 %v2833, %v2803
      %v2835 = vadd.f32 %v2834, %v2804
      %v2836 = vadd.f32 %v2835, %v2805
      %v2837 = vadd.f32 %v2836, %v2806
      %v2838 = vadd.f32 %v2837, %v2807
      %v2839 = vadd.f32 %v2838, %v2808
      %v2840 = vadd.f32 %v2839, %v2809
      %v2841 = vadd.f32 %v2840, %v2810
      %v2842 = vadd.f32 %v2841, %v2811
      %v2843 = vadd.f32 %v2842, %v2812
      %v2844 = vadd.f32 %v2843, %v2813
      %v2845 = vadd.f32 %v2844, %v2814
      %v2846 = vadd.f32 %v2845, %v2815
      %v2847 = vadd.f32 %v2846, %v2816
      %v2848 = vadd.f32 %v2847, %v2817
      %v2849 = vadd.f32 %v2848, %v2818
      %v2850 = vadd.f32 %v2849, %v2819
      %v2851 = vadd.f32 %v2850, %v2820
      %v2852 = vadd.f32 %v2851, %v2821
      %v2853 = vadd.f32 %v2852, %v2822
      %v2854 = vadd.f32 %v2853, %v2823
      %v2855 = vadd.f32 %v2854, %v2824
      %v2856 = vadd.f32 %v2855, %v2825
      %v2857 = vadd.f32 %v2856, %v2826
      %v2858 = vadd.f32 %v2857, %v2827
      %v2859 = vadd.f32 %v2858, %v2828
      %v2860 = vadd.f32 %v2859, %v2829
      %v2861 = vadd.f32 %v2860, %v2830
      %v2862 = vadd.f32 %v2861, %v2831
      %v2863 = vrot.slane %v2862, 4
      %v2864 = vadd.f32 %v2862, %v2863
      %v2865 = vrot.slane %v2864, 2
      %v2866 = vadd.f32 %v2864, %v2865
      %v2867 = vrot.slane %v2866, 1
      %v2868 = vadd.f32 %v2866, %v2867
      %v2869 = vmul.f32 %v2800, %v2800
      %v2870 = vmul.f32 %v2801, %v2801
      %v2871 = vmul.f32 %v2802, %v2802
      %v2872 = vmul.f32 %v2803, %v2803
      %v2873 = vmul.f32 %v2804, %v2804
      %v2874 = vmul.f32 %v2805, %v2805
      %v2875 = vmul.f32 %v2806, %v2806
      %v2876 = vmul.f32 %v2807, %v2807
      %v2877 = vmul.f32 %v2808, %v2808
      %v2878 = vmul.f32 %v2809, %v2809
      %v2879 = vmul.f32 %v2810, %v2810
      %v2880 = vmul.f32 %v2811, %v2811
      %v2881 = vmul.f32 %v2812, %v2812
      %v2882 = vmul.f32 %v2813, %v2813
      %v2883 = vmul.f32 %v2814, %v2814
      %v2884 = vmul.f32 %v2815, %v2815
      %v2885 = vmul.f32 %v2816, %v2816
      %v2886 = vmul.f32 %v2817, %v2817
      %v2887 = vmul.f32 %v2818, %v2818
      %v2888 = vmul.f32 %v2819, %v2819
      %v2889 = vmul.f32 %v2820, %v2820
      %v2890 = vmul.f32 %v2821, %v2821
      %v2891 = vmul.f32 %v2822, %v2822
      %v2892 = vmul.f32 %v2823, %v2823
      %v2893 = vmul.f32 %v2824, %v2824
      %v2894 = vmul.f32 %v2825, %v2825
      %v2895 = vmul.f32 %v2826, %v2826
      %v2896 = vmul.f32 %v2827, %v2827
      %v2897 = vmul.f32 %v2828, %v2828
      %v2898 = vmul.f32 %v2829, %v2829
      %v2899 = vmul.f32 %v2830, %v2830
      %v2900 = vmul.f32 %v2831, %v2831
      %v2901 = vadd.f32 %v2869, %v2870
      %v2902 = vadd.f32 %v2901, %v2871
      %v2903 = vadd.f32 %v2902, %v2872
      %v2904 = vadd.f32 %v2903, %v2873
      %v2905 = vadd.f32 %v2904, %v2874
      %v2906 = vadd.f32 %v2905, %v2875
      %v2907 = vadd.f32 %v2906, %v2876
      %v2908 = vadd.f32 %v2907, %v2877
      %v2909 = vadd.f32 %v2908, %v2878
      %v2910 = vadd.f32 %v2909, %v2879
      %v2911 = vadd.f32 %v2910, %v2880
      %v2912 = vadd.f32 %v2911, %v2881
      %v2913 = vadd.f32 %v2912, %v2882
      %v2914 = vadd.f32 %v2913, %v2883
      %v2915 = vadd.f32 %v2914, %v2884
      %v2916 = vadd.f32 %v2915, %v2885
      %v2917 = vadd.f32 %v2916, %v2886
      %v2918 = vadd.f32 %v2917, %v2887
      %v2919 = vadd.f32 %v2918, %v2888
      %v2920 = vadd.f32 %v2919, %v2889
      %v2921 = vadd.f32 %v2920, %v2890
      %v2922 = vadd.f32 %v2921, %v2891
      %v2923 = vadd.f32 %v2922, %v2892
      %v2924 = vadd.f32 %v2923, %v2893
      %v2925 = vadd.f32 %v2924, %v2894
      %v2926 = vadd.f32 %v2925, %v2895
      %v2927 = vadd.f32 %v2926, %v2896
      %v2928 = vadd.f32 %v2927, %v2897
      %v2929 = vadd.f32 %v2928, %v2898
      %v2930 = vadd.f32 %v2929, %v2899
      %v2931 = vadd.f32 %v2930, %v2900
      %v2932 = vrot.slane %v2931, 4
      %v2933 = vadd.f32 %v2931, %v2932
      %v2934 = vrot.slane %v2933, 2
      %v2935 = vadd.f32 %v2933, %v2934
      %v2936 = vrot.slane %v2935, 1
      %v2937 = vadd.f32 %v2935, %v2936
      %vm2938 = vcmask 1040384
      %v2939 = vsel %vm2938, %v2868, %v2937
      %2940 = vst [vmem:[%s411] sm:$0x3] %v2939
      %v2941 = vpack.c.bf16 %v2801, %v2800
      %v2942 = vpack.c.bf16 %v2803, %v2802
      %v2943 = vpack.c.bf16 %v2805, %v2804
      %v2944 = vpack.c.bf16 %v2807, %v2806
      %v2945 = vpack.c.bf16 %v2809, %v2808
      %v2946 = vpack.c.bf16 %v2811, %v2810
      %v2947 = vpack.c.bf16 %v2813, %v2812
      %v2948 = vpack.c.bf16 %v2815, %v2814
      %v2949 = vpack.c.bf16 %v2817, %v2816
      %v2950 = vpack.c.bf16 %v2819, %v2818
      %v2951 = vpack.c.bf16 %v2821, %v2820
      %v2952 = vpack.c.bf16 %v2823, %v2822
      %v2953 = vpack.c.bf16 %v2825, %v2824
      %v2954 = vpack.c.bf16 %v2827, %v2826
      %v2955 = vpack.c.bf16 %v2829, %v2828
      %v2956 = vpack.c.bf16 %v2831, %v2830
      %v2973 = vunpack.c.l.b16 %v2941
      %v2974 = vunpack.c.h.b16 %v2941
      %v2975 = vunpack.c.l.b16 %v2942
      %v2976 = vunpack.c.h.b16 %v2942
      %v2977 = vunpack.c.l.b16 %v2943
      %v2978 = vunpack.c.h.b16 %v2943
      %v2979 = vunpack.c.l.b16 %v2944
      %v2980 = vunpack.c.h.b16 %v2944
      %v2981 = vunpack.c.l.b16 %v2945
      %v2982 = vunpack.c.h.b16 %v2945
      %v2983 = vunpack.c.l.b16 %v2946
      %v2984 = vunpack.c.h.b16 %v2946
      %v2985 = vunpack.c.l.b16 %v2947
      %v2986 = vunpack.c.h.b16 %v2947
      %v2987 = vunpack.c.l.b16 %v2948
      %v2988 = vunpack.c.h.b16 %v2948
      %v2989 = vunpack.c.l.b16 %v2949
      %v2990 = vunpack.c.h.b16 %v2949
      %v2991 = vunpack.c.l.b16 %v2950
      %v2992 = vunpack.c.h.b16 %v2950
      %v2993 = vunpack.c.l.b16 %v2951
      %v2994 = vunpack.c.h.b16 %v2951
      %v2995 = vunpack.c.l.b16 %v2952
      %v2996 = vunpack.c.h.b16 %v2952
      %v2997 = vunpack.c.l.b16 %v2953
      %v2998 = vunpack.c.h.b16 %v2953
      %v2999 = vunpack.c.l.b16 %v2954
      %v3000 = vunpack.c.h.b16 %v2954
      %v3001 = vunpack.c.l.b16 %v2955
      %v3002 = vunpack.c.h.b16 %v2955
      %v3003 = vunpack.c.l.b16 %v2956
      %v3004 = vunpack.c.h.b16 %v2956
      %v3005 = vpack.c.b16 %v2973, %v2973
      %v3006 = vpack.c.b16 %v2974, %v2974
      %v3007 = vpack.c.b16 %v2975, %v2975
      %v3008 = vpack.c.b16 %v2976, %v2976
      %v3009 = vpack.c.b16 %v2977, %v2977
      %v3010 = vpack.c.b16 %v2978, %v2978
      %v3011 = vpack.c.b16 %v2979, %v2979
      %v3012 = vpack.c.b16 %v2980, %v2980
      %v3013 = vpack.c.b16 %v2981, %v2981
      %v3014 = vpack.c.b16 %v2982, %v2982
      %v3015 = vpack.c.b16 %v2983, %v2983
      %v3016 = vpack.c.b16 %v2984, %v2984
      %v3017 = vpack.c.b16 %v2985, %v2985
      %v3018 = vpack.c.b16 %v2986, %v2986
      %v3019 = vpack.c.b16 %v2987, %v2987
      %v3020 = vpack.c.b16 %v2988, %v2988
      %v3021 = vpack.c.b16 %v2989, %v2989
      %v3022 = vpack.c.b16 %v2990, %v2990
      %v3023 = vpack.c.b16 %v2991, %v2991
      %v3024 = vpack.c.b16 %v2992, %v2992
      %v3025 = vpack.c.b16 %v2993, %v2993
      %v3026 = vpack.c.b16 %v2994, %v2994
      %v3027 = vpack.c.b16 %v2995, %v2995
      %v3028 = vpack.c.b16 %v2996, %v2996
      %v3029 = vpack.c.b16 %v2997, %v2997
      %v3030 = vpack.c.b16 %v2998, %v2998
      %v3031 = vpack.c.b16 %v2999, %v2999
      %v3032 = vpack.c.b16 %v3000, %v3000
      %v3033 = vpack.c.b16 %v3001, %v3001
      %v3034 = vpack.c.b16 %v3002, %v3002
      %v3035 = vpack.c.b16 %v3003, %v3003
      %v3036 = vpack.c.b16 %v3004, %v3004
      %3069 = vst [vmem:[%s403] sm:$0xf] %v3005
      %3070 = vst [vmem:[%s403 + $0x4] sm:$0xf] %v3006
      %3071 = vst [vmem:[%s403 + $0x8] sm:$0xf] %v3007
      %3072 = vst [vmem:[%s403 + $0xc] sm:$0xf] %v3008
      %3073 = vst [vmem:[%s403 + $0x10] sm:$0xf] %v3009
      %3074 = vst [vmem:[%s403 + $0x14] sm:$0xf] %v3010
      %3075 = vst [vmem:[%s403 + $0x18] sm:$0xf] %v3011
      %3076 = vst [vmem:[%s403 + $0x1c] sm:$0xf] %v3012
      %3077 = vst [vmem:[%s403 + $0x20] sm:$0xf] %v3013
      %3078 = vst [vmem:[%s403 + $0x24] sm:$0xf] %v3014
      %3079 = vst [vmem:[%s403 + $0x28] sm:$0xf] %v3015
      %3080 = vst [vmem:[%s403 + $0x2c] sm:$0xf] %v3016
      %3081 = vst [vmem:[%s403 + $0x30] sm:$0xf] %v3017
      %3082 = vst [vmem:[%s403 + $0x34] sm:$0xf] %v3018
      %3083 = vst [vmem:[%s403 + $0x38] sm:$0xf] %v3019
      %3084 = vst [vmem:[%s403 + $0x3c] sm:$0xf] %v3020
      %3085 = vst [vmem:[%s403 + $0x40] sm:$0xf] %v3021
      %3086 = vst [vmem:[%s403 + $0x44] sm:$0xf] %v3022
      %3087 = vst [vmem:[%s403 + $0x48] sm:$0xf] %v3023
      %3088 = vst [vmem:[%s403 + $0x4c] sm:$0xf] %v3024
      %3089 = vst [vmem:[%s403 + $0x50] sm:$0xf] %v3025
      %3090 = vst [vmem:[%s403 + $0x54] sm:$0xf] %v3026
      %3091 = vst [vmem:[%s403 + $0x58] sm:$0xf] %v3027
      %3092 = vst [vmem:[%s403 + $0x5c] sm:$0xf] %v3028
      %3093 = vst [vmem:[%s403 + $0x60] sm:$0xf] %v3029
      %3094 = vst [vmem:[%s403 + $0x64] sm:$0xf] %v3030
      %3095 = vst [vmem:[%s403 + $0x68] sm:$0xf] %v3031
      %3096 = vst [vmem:[%s403 + $0x6c] sm:$0xf] %v3032
      %3097 = vst [vmem:[%s403 + $0x70] sm:$0xf] %v3033
      %3098 = vst [vmem:[%s403 + $0x74] sm:$0xf] %v3034
      %3099 = vst [vmem:[%s403 + $0x78] sm:$0xf] %v3035
      %3100 = vst [vmem:[%s403 + $0x7c] sm:$0xf] %v3036
      %s3101 = smul.u32 16, %s22
      %p3102 = scmp.lt.s32.totalorder %s21, 1
      %s3103 = scalar_select %p3102, %s21, 1
      %p3104 = scmp.lt.s32.totalorder %s3101, 15
      %s3105 = scalar_select %p3104, %s3101, 15
      %s3106 = smul.addr %s3105, 2
      %s3107 = smul.addr %s3103, 32
      %s3108 = sadd.s32 %s3106, %s3107
      %s3109 = smul.addr %s3108, 4
      %s3110 = scalar_lea.vmem %s4, %s3109
      %p3111 = scmp.lt.s32.totalorder %s21, 1
      %s3112 = scalar_select %p3111, %s21, 1
      %p3113 = scmp.lt.s32.totalorder %s22, 0
      %s3114 = scalar_select %p3113, %s22, 0
      %s3115 = sadd.s32 %s3114, %s3112
      %s3116 = smul.addr %s3115, 2
      %s3117 = scalar_lea.vmem %s5, %s3116
      // Predicated region
      $region37: #{double_conv.3} parent=35 // pred_check
        %p3118 = pneg %p170
      $region38: #{double_conv.3} parent=35 // pred_check_branch
        %3120 = sbr.rel (%p3118) target = $region40
      $region39: #{double_conv.3} parent=35 // pred_region
        %s3121 = smul.u32 16, %s22
      $region40: #{double_conv.3} parent=35 // pred_fallthru
        _
      // Predicated region
      $region41: #{double_conv.3} parent=35 // pred_check
        %p3122 = pneg %p198
      $region42: #{double_conv.3} parent=35 // pred_check_branch
        %3124 = sbr.rel (%p3122) target = $region44
      $region43: #{double_conv.3} parent=35 // pred_region
        _
      $region44: #{double_conv.3} parent=35 // pred_fallthru
        _
    $region36: #{double_conv.3} parent=5 // pred_fallthru
      _
    %p3125 = scmp.le.s32.totalorder 2, %s12
    // Predicated region
    $region45: #{double_conv.3} parent=5 // pred_check
      %p3126 = pneg %p3125
    $region46: #{double_conv.3} parent=5 // pred_check_branch
      %3128 = sbr.rel (%p3126) target = $region48
    $region47: #{double_conv.3} parent=5 // pred_region
      %s3129 = ssub.s32 %s12, 2
      // Predicated region
      $region49: #{double_conv.3} parent=47 // pred_check
        %p3130 = pneg %p176
      $region50: #{double_conv.3} parent=47 // pred_check_branch
        %3132 = sbr.rel (%p3130) target = $region52
      $region51: #{double_conv.3} parent=47 // pred_region
        %s3133 = smul.u32 16, %s24
        %p3134 = scmp.lt.s32.totalorder %s23, 1
        %s3135 = scalar_select %p3134, %s23, 1
        %p3136 = scmp.lt.s32.totalorder %s3133, 15
        %s3137 = scalar_select %p3136, %s3133, 15
        %s3138 = smul.addr %s3137, 2
        %s3139 = smul.addr %s3135, 32
        %s3140 = sadd.s32 %s3138, %s3139
        %s3141 = smul.addr %s3140, 4
        %s3142 = scalar_lea.vmem %s4, %s3141
      $region52: #{double_conv.3} parent=47 // pred_fallthru
        _
      // Predicated region
      $region53: #{double_conv.3} parent=47 // pred_check
        %p3143 = pneg %p204
      $region54: #{double_conv.3} parent=47 // pred_check_branch
        %3145 = sbr.rel (%p3143) target = $region56
      $region55: #{double_conv.3} parent=47 // pred_region
        %p3146 = scmp.lt.s32.totalorder %s23, 1
        %s3147 = scalar_select %p3146, %s23, 1
        %p3148 = scmp.lt.s32.totalorder %s24, 0
        %s3149 = scalar_select %p3148, %s24, 0
        %s3150 = sadd.s32 %s3149, %s3147
        %s3151 = smul.addr %s3150, 2
        %s3152 = scalar_lea.vmem %s5, %s3151
      $region56: #{double_conv.3} parent=47 // pred_fallthru
        _
    $region48: #{double_conv.3} parent=5 // pred_fallthru
      _
  $region6: #{double_conv.3} parent=0 // loop_footer
    %s16 = sadd.s32 1, %s12
  $region7: #{double_conv.3} parent=0 // loop_footer_branch
    %11 = sbr.rel target = $region3
  $region8: #{double_conv.3} parent=0 // loop_exit
    _

// kernel: double_conv.4
$region0: #{double_conv.4}
  #allocation0 [shape = 'u32[]', space=smem, size = 0x4, offset = 0x4, fixed_abs, tag = 'smem constant byte address 0x4 - core index']
  #allocation1 [shape = 'u32[144,128]{1,0:T(1,128)}', space=vmem, size = 0x12000, scoped, tag = 'internal scratch']
  #allocation2 [shape = 'f32[18,18,128]{2,1,0:T(8,128)}', space=vmem, size = 0x36000, scoped, tag = 'scratch operand']
  %s0 = inlined_call_operand.vmem [shape: bf16[2,16,16,128], index: 0, kind: input, shape index: {}, may-alias: {0,1,2}]
  %s1 = inlined_call_operand.vmem [shape: bf16[2,16,16,128], index: 1, kind: input, shape index: {}, may-alias: {0,1,2}]
  %s2 = inlined_call_operand.vmem [shape: bf16[2,16,16,128], index: 2, kind: input, shape index: {}, may-alias: {0,1,2}]
  %s3 = inlined_call_operand.vmem [shape: f32[2,128], index: 3, kind: input, shape index: {}]
  %s4 = inlined_call_operand.vmem [shape: bf16[9,128,128], index: 4, kind: input, shape index: {}]
  %s5 = inlined_call_operand.vmem [shape: bf16[2,16,16,128], index: 5, kind: output, shape index: {0}]
  %s6 = inlined_call_operand.vmem [shape: f32[2,1,2,128], index: 6, kind: output, shape index: {1}]
  %7 = xla_tuple %s5, %s6
  %s8 = sld [smem:[#allocation0]]
  $region61: #{double_conv.4} parent=0
    _
  %s10 = ssub.s32 1, %s8
  %s11 = scalar_select 0, %s10, %s8
  loop: start=0, step=1, limit=4
  $region2: #{double_conv.4} parent=0 // loop_pre_header
    _
  $region3: #{double_conv.4} parent=0 // loop_header
    %s13 = sphi 0, %s17
    %p14 = scmp.ge.s32.totalorder %s13, 4
    %s20 = sphi 0, %s32
    %s21 = sphi 0, %s28
    %s22 = sphi 0, %s20
    %s23 = sphi 0, %s21
    %s24 = sphi 0, %s22
    %s25 = sphi 0, %s23
    %s45 = sphi 0, %s47
    %s48 = sphi 0, %s45
    %s49 = sphi 0, %s48
    %s65 = sphi 0, %s49
    %s73 = sphi 0, %s75
    %s76 = sphi 0, %s73
    %s77 = sphi 0, %s76
    %s93 = sphi 0, %s77
    %s109 = sphi 0, %s111
    %s112 = sphi 0, %s109
    %s113 = sphi 0, %s112
    %s129 = sphi 0, %s113
    %s133 = sphi 0, %s133
    %s135 = sphi 0, %s133
    %s136 = sphi 0, %s135
    %s150 = sphi 0, %s136
    %s154 = sphi 0, %s154
    %s156 = sphi 0, %s154
    %s157 = sphi 0, %s156
    %s171 = sphi 0, %s157
    %s179 = sphi 0, %s181
    %s182 = sphi 0, %s179
    %s183 = sphi 0, %s182
    %s199 = sphi 0, %s183
    %s207 = sphi 0, %s209
    %s210 = sphi 0, %s207
    %s211 = sphi 0, %s210
    %s227 = sphi 0, %s211
  $region4: #{double_conv.4} parent=0 // loop_header_branch
    %16 = sbr.rel (%p14) target = $region8
  $region5: #{double_conv.4} parent=0 // loop_body
    %s18 = ssub.s32 %s13, 1
    %s19 = ssub.s32 %s13, 2
    %s26 = sadd.s32 1, %s21
    %p27 = scmp.ge.s32.totalorder %s26, 1
    %s28 = scalar_select %p27, 0, %s26
    %s29 = sadd.s32 1, %s20
    %s30 = scalar_select %p27, %s29, %s20
    %p31 = scmp.ge.s32.totalorder %s30, 2
    %s32 = scalar_select %p31, 0, %s30
    %s33 = smul.u32 %s21, 16
    %s34 = ssub.s32 %s33, 1
    %p35 = scmp.gt.s32.totalorder %s34, 0
    %s36 = scalar_select %p35, %s34, 0
    %s37 = smul.u32 %s28, 16
    %s38 = ssub.s32 %s37, 1
    %p39 = scmp.gt.s32.totalorder %s38, 0
    %s40 = scalar_select %p39, %s38, 0
    %s41 = ssub.s32 %s20, %s32
    %s42 = ssub.s32 %s36, %s40
    %s43 = sor.u32 %s41, %s42
    %p44 = scmp.eq.s32.totalorder %s43, 0
    %s46 = sadd.s32 %s45, 1
    %s47 = scalar_select %p44, %s45, %s46
    %p50 = pneg %p44
    %p51 = scmp.eq.s32.totalorder %s13, 1
    %p52 = por %p50, %p51
    %p53 = scmp.ne.s32.totalorder %s45, %s48
    %p54 = scmp.eq.s32.totalorder %s13, 0
    %p55 = por %p53, %p54
    %p56 = scmp.ne.s32.totalorder %s45, %s48
    %p57 = scmp.eq.s32.totalorder %s18, 1
    %p58 = por %p56, %p57
    %p59 = scmp.ne.s32.totalorder %s48, %s49
    %p60 = scmp.eq.s32.totalorder %s18, 0
    %p61 = por %p59, %p60
    %p62 = scmp.ne.s32.totalorder %s48, %s49
    %p63 = scmp.eq.s32.totalorder %s19, 1
    %p64 = por %p62, %p63
    %p66 = scmp.ne.s32.totalorder %s49, %s65
    %p67 = scmp.eq.s32.totalorder %s19, 0
    %p68 = por %p66, %p67
    %s69 = ssub.s32 %s20, %s32
    %s70 = ssub.s32 %s21, %s28
    %s71 = sor.u32 %s69, %s70
    %p72 = scmp.eq.s32.totalorder %s71, 0
    %s74 = sadd.s32 %s73, 1
    %s75 = scalar_select %p72, %s73, %s74
    %p78 = pneg %p72
    %p79 = scmp.eq.s32.totalorder %s13, 1
    %p80 = por %p78, %p79
    %p81 = scmp.ne.s32.totalorder %s73, %s76
    %p82 = scmp.eq.s32.totalorder %s13, 0
    %p83 = por %p81, %p82
    %p84 = scmp.ne.s32.totalorder %s73, %s76
    %p85 = scmp.eq.s32.totalorder %s18, 1
    %p86 = por %p84, %p85
    %p87 = scmp.ne.s32.totalorder %s76, %s77
    %p88 = scmp.eq.s32.totalorder %s18, 0
    %p89 = por %p87, %p88
    %p90 = scmp.ne.s32.totalorder %s76, %s77
    %p91 = scmp.eq.s32.totalorder %s19, 1
    %p92 = por %p90, %p91
    %p94 = scmp.ne.s32.totalorder %s77, %s93
    %p95 = scmp.eq.s32.totalorder %s19, 0
    %p96 = por %p94, %p95
    %s97 = sadd.s32 %s21, 1
    %s98 = smul.u32 %s97, 16
    %p99 = scmp.lt.s32.totalorder %s98, 15
    %s100 = scalar_select %p99, %s98, 15
    %s101 = sadd.s32 %s28, 1
    %s102 = smul.u32 %s101, 16
    %p103 = scmp.lt.s32.totalorder %s102, 15
    %s104 = scalar_select %p103, %s102, 15
    %s105 = ssub.s32 %s20, %s32
    %s106 = ssub.s32 %s100, %s104
    %s107 = sor.u32 %s105, %s106
    %p108 = scmp.eq.s32.totalorder %s107, 0
    %s110 = sadd.s32 %s109, 1
    %s111 = scalar_select %p108, %s109, %s110
    %p114 = pneg %p108
    %p115 = scmp.eq.s32.totalorder %s13, 1
    %p116 = por %p114, %p115
    %p117 = scmp.ne.s32.totalorder %s109, %s112
    %p118 = scmp.eq.s32.totalorder %s13, 0
    %p119 = por %p117, %p118
    %p120 = scmp.ne.s32.totalorder %s109, %s112
    %p121 = scmp.eq.s32.totalorder %s18, 1
    %p122 = por %p120, %p121
    %p123 = scmp.ne.s32.totalorder %s112, %s113
    %p124 = scmp.eq.s32.totalorder %s18, 0
    %p125 = por %p123, %p124
    %p126 = scmp.ne.s32.totalorder %s112, %s113
    %p127 = scmp.eq.s32.totalorder %s19, 1
    %p128 = por %p126, %p127
    %p130 = scmp.ne.s32.totalorder %s113, %s129
    %p131 = scmp.eq.s32.totalorder %s19, 0
    %p132 = por %p130, %p131
    %s134 = sadd.s32 %s133, 1
    %p137 = scmp.eq.s32.totalorder %s13, 1
    %p138 = scmp.ne.s32.totalorder %s133, %s135
    %p139 = scmp.eq.s32.totalorder %s13, 0
    %p140 = por %p138, %p139
    %p141 = scmp.ne.s32.totalorder %s133, %s135
    %p142 = scmp.eq.s32.totalorder %s18, 1
    %p143 = por %p141, %p142
    %p144 = scmp.ne.s32.totalorder %s135, %s136
    %p145 = scmp.eq.s32.totalorder %s18, 0
    %p146 = por %p144, %p145
    %p147 = scmp.ne.s32.totalorder %s135, %s136
    %p148 = scmp.eq.s32.totalorder %s19, 1
    %p149 = por %p147, %p148
    %p151 = scmp.ne.s32.totalorder %s136, %s150
    %p152 = scmp.eq.s32.totalorder %s19, 0
    %p153 = por %p151, %p152
    %s155 = sadd.s32 %s154, 1
    %p158 = scmp.eq.s32.totalorder %s13, 1
    %p159 = scmp.ne.s32.totalorder %s154, %s156
    %p160 = scmp.eq.s32.totalorder %s13, 0
    %p161 = por %p159, %p160
    %p162 = scmp.ne.s32.totalorder %s154, %s156
    %p163 = scmp.eq.s32.totalorder %s18, 1
    %p164 = por %p162, %p163
    %p165 = scmp.ne.s32.totalorder %s156, %s157
    %p166 = scmp.eq.s32.totalorder %s18, 0
    %p167 = por %p165, %p166
    %p168 = scmp.ne.s32.totalorder %s156, %s157
    %p169 = scmp.eq.s32.totalorder %s19, 1
    %p170 = por %p168, %p169
    %p172 = scmp.ne.s32.totalorder %s157, %s171
    %p173 = scmp.eq.s32.totalorder %s19, 0
    %p174 = por %p172, %p173
    %s175 = ssub.s32 %s20, %s32
    %s176 = ssub.s32 %s21, %s28
    %s177 = sor.u32 %s175, %s176
    %p178 = scmp.eq.s32.totalorder %s177, 0
    %s180 = sadd.s32 %s179, 1
    %s181 = scalar_select %p178, %s179, %s180
    %p184 = pneg %p178
    %p185 = scmp.eq.s32.totalorder %s13, 1
    %p186 = por %p184, %p185
    %p187 = scmp.ne.s32.totalorder %s179, %s182
    %p188 = scmp.eq.s32.totalorder %s13, 0
    %p189 = por %p187, %p188
    %p190 = scmp.ne.s32.totalorder %s179, %s182
    %p191 = scmp.eq.s32.totalorder %s18, 1
    %p192 = por %p190, %p191
    %p193 = scmp.ne.s32.totalorder %s182, %s183
    %p194 = scmp.eq.s32.totalorder %s18, 0
    %p195 = por %p193, %p194
    %p196 = scmp.ne.s32.totalorder %s182, %s183
    %p197 = scmp.eq.s32.totalorder %s19, 1
    %p198 = por %p196, %p197
    %p200 = scmp.ne.s32.totalorder %s183, %s199
    %p201 = scmp.eq.s32.totalorder %s19, 0
    %p202 = por %p200, %p201
    %s203 = ssub.s32 %s20, %s32
    %s204 = ssub.s32 %s21, %s28
    %s205 = sor.u32 %s203, %s204
    %p206 = scmp.eq.s32.totalorder %s205, 0
    %s208 = sadd.s32 %s207, 1
    %s209 = scalar_select %p206, %s207, %s208
    %p212 = pneg %p206
    %p213 = scmp.eq.s32.totalorder %s13, 1
    %p214 = por %p212, %p213
    %p215 = scmp.ne.s32.totalorder %s207, %s210
    %p216 = scmp.eq.s32.totalorder %s13, 0
    %p217 = por %p215, %p216
    %p218 = scmp.ne.s32.totalorder %s207, %s210
    %p219 = scmp.eq.s32.totalorder %s18, 1
    %p220 = por %p218, %p219
    %p221 = scmp.ne.s32.totalorder %s210, %s211
    %p222 = scmp.eq.s32.totalorder %s18, 0
    %p223 = por %p221, %p222
    %p224 = scmp.ne.s32.totalorder %s210, %s211
    %p225 = scmp.eq.s32.totalorder %s19, 1
    %p226 = por %p224, %p225
    %p228 = scmp.ne.s32.totalorder %s211, %s227
    %p229 = scmp.eq.s32.totalorder %s19, 0
    %p230 = por %p228, %p229
    %p231 = scmp.le.s32.totalorder 1, %s13
    %p232 = scmp.lt.s32.totalorder %s13, 3
    %p233 = pnand %p231, %p232
    %p234 = pneg %p233
    // Predicated region
    $region9: #{double_conv.4} parent=5 // pred_check
      _
    $region10: #{double_conv.4} parent=5 // pred_check_branch
      %236 = sbr.rel (%p233) target = $region12
    $region11: #{double_conv.4} parent=5 // pred_region
      %s237 = ssub.s32 %s13, 1
      // Predicated region
      $region13: #{double_conv.4} parent=11 // pred_check
        %p238 = pneg %p146
      $region14: #{double_conv.4} parent=11 // pred_check_branch
        %240 = sbr.rel (%p238) target = $region16
      $region15: #{double_conv.4} parent=11 // pred_region
        _
      $region16: #{double_conv.4} parent=11 // pred_fallthru
        _
      // Predicated region
      $region17: #{double_conv.4} parent=11 // pred_check
        %p241 = pneg %p167
      $region18: #{double_conv.4} parent=11 // pred_check_branch
        %243 = sbr.rel (%p241) target = $region20
      $region19: #{double_conv.4} parent=11 // pred_region
        _
      $region20: #{double_conv.4} parent=11 // pred_fallthru
        _
    $region12: #{double_conv.4} parent=5 // pred_fallthru
      _
    %p244 = scmp.lt.s32.totalorder %s13, 2
    // Predicated region
    $region21: #{double_conv.4} parent=5 // pred_check
      %p245 = pneg %p244
    $region22: #{double_conv.4} parent=5 // pred_check_branch
      %247 = sbr.rel (%p245) target = $region24
    $region23: #{double_conv.4} parent=5 // pred_region
      // Predicated region
      $region25: #{double_conv.4} parent=23 // pred_check
        %p248 = pneg %p55
      $region26: #{double_conv.4} parent=23 // pred_check_branch
        %250 = sbr.rel (%p248) target = $region28
      $region27: #{double_conv.4} parent=23 // pred_region
        %s251 = smul.u32 %s21, 16
        %s252 = ssub.s32 %s251, 1
        %p253 = scmp.gt.s32.totalorder %s252, 0
        %s254 = scalar_select %p253, %s252, 0
        %p255 = scmp.lt.s32.totalorder %s20, 1
        %s256 = scalar_select %p255, %s20, 1
        %p257 = scmp.lt.s32.totalorder %s254, 15
        %s258 = scalar_select %p257, %s254, 15
        %s259 = smul.addr %s258, 2
        %s260 = smul.addr %s256, 32
        %s261 = sadd.s32 %s259, %s260
        %s262 = smul.addr %s261, 4
        %s263 = scalar_lea.vmem %s0, %s262
        %s264 = smul.u32 %s21, 16
        %s265 = ssub.s32 %s264, 1
        %p266 = scmp.gt.s32.totalorder %s265, 0
        %s267 = scalar_select %p266, %s265, 0
      $region28: #{double_conv.4} parent=23 // pred_fallthru
        _
      // Predicated region
      $region29: #{double_conv.4} parent=23 // pred_check
        %p268 = pneg %p83
      $region30: #{double_conv.4} parent=23 // pred_check_branch
        %270 = sbr.rel (%p268) target = $region32
      $region31: #{double_conv.4} parent=23 // pred_region
        %s271 = smul.u32 16, %s21
        %p272 = scmp.lt.s32.totalorder %s20, 1
        %s273 = scalar_select %p272, %s20, 1
        %p274 = scmp.lt.s32.totalorder %s271, 15
        %s275 = scalar_select %p274, %s271, 15
        %s276 = smul.addr %s275, 2
        %s277 = smul.addr %s273, 32
        %s278 = sadd.s32 %s276, %s277
        %s279 = smul.addr %s278, 4
        %s280 = scalar_lea.vmem %s1, %s279
        %s281 = smul.u32 16, %s21
      $region32: #{double_conv.4} parent=23 // pred_fallthru
        _
      // Predicated region
      $region33: #{double_conv.4} parent=23 // pred_check
        %p282 = pneg %p119
      $region34: #{double_conv.4} parent=23 // pred_check_branch
        %284 = sbr.rel (%p282) target = $region36
      $region35: #{double_conv.4} parent=23 // pred_region
        %s285 = sadd.s32 %s21, 1
        %s286 = smul.u32 %s285, 16
        %p287 = scmp.lt.s32.totalorder %s286, 15
        %s288 = scalar_select %p287, %s286, 15
        %p289 = scmp.lt.s32.totalorder %s20, 1
        %s290 = scalar_select %p289, %s20, 1
        %p291 = scmp.lt.s32.totalorder %s288, 15
        %s292 = scalar_select %p291, %s288, 15
        %s293 = smul.addr %s292, 2
        %s294 = smul.addr %s290, 32
        %s295 = sadd.s32 %s293, %s294
        %s296 = smul.addr %s295, 4
        %s297 = scalar_lea.vmem %s2, %s296
        %s298 = sadd.s32 %s21, 1
        %s299 = smul.u32 %s298, 16
        %p300 = scmp.lt.s32.totalorder %s299, 15
        %s301 = scalar_select %p300, %s299, 15
      $region36: #{double_conv.4} parent=23 // pred_fallthru
        _
    $region24: #{double_conv.4} parent=5 // pred_fallthru
      _
    %p302 = scmp.le.s32.totalorder 1, %s13
    %p303 = scmp.lt.s32.totalorder %s13, 3
    %p304 = pnand %p302, %p303
    %p305 = pneg %p304
    // Predicated region
    $region37: #{double_conv.4} parent=5 // pred_check
      _
    $region38: #{double_conv.4} parent=5 // pred_check_branch
      %307 = sbr.rel (%p304) target = $region40
    $region39: #{double_conv.4} parent=5 // pred_region
      %s308 = ssub.s32 %s13, 1
      %s309 = smul.u32 %s23, 16
      %s310 = ssub.s32 %s309, 1
      %p311 = scmp.gt.s32.totalorder %s310, 0
      %s312 = scalar_select %p311, %s310, 0
      %p313 = scmp.lt.s32.totalorder %s22, 1
      %s314 = scalar_select %p313, %s22, 1
      %p315 = scmp.lt.s32.totalorder %s312, 15
      %s316 = scalar_select %p315, %s312, 15
      %s317 = smul.addr %s316, 2
      %s318 = smul.addr %s314, 32
      %s319 = sadd.s32 %s317, %s318
      %s320 = smul.addr %s319, 4
      %s321 = scalar_lea.vmem %s0, %s320
      %p322 = pneg %p61
      %p323 = pneg %p58
      %s324 = smul.u32 16, %s23
      %p325 = scmp.lt.s32.totalorder %s22, 1
      %s326 = scalar_select %p325, %s22, 1
      %p327 = scmp.lt.s32.totalorder %s324, 15
      %s328 = scalar_select %p327, %s324, 15
      %s329 = smul.addr %s328, 2
      %s330 = smul.addr %s326, 32
      %s331 = sadd.s32 %s329, %s330
      %s332 = smul.addr %s331, 4
      %s333 = scalar_lea.vmem %s1, %s332
      %p334 = pneg %p89
      %p335 = pneg %p86
      %s336 = sadd.s32 %s23, 1
      %s337 = smul.u32 %s336, 16
      %p338 = scmp.lt.s32.totalorder %s337, 15
      %s339 = scalar_select %p338, %s337, 15
      %p340 = scmp.lt.s32.totalorder %s22, 1
      %s341 = scalar_select %p340, %s22, 1
      %p342 = scmp.lt.s32.totalorder %s339, 15
      %s343 = scalar_select %p342, %s339, 15
      %s344 = smul.addr %s343, 2
      %s345 = smul.addr %s341, 32
      %s346 = sadd.s32 %s344, %s345
      %s347 = smul.addr %s346, 4
      %s348 = scalar_lea.vmem %s2, %s347
      %p349 = pneg %p125
      %p350 = pneg %p122
      %p351 = pneg %p146
      %p352 = pneg %p143
      %p353 = pneg %p167
      %p354 = pneg %p164
      %p355 = pneg %p195
      %p356 = pneg %p192
      %s357 = smul.u32 16, %s23
      %p358 = scmp.lt.s32.totalorder %s22, 1
      %s359 = scalar_select %p358, %s22, 1
      %p360 = scmp.lt.s32.totalorder %s357, 15
      %s361 = scalar_select %p360, %s357, 15
      %s362 = smul.addr %s361, 2
      %s363 = smul.addr %s359, 32
      %s364 = sadd.s32 %s362, %s363
      %s365 = smul.addr %s364, 4
      %s366 = scalar_lea.vmem %s5, %s365
      %p367 = pneg %p223
      %p368 = pneg %p220
      %p369 = scmp.lt.s32.totalorder %s22, 1
      %s370 = scalar_select %p369, %s22, 1
      %p371 = scmp.lt.s32.totalorder %s23, 0
      %s372 = scalar_select %p371, %s23, 0
      %s373 = sadd.s32 %s372, %s370
      %s374 = smul.addr %s373, 2
      %s375 = scalar_lea.vmem %s6, %s374
      %s376 = smul.u32 %s23, 16
      %s377 = ssub.s32 %s376, 1
      %p378 = scmp.gt.s32.totalorder %s377, 0
      %s379 = scalar_select %p378, %s377, 0
      %p380 = scmp.lt.s32.totalorder %s22, 1
      %s381 = scalar_select %p380, %s22, 1
      %p382 = scmp.lt.s32.totalorder %s379, 15
      %s383 = scalar_select %p382, %s379, 15
      %s384 = smul.addr %s383, 2
      %s385 = smul.addr %s381, 32
      %s386 = sadd.s32 %s384, %s385
      %s387 = smul.addr %s386, 4
      %s388 = scalar_lea.vmem %s0, %s387
      %s389 = smul.u32 %s23, 16
      %s390 = ssub.s32 %s389, 1
      %p391 = scmp.gt.s32.totalorder %s390, 0
      %s392 = scalar_select %p391, %s390, 0
      %s393 = smul.u32 16, %s23
      %p394 = scmp.lt.s32.totalorder %s22, 1
      %s395 = scalar_select %p394, %s22, 1
      %p396 = scmp.lt.s32.totalorder %s393, 15
      %s397 = scalar_select %p396, %s393, 15
      %s398 = smul.addr %s397, 2
      %s399 = smul.addr %s395, 32
      %s400 = sadd.s32 %s398, %s399
      %s401 = smul.addr %s400, 4
      %s402 = scalar_lea.vmem %s1, %s401
      %s403 = smul.u32 16, %s23
      %s404 = sadd.s32 %s23, 1
      %s405 = smul.u32 %s404, 16
      %p406 = scmp.lt.s32.totalorder %s405, 15
      %s407 = scalar_select %p406, %s405, 15
      %p408 = scmp.lt.s32.totalorder %s22, 1
      %s409 = scalar_select %p408, %s22, 1
      %p410 = scmp.lt.s32.totalorder %s407, 15
      %s411 = scalar_select %p410, %s407, 15
      %s412 = smul.addr %s411, 2
      %s413 = smul.addr %s409, 32
      %s414 = sadd.s32 %s412, %s413
      %s415 = smul.addr %s414, 4
      %s416 = scalar_lea.vmem %s2, %s415
      %s417 = sadd.s32 %s23, 1
      %s418 = smul.u32 %s417, 16
      %p419 = scmp.lt.s32.totalorder %s418, 15
      %s420 = scalar_select %p419, %s418, 15
      %s421 = smul.u32 16, %s23
      %p422 = scmp.lt.s32.totalorder %s22, 1
      %s423 = scalar_select %p422, %s22, 1
      %p424 = scmp.lt.s32.totalorder %s421, 15
      %s425 = scalar_select %p424, %s421, 15
      %s426 = smul.addr %s425, 2
      %s427 = smul.addr %s423, 32
      %s428 = sadd.s32 %s426, %s427
      %s429 = smul.addr %s428, 4
      %s430 = scalar_lea.vmem %s5, %s429
      %s431 = smul.u32 16, %s23
      %p432 = scmp.lt.s32.totalorder %s22, 1
      %s433 = scalar_select %p432, %s22, 1
      %p434 = scmp.lt.s32.totalorder %s23, 0
      %s435 = scalar_select %p434, %s23, 0
      %s436 = sadd.s32 %s435, %s433
      %s437 = smul.addr %s436, 2
      %s438 = scalar_lea.vmem %s6, %s437
      %v440 = vld [vmem:[%s3] sm:$0x1]
      %v441 = vld [vmem:[%s3 + $0x1] sm:$0x1]
      %442 = vst [vmem:[#allocation2] sm:$0x1] 0.0
      %443 = vst [vmem:[#allocation2 + $0x18] sm:$0x1] 0.0
      %444 = vst [vmem:[#allocation2 + $0x30] sm:$0x1] 0.0
      %445 = vst [vmem:[#allocation2 + $0x48] sm:$0x1] 0.0
      %446 = vst [vmem:[#allocation2 + $0x60] sm:$0x1] 0.0
      %447 = vst [vmem:[#allocation2 + $0x78] sm:$0x1] 0.0
      %448 = vst [vmem:[#allocation2 + $0x90] sm:$0x1] 0.0
      %449 = vst [vmem:[#allocation2 + $0xa8] sm:$0x1] 0.0
      %450 = vst [vmem:[#allocation2 + $0xc0] sm:$0x1] 0.0
      %451 = vst [vmem:[#allocation2 + $0xd8] sm:$0x1] 0.0
      %452 = vst [vmem:[#allocation2 + $0xf0] sm:$0x1] 0.0
      %453 = vst [vmem:[#allocation2 + $0x108] sm:$0x1] 0.0
      %454 = vst [vmem:[#allocation2 + $0x120] sm:$0x1] 0.0
      %455 = vst [vmem:[#allocation2 + $0x138] sm:$0x1] 0.0
      %456 = vst [vmem:[#allocation2 + $0x150] sm:$0x1] 0.0
      %457 = vst [vmem:[#allocation2 + $0x168] sm:$0x1] 0.0
      %458 = vst [vmem:[#allocation2 + $0x180] sm:$0x1] 0.0
      %459 = vst [vmem:[#allocation2 + $0x198] sm:$0x1] 0.0
      %460 = vst [vmem:[#allocation2 + $0x11] sm:$0x1] 0.0
      %461 = vst [vmem:[#allocation2 + $0x29] sm:$0x1] 0.0
      %462 = vst [vmem:[#allocation2 + $0x41] sm:$0x1] 0.0
      %463 = vst [vmem:[#allocation2 + $0x59] sm:$0x1] 0.0
      %464 = vst [vmem:[#allocation2 + $0x71] sm:$0x1] 0.0
      %465 = vst [vmem:[#allocation2 + $0x89] sm:$0x1] 0.0
      %466 = vst [vmem:[#allocation2 + $0xa1] sm:$0x1] 0.0
      %467 = vst [vmem:[#allocation2 + $0xb9] sm:$0x1] 0.0
      %468 = vst [vmem:[#allocation2 + $0xd1] sm:$0x1] 0.0
      %469 = vst [vmem:[#allocation2 + $0xe9] sm:$0x1] 0.0
      %470 = vst [vmem:[#allocation2 + $0x101] sm:$0x1] 0.0
      %471 = vst [vmem:[#allocation2 + $0x119] sm:$0x1] 0.0
      %472 = vst [vmem:[#allocation2 + $0x131] sm:$0x1] 0.0
      %473 = vst [vmem:[#allocation2 + $0x149] sm:$0x1] 0.0
      %474 = vst [vmem:[#allocation2 + $0x161] sm:$0x1] 0.0
      %475 = vst [vmem:[#allocation2 + $0x179] sm:$0x1] 0.0
      %476 = vst [vmem:[#allocation2 + $0x191] sm:$0x1] 0.0
      %477 = vst [vmem:[#allocation2 + $0x1a9] sm:$0x1] 0.0
      %v478 = vld [vmem:[%s388] sm:$0xf]
      %v479 = vld [vmem:[%s388 + $0x4] sm:$0xf]
      %v480 = vunpack.c.l.bf16 %v478
      %v481 = vunpack.c.l.bf16 %v479
      %v482 = vlaneseq
      %v483 = vshrl.u32 %v482, 7
      %v484 = vsub.s32 0, %v483
      %v485 = vrot.slane %v440, %v484
      %v486 = vmul.f32 %v480, %v485
      %v487 = vmul.f32 %v481, %v485
      %v488 = vlaneseq
      %v489 = vshrl.u32 %v488, 7
      %v490 = vsub.s32 0, %v489
      %v491 = vrot.slane %v441, %v490
      %v492 = vadd.f32 %v486, %v491
      %v493 = vadd.f32 %v487, %v491
      %v494 = vmax.f32 %v492, 0.0
      %v495 = vmax.f32 %v493, 0.0
      %p496 = scmp.gt.s32.totalorder %s23, 0
      %s497 = scalar_select %p496, 1, 0
      %s498 = scvt.s32.f32 %s497
      %v499 = vstv %s498
      %v500 = vmul.f32 %v494, %v499
      %v501 = vmul.f32 %v495, %v499
      %502 = vst [vmem:[#allocation2 + $0x1] sm:$0xff] %v500
      %503 = vst [vmem:[#allocation2 + $0x9] sm:$0xff] %v501
      %v504 = vld [vmem:[%s402] sm:$0xf]
      %v505 = vld [vmem:[%s402 + $0x4] sm:$0xf]
      %v506 = vld [vmem:[%s402 + $0x8] sm:$0xf]
      %v507 = vld [vmem:[%s402 + $0xc] sm:$0xf]
      %v508 = vld [vmem:[%s402 + $0x10] sm:$0xf]
      %v509 = vld [vmem:[%s402 + $0x14] sm:$0xf]
      %v510 = vld [vmem:[%s402 + $0x18] sm:$0xf]
      %v511 = vld [vmem:[%s402 + $0x1c] sm:$0xf]
      %v512 = vld [vmem:[%s402 + $0x20] sm:$0xf]
      %v513 = vld [vmem:[%s402 + $0x24] sm:$0xf]
      %v514 = vld [vmem:[%s402 + $0x28] sm:$0xf]
      %v515 = vld [vmem:[%s402 + $0x2c] sm:$0xf]
      %v516 = vld [vmem:[%s402 + $0x30] sm:$0xf]
      %v517 = vld [vmem:[%s402 + $0x34] sm:$0xf]
      %v518 = vld [vmem:[%s402 + $0x38] sm:$0xf]
      %v519 = vld [vmem:[%s402 + $0x3c] sm:$0xf]
      %v520 = vld [vmem:[%s402 + $0x40] sm:$0xf]
      %v521 = vld [vmem:[%s402 + $0x44] sm:$0xf]
      %v522 = vld [vmem:[%s402 + $0x48] sm:$0xf]
      %v523 = vld [vmem:[%s402 + $0x4c] sm:$0xf]
      %v524 = vld [vmem:[%s402 + $0x50] sm:$0xf]
      %v525 = vld [vmem:[%s402 + $0x54] sm:$0xf]
      %v526 = vld [vmem:[%s402 + $0x58] sm:$0xf]
      %v527 = vld [vmem:[%s402 + $0x5c] sm:$0xf]
      %v528 = vld [vmem:[%s402 + $0x60] sm:$0xf]
      %v529 = vld [vmem:[%s402 + $0x64] sm:$0xf]
      %v530 = vld [vmem:[%s402 + $0x68] sm:$0xf]
      %v531 = vld [vmem:[%s402 + $0x6c] sm:$0xf]
      %v532 = vld [vmem:[%s402 + $0x70] sm:$0xf]
      %v533 = vld [vmem:[%s402 + $0x74] sm:$0xf]
      %v534 = vld [vmem:[%s402 + $0x78] sm:$0xf]
      %v535 = vld [vmem:[%s402 + $0x7c] sm:$0xf]
      %v536 = vunpack.c.l.bf16 %v504
      %v537 = vunpack.c.l.bf16 %v505
      %v538 = vunpack.c.l.bf16 %v506
      %v539 = vunpack.c.l.bf16 %v507
      %v540 = vunpack.c.l.bf16 %v508
      %v541 = vunpack.c.l.bf16 %v509
      %v542 = vunpack.c.l.bf16 %v510
      %v543 = vunpack.c.l.bf16 %v511
      %v544 = vunpack.c.l.bf16 %v512
      %v545 = vunpack.c.l.bf16 %v513
      %v546 = vunpack.c.l.bf16 %v514
      %v547 = vunpack.c.l.bf16 %v515
      %v548 = vunpack.c.l.bf16 %v516
      %v549 = vunpack.c.l.bf16 %v517
      %v550 = vunpack.c.l.bf16 %v518
      %v551 = vunpack.c.l.bf16 %v519
      %v552 = vunpack.c.l.bf16 %v520
      %v553 = vunpack.c.l.bf16 %v521
      %v554 = vunpack.c.l.bf16 %v522
      %v555 = vunpack.c.l.bf16 %v523
      %v556 = vunpack.c.l.bf16 %v524
      %v557 = vunpack.c.l.bf16 %v525
      %v558 = vunpack.c.l.bf16 %v526
      %v559 = vunpack.c.l.bf16 %v527
      %v560 = vunpack.c.l.bf16 %v528
      %v561 = vunpack.c.l.bf16 %v529
      %v562 = vunpack.c.l.bf16 %v530
      %v563 = vunpack.c.l.bf16 %v531
      %v564 = vunpack.c.l.bf16 %v532
      %v565 = vunpack.c.l.bf16 %v533
      %v566 = vunpack.c.l.bf16 %v534
      %v567 = vunpack.c.l.bf16 %v535
      %v568 = vmul.f32 %v536, %v485
      %v569 = vmul.f32 %v537, %v485
      %v570 = vmul.f32 %v538, %v485
      %v571 = vmul.f32 %v539, %v485
      %v572 = vmul.f32 %v540, %v485
      %v573 = vmul.f32 %v541, %v485
      %v574 = vmul.f32 %v542, %v485
      %v575 = vmul.f32 %v543, %v485
      %v576 = vmul.f32 %v544, %v485
      %v577 = vmul.f32 %v545, %v485
      %v578 = vmul.f32 %v546, %v485
      %v579 = vmul.f32 %v547, %v485
      %v580 = vmul.f32 %v548, %v485
      %v581 = vmul.f32 %v549, %v485
      %v582 = vmul.f32 %v550, %v485
      %v583 = vmul.f32 %v551, %v485
      %v584 = vmul.f32 %v552, %v485
      %v585 = vmul.f32 %v553, %v485
      %v586 = vmul.f32 %v554, %v485
      %v587 = vmul.f32 %v555, %v485
      %v588 = vmul.f32 %v556, %v485
      %v589 = vmul.f32 %v557, %v485
      %v590 = vmul.f32 %v558, %v485
      %v591 = vmul.f32 %v559, %v485
      %v592 = vmul.f32 %v560, %v485
      %v593 = vmul.f32 %v561, %v485
      %v594 = vmul.f32 %v562, %v485
      %v595 = vmul.f32 %v563, %v485
      %v596 = vmul.f32 %v564, %v485
      %v597 = vmul.f32 %v565, %v485
      %v598 = vmul.f32 %v566, %v485
      %v599 = vmul.f32 %v567, %v485
      %v600 = vadd.f32 %v568, %v491
      %v601 = vadd.f32 %v569, %v491
      %v602 = vadd.f32 %v570, %v491
      %v603 = vadd.f32 %v571, %v491
      %v604 = vadd.f32 %v572, %v491
      %v605 = vadd.f32 %v573, %v491
      %v606 = vadd.f32 %v574, %v491
      %v607 = vadd.f32 %v575, %v491
      %v608 = vadd.f32 %v576, %v491
      %v609 = vadd.f32 %v577, %v491
      %v610 = vadd.f32 %v578, %v491
      %v611 = vadd.f32 %v579, %v491
      %v612 = vadd.f32 %v580, %v491
      %v613 = vadd.f32 %v581, %v491
      %v614 = vadd.f32 %v582, %v491
      %v615 = vadd.f32 %v583, %v491
      %v616 = vadd.f32 %v584, %v491
      %v617 = vadd.f32 %v585, %v491
      %v618 = vadd.f32 %v586, %v491
      %v619 = vadd.f32 %v587, %v491
      %v620 = vadd.f32 %v588, %v491
      %v621 = vadd.f32 %v589, %v491
      %v622 = vadd.f32 %v590, %v491
      %v623 = vadd.f32 %v591, %v491
      %v624 = vadd.f32 %v592, %v491
      %v625 = vadd.f32 %v593, %v491
      %v626 = vadd.f32 %v594, %v491
      %v627 = vadd.f32 %v595, %v491
      %v628 = vadd.f32 %v596, %v491
      %v629 = vadd.f32 %v597, %v491
      %v630 = vadd.f32 %v598, %v491
      %v631 = vadd.f32 %v599, %v491
      %v632 = vmax.f32 %v600, 0.0
      %v633 = vmax.f32 %v601, 0.0
      %v634 = vmax.f32 %v602, 0.0
      %v635 = vmax.f32 %v603, 0.0
      %v636 = vmax.f32 %v604, 0.0
      %v637 = vmax.f32 %v605, 0.0
      %v638 = vmax.f32 %v606, 0.0
      %v639 = vmax.f32 %v607, 0.0
      %v640 = vmax.f32 %v608, 0.0
      %v641 = vmax.f32 %v609, 0.0
      %v642 = vmax.f32 %v610, 0.0
      %v643 = vmax.f32 %v611, 0.0
      %v644 = vmax.f32 %v612, 0.0
      %v645 = vmax.f32 %v613, 0.0
      %v646 = vmax.f32 %v614, 0.0
      %v647 = vmax.f32 %v615, 0.0
      %v648 = vmax.f32 %v616, 0.0
      %v649 = vmax.f32 %v617, 0.0
      %v650 = vmax.f32 %v618, 0.0
      %v651 = vmax.f32 %v619, 0.0
      %v652 = vmax.f32 %v620, 0.0
      %v653 = vmax.f32 %v621, 0.0
      %v654 = vmax.f32 %v622, 0.0
      %v655 = vmax.f32 %v623, 0.0
      %v656 = vmax.f32 %v624, 0.0
      %v657 = vmax.f32 %v625, 0.0
      %v658 = vmax.f32 %v626, 0.0
      %v659 = vmax.f32 %v627, 0.0
      %v660 = vmax.f32 %v628, 0.0
      %v661 = vmax.f32 %v629, 0.0
      %v662 = vmax.f32 %v630, 0.0
      %v663 = vmax.f32 %v631, 0.0
      %s664 = scalar_lea.vmem [#allocation2], 24
      %665 = vst [vmem:[%s664 + $0x1] sm:$0xff] %v632
      %666 = vst [vmem:[%s664 + $0x9] sm:$0xff] %v633
      %667 = vst [vmem:[%s664 + $0x19] sm:$0xff] %v634
      %668 = vst [vmem:[%s664 + $0x21] sm:$0xff] %v635
      %669 = vst [vmem:[%s664 + $0x31] sm:$0xff] %v636
      %670 = vst [vmem:[%s664 + $0x39] sm:$0xff] %v637
      %671 = vst [vmem:[%s664 + $0x49] sm:$0xff] %v638
      %672 = vst [vmem:[%s664 + $0x51] sm:$0xff] %v639
      %673 = vst [vmem:[%s664 + $0x61] sm:$0xff] %v640
      %674 = vst [vmem:[%s664 + $0x69] sm:$0xff] %v641
      %675 = vst [vmem:[%s664 + $0x79] sm:$0xff] %v642
      %676 = vst [vmem:[%s664 + $0x81] sm:$0xff] %v643
      %677 = vst [vmem:[%s664 + $0x91] sm:$0xff] %v644
      %678 = vst [vmem:[%s664 + $0x99] sm:$0xff] %v645
      %679 = vst [vmem:[%s664 + $0xa9] sm:$0xff] %v646
      %680 = vst [vmem:[%s664 + $0xb1] sm:$0xff] %v647
      %681 = vst [vmem:[%s664 + $0xc1] sm:$0xff] %v648
      %682 = vst [vmem:[%s664 + $0xc9] sm:$0xff] %v649
      %683 = vst [vmem:[%s664 + $0xd9] sm:$0xff] %v650
      %684 = vst [vmem:[%s664 + $0xe1] sm:$0xff] %v651
      %685 = vst [vmem:[%s664 + $0xf1] sm:$0xff] %v652
      %686 = vst [vmem:[%s664 + $0xf9] sm:$0xff] %v653
      %687 = vst [vmem:[%s664 + $0x109] sm:$0xff] %v654
      %688 = vst [vmem:[%s664 + $0x111] sm:$0xff] %v655
      %689 = vst [vmem:[%s664 + $0x121] sm:$0xff] %v656
      %690 = vst [vmem:[%s664 + $0x129] sm:$0xff] %v657
      %691 = vst [vmem:[%s664 + $0x139] sm:$0xff] %v658
      %692 = vst [vmem:[%s664 + $0x141] sm:$0xff] %v659
      %693 = vst [vmem:[%s664 + $0x151] sm:$0xff] %v660
      %694 = vst [vmem:[%s664 + $0x159] sm:$0xff] %v661
      %695 = vst [vmem:[%s664 + $0x169] sm:$0xff] %v662
      %696 = vst [vmem:[%s664 + $0x171] sm:$0xff] %v663
      %v697 = vld [vmem:[%s416] sm:$0xf]
      %v698 = vld [vmem:[%s416 + $0x4] sm:$0xf]
      %v699 = vunpack.c.l.bf16 %v697
      %v700 = vunpack.c.l.bf16 %v698
      %v701 = vmul.f32 %v699, %v485
      %v702 = vmul.f32 %v700, %v485
      %v703 = vadd.f32 %v701, %v491
      %v704 = vadd.f32 %v702, %v491
      %v705 = vmax.f32 %v703, 0.0
      %v706 = vmax.f32 %v704, 0.0
      %p707 = scmp.lt.s32.totalorder %s23, 0
      %s708 = scalar_select %p707, 1, 0
      %s709 = scvt.s32.f32 %s708
      %v710 = vstv %s709
      %v711 = vmul.f32 %v705, %v710
      %v712 = vmul.f32 %v706, %v710
      %s713 = scalar_lea.vmem [#allocation2], 408
      %714 = vst [vmem:[%s713 + $0x1] sm:$0xff] %v711
      %715 = vst [vmem:[%s713 + $0x9] sm:$0xff] %v712
      %v716 = vld [vmem:[#allocation2] sm:$0xff]
      %v717 = vld [vmem:[#allocation2 + $0x8] sm:$0xff]
      %v718 = vld [vmem:[#allocation2 + $0x10] sm:$0x3]
      %v719 = vld [vmem:[#allocation2 + $0x18] sm:$0xff]
      %v720 = vld [vmem:[#allocation2 + $0x20] sm:$0xff]
      %v721 = vld [vmem:[#allocation2 + $0x28] sm:$0x3]
      %v722 = vld [vmem:[#allocation2 + $0x30] sm:$0xff]
      %v723 = vld [vmem:[#allocation2 + $0x38] sm:$0xff]
      %v724 = vld [vmem:[#allocation2 + $0x40] sm:$0x3]
      %v725 = vld [vmem:[#allocation2 + $0x48] sm:$0xff]
      %v726 = vld [vmem:[#allocation2 + $0x50] sm:$0xff]
      %v727 = vld [vmem:[#allocation2 + $0x58] sm:$0x3]
      %v728 = vld [vmem:[#allocation2 + $0x60] sm:$0xff]
      %v729 = vld [vmem:[#allocation2 + $0x68] sm:$0xff]
      %v730 = vld [vmem:[#allocation2 + $0x70] sm:$0x3]
      %v731 = vld [vmem:[#allocation2 + $0x78] sm:$0xff]
      %v732 = vld [vmem:[#allocation2 + $0x80] sm:$0xff]
      %v733 = vld [vmem:[#allocation2 + $0x88] sm:$0x3]
      %v734 = vld [vmem:[#allocation2 + $0x90] sm:$0xff]
      %v735 = vld [vmem:[#allocation2 + $0x98] sm:$0xff]
      %v736 = vld [vmem:[#allocation2 + $0xa0] sm:$0x3]
      %v737 = vld [vmem:[#allocation2 + $0xa8] sm:$0xff]
      %v738 = vld [vmem:[#allocation2 + $0xb0] sm:$0xff]
      %v739 = vld [vmem:[#allocation2 + $0xb8] sm:$0x3]
      %v740 = vld [vmem:[#allocation2 + $0xc0] sm:$0xff]
      %v741 = vld [vmem:[#allocation2 + $0xc8] sm:$0xff]
      %v742 = vld [vmem:[#allocation2 + $0xd0] sm:$0x3]
      %v743 = vld [vmem:[#allocation2 + $0xd8] sm:$0xff]
      %v744 = vld [vmem:[#allocation2 + $0xe0] sm:$0xff]
      %v745 = vld [vmem:[#allocation2 + $0xe8] sm:$0x3]
      %v746 = vld [vmem:[#allocation2 + $0xf0] sm:$0xff]
      %v747 = vld [vmem:[#allocation2 + $0xf8] sm:$0xff]
      %v748 = vld [vmem:[#allocation2 + $0x100] sm:$0x3]
      %v749 = vld [vmem:[#allocation2 + $0x108] sm:$0xff]
      %v750 = vld [vmem:[#allocation2 + $0x110] sm:$0xff]
      %v751 = vld [vmem:[#allocation2 + $0x118] sm:$0x3]
      %v752 = vld [vmem:[#allocation2 + $0x120] sm:$0xff]
      %v753 = vld [vmem:[#allocation2 + $0x128] sm:$0xff]
      %v754 = vld [vmem:[#allocation2 + $0x130] sm:$0x3]
      %v755 = vld [vmem:[#allocation2 + $0x138] sm:$0xff]
      %v756 = vld [vmem:[#allocation2 + $0x140] sm:$0xff]
      %v757 = vld [vmem:[#allocation2 + $0x148] sm:$0x3]
      %v758 = vld [vmem:[#allocation2 + $0x150] sm:$0xff]
      %v759 = vld [vmem:[#allocation2 + $0x158] sm:$0xff]
      %v760 = vld [vmem:[#allocation2 + $0x160] sm:$0x3]
      %v761 = vld [vmem:[#allocation2 + $0x168] sm:$0xff]
      %v762 = vld [vmem:[#allocation2 + $0x170] sm:$0xff]
      %v763 = vld [vmem:[#allocation2 + $0x178] sm:$0x3]
      %v764 = vld [vmem:[#allocation2 + $0x180] sm:$0xff]
      %v765 = vld [vmem:[#allocation2 + $0x188] sm:$0xff]
      %v766 = vld [vmem:[#allocation2 + $0x190] sm:$0x3]
      %v767 = vld [vmem:[#allocation2 + $0x198] sm:$0xff]
      %v768 = vld [vmem:[#allocation2 + $0x1a0] sm:$0xff]
      %v769 = vld [vmem:[#allocation2 + $0x1a8] sm:$0x3]
      %v770 = vpack.c.bf16 %v717, %v716
      %v771 = vpack.c.bf16 %v718, %v718
      %v772 = vpack.c.bf16 %v720, %v719
      %v773 = vpack.c.bf16 %v721, %v721
      %v774 = vpack.c.bf16 %v723, %v722
      %v775 = vpack.c.bf16 %v724, %v724
      %v776 = vpack.c.bf16 %v726, %v725
      %v777 = vpack.c.bf16 %v727, %v727
      %v778 = vpack.c.bf16 %v729, %v728
      %v779 = vpack.c.bf16 %v730, %v730
      %v780 = vpack.c.bf16 %v732, %v731
      %v781 = vpack.c.bf16 %v733, %v733
      %v782 = vpack.c.bf16 %v735, %v734
      %v783 = vpack.c.bf16 %v736, %v736
      %v784 = vpack.c.bf16 %v738, %v737
      %v785 = vpack.c.bf16 %v739, %v739
      %v786 = vpack.c.bf16 %v741, %v740
      %v787 = vpack.c.bf16 %v742, %v742
      %v788 = vpack.c.bf16 %v744, %v743
      %v789 = vpack.c.bf16 %v745, %v745
      %v790 = vpack.c.bf16 %v747, %v746
      %v791 = vpack.c.bf16 %v748, %v748
      %v792 = vpack.c.bf16 %v750, %v749
      %v793 = vpack.c.bf16 %v751, %v751
      %v794 = vpack.c.bf16 %v753, %v752
      %v795 = vpack.c.bf16 %v754, %v754
      %v796 = vpack.c.bf16 %v756, %v755
      %v797 = vpack.c.bf16 %v757, %v757
      %v798 = vpack.c.bf16 %v759, %v758
      %v799 = vpack.c.bf16 %v760, %v760
      %v800 = vpack.c.bf16 %v762, %v761
      %v801 = vpack.c.bf16 %v763, %v763
      %v802 = vpack.c.bf16 %v765, %v764
      %v803 = vpack.c.bf16 %v766, %v766
      %v804 = vpack.c.bf16 %v768, %v767
      %v805 = vpack.c.bf16 %v769, %v769
      %v806 = vld [vmem:[%s4] sm:$0xf]
      %v807 = vld [vmem:[%s4 + $0x4] sm:$0xf]
      %v808 = vld [vmem:[%s4 + $0x8] sm:$0xf]
      %v809 = vld [vmem:[%s4 + $0xc] sm:$0xf]
      %v810 = vld [vmem:[%s4 + $0x10] sm:$0xf]
      %v811 = vld [vmem:[%s4 + $0x14] sm:$0xf]
      %v812 = vld [vmem:[%s4 + $0x18] sm:$0xf]
      %v813 = vld [vmem:[%s4 + $0x1c] sm:$0xf]
      %v814 = vld [vmem:[%s4 + $0x20] sm:$0xf]
      %v815 = vld [vmem:[%s4 + $0x24] sm:$0xf]
      %v816 = vld [vmem:[%s4 + $0x28] sm:$0xf]
      %v817 = vld [vmem:[%s4 + $0x2c] sm:$0xf]
      %v818 = vld [vmem:[%s4 + $0x30] sm:$0xf]
      %v819 = vld [vmem:[%s4 + $0x34] sm:$0xf]
      %v820 = vld [vmem:[%s4 + $0x38] sm:$0xf]
      %v821 = vld [vmem:[%s4 + $0x3c] sm:$0xf]
      %vm822 = vsmask.f32 7424
      %v824 = vshrl.u32 %v770, 16
      %v826 = vshll.u32 %v770, 16
      %v828 = vrot.slane %v826, 1
      %v829 = vor.u32 %v824, %v828
      %v831 = vshll.u32 %v771, 16
      %v833 = vrot.slane %v831, 1
      %v834 = vsel %vm822, %v829, %v833
      %v836 = vshrl.u32 %v772, 16
      %v838 = vshll.u32 %v772, 16
      %v840 = vrot.slane %v838, 1
      %v841 = vor.u32 %v836, %v840
      %v843 = vshll.u32 %v773, 16
      %v845 = vrot.slane %v843, 1
      %v846 = vsel %vm822, %v841, %v845
      %v848 = vshrl.u32 %v774, 16
      %v850 = vshll.u32 %v774, 16
      %v852 = vrot.slane %v850, 1
      %v853 = vor.u32 %v848, %v852
      %v855 = vshll.u32 %v775, 16
      %v857 = vrot.slane %v855, 1
      %v858 = vsel %vm822, %v853, %v857
      %v860 = vshrl.u32 %v776, 16
      %v862 = vshll.u32 %v776, 16
      %v864 = vrot.slane %v862, 1
      %v865 = vor.u32 %v860, %v864
      %v867 = vshll.u32 %v777, 16
      %v869 = vrot.slane %v867, 1
      %v870 = vsel %vm822, %v865, %v869
      %v872 = vshrl.u32 %v778, 16
      %v874 = vshll.u32 %v778, 16
      %v876 = vrot.slane %v874, 1
      %v877 = vor.u32 %v872, %v876
      %v879 = vshll.u32 %v779, 16
      %v881 = vrot.slane %v879, 1
      %v882 = vsel %vm822, %v877, %v881
      %v884 = vshrl.u32 %v780, 16
      %v886 = vshll.u32 %v780, 16
      %v888 = vrot.slane %v886, 1
      %v889 = vor.u32 %v884, %v888
      %v891 = vshll.u32 %v781, 16
      %v893 = vrot.slane %v891, 1
      %v894 = vsel %vm822, %v889, %v893
      %v896 = vshrl.u32 %v782, 16
      %v898 = vshll.u32 %v782, 16
      %v900 = vrot.slane %v898, 1
      %v901 = vor.u32 %v896, %v900
      %v903 = vshll.u32 %v783, 16
      %v905 = vrot.slane %v903, 1
      %v906 = vsel %vm822, %v901, %v905
      %v908 = vshrl.u32 %v784, 16
      %v910 = vshll.u32 %v784, 16
      %v912 = vrot.slane %v910, 1
      %v913 = vor.u32 %v908, %v912
      %v915 = vshll.u32 %v785, 16
      %v917 = vrot.slane %v915, 1
      %v918 = vsel %vm822, %v913, %v917
      %v920 = vshrl.u32 %v786, 16
      %v922 = vshll.u32 %v786, 16
      %v924 = vrot.slane %v922, 1
      %v925 = vor.u32 %v920, %v924
      %v927 = vshll.u32 %v787, 16
      %v929 = vrot.slane %v927, 1
      %v930 = vsel %vm822, %v925, %v929
      %v932 = vshrl.u32 %v788, 16
      %v934 = vshll.u32 %v788, 16
      %v936 = vrot.slane %v934, 1
      %v937 = vor.u32 %v932, %v936
      %v939 = vshll.u32 %v789, 16
      %v941 = vrot.slane %v939, 1
      %v942 = vsel %vm822, %v937, %v941
      %v944 = vshrl.u32 %v790, 16
      %v946 = vshll.u32 %v790, 16
      %v948 = vrot.slane %v946, 1
      %v949 = vor.u32 %v944, %v948
      %v951 = vshll.u32 %v791, 16
      %v953 = vrot.slane %v951, 1
      %v954 = vsel %vm822, %v949, %v953
      %v956 = vshrl.u32 %v792, 16
      %v958 = vshll.u32 %v792, 16
      %v960 = vrot.slane %v958, 1
      %v961 = vor.u32 %v956, %v960
      %v963 = vshll.u32 %v793, 16
      %v965 = vrot.slane %v963, 1
      %v966 = vsel %vm822, %v961, %v965
      %v968 = vshrl.u32 %v794, 16
      %v970 = vshll.u32 %v794, 16
      %v972 = vrot.slane %v970, 1
      %v973 = vor.u32 %v968, %v972
      %v975 = vshll.u32 %v795, 16
      %v977 = vrot.slane %v975, 1
      %v978 = vsel %vm822, %v973, %v977
      %v980 = vshrl.u32 %v796, 16
      %v982 = vshll.u32 %v796, 16
      %v984 = vrot.slane %v982, 1
      %v985 = vor.u32 %v980, %v984
      %v987 = vshll.u32 %v797, 16
      %v989 = vrot.slane %v987, 1
      %v990 = vsel %vm822, %v985, %v989
      %v992 = vshrl.u32 %v798, 16
      %v994 = vshll.u32 %v798, 16
      %v996 = vrot.slane %v994, 1
      %v997 = vor.u32 %v992, %v996
      %v999 = vshll.u32 %v799, 16
      %v1001 = vrot.slane %v999, 1
      %v1002 = vsel %vm822, %v997, %v1001
      %v1004 = vshrl.u32 %v800, 16
      %v1006 = vshll.u32 %v800, 16
      %v1008 = vrot.slane %v1006, 1
      %v1009 = vor.u32 %v1004, %v1008
      %v1011 = vshll.u32 %v801, 16
      %v1013 = vrot.slane %v1011, 1
      %v1014 = vsel %vm822, %v1009, %v1013
      %s1031 = scalar_lea.vmem %s4, 64
      %v1032 = vld [vmem:[%s1031] sm:$0xf]
      %v1033 = vld [vmem:[%s1031 + $0x4] sm:$0xf]
      %v1034 = vld [vmem:[%s1031 + $0x8] sm:$0xf]
      %v1035 = vld [vmem:[%s1031 + $0xc] sm:$0xf]
      %v1036 = vld [vmem:[%s1031 + $0x10] sm:$0xf]
      %v1037 = vld [vmem:[%s1031 + $0x14] sm:$0xf]
      %v1038 = vld [vmem:[%s1031 + $0x18] sm:$0xf]
      %v1039 = vld [vmem:[%s1031 + $0x1c] sm:$0xf]
      %v1040 = vld [vmem:[%s1031 + $0x20] sm:$0xf]
      %v1041 = vld [vmem:[%s1031 + $0x24] sm:$0xf]
      %v1042 = vld [vmem:[%s1031 + $0x28] sm:$0xf]
      %v1043 = vld [vmem:[%s1031 + $0x2c] sm:$0xf]
      %v1044 = vld [vmem:[%s1031 + $0x30] sm:$0xf]
      %v1045 = vld [vmem:[%s1031 + $0x34] sm:$0xf]
      %v1046 = vld [vmem:[%s1031 + $0x38] sm:$0xf]
      %v1047 = vld [vmem:[%s1031 + $0x3c] sm:$0xf]
      %v1064 = vunpack.c.l.b16 %v1032
      %v1065 = vunpack.c.l.b16 %v1033
      %v1066 = vunpack.c.l.b16 %v1034
      %v1067 = vunpack.c.l.b16 %v1035
      %v1068 = vunpack.c.l.b16 %v1036
      %v1069 = vunpack.c.l.b16 %v1037
      %v1070 = vunpack.c.l.b16 %v1038
      %v1071 = vunpack.c.l.b16 %v1039
      %v1072 = vunpack.c.l.b16 %v1040
      %v1073 = vunpack.c.l.b16 %v1041
      %v1074 = vunpack.c.l.b16 %v1042
      %v1075 = vunpack.c.l.b16 %v1043
      %v1076 = vunpack.c.l.b16 %v1044
      %v1077 = vunpack.c.l.b16 %v1045
      %v1078 = vunpack.c.l.b16 %v1046
      %v1079 = vunpack.c.l.b16 %v1047
      %v1080 = vpack.c.b16 %v1065, %v1064
      %v1081 = vpack.c.b16 %v1067, %v1066
      %v1082 = vpack.c.b16 %v1069, %v1068
      %v1083 = vpack.c.b16 %v1071, %v1070
      %v1084 = vpack.c.b16 %v1073, %v1072
      %v1085 = vpack.c.b16 %v1075, %v1074
      %v1086 = vpack.c.b16 %v1077, %v1076
      %v1087 = vpack.c.b16 %v1079, %v1078
      %1096 = vmatprep.subr.bf16.mxu0 0
      %1097 = vmatpush1.bf16.msra.mxu0 %v1080
      %1098 = vmatprep.subr.bf16.mxu0 0
      %1099 = vmatpush1.bf16.msra.mxu0 %v1081
      %1100 = vmatprep.subr.bf16.mxu0 0
      %1101 = vmatpush1.bf16.msra.mxu0 %v1082
      %1102 = vmatprep.subr.bf16.mxu0 0
      %1103 = vmatpush1.bf16.msra.mxu0 %v1083
      %1104 = vmatprep.subr.bf16.mxu0 0
      %1105 = vmatpush1.bf16.msra.mxu0 %v1084
      %1106 = vmatprep.subr.bf16.mxu0 0
      %1107 = vmatpush1.bf16.msra.mxu0 %v1085
      %1108 = vmatprep.subr.bf16.mxu0 0
      %1109 = vmatpush1.bf16.msra.mxu0 %v1086
      %1110 = vmatprep.subr.bf16.mxu0 0
      %1111 = vmatpush1.bf16.msra.mxu0 %v1087
      %1112 = vmatprep.subr.bf16.mxu0 0
      %1113 = vmatpush1.bf16.msra.mxu0 0
      %1114 = vmatprep.subr.bf16.mxu0 0
      %1115 = vmatpush1.bf16.msra.mxu0 0
      %1116 = vmatprep.subr.bf16.mxu0 0
      %1117 = vmatpush1.bf16.msra.mxu0 0
      %1118 = vmatprep.subr.bf16.mxu0 0
      %1119 = vmatpush1.bf16.msra.mxu0 0
      %1120 = vmatprep.subr.bf16.mxu0 0
      %1121 = vmatpush1.bf16.msra.mxu0 0
      %1122 = vmatprep.subr.bf16.mxu0 0
      %1123 = vmatpush1.bf16.msra.mxu0 0
      %1124 = vmatprep.subr.bf16.mxu0 0
      %1125 = vmatpush1.bf16.msra.mxu0 0
      %1126 = vmatprep.subr.bf16.mxu0 0
      %1127 = vmatpush1.bf16.msra.mxu0 0
      %1128 = vmatprep.mubr.bf16.mxu0 0
      %1129 = vmatmul.mubr.bf16.gmra.mrb[0].mxu0 %v834
      %v1130 = vpop.f32.mrb[0].mxu0
      %v1131 = vadd.f32 0.0, %v1130
      %v1132 = vpop.f32.mrb[0].mxu0
      %v1133 = vpop.f32.mrb[0].mxu0
      %v1134 = vadd.f32 0.0, %v1133
      %v1135 = vpop.f32.mrb[0].mxu0
      %1136 = vmatprep.mubr.bf16.mxu0 0
      %1137 = vmatmul.mubr.bf16.gmra.mrb[0].mxu0 %v846
      %v1138 = vpop.f32.mrb[0].mxu0
      %v1139 = vadd.f32 0.0, %v1138
      %v1140 = vpop.f32.mrb[0].mxu0
      %v1141 = vpop.f32.mrb[0].mxu0
      %v1142 = vadd.f32 0.0, %v1141
      %v1143 = vpop.f32.mrb[0].mxu0
      %1144 = vmatprep.mubr.bf16.mxu0 0
      %1145 = vmatmul.mubr.bf16.gmra.mrb[0].mxu0 %v858
      %v1146 = vpop.f32.mrb[0].mxu0
      %v1147 = vadd.f32 0.0, %v1146
      %v1148 = vpop.f32.mrb[0].mxu0
      %v1149 = vpop.f32.mrb[0].mxu0
      %v1150 = vadd.f32 0.0, %v1149
      %v1151 = vpop.f32.mrb[0].mxu0
      %1152 = vmatprep.mubr.bf16.mxu0 0
      %1153 = vmatmul.mubr.bf16.gmra.mrb[0].mxu0 %v870
      %v1154 = vpop.f32.mrb[0].mxu0
      %v1155 = vadd.f32 0.0, %v1154
      %v1156 = vpop.f32.mrb[0].mxu0
      %v1157 = vpop.f32.mrb[0].mxu0
      %v1158 = vadd.f32 0.0, %v1157
      %v1159 = vpop.f32.mrb[0].mxu0
      %1160 = vmatprep.mubr.bf16.mxu0 0
      %1161 = vmatmul.mubr.bf16.gmra.mrb[0].mxu0 %v882
      %v1162 = vpop.f32.mrb[0].mxu0
      %v1163 = vadd.f32 0.0, %v1162
      %v1164 = vpop.f32.mrb[0].mxu0
      %v1165 = vpop.f32.mrb[0].mxu0
      %v1166 = vadd.f32 0.0, %v1165
      %v1167 = vpop.f32.mrb[0].mxu0
      %1168 = vmatprep.mubr.bf16.mxu0 0
      %1169 = vmatmul.mubr.bf16.gmra.mrb[0].mxu0 %v894
      %v1170 = vpop.f32.mrb[0].mxu0
      %v1171 = vadd.f32 0.0, %v1170
      %v1172 = vpop.f32.mrb[0].mxu0
      %v1173 = vpop.f32.mrb[0].mxu0
      %v1174 = vadd.f32 0.0, %v1173
      %v1175 = vpop.f32.mrb[0].mxu0
      %1176 = vmatprep.mubr.bf16.mxu0 0
      %1177 = vmatmul.mubr.bf16.gmra.mrb[0].mxu0 %v906
      %v1178 = vpop.f32.mrb[0].mxu0
      %v1179 = vadd.f32 0.0, %v1178
      %v1180 = vpop.f32.mrb[0].mxu0
      %v1181 = vpop.f32.mrb[0].mxu0
      %v1182 = vadd.f32 0.0, %v1181
      %v1183 = vpop.f32.mrb[0].mxu0
      %1184 = vmatprep.mubr.bf16.mxu0 0
      %1185 = vmatmul.mubr.bf16.gmra.mrb[0].mxu0 %v918
      %v1186 = vpop.f32.mrb[0].mxu0
      %v1187 = vadd.f32 0.0, %v1186
      %v1188 = vpop.f32.mrb[0].mxu0
      %v1189 = vpop.f32.mrb[0].mxu0
      %v1190 = vadd.f32 0.0, %v1189
      %v1191 = vpop.f32.mrb[0].mxu0
      %1192 = vmatprep.mubr.bf16.mxu0 0
      %1193 = vmatmul.mubr.bf16.gmra.mrb[0].mxu0 %v930
      %v1194 = vpop.f32.mrb[0].mxu0
      %v1195 = vadd.f32 0.0, %v1194
      %v1196 = vpop.f32.mrb[0].mxu0
      %v1197 = vpop.f32.mrb[0].mxu0
      %v1198 = vadd.f32 0.0, %v1197
      %v1199 = vpop.f32.mrb[0].mxu0
      %1200 = vmatprep.mubr.bf16.mxu0 0
      %1201 = vmatmul.mubr.bf16.gmra.mrb[0].mxu0 %v942
      %v1202 = vpop.f32.mrb[0].mxu0
      %v1203 = vadd.f32 0.0, %v1202
      %v1204 = vpop.f32.mrb[0].mxu0
      %v1205 = vpop.f32.mrb[0].mxu0
      %v1206 = vadd.f32 0.0, %v1205
      %v1207 = vpop.f32.mrb[0].mxu0
      %1208 = vmatprep.mubr.bf16.mxu0 0
      %1209 = vmatmul.mubr.bf16.gmra.mrb[0].mxu0 %v954
      %v1210 = vpop.f32.mrb[0].mxu0
      %v1211 = vadd.f32 0.0, %v1210
      %v1212 = vpop.f32.mrb[0].mxu0
      %v1213 = vpop.f32.mrb[0].mxu0
      %v1214 = vadd.f32 0.0, %v1213
      %v1215 = vpop.f32.mrb[0].mxu0
      %1216 = vmatprep.mubr.bf16.mxu0 0
      %1217 = vmatmul.mubr.bf16.gmra.mrb[0].mxu0 %v966
      %v1218 = vpop.f32.mrb[0].mxu0
      %v1219 = vadd.f32 0.0, %v1218
      %v1220 = vpop.f32.mrb[0].mxu0
      %v1221 = vpop.f32.mrb[0].mxu0
      %v1222 = vadd.f32 0.0, %v1221
      %v1223 = vpop.f32.mrb[0].mxu0
      %1224 = vmatprep.mubr.bf16.mxu0 0
      %1225 = vmatmul.mubr.bf16.gmra.mrb[0].mxu0 %v978
      %v1226 = vpop.f32.mrb[0].mxu0
      %v1227 = vadd.f32 0.0, %v1226
      %v1228 = vpop.f32.mrb[0].mxu0
      %v1229 = vpop.f32.mrb[0].mxu0
      %v1230 = vadd.f32 0.0, %v1229
      %v1231 = vpop.f32.mrb[0].mxu0
      %1232 = vmatprep.mubr.bf16.mxu0 0
      %1233 = vmatmul.mubr.bf16.gmra.mrb[0].mxu0 %v990
      %v1234 = vpop.f32.mrb[0].mxu0
      %v1235 = vadd.f32 0.0, %v1234
      %v1236 = vpop.f32.mrb[0].mxu0
      %v1237 = vpop.f32.mrb[0].mxu0
      %v1238 = vadd.f32 0.0, %v1237
      %v1239 = vpop.f32.mrb[0].mxu0
      %1240 = vmatprep.mubr.bf16.mxu0 0
      %1241 = vmatmul.mubr.bf16.gmra.mrb[0].mxu0 %v1002
      %v1242 = vpop.f32.mrb[0].mxu0
      %v1243 = vadd.f32 0.0, %v1242
      %v1244 = vpop.f32.mrb[0].mxu0
      %v1245 = vpop.f32.mrb[0].mxu0
      %v1246 = vadd.f32 0.0, %v1245
      %v1247 = vpop.f32.mrb[0].mxu0
      %1248 = vmatprep.mubr.bf16.mxu0 0
      %1249 = vmatmul.mubr.bf16.gmra.mrb[0].mxu0 %v1014
      %v1250 = vpop.f32.mrb[0].mxu0
      %v1251 = vadd.f32 0.0, %v1250
      %v1252 = vpop.f32.mrb[0].mxu0
      %v1253 = vpop.f32.mrb[0].mxu0
      %v1254 = vadd.f32 0.0, %v1253
      %v1255 = vpop.f32.mrb[0].mxu0
      %1256 = vdwg.mxu0
      %v1273 = vunpack.c.l.b16 %v806
      %v1274 = vunpack.c.l.b16 %v807
      %v1275 = vunpack.c.l.b16 %v808
      %v1276 = vunpack.c.l.b16 %v809
      %v1277 = vunpack.c.l.b16 %v810
      %v1278 = vunpack.c.l.b16 %v811
      %v1279 = vunpack.c.l.b16 %v812
      %v1280 = vunpack.c.l.b16 %v813
      %v1281 = vunpack.c.l.b16 %v814
      %v1282 = vunpack.c.l.b16 %v815
      %v1283 = vunpack.c.l.b16 %v816
      %v1284 = vunpack.c.l.b16 %v817
      %v1285 = vunpack.c.l.b16 %v818
      %v1286 = vunpack.c.l.b16 %v819
      %v1287 = vunpack.c.l.b16 %v820
      %v1288 = vunpack.c.l.b16 %v821
      %v1289 = vpack.c.b16 %v1274, %v1273
      %v1290 = vpack.c.b16 %v1276, %v1275
      %v1291 = vpack.c.b16 %v1278, %v1277
      %v1292 = vpack.c.b16 %v1280, %v1279
      %v1293 = vpack.c.b16 %v1282, %v1281
      %v1294 = vpack.c.b16 %v1284, %v1283
      %v1295 = vpack.c.b16 %v1286, %v1285
      %v1296 = vpack.c.b16 %v1288, %v1287
      %1305 = vmatprep.subr.bf16.mxu0 0
      %1306 = vmatpush1.bf16.msra.mxu0 %v1289
      %1307 = vmatprep.subr.bf16.mxu0 0
      %1308 = vmatpush1.bf16.msra.mxu0 %v1290
      %1309 = vmatprep.subr.bf16.mxu0 0
      %1310 = vmatpush1.bf16.msra.mxu0 %v1291
      %1311 = vmatprep.subr.bf16.mxu0 0
      %1312 = vmatpush1.bf16.msra.mxu0 %v1292
      %1313 = vmatprep.subr.bf16.mxu0 0
      %1314 = vmatpush1.bf16.msra.mxu0 %v1293
      %1315 = vmatprep.subr.bf16.mxu0 0
      %1316 = vmatpush1.bf16.msra.mxu0 %v1294
      %1317 = vmatprep.subr.bf16.mxu0 0
      %1318 = vmatpush1.bf16.msra.mxu0 %v1295
      %1319 = vmatprep.subr.bf16.mxu0 0
      %1320 = vmatpush1.bf16.msra.mxu0 %v1296
      %1321 = vmatprep.subr.bf16.mxu0 0
      %1322 = vmatpush1.bf16.msra.mxu0 0
      %1323 = vmatprep.subr.bf16.mxu0 0
      %1324 = vmatpush1.bf16.msra.mxu0 0
      %1325 = vmatprep.subr.bf16.mxu0 0
      %1326 = vmatpush1.bf16.msra.mxu0 0
      %1327 = vmatprep.subr.bf16.mxu0 0
      %1328 = vmatpush1.bf16.msra.mxu0 0
      %1329 = vmatprep.subr.bf16.mxu0 0
      %1330 = vmatpush1.bf16.msra.mxu0 0
      %1331 = vmatprep.subr.bf16.mxu0 0
      %1332 = vmatpush1.bf16.msra.mxu0 0
      %1333 = vmatprep.subr.bf16.mxu0 0
      %1334 = vmatpush1.bf16.msra.mxu0 0
      %1335 = vmatprep.subr.bf16.mxu0 0
      %1336 = vmatpush1.bf16.msra.mxu0 0
      %1337 = vmatprep.mubr.bf16.mxu0 0
      %1338 = vmatmul.mubr.bf16.gmra.mrb[0].mxu0 %v770
      %v1339 = vpop.f32.mrb[0].mxu0
      %v1340 = vadd.f32 %v1131, %v1339
      %v1341 = vpop.f32.mrb[0].mxu0
      %v1342 = vpop.f32.mrb[0].mxu0
      %v1343 = vadd.f32 %v1134, %v1342
      %v1344 = vpop.f32.mrb[0].mxu0
      %1345 = vmatprep.mubr.bf16.mxu0 0
      %1346 = vmatmul.mubr.bf16.gmra.mrb[0].mxu0 %v772
      %v1347 = vpop.f32.mrb[0].mxu0
      %v1348 = vadd.f32 %v1139, %v1347
      %v1349 = vpop.f32.mrb[0].mxu0
      %v1350 = vpop.f32.mrb[0].mxu0
      %v1351 = vadd.f32 %v1142, %v1350
      %v1352 = vpop.f32.mrb[0].mxu0
      %1353 = vmatprep.mubr.bf16.mxu0 0
      %1354 = vmatmul.mubr.bf16.gmra.mrb[0].mxu0 %v774
      %v1355 = vpop.f32.mrb[0].mxu0
      %v1356 = vadd.f32 %v1147, %v1355
      %v1357 = vpop.f32.mrb[0].mxu0
      %v1358 = vpop.f32.mrb[0].mxu0
      %v1359 = vadd.f32 %v1150, %v1358
      %v1360 = vpop.f32.mrb[0].mxu0
      %1361 = vmatprep.mubr.bf16.mxu0 0
      %1362 = vmatmul.mubr.bf16.gmra.mrb[0].mxu0 %v776
      %v1363 = vpop.f32.mrb[0].mxu0
      %v1364 = vadd.f32 %v1155, %v1363
      %v1365 = vpop.f32.mrb[0].mxu0
      %v1366 = vpop.f32.mrb[0].mxu0
      %v1367 = vadd.f32 %v1158, %v1366
      %v1368 = vpop.f32.mrb[0].mxu0
      %1369 = vmatprep.mubr.bf16.mxu0 0
      %1370 = vmatmul.mubr.bf16.gmra.mrb[0].mxu0 %v778
      %v1371 = vpop.f32.mrb[0].mxu0
      %v1372 = vadd.f32 %v1163, %v1371
      %v1373 = vpop.f32.mrb[0].mxu0
      %v1374 = vpop.f32.mrb[0].mxu0
      %v1375 = vadd.f32 %v1166, %v1374
      %v1376 = vpop.f32.mrb[0].mxu0
      %1377 = vmatprep.mubr.bf16.mxu0 0
      %1378 = vmatmul.mubr.bf16.gmra.mrb[0].mxu0 %v780
      %v1379 = vpop.f32.mrb[0].mxu0
      %v1380 = vadd.f32 %v1171, %v1379
      %v1381 = vpop.f32.mrb[0].mxu0
      %v1382 = vpop.f32.mrb[0].mxu0
      %v1383 = vadd.f32 %v1174, %v1382
      %v1384 = vpop.f32.mrb[0].mxu0
      %1385 = vmatprep.mubr.bf16.mxu0 0
      %1386 = vmatmul.mubr.bf16.gmra.mrb[0].mxu0 %v782
      %v1387 = vpop.f32.mrb[0].mxu0
      %v1388 = vadd.f32 %v1179, %v1387
      %v1389 = vpop.f32.mrb[0].mxu0
      %v1390 = vpop.f32.mrb[0].mxu0
      %v1391 = vadd.f32 %v1182, %v1390
      %v1392 = vpop.f32.mrb[0].mxu0
      %1393 = vmatprep.mubr.bf16.mxu0 0
      %1394 = vmatmul.mubr.bf16.gmra.mrb[0].mxu0 %v784
      %v1395 = vpop.f32.mrb[0].mxu0
      %v1396 = vadd.f32 %v1187, %v1395
      %v1397 = vpop.f32.mrb[0].mxu0
      %v1398 = vpop.f32.mrb[0].mxu0
      %v1399 = vadd.f32 %v1190, %v1398
      %v1400 = vpop.f32.mrb[0].mxu0
      %1401 = vmatprep.mubr.bf16.mxu0 0
      %1402 = vmatmul.mubr.bf16.gmra.mrb[0].mxu0 %v786
      %v1403 = vpop.f32.mrb[0].mxu0
      %v1404 = vadd.f32 %v1195, %v1403
      %v1405 = vpop.f32.mrb[0].mxu0
      %v1406 = vpop.f32.mrb[0].mxu0
      %v1407 = vadd.f32 %v1198, %v1406
      %v1408 = vpop.f32.mrb[0].mxu0
      %1409 = vmatprep.mubr.bf16.mxu0 0
      %1410 = vmatmul.mubr.bf16.gmra.mrb[0].mxu0 %v788
      %v1411 = vpop.f32.mrb[0].mxu0
      %v1412 = vadd.f32 %v1203, %v1411
      %v1413 = vpop.f32.mrb[0].mxu0
      %v1414 = vpop.f32.mrb[0].mxu0
      %v1415 = vadd.f32 %v1206, %v1414
      %v1416 = vpop.f32.mrb[0].mxu0
      %1417 = vmatprep.mubr.bf16.mxu0 0
      %1418 = vmatmul.mubr.bf16.gmra.mrb[0].mxu0 %v790
      %v1419 = vpop.f32.mrb[0].mxu0
      %v1420 = vadd.f32 %v1211, %v1419
      %v1421 = vpop.f32.mrb[0].mxu0
      %v1422 = vpop.f32.mrb[0].mxu0
      %v1423 = vadd.f32 %v1214, %v1422
      %v1424 = vpop.f32.mrb[0].mxu0
      %1425 = vmatprep.mubr.bf16.mxu0 0
      %1426 = vmatmul.mubr.bf16.gmra.mrb[0].mxu0 %v792
      %v1427 = vpop.f32.mrb[0].mxu0
      %v1428 = vadd.f32 %v1219, %v1427
      %v1429 = vpop.f32.mrb[0].mxu0
      %v1430 = vpop.f32.mrb[0].mxu0
      %v1431 = vadd.f32 %v1222, %v1430
      %v1432 = vpop.f32.mrb[0].mxu0
      %1433 = vmatprep.mubr.bf16.mxu0 0
      %1434 = vmatmul.mubr.bf16.gmra.mrb[0].mxu0 %v794
      %v1435 = vpop.f32.mrb[0].mxu0
      %v1436 = vadd.f32 %v1227, %v1435
      %v1437 = vpop.f32.mrb[0].mxu0
      %v1438 = vpop.f32.mrb[0].mxu0
      %v1439 = vadd.f32 %v1230, %v1438
      %v1440 = vpop.f32.mrb[0].mxu0
      %1441 = vmatprep.mubr.bf16.mxu0 0
      %1442 = vmatmul.mubr.bf16.gmra.mrb[0].mxu0 %v796
      %v1443 = vpop.f32.mrb[0].mxu0
      %v1444 = vadd.f32 %v1235, %v1443
      %v1445 = vpop.f32.mrb[0].mxu0
      %v1446 = vpop.f32.mrb[0].mxu0
      %v1447 = vadd.f32 %v1238, %v1446
      %v1448 = vpop.f32.mrb[0].mxu0
      %1449 = vmatprep.mubr.bf16.mxu0 0
      %1450 = vmatmul.mubr.bf16.gmra.mrb[0].mxu0 %v798
      %v1451 = vpop.f32.mrb[0].mxu0
      %v1452 = vadd.f32 %v1243, %v1451
      %v1453 = vpop.f32.mrb[0].mxu0
      %v1454 = vpop.f32.mrb[0].mxu0
      %v1455 = vadd.f32 %v1246, %v1454
      %v1456 = vpop.f32.mrb[0].mxu0
      %1457 = vmatprep.mubr.bf16.mxu0 0
      %1458 = vmatmul.mubr.bf16.gmra.mrb[0].mxu0 %v800
      %v1459 = vpop.f32.mrb[0].mxu0
      %v1460 = vadd.f32 %v1251, %v1459
      %v1461 = vpop.f32.mrb[0].mxu0
      %v1462 = vpop.f32.mrb[0].mxu0
      %v1463 = vadd.f32 %v1254, %v1462
      %v1464 = vpop.f32.mrb[0].mxu0
      %1465 = vdwg.mxu0
      %vm1498 = vcmask 1046528
      %v1499 = vrot.slane %v770, 1
      %v1500 = vrot.slane %v771, 1
      %v1501 = vsel %vm1498, %v1499, %v1500
      %v1502 = vrot.slane %v772, 1
      %v1503 = vrot.slane %v773, 1
      %v1504 = vsel %vm1498, %v1502, %v1503
      %v1505 = vrot.slane %v774, 1
      %v1506 = vrot.slane %v775, 1
      %v1507 = vsel %vm1498, %v1505, %v1506
      %v1508 = vrot.slane %v776, 1
      %v1509 = vrot.slane %v777, 1
      %v1510 = vsel %vm1498, %v1508, %v1509
      %v1511 = vrot.slane %v778, 1
      %v1512 = vrot.slane %v779, 1
      %v1513 = vsel %vm1498, %v1511, %v1512
      %v1514 = vrot.slane %v780, 1
      %v1515 = vrot.slane %v781, 1
      %v1516 = vsel %vm1498, %v1514, %v1515
      %v1517 = vrot.slane %v782, 1
      %v1518 = vrot.slane %v783, 1
      %v1519 = vsel %vm1498, %v1517, %v1518
      %v1520 = vrot.slane %v784, 1
      %v1521 = vrot.slane %v785, 1
      %v1522 = vsel %vm1498, %v1520, %v1521
      %v1523 = vrot.slane %v786, 1
      %v1524 = vrot.slane %v787, 1
      %v1525 = vsel %vm1498, %v1523, %v1524
      %v1526 = vrot.slane %v788, 1
      %v1527 = vrot.slane %v789, 1
      %v1528 = vsel %vm1498, %v1526, %v1527
      %v1529 = vrot.slane %v790, 1
      %v1530 = vrot.slane %v791, 1
      %v1531 = vsel %vm1498, %v1529, %v1530
      %v1532 = vrot.slane %v792, 1
      %v1533 = vrot.slane %v793, 1
      %v1534 = vsel %vm1498, %v1532, %v1533
      %v1535 = vrot.slane %v794, 1
      %v1536 = vrot.slane %v795, 1
      %v1537 = vsel %vm1498, %v1535, %v1536
      %v1538 = vrot.slane %v796, 1
      %v1539 = vrot.slane %v797, 1
      %v1540 = vsel %vm1498, %v1538, %v1539
      %v1541 = vrot.slane %v798, 1
      %v1542 = vrot.slane %v799, 1
      %v1543 = vsel %vm1498, %v1541, %v1542
      %v1544 = vrot.slane %v800, 1
      %v1545 = vrot.slane %v801, 1
      %v1546 = vsel %vm1498, %v1544, %v1545
      %s1563 = scalar_lea.vmem %s4, 128
      %v1564 = vld [vmem:[%s1563] sm:$0xf]
      %v1565 = vld [vmem:[%s1563 + $0x4] sm:$0xf]
      %v1566 = vld [vmem:[%s1563 + $0x8] sm:$0xf]
      %v1567 = vld [vmem:[%s1563 + $0xc] sm:$0xf]
      %v1568 = vld [vmem:[%s1563 + $0x10] sm:$0xf]
      %v1569 = vld [vmem:[%s1563 + $0x14] sm:$0xf]
      %v1570 = vld [vmem:[%s1563 + $0x18] sm:$0xf]
      %v1571 = vld [vmem:[%s1563 + $0x1c] sm:$0xf]
      %v1572 = vld [vmem:[%s1563 + $0x20] sm:$0xf]
      %v1573 = vld [vmem:[%s1563 + $0x24] sm:$0xf]
      %v1574 = vld [vmem:[%s1563 + $0x28] sm:$0xf]
      %v1575 = vld [vmem:[%s1563 + $0x2c] sm:$0xf]
      %v1576 = vld [vmem:[%s1563 + $0x30] sm:$0xf]
      %v1577 = vld [vmem:[%s1563 + $0x34] sm:$0xf]
      %v1578 = vld [vmem:[%s1563 + $0x38] sm:$0xf]
      %v1579 = vld [vmem:[%s1563 + $0x3c] sm:$0xf]
      %v1596 = vunpack.c.l.b16 %v1564
      %v1597 = vunpack.c.l.b16 %v1565
      %v1598 = vunpack.c.l.b16 %v1566
      %v1599 = vunpack.c.l.b16 %v1567
      %v1600 = vunpack.c.l.b16 %v1568
      %v1601 = vunpack.c.l.b16 %v1569
      %v1602 = vunpack.c.l.b16 %v1570
      %v1603 = vunpack.c.l.b16 %v1571
      %v1604 = vunpack.c.l.b16 %v1572
      %v1605 = vunpack.c.l.b16 %v1573
      %v1606 = vunpack.c.l.b16 %v1574
      %v1607 = vunpack.c.l.b16 %v1575
      %v1608 = vunpack.c.l.b16 %v1576
      %v1609 = vunpack.c.l.b16 %v1577
      %v1610 = vunpack.c.l.b16 %v1578
      %v1611 = vunpack.c.l.b16 %v1579
      %v1612 = vpack.c.b16 %v1597, %v1596
      %v1613 = vpack.c.b16 %v1599, %v1598
      %v1614 = vpack.c.b16 %v1601, %v1600
      %v1615 = vpack.c.b16 %v1603, %v1602
      %v1616 = vpack.c.b16 %v1605, %v1604
      %v1617 = vpack.c.b16 %v1607, %v1606
      %v1618 = vpack.c.b16 %v1609, %v1608
      %v1619 = vpack.c.b16 %v1611, %v1610
      %1628 = vmatprep.subr.bf16.mxu0 0
      %1629 = vmatpush1.bf16.msra.mxu0 %v1612
      %1630 = vmatprep.subr.bf16.mxu0 0
      %1631 = vmatpush1.bf16.msra.mxu0 %v1613
      %1632 = vmatprep.subr.bf16.mxu0 0
      %1633 = vmatpush1.bf16.msra.mxu0 %v1614
      %1634 = vmatprep.subr.bf16.mxu0 0
      %1635 = vmatpush1.bf16.msra.mxu0 %v1615
      %1636 = vmatprep.subr.bf16.mxu0 0
      %1637 = vmatpush1.bf16.msra.mxu0 %v1616
      %1638 = vmatprep.subr.bf16.mxu0 0
      %1639 = vmatpush1.bf16.msra.mxu0 %v1617
      %1640 = vmatprep.subr.bf16.mxu0 0
      %1641 = vmatpush1.bf16.msra.mxu0 %v1618
      %1642 = vmatprep.subr.bf16.mxu0 0
      %1643 = vmatpush1.bf16.msra.mxu0 %v1619
      %1644 = vmatprep.subr.bf16.mxu0 0
      %1645 = vmatpush1.bf16.msra.mxu0 0
      %1646 = vmatprep.subr.bf16.mxu0 0
      %1647 = vmatpush1.bf16.msra.mxu0 0
      %1648 = vmatprep.subr.bf16.mxu0 0
      %1649 = vmatpush1.bf16.msra.mxu0 0
      %1650 = vmatprep.subr.bf16.mxu0 0
      %1651 = vmatpush1.bf16.msra.mxu0 0
      %1652 = vmatprep.subr.bf16.mxu0 0
      %1653 = vmatpush1.bf16.msra.mxu0 0
      %1654 = vmatprep.subr.bf16.mxu0 0
      %1655 = vmatpush1.bf16.msra.mxu0 0
      %1656 = vmatprep.subr.bf16.mxu0 0
      %1657 = vmatpush1.bf16.msra.mxu0 0
      %1658 = vmatprep.subr.bf16.mxu0 0
      %1659 = vmatpush1.bf16.msra.mxu0 0
      %1660 = vmatprep.mubr.bf16.mxu0 0
      %1661 = vmatmul.mubr.bf16.gmra.mrb[0].mxu0 %v1501
      %v1662 = vpop.f32.mrb[0].mxu0
      %v1663 = vadd.f32 0.0, %v1662
      %v1664 = vpop.f32.mrb[0].mxu0
      %v1665 = vpop.f32.mrb[0].mxu0
      %v1666 = vadd.f32 0.0, %v1665
      %v1667 = vpop.f32.mrb[0].mxu0
      %1668 = vmatprep.mubr.bf16.mxu0 0
      %1669 = vmatmul.mubr.bf16.gmra.mrb[0].mxu0 %v1504
      %v1670 = vpop.f32.mrb[0].mxu0
      %v1671 = vadd.f32 0.0, %v1670
      %v1672 = vpop.f32.mrb[0].mxu0
      %v1673 = vpop.f32.mrb[0].mxu0
      %v1674 = vadd.f32 0.0, %v1673
      %v1675 = vpop.f32.mrb[0].mxu0
      %1676 = vmatprep.mubr.bf16.mxu0 0
      %1677 = vmatmul.mubr.bf16.gmra.mrb[0].mxu0 %v1507
      %v1678 = vpop.f32.mrb[0].mxu0
      %v1679 = vadd.f32 0.0, %v1678
      %v1680 = vpop.f32.mrb[0].mxu0
      %v1681 = vpop.f32.mrb[0].mxu0
      %v1682 = vadd.f32 0.0, %v1681
      %v1683 = vpop.f32.mrb[0].mxu0
      %1684 = vmatprep.mubr.bf16.mxu0 0
      %1685 = vmatmul.mubr.bf16.gmra.mrb[0].mxu0 %v1510
      %v1686 = vpop.f32.mrb[0].mxu0
      %v1687 = vadd.f32 0.0, %v1686
      %v1688 = vpop.f32.mrb[0].mxu0
      %v1689 = vpop.f32.mrb[0].mxu0
      %v1690 = vadd.f32 0.0, %v1689
      %v1691 = vpop.f32.mrb[0].mxu0
      %1692 = vmatprep.mubr.bf16.mxu0 0
      %1693 = vmatmul.mubr.bf16.gmra.mrb[0].mxu0 %v1513
      %v1694 = vpop.f32.mrb[0].mxu0
      %v1695 = vadd.f32 0.0, %v1694
      %v1696 = vpop.f32.mrb[0].mxu0
      %v1697 = vpop.f32.mrb[0].mxu0
      %v1698 = vadd.f32 0.0, %v1697
      %v1699 = vpop.f32.mrb[0].mxu0
      %1700 = vmatprep.mubr.bf16.mxu0 0
      %1701 = vmatmul.mubr.bf16.gmra.mrb[0].mxu0 %v1516
      %v1702 = vpop.f32.mrb[0].mxu0
      %v1703 = vadd.f32 0.0, %v1702
      %v1704 = vpop.f32.mrb[0].mxu0
      %v1705 = vpop.f32.mrb[0].mxu0
      %v1706 = vadd.f32 0.0, %v1705
      %v1707 = vpop.f32.mrb[0].mxu0
      %1708 = vmatprep.mubr.bf16.mxu0 0
      %1709 = vmatmul.mubr.bf16.gmra.mrb[0].mxu0 %v1519
      %v1710 = vpop.f32.mrb[0].mxu0
      %v1711 = vadd.f32 0.0, %v1710
      %v1712 = vpop.f32.mrb[0].mxu0
      %v1713 = vpop.f32.mrb[0].mxu0
      %v1714 = vadd.f32 0.0, %v1713
      %v1715 = vpop.f32.mrb[0].mxu0
      %1716 = vmatprep.mubr.bf16.mxu0 0
      %1717 = vmatmul.mubr.bf16.gmra.mrb[0].mxu0 %v1522
      %v1718 = vpop.f32.mrb[0].mxu0
      %v1719 = vadd.f32 0.0, %v1718
      %v1720 = vpop.f32.mrb[0].mxu0
      %v1721 = vpop.f32.mrb[0].mxu0
      %v1722 = vadd.f32 0.0, %v1721
      %v1723 = vpop.f32.mrb[0].mxu0
      %1724 = vmatprep.mubr.bf16.mxu0 0
      %1725 = vmatmul.mubr.bf16.gmra.mrb[0].mxu0 %v1525
      %v1726 = vpop.f32.mrb[0].mxu0
      %v1727 = vadd.f32 0.0, %v1726
      %v1728 = vpop.f32.mrb[0].mxu0
      %v1729 = vpop.f32.mrb[0].mxu0
      %v1730 = vadd.f32 0.0, %v1729
      %v1731 = vpop.f32.mrb[0].mxu0
      %1732 = vmatprep.mubr.bf16.mxu0 0
      %1733 = vmatmul.mubr.bf16.gmra.mrb[0].mxu0 %v1528
      %v1734 = vpop.f32.mrb[0].mxu0
      %v1735 = vadd.f32 0.0, %v1734
      %v1736 = vpop.f32.mrb[0].mxu0
      %v1737 = vpop.f32.mrb[0].mxu0
      %v1738 = vadd.f32 0.0, %v1737
      %v1739 = vpop.f32.mrb[0].mxu0
      %1740 = vmatprep.mubr.bf16.mxu0 0
      %1741 = vmatmul.mubr.bf16.gmra.mrb[0].mxu0 %v1531
      %v1742 = vpop.f32.mrb[0].mxu0
      %v1743 = vadd.f32 0.0, %v1742
      %v1744 = vpop.f32.mrb[0].mxu0
      %v1745 = vpop.f32.mrb[0].mxu0
      %v1746 = vadd.f32 0.0, %v1745
      %v1747 = vpop.f32.mrb[0].mxu0
      %1748 = vmatprep.mubr.bf16.mxu0 0
      %1749 = vmatmul.mubr.bf16.gmra.mrb[0].mxu0 %v1534
      %v1750 = vpop.f32.mrb[0].mxu0
      %v1751 = vadd.f32 0.0, %v1750
      %v1752 = vpop.f32.mrb[0].mxu0
      %v1753 = vpop.f32.mrb[0].mxu0
      %v1754 = vadd.f32 0.0, %v1753
      %v1755 = vpop.f32.mrb[0].mxu0
      %1756 = vmatprep.mubr.bf16.mxu0 0
      %1757 = vmatmul.mubr.bf16.gmra.mrb[0].mxu0 %v1537
      %v1758 = vpop.f32.mrb[0].mxu0
      %v1759 = vadd.f32 0.0, %v1758
      %v1760 = vpop.f32.mrb[0].mxu0
      %v1761 = vpop.f32.mrb[0].mxu0
      %v1762 = vadd.f32 0.0, %v1761
      %v1763 = vpop.f32.mrb[0].mxu0
      %1764 = vmatprep.mubr.bf16.mxu0 0
      %1765 = vmatmul.mubr.bf16.gmra.mrb[0].mxu0 %v1540
      %v1766 = vpop.f32.mrb[0].mxu0
      %v1767 = vadd.f32 0.0, %v1766
      %v1768 = vpop.f32.mrb[0].mxu0
      %v1769 = vpop.f32.mrb[0].mxu0
      %v1770 = vadd.f32 0.0, %v1769
      %v1771 = vpop.f32.mrb[0].mxu0
      %1772 = vmatprep.mubr.bf16.mxu0 0
      %1773 = vmatmul.mubr.bf16.gmra.mrb[0].mxu0 %v1543
      %v1774 = vpop.f32.mrb[0].mxu0
      %v1775 = vadd.f32 0.0, %v1774
      %v1776 = vpop.f32.mrb[0].mxu0
      %v1777 = vpop.f32.mrb[0].mxu0
      %v1778 = vadd.f32 0.0, %v1777
      %v1779 = vpop.f32.mrb[0].mxu0
      %1780 = vmatprep.mubr.bf16.mxu0 0
      %1781 = vmatmul.mubr.bf16.gmra.mrb[0].mxu0 %v1546
      %v1782 = vpop.f32.mrb[0].mxu0
      %v1783 = vadd.f32 0.0, %v1782
      %v1784 = vpop.f32.mrb[0].mxu0
      %v1785 = vpop.f32.mrb[0].mxu0
      %v1786 = vadd.f32 0.0, %v1785
      %v1787 = vpop.f32.mrb[0].mxu0
      %1788 = vdwg.mxu0
      %v1789 = vadd.f32 %v1340, %v1663
      %v1790 = vadd.f32 %v1343, %v1666
      %v1791 = vadd.f32 %v1348, %v1671
      %v1792 = vadd.f32 %v1351, %v1674
      %v1793 = vadd.f32 %v1356, %v1679
      %v1794 = vadd.f32 %v1359, %v1682
      %v1795 = vadd.f32 %v1364, %v1687
      %v1796 = vadd.f32 %v1367, %v1690
      %v1797 = vadd.f32 %v1372, %v1695
      %v1798 = vadd.f32 %v1375, %v1698
      %v1799 = vadd.f32 %v1380, %v1703
      %v1800 = vadd.f32 %v1383, %v1706
      %v1801 = vadd.f32 %v1388, %v1711
      %v1802 = vadd.f32 %v1391, %v1714
      %v1803 = vadd.f32 %v1396, %v1719
      %v1804 = vadd.f32 %v1399, %v1722
      %v1805 = vadd.f32 %v1404, %v1727
      %v1806 = vadd.f32 %v1407, %v1730
      %v1807 = vadd.f32 %v1412, %v1735
      %v1808 = vadd.f32 %v1415, %v1738
      %v1809 = vadd.f32 %v1420, %v1743
      %v1810 = vadd.f32 %v1423, %v1746
      %v1811 = vadd.f32 %v1428, %v1751
      %v1812 = vadd.f32 %v1431, %v1754
      %v1813 = vadd.f32 %v1436, %v1759
      %v1814 = vadd.f32 %v1439, %v1762
      %v1815 = vadd.f32 %v1444, %v1767
      %v1816 = vadd.f32 %v1447, %v1770
      %v1817 = vadd.f32 %v1452, %v1775
      %v1818 = vadd.f32 %v1455, %v1778
      %v1819 = vadd.f32 %v1460, %v1783
      %v1820 = vadd.f32 %v1463, %v1786
      %s1821 = scalar_lea.vmem %s4, 192
      %v1822 = vld [vmem:[%s1821] sm:$0xf]
      %v1823 = vld [vmem:[%s1821 + $0x4] sm:$0xf]
      %v1824 = vld [vmem:[%s1821 + $0x8] sm:$0xf]
      %v1825 = vld [vmem:[%s1821 + $0xc] sm:$0xf]
      %v1826 = vld [vmem:[%s1821 + $0x10] sm:$0xf]
      %v1827 = vld [vmem:[%s1821 + $0x14] sm:$0xf]
      %v1828 = vld [vmem:[%s1821 + $0x18] sm:$0xf]
      %v1829 = vld [vmem:[%s1821 + $0x1c] sm:$0xf]
      %v1830 = vld [vmem:[%s1821 + $0x20] sm:$0xf]
      %v1831 = vld [vmem:[%s1821 + $0x24] sm:$0xf]
      %v1832 = vld [vmem:[%s1821 + $0x28] sm:$0xf]
      %v1833 = vld [vmem:[%s1821 + $0x2c] sm:$0xf]
      %v1834 = vld [vmem:[%s1821 + $0x30] sm:$0xf]
      %v1835 = vld [vmem:[%s1821 + $0x34] sm:$0xf]
      %v1836 = vld [vmem:[%s1821 + $0x38] sm:$0xf]
      %v1837 = vld [vmem:[%s1821 + $0x3c] sm:$0xf]
      %v1854 = vunpack.c.l.b16 %v1822
      %v1855 = vunpack.c.l.b16 %v1823
      %v1856 = vunpack.c.l.b16 %v1824
      %v1857 = vunpack.c.l.b16 %v1825
      %v1858 = vunpack.c.l.b16 %v1826
      %v1859 = vunpack.c.l.b16 %v1827
      %v1860 = vunpack.c.l.b16 %v1828
      %v1861 = vunpack.c.l.b16 %v1829
      %v1862 = vunpack.c.l.b16 %v1830
      %v1863 = vunpack.c.l.b16 %v1831
      %v1864 = vunpack.c.l.b16 %v1832
      %v1865 = vunpack.c.l.b16 %v1833
      %v1866 = vunpack.c.l.b16 %v1834
      %v1867 = vunpack.c.l.b16 %v1835
      %v1868 = vunpack.c.l.b16 %v1836
      %v1869 = vunpack.c.l.b16 %v1837
      %v1870 = vpack.c.b16 %v1855, %v1854
      %v1871 = vpack.c.b16 %v1857, %v1856
      %v1872 = vpack.c.b16 %v1859, %v1858
      %v1873 = vpack.c.b16 %v1861, %v1860
      %v1874 = vpack.c.b16 %v1863, %v1862
      %v1875 = vpack.c.b16 %v1865, %v1864
      %v1876 = vpack.c.b16 %v1867, %v1866
      %v1877 = vpack.c.b16 %v1869, %v1868
      %1886 = vmatprep.subr.bf16.mxu0 0
      %1887 = vmatpush1.bf16.msra.mxu0 %v1870
      %1888 = vmatprep.subr.bf16.mxu0 0
      %1889 = vmatpush1.bf16.msra.mxu0 %v1871
      %1890 = vmatprep.subr.bf16.mxu0 0
      %1891 = vmatpush1.bf16.msra.mxu0 %v1872
      %1892 = vmatprep.subr.bf16.mxu0 0
      %1893 = vmatpush1.bf16.msra.mxu0 %v1873
      %1894 = vmatprep.subr.bf16.mxu0 0
      %1895 = vmatpush1.bf16.msra.mxu0 %v1874
      %1896 = vmatprep.subr.bf16.mxu0 0
      %1897 = vmatpush1.bf16.msra.mxu0 %v1875
      %1898 = vmatprep.subr.bf16.mxu0 0
      %1899 = vmatpush1.bf16.msra.mxu0 %v1876
      %1900 = vmatprep.subr.bf16.mxu0 0
      %1901 = vmatpush1.bf16.msra.mxu0 %v1877
      %1902 = vmatprep.subr.bf16.mxu0 0
      %1903 = vmatpush1.bf16.msra.mxu0 0
      %1904 = vmatprep.subr.bf16.mxu0 0
      %1905 = vmatpush1.bf16.msra.mxu0 0
      %1906 = vmatprep.subr.bf16.mxu0 0
      %1907 = vmatpush1.bf16.msra.mxu0 0
      %1908 = vmatprep.subr.bf16.mxu0 0
      %1909 = vmatpush1.bf16.msra.mxu0 0
      %1910 = vmatprep.subr.bf16.mxu0 0
      %1911 = vmatpush1.bf16.msra.mxu0 0
      %1912 = vmatprep.subr.bf16.mxu0 0
      %1913 = vmatpush1.bf16.msra.mxu0 0
      %1914 = vmatprep.subr.bf16.mxu0 0
      %1915 = vmatpush1.bf16.msra.mxu0 0
      %1916 = vmatprep.subr.bf16.mxu0 0
      %1917 = vmatpush1.bf16.msra.mxu0 0
      %1918 = vmatprep.mubr.bf16.mxu0 0
      %1919 = vmatmul.mubr.bf16.gmra.mrb[0].mxu0 %v772
      %v1920 = vpop.f32.mrb[0].mxu0
      %v1921 = vadd.f32 0.0, %v1920
      %v1922 = vpop.f32.mrb[0].mxu0
      %v1923 = vpop.f32.mrb[0].mxu0
      %v1924 = vadd.f32 0.0, %v1923
      %v1925 = vpop.f32.mrb[0].mxu0
      %1926 = vmatprep.mubr.bf16.mxu0 0
      %1927 = vmatmul.mubr.bf16.gmra.mrb[0].mxu0 %v774
      %v1928 = vpop.f32.mrb[0].mxu0
      %v1929 = vadd.f32 0.0, %v1928
      %v1930 = vpop.f32.mrb[0].mxu0
      %v1931 = vpop.f32.mrb[0].mxu0
      %v1932 = vadd.f32 0.0, %v1931
      %v1933 = vpop.f32.mrb[0].mxu0
      %1934 = vmatprep.mubr.bf16.mxu0 0
      %1935 = vmatmul.mubr.bf16.gmra.mrb[0].mxu0 %v776
      %v1936 = vpop.f32.mrb[0].mxu0
      %v1937 = vadd.f32 0.0, %v1936
      %v1938 = vpop.f32.mrb[0].mxu0
      %v1939 = vpop.f32.mrb[0].mxu0
      %v1940 = vadd.f32 0.0, %v1939
      %v1941 = vpop.f32.mrb[0].mxu0
      %1942 = vmatprep.mubr.bf16.mxu0 0
      %1943 = vmatmul.mubr.bf16.gmra.mrb[0].mxu0 %v778
      %v1944 = vpop.f32.mrb[0].mxu0
      %v1945 = vadd.f32 0.0, %v1944
      %v1946 = vpop.f32.mrb[0].mxu0
      %v1947 = vpop.f32.mrb[0].mxu0
      %v1948 = vadd.f32 0.0, %v1947
      %v1949 = vpop.f32.mrb[0].mxu0
      %1950 = vmatprep.mubr.bf16.mxu0 0
      %1951 = vmatmul.mubr.bf16.gmra.mrb[0].mxu0 %v780
      %v1952 = vpop.f32.mrb[0].mxu0
      %v1953 = vadd.f32 0.0, %v1952
      %v1954 = vpop.f32.mrb[0].mxu0
      %v1955 = vpop.f32.mrb[0].mxu0
      %v1956 = vadd.f32 0.0, %v1955
      %v1957 = vpop.f32.mrb[0].mxu0
      %1958 = vmatprep.mubr.bf16.mxu0 0
      %1959 = vmatmul.mubr.bf16.gmra.mrb[0].mxu0 %v782
      %v1960 = vpop.f32.mrb[0].mxu0
      %v1961 = vadd.f32 0.0, %v1960
      %v1962 = vpop.f32.mrb[0].mxu0
      %v1963 = vpop.f32.mrb[0].mxu0
      %v1964 = vadd.f32 0.0, %v1963
      %v1965 = vpop.f32.mrb[0].mxu0
      %1966 = vmatprep.mubr.bf16.mxu0 0
      %1967 = vmatmul.mubr.bf16.gmra.mrb[0].mxu0 %v784
      %v1968 = vpop.f32.mrb[0].mxu0
      %v1969 = vadd.f32 0.0, %v1968
      %v1970 = vpop.f32.mrb[0].mxu0
      %v1971 = vpop.f32.mrb[0].mxu0
      %v1972 = vadd.f32 0.0, %v1971
      %v1973 = vpop.f32.mrb[0].mxu0
      %1974 = vmatprep.mubr.bf16.mxu0 0
      %1975 = vmatmul.mubr.bf16.gmra.mrb[0].mxu0 %v786
      %v1976 = vpop.f32.mrb[0].mxu0
      %v1977 = vadd.f32 0.0, %v1976
      %v1978 = vpop.f32.mrb[0].mxu0
      %v1979 = vpop.f32.mrb[0].mxu0
      %v1980 = vadd.f32 0.0, %v1979
      %v1981 = vpop.f32.mrb[0].mxu0
      %1982 = vmatprep.mubr.bf16.mxu0 0
      %1983 = vmatmul.mubr.bf16.gmra.mrb[0].mxu0 %v788
      %v1984 = vpop.f32.mrb[0].mxu0
      %v1985 = vadd.f32 0.0, %v1984
      %v1986 = vpop.f32.mrb[0].mxu0
      %v1987 = vpop.f32.mrb[0].mxu0
      %v1988 = vadd.f32 0.0, %v1987
      %v1989 = vpop.f32.mrb[0].mxu0
      %1990 = vmatprep.mubr.bf16.mxu0 0
      %1991 = vmatmul.mubr.bf16.gmra.mrb[0].mxu0 %v790
      %v1992 = vpop.f32.mrb[0].mxu0
      %v1993 = vadd.f32 0.0, %v1992
      %v1994 = vpop.f32.mrb[0].mxu0
      %v1995 = vpop.f32.mrb[0].mxu0
      %v1996 = vadd.f32 0.0, %v1995
      %v1997 = vpop.f32.mrb[0].mxu0
      %1998 = vmatprep.mubr.bf16.mxu0 0
      %1999 = vmatmul.mubr.bf16.gmra.mrb[0].mxu0 %v792
      %v2000 = vpop.f32.mrb[0].mxu0
      %v2001 = vadd.f32 0.0, %v2000
      %v2002 = vpop.f32.mrb[0].mxu0
      %v2003 = vpop.f32.mrb[0].mxu0
      %v2004 = vadd.f32 0.0, %v2003
      %v2005 = vpop.f32.mrb[0].mxu0
      %2006 = vmatprep.mubr.bf16.mxu0 0
      %2007 = vmatmul.mubr.bf16.gmra.mrb[0].mxu0 %v794
      %v2008 = vpop.f32.mrb[0].mxu0
      %v2009 = vadd.f32 0.0, %v2008
      %v2010 = vpop.f32.mrb[0].mxu0
      %v2011 = vpop.f32.mrb[0].mxu0
      %v2012 = vadd.f32 0.0, %v2011
      %v2013 = vpop.f32.mrb[0].mxu0
      %2014 = vmatprep.mubr.bf16.mxu0 0
      %2015 = vmatmul.mubr.bf16.gmra.mrb[0].mxu0 %v796
      %v2016 = vpop.f32.mrb[0].mxu0
      %v2017 = vadd.f32 0.0, %v2016
      %v2018 = vpop.f32.mrb[0].mxu0
      %v2019 = vpop.f32.mrb[0].mxu0
      %v2020 = vadd.f32 0.0, %v2019
      %v2021 = vpop.f32.mrb[0].mxu0
      %2022 = vmatprep.mubr.bf16.mxu0 0
      %2023 = vmatmul.mubr.bf16.gmra.mrb[0].mxu0 %v798
      %v2024 = vpop.f32.mrb[0].mxu0
      %v2025 = vadd.f32 0.0, %v2024
      %v2026 = vpop.f32.mrb[0].mxu0
      %v2027 = vpop.f32.mrb[0].mxu0
      %v2028 = vadd.f32 0.0, %v2027
      %v2029 = vpop.f32.mrb[0].mxu0
      %2030 = vmatprep.mubr.bf16.mxu0 0
      %2031 = vmatmul.mubr.bf16.gmra.mrb[0].mxu0 %v800
      %v2032 = vpop.f32.mrb[0].mxu0
      %v2033 = vadd.f32 0.0, %v2032
      %v2034 = vpop.f32.mrb[0].mxu0
      %v2035 = vpop.f32.mrb[0].mxu0
      %v2036 = vadd.f32 0.0, %v2035
      %v2037 = vpop.f32.mrb[0].mxu0
      %2038 = vmatprep.mubr.bf16.mxu0 0
      %2039 = vmatmul.mubr.bf16.gmra.mrb[0].mxu0 %v802
      %v2040 = vpop.f32.mrb[0].mxu0
      %v2041 = vadd.f32 0.0, %v2040
      %v2042 = vpop.f32.mrb[0].mxu0
      %v2043 = vpop.f32.mrb[0].mxu0
      %v2044 = vadd.f32 0.0, %v2043
      %v2045 = vpop.f32.mrb[0].mxu0
      %2046 = vdwg.mxu0
      %v2047 = vadd.f32 %v1789, %v1921
      %v2048 = vadd.f32 %v1790, %v1924
      %v2049 = vadd.f32 %v1791, %v1929
      %v2050 = vadd.f32 %v1792, %v1932
      %v2051 = vadd.f32 %v1793, %v1937
      %v2052 = vadd.f32 %v1794, %v1940
      %v2053 = vadd.f32 %v1795, %v1945
      %v2054 = vadd.f32 %v1796, %v1948
      %v2055 = vadd.f32 %v1797, %v1953
      %v2056 = vadd.f32 %v1798, %v1956
      %v2057 = vadd.f32 %v1799, %v1961
      %v2058 = vadd.f32 %v1800, %v1964
      %v2059 = vadd.f32 %v1801, %v1969
      %v2060 = vadd.f32 %v1802, %v1972
      %v2061 = vadd.f32 %v1803, %v1977
      %v2062 = vadd.f32 %v1804, %v1980
      %v2063 = vadd.f32 %v1805, %v1985
      %v2064 = vadd.f32 %v1806, %v1988
      %v2065 = vadd.f32 %v1807, %v1993
      %v2066 = vadd.f32 %v1808, %v1996
      %v2067 = vadd.f32 %v1809, %v2001
      %v2068 = vadd.f32 %v1810, %v2004
      %v2069 = vadd.f32 %v1811, %v2009
      %v2070 = vadd.f32 %v1812, %v2012
      %v2071 = vadd.f32 %v1813, %v2017
      %v2072 = vadd.f32 %v1814, %v2020
      %v2073 = vadd.f32 %v1815, %v2025
      %v2074 = vadd.f32 %v1816, %v2028
      %v2075 = vadd.f32 %v1817, %v2033
      %v2076 = vadd.f32 %v1818, %v2036
      %v2077 = vadd.f32 %v1819, %v2041
      %v2078 = vadd.f32 %v1820, %v2044
      %v2080 = vshrl.u32 %v802, 16
      %v2082 = vshll.u32 %v802, 16
      %v2084 = vrot.slane %v2082, 1
      %v2085 = vor.u32 %v2080, %v2084
      %v2087 = vshll.u32 %v803, 16
      %v2089 = vrot.slane %v2087, 1
      %v2090 = vsel %vm822, %v2085, %v2089
      %s2092 = scalar_lea.vmem %s4, 256
      %v2093 = vld [vmem:[%s2092] sm:$0xf]
      %v2094 = vld [vmem:[%s2092 + $0x4] sm:$0xf]
      %v2095 = vld [vmem:[%s2092 + $0x8] sm:$0xf]
      %v2096 = vld [vmem:[%s2092 + $0xc] sm:$0xf]
      %v2097 = vld [vmem:[%s2092 + $0x10] sm:$0xf]
      %v2098 = vld [vmem:[%s2092 + $0x14] sm:$0xf]
      %v2099 = vld [vmem:[%s2092 + $0x18] sm:$0xf]
      %v2100 = vld [vmem:[%s2092 + $0x1c] sm:$0xf]
      %v2101 = vld [vmem:[%s2092 + $0x20] sm:$0xf]
      %v2102 = vld [vmem:[%s2092 + $0x24] sm:$0xf]
      %v2103 = vld [vmem:[%s2092 + $0x28] sm:$0xf]
      %v2104 = vld [vmem:[%s2092 + $0x2c] sm:$0xf]
      %v2105 = vld [vmem:[%s2092 + $0x30] sm:$0xf]
      %v2106 = vld [vmem:[%s2092 + $0x34] sm:$0xf]
      %v2107 = vld [vmem:[%s2092 + $0x38] sm:$0xf]
      %v2108 = vld [vmem:[%s2092 + $0x3c] sm:$0xf]
      %v2125 = vunpack.c.l.b16 %v2093
      %v2126 = vunpack.c.l.b16 %v2094
      %v2127 = vunpack.c.l.b16 %v2095
      %v2128 = vunpack.c.l.b16 %v2096
      %v2129 = vunpack.c.l.b16 %v2097
      %v2130 = vunpack.c.l.b16 %v2098
      %v2131 = vunpack.c.l.b16 %v2099
      %v2132 = vunpack.c.l.b16 %v2100
      %v2133 = vunpack.c.l.b16 %v2101
      %v2134 = vunpack.c.l.b16 %v2102
      %v2135 = vunpack.c.l.b16 %v2103
      %v2136 = vunpack.c.l.b16 %v2104
      %v2137 = vunpack.c.l.b16 %v2105
      %v2138 = vunpack.c.l.b16 %v2106
      %v2139 = vunpack.c.l.b16 %v2107
      %v2140 = vunpack.c.l.b16 %v2108
      %v2141 = vpack.c.b16 %v2126, %v2125
      %v2142 = vpack.c.b16 %v2128, %v2127
      %v2143 = vpack.c.b16 %v2130, %v2129
      %v2144 = vpack.c.b16 %v2132, %v2131
      %v2145 = vpack.c.b16 %v2134, %v2133
      %v2146 = vpack.c.b16 %v2136, %v2135
      %v2147 = vpack.c.b16 %v2138, %v2137
      %v2148 = vpack.c.b16 %v2140, %v2139
      %2157 = vmatprep.subr.bf16.mxu0 0
      %2158 = vmatpush1.bf16.msra.mxu0 %v2141
      %2159 = vmatprep.subr.bf16.mxu0 0
      %2160 = vmatpush1.bf16.msra.mxu0 %v2142
      %2161 = vmatprep.subr.bf16.mxu0 0
      %2162 = vmatpush1.bf16.msra.mxu0 %v2143
      %2163 = vmatprep.subr.bf16.mxu0 0
      %2164 = vmatpush1.bf16.msra.mxu0 %v2144
      %2165 = vmatprep.subr.bf16.mxu0 0
      %2166 = vmatpush1.bf16.msra.mxu0 %v2145
      %2167 = vmatprep.subr.bf16.mxu0 0
      %2168 = vmatpush1.bf16.msra.mxu0 %v2146
      %2169 = vmatprep.subr.bf16.mxu0 0
      %2170 = vmatpush1.bf16.msra.mxu0 %v2147
      %2171 = vmatprep.subr.bf16.mxu0 0
      %2172 = vmatpush1.bf16.msra.mxu0 %v2148
      %2173 = vmatprep.subr.bf16.mxu0 0
      %2174 = vmatpush1.bf16.msra.mxu0 0
      %2175 = vmatprep.subr.bf16.mxu0 0
      %2176 = vmatpush1.bf16.msra.mxu0 0
      %2177 = vmatprep.subr.bf16.mxu0 0
      %2178 = vmatpush1.bf16.msra.mxu0 0
      %2179 = vmatprep.subr.bf16.mxu0 0
      %2180 = vmatpush1.bf16.msra.mxu0 0
      %2181 = vmatprep.subr.bf16.mxu0 0
      %2182 = vmatpush1.bf16.msra.mxu0 0
      %2183 = vmatprep.subr.bf16.mxu0 0
      %2184 = vmatpush1.bf16.msra.mxu0 0
      %2185 = vmatprep.subr.bf16.mxu0 0
      %2186 = vmatpush1.bf16.msra.mxu0 0
      %2187 = vmatprep.subr.bf16.mxu0 0
      %2188 = vmatpush1.bf16.msra.mxu0 0
      %2189 = vmatprep.mubr.bf16.mxu0 0
      %2190 = vmatmul.mubr.bf16.gmra.mrb[0].mxu0 %v846
      %v2191 = vpop.f32.mrb[0].mxu0
      %v2192 = vadd.f32 0.0, %v2191
      %v2193 = vpop.f32.mrb[0].mxu0
      %v2194 = vpop.f32.mrb[0].mxu0
      %v2195 = vadd.f32 0.0, %v2194
      %v2196 = vpop.f32.mrb[0].mxu0
      %2197 = vmatprep.mubr.bf16.mxu0 0
      %2198 = vmatmul.mubr.bf16.gmra.mrb[0].mxu0 %v858
      %v2199 = vpop.f32.mrb[0].mxu0
      %v2200 = vadd.f32 0.0, %v2199
      %v2201 = vpop.f32.mrb[0].mxu0
      %v2202 = vpop.f32.mrb[0].mxu0
      %v2203 = vadd.f32 0.0, %v2202
      %v2204 = vpop.f32.mrb[0].mxu0
      %2205 = vmatprep.mubr.bf16.mxu0 0
      %2206 = vmatmul.mubr.bf16.gmra.mrb[0].mxu0 %v870
      %v2207 = vpop.f32.mrb[0].mxu0
      %v2208 = vadd.f32 0.0, %v2207
      %v2209 = vpop.f32.mrb[0].mxu0
      %v2210 = vpop.f32.mrb[0].mxu0
      %v2211 = vadd.f32 0.0, %v2210
      %v2212 = vpop.f32.mrb[0].mxu0
      %2213 = vmatprep.mubr.bf16.mxu0 0
      %2214 = vmatmul.mubr.bf16.gmra.mrb[0].mxu0 %v882
      %v2215 = vpop.f32.mrb[0].mxu0
      %v2216 = vadd.f32 0.0, %v2215
      %v2217 = vpop.f32.mrb[0].mxu0
      %v2218 = vpop.f32.mrb[0].mxu0
      %v2219 = vadd.f32 0.0, %v2218
      %v2220 = vpop.f32.mrb[0].mxu0
      %2221 = vmatprep.mubr.bf16.mxu0 0
      %2222 = vmatmul.mubr.bf16.gmra.mrb[0].mxu0 %v894
      %v2223 = vpop.f32.mrb[0].mxu0
      %v2224 = vadd.f32 0.0, %v2223
      %v2225 = vpop.f32.mrb[0].mxu0
      %v2226 = vpop.f32.mrb[0].mxu0
      %v2227 = vadd.f32 0.0, %v2226
      %v2228 = vpop.f32.mrb[0].mxu0
      %2229 = vmatprep.mubr.bf16.mxu0 0
      %2230 = vmatmul.mubr.bf16.gmra.mrb[0].mxu0 %v906
      %v2231 = vpop.f32.mrb[0].mxu0
      %v2232 = vadd.f32 0.0, %v2231
      %v2233 = vpop.f32.mrb[0].mxu0
      %v2234 = vpop.f32.mrb[0].mxu0
      %v2235 = vadd.f32 0.0, %v2234
      %v2236 = vpop.f32.mrb[0].mxu0
      %2237 = vmatprep.mubr.bf16.mxu0 0
      %2238 = vmatmul.mubr.bf16.gmra.mrb[0].mxu0 %v918
      %v2239 = vpop.f32.mrb[0].mxu0
      %v2240 = vadd.f32 0.0, %v2239
      %v2241 = vpop.f32.mrb[0].mxu0
      %v2242 = vpop.f32.mrb[0].mxu0
      %v2243 = vadd.f32 0.0, %v2242
      %v2244 = vpop.f32.mrb[0].mxu0
      %2245 = vmatprep.mubr.bf16.mxu0 0
      %2246 = vmatmul.mubr.bf16.gmra.mrb[0].mxu0 %v930
      %v2247 = vpop.f32.mrb[0].mxu0
      %v2248 = vadd.f32 0.0, %v2247
      %v2249 = vpop.f32.mrb[0].mxu0
      %v2250 = vpop.f32.mrb[0].mxu0
      %v2251 = vadd.f32 0.0, %v2250
      %v2252 = vpop.f32.mrb[0].mxu0
      %2253 = vmatprep.mubr.bf16.mxu0 0
      %2254 = vmatmul.mubr.bf16.gmra.mrb[0].mxu0 %v942
      %v2255 = vpop.f32.mrb[0].mxu0
      %v2256 = vadd.f32 0.0, %v2255
      %v2257 = vpop.f32.mrb[0].mxu0
      %v2258 = vpop.f32.mrb[0].mxu0
      %v2259 = vadd.f32 0.0, %v2258
      %v2260 = vpop.f32.mrb[0].mxu0
      %2261 = vmatprep.mubr.bf16.mxu0 0
      %2262 = vmatmul.mubr.bf16.gmra.mrb[0].mxu0 %v954
      %v2263 = vpop.f32.mrb[0].mxu0
      %v2264 = vadd.f32 0.0, %v2263
      %v2265 = vpop.f32.mrb[0].mxu0
      %v2266 = vpop.f32.mrb[0].mxu0
      %v2267 = vadd.f32 0.0, %v2266
      %v2268 = vpop.f32.mrb[0].mxu0
      %2269 = vmatprep.mubr.bf16.mxu0 0
      %2270 = vmatmul.mubr.bf16.gmra.mrb[0].mxu0 %v966
      %v2271 = vpop.f32.mrb[0].mxu0
      %v2272 = vadd.f32 0.0, %v2271
      %v2273 = vpop.f32.mrb[0].mxu0
      %v2274 = vpop.f32.mrb[0].mxu0
      %v2275 = vadd.f32 0.0, %v2274
      %v2276 = vpop.f32.mrb[0].mxu0
      %2277 = vmatprep.mubr.bf16.mxu0 0
      %2278 = vmatmul.mubr.bf16.gmra.mrb[0].mxu0 %v978
      %v2279 = vpop.f32.mrb[0].mxu0
      %v2280 = vadd.f32 0.0, %v2279
      %v2281 = vpop.f32.mrb[0].mxu0
      %v2282 = vpop.f32.mrb[0].mxu0
      %v2283 = vadd.f32 0.0, %v2282
      %v2284 = vpop.f32.mrb[0].mxu0
      %2285 = vmatprep.mubr.bf16.mxu0 0
      %2286 = vmatmul.mubr.bf16.gmra.mrb[0].mxu0 %v990
      %v2287 = vpop.f32.mrb[0].mxu0
      %v2288 = vadd.f32 0.0, %v2287
      %v2289 = vpop.f32.mrb[0].mxu0
      %v2290 = vpop.f32.mrb[0].mxu0
      %v2291 = vadd.f32 0.0, %v2290
      %v2292 = vpop.f32.mrb[0].mxu0
      %2293 = vmatprep.mubr.bf16.mxu0 0
      %2294 = vmatmul.mubr.bf16.gmra.mrb[0].mxu0 %v1002
      %v2295 = vpop.f32.mrb[0].mxu0
      %v2296 = vadd.f32 0.0, %v2295
      %v2297 = vpop.f32.mrb[0].mxu0
      %v2298 = vpop.f32.mrb[0].mxu0
      %v2299 = vadd.f32 0.0, %v2298
      %v2300 = vpop.f32.mrb[0].mxu0
      %2301 = vmatprep.mubr.bf16.mxu0 0
      %2302 = vmatmul.mubr.bf16.gmra.mrb[0].mxu0 %v1014
      %v2303 = vpop.f32.mrb[0].mxu0
      %v2304 = vadd.f32 0.0, %v2303
      %v2305 = vpop.f32.mrb[0].mxu0
      %v2306 = vpop.f32.mrb[0].mxu0
      %v2307 = vadd.f32 0.0, %v2306
      %v2308 = vpop.f32.mrb[0].mxu0
      %2309 = vmatprep.mubr.bf16.mxu0 0
      %2310 = vmatmul.mubr.bf16.gmra.mrb[0].mxu0 %v2090
      %v2311 = vpop.f32.mrb[0].mxu0
      %v2312 = vadd.f32 0.0, %v2311
      %v2313 = vpop.f32.mrb[0].mxu0
      %v2314 = vpop.f32.mrb[0].mxu0
      %v2315 = vadd.f32 0.0, %v2314
      %v2316 = vpop.f32.mrb[0].mxu0
      %2317 = vdwg.mxu0
      %v2318 = vadd.f32 %v2047, %v2192
      %v2319 = vadd.f32 %v2048, %v2195
      %v2320 = vadd.f32 %v2049, %v2200
      %v2321 = vadd.f32 %v2050, %v2203
      %v2322 = vadd.f32 %v2051, %v2208
      %v2323 = vadd.f32 %v2052, %v2211
      %v2324 = vadd.f32 %v2053, %v2216
      %v2325 = vadd.f32 %v2054, %v2219
      %v2326 = vadd.f32 %v2055, %v2224
      %v2327 = vadd.f32 %v2056, %v2227
      %v2328 = vadd.f32 %v2057, %v2232
      %v2329 = vadd.f32 %v2058, %v2235
      %v2330 = vadd.f32 %v2059, %v2240
      %v2331 = vadd.f32 %v2060, %v2243
      %v2332 = vadd.f32 %v2061, %v2248
      %v2333 = vadd.f32 %v2062, %v2251
      %v2334 = vadd.f32 %v2063, %v2256
      %v2335 = vadd.f32 %v2064, %v2259
      %v2336 = vadd.f32 %v2065, %v2264
      %v2337 = vadd.f32 %v2066, %v2267
      %v2338 = vadd.f32 %v2067, %v2272
      %v2339 = vadd.f32 %v2068, %v2275
      %v2340 = vadd.f32 %v2069, %v2280
      %v2341 = vadd.f32 %v2070, %v2283
      %v2342 = vadd.f32 %v2071, %v2288
      %v2343 = vadd.f32 %v2072, %v2291
      %v2344 = vadd.f32 %v2073, %v2296
      %v2345 = vadd.f32 %v2074, %v2299
      %v2346 = vadd.f32 %v2075, %v2304
      %v2347 = vadd.f32 %v2076, %v2307
      %v2348 = vadd.f32 %v2077, %v2312
      %v2349 = vadd.f32 %v2078, %v2315
      %v2352 = vrot.slane %v802, 1
      %v2353 = vrot.slane %v803, 1
      %v2354 = vsel %vm1498, %v2352, %v2353
      %s2356 = scalar_lea.vmem %s4, 320
      %v2357 = vld [vmem:[%s2356] sm:$0xf]
      %v2358 = vld [vmem:[%s2356 + $0x4] sm:$0xf]
      %v2359 = vld [vmem:[%s2356 + $0x8] sm:$0xf]
      %v2360 = vld [vmem:[%s2356 + $0xc] sm:$0xf]
      %v2361 = vld [vmem:[%s2356 + $0x10] sm:$0xf]
      %v2362 = vld [vmem:[%s2356 + $0x14] sm:$0xf]
      %v2363 = vld [vmem:[%s2356 + $0x18] sm:$0xf]
      %v2364 = vld [vmem:[%s2356 + $0x1c] sm:$0xf]
      %v2365 = vld [vmem:[%s2356 + $0x20] sm:$0xf]
      %v2366 = vld [vmem:[%s2356 + $0x24] sm:$0xf]
      %v2367 = vld [vmem:[%s2356 + $0x28] sm:$0xf]
      %v2368 = vld [vmem:[%s2356 + $0x2c] sm:$0xf]
      %v2369 = vld [vmem:[%s2356 + $0x30] sm:$0xf]
      %v2370 = vld [vmem:[%s2356 + $0x34] sm:$0xf]
      %v2371 = vld [vmem:[%s2356 + $0x38] sm:$0xf]
      %v2372 = vld [vmem:[%s2356 + $0x3c] sm:$0xf]
      %v2389 = vunpack.c.l.b16 %v2357
      %v2390 = vunpack.c.l.b16 %v2358
      %v2391 = vunpack.c.l.b16 %v2359
      %v2392 = vunpack.c.l.b16 %v2360
      %v2393 = vunpack.c.l.b16 %v2361
      %v2394 = vunpack.c.l.b16 %v2362
      %v2395 = vunpack.c.l.b16 %v2363
      %v2396 = vunpack.c.l.b16 %v2364
      %v2397 = vunpack.c.l.b16 %v2365
      %v2398 = vunpack.c.l.b16 %v2366
      %v2399 = vunpack.c.l.b16 %v2367
      %v2400 = vunpack.c.l.b16 %v2368
      %v2401 = vunpack.c.l.b16 %v2369
      %v2402 = vunpack.c.l.b16 %v2370
      %v2403 = vunpack.c.l.b16 %v2371
      %v2404 = vunpack.c.l.b16 %v2372
      %v2405 = vpack.c.b16 %v2390, %v2389
      %v2406 = vpack.c.b16 %v2392, %v2391
      %v2407 = vpack.c.b16 %v2394, %v2393
      %v2408 = vpack.c.b16 %v2396, %v2395
      %v2409 = vpack.c.b16 %v2398, %v2397
      %v2410 = vpack.c.b16 %v2400, %v2399
      %v2411 = vpack.c.b16 %v2402, %v2401
      %v2412 = vpack.c.b16 %v2404, %v2403
      %2421 = vmatprep.subr.bf16.mxu0 0
      %2422 = vmatpush1.bf16.msra.mxu0 %v2405
      %2423 = vmatprep.subr.bf16.mxu0 0
      %2424 = vmatpush1.bf16.msra.mxu0 %v2406
      %2425 = vmatprep.subr.bf16.mxu0 0
      %2426 = vmatpush1.bf16.msra.mxu0 %v2407
      %2427 = vmatprep.subr.bf16.mxu0 0
      %2428 = vmatpush1.bf16.msra.mxu0 %v2408
      %2429 = vmatprep.subr.bf16.mxu0 0
      %2430 = vmatpush1.bf16.msra.mxu0 %v2409
      %2431 = vmatprep.subr.bf16.mxu0 0
      %2432 = vmatpush1.bf16.msra.mxu0 %v2410
      %2433 = vmatprep.subr.bf16.mxu0 0
      %2434 = vmatpush1.bf16.msra.mxu0 %v2411
      %2435 = vmatprep.subr.bf16.mxu0 0
      %2436 = vmatpush1.bf16.msra.mxu0 %v2412
      %2437 = vmatprep.subr.bf16.mxu0 0
      %2438 = vmatpush1.bf16.msra.mxu0 0
      %2439 = vmatprep.subr.bf16.mxu0 0
      %2440 = vmatpush1.bf16.msra.mxu0 0
      %2441 = vmatprep.subr.bf16.mxu0 0
      %2442 = vmatpush1.bf16.msra.mxu0 0
      %2443 = vmatprep.subr.bf16.mxu0 0
      %2444 = vmatpush1.bf16.msra.mxu0 0
      %2445 = vmatprep.subr.bf16.mxu0 0
      %2446 = vmatpush1.bf16.msra.mxu0 0
      %2447 = vmatprep.subr.bf16.mxu0 0
      %2448 = vmatpush1.bf16.msra.mxu0 0
      %2449 = vmatprep.subr.bf16.mxu0 0
      %2450 = vmatpush1.bf16.msra.mxu0 0
      %2451 = vmatprep.subr.bf16.mxu0 0
      %2452 = vmatpush1.bf16.msra.mxu0 0
      %2453 = vmatprep.mubr.bf16.mxu0 0
      %2454 = vmatmul.mubr.bf16.gmra.mrb[0].mxu0 %v1504
      %v2455 = vpop.f32.mrb[0].mxu0
      %v2456 = vadd.f32 0.0, %v2455
      %v2457 = vpop.f32.mrb[0].mxu0
      %v2458 = vpop.f32.mrb[0].mxu0
      %v2459 = vadd.f32 0.0, %v2458
      %v2460 = vpop.f32.mrb[0].mxu0
      %2461 = vmatprep.mubr.bf16.mxu0 0
      %2462 = vmatmul.mubr.bf16.gmra.mrb[0].mxu0 %v1507
      %v2463 = vpop.f32.mrb[0].mxu0
      %v2464 = vadd.f32 0.0, %v2463
      %v2465 = vpop.f32.mrb[0].mxu0
      %v2466 = vpop.f32.mrb[0].mxu0
      %v2467 = vadd.f32 0.0, %v2466
      %v2468 = vpop.f32.mrb[0].mxu0
      %2469 = vmatprep.mubr.bf16.mxu0 0
      %2470 = vmatmul.mubr.bf16.gmra.mrb[0].mxu0 %v1510
      %v2471 = vpop.f32.mrb[0].mxu0
      %v2472 = vadd.f32 0.0, %v2471
      %v2473 = vpop.f32.mrb[0].mxu0
      %v2474 = vpop.f32.mrb[0].mxu0
      %v2475 = vadd.f32 0.0, %v2474
      %v2476 = vpop.f32.mrb[0].mxu0
      %2477 = vmatprep.mubr.bf16.mxu0 0
      %2478 = vmatmul.mubr.bf16.gmra.mrb[0].mxu0 %v1513
      %v2479 = vpop.f32.mrb[0].mxu0
      %v2480 = vadd.f32 0.0, %v2479
      %v2481 = vpop.f32.mrb[0].mxu0
      %v2482 = vpop.f32.mrb[0].mxu0
      %v2483 = vadd.f32 0.0, %v2482
      %v2484 = vpop.f32.mrb[0].mxu0
      %2485 = vmatprep.mubr.bf16.mxu0 0
      %2486 = vmatmul.mubr.bf16.gmra.mrb[0].mxu0 %v1516
      %v2487 = vpop.f32.mrb[0].mxu0
      %v2488 = vadd.f32 0.0, %v2487
      %v2489 = vpop.f32.mrb[0].mxu0
      %v2490 = vpop.f32.mrb[0].mxu0
      %v2491 = vadd.f32 0.0, %v2490
      %v2492 = vpop.f32.mrb[0].mxu0
      %2493 = vmatprep.mubr.bf16.mxu0 0
      %2494 = vmatmul.mubr.bf16.gmra.mrb[0].mxu0 %v1519
      %v2495 = vpop.f32.mrb[0].mxu0
      %v2496 = vadd.f32 0.0, %v2495
      %v2497 = vpop.f32.mrb[0].mxu0
      %v2498 = vpop.f32.mrb[0].mxu0
      %v2499 = vadd.f32 0.0, %v2498
      %v2500 = vpop.f32.mrb[0].mxu0
      %2501 = vmatprep.mubr.bf16.mxu0 0
      %2502 = vmatmul.mubr.bf16.gmra.mrb[0].mxu0 %v1522
      %v2503 = vpop.f32.mrb[0].mxu0
      %v2504 = vadd.f32 0.0, %v2503
      %v2505 = vpop.f32.mrb[0].mxu0
      %v2506 = vpop.f32.mrb[0].mxu0
      %v2507 = vadd.f32 0.0, %v2506
      %v2508 = vpop.f32.mrb[0].mxu0
      %2509 = vmatprep.mubr.bf16.mxu0 0
      %2510 = vmatmul.mubr.bf16.gmra.mrb[0].mxu0 %v1525
      %v2511 = vpop.f32.mrb[0].mxu0
      %v2512 = vadd.f32 0.0, %v2511
      %v2513 = vpop.f32.mrb[0].mxu0
      %v2514 = vpop.f32.mrb[0].mxu0
      %v2515 = vadd.f32 0.0, %v2514
      %v2516 = vpop.f32.mrb[0].mxu0
      %2517 = vmatprep.mubr.bf16.mxu0 0
      %2518 = vmatmul.mubr.bf16.gmra.mrb[0].mxu0 %v1528
      %v2519 = vpop.f32.mrb[0].mxu0
      %v2520 = vadd.f32 0.0, %v2519
      %v2521 = vpop.f32.mrb[0].mxu0
      %v2522 = vpop.f32.mrb[0].mxu0
      %v2523 = vadd.f32 0.0, %v2522
      %v2524 = vpop.f32.mrb[0].mxu0
      %2525 = vmatprep.mubr.bf16.mxu0 0
      %2526 = vmatmul.mubr.bf16.gmra.mrb[0].mxu0 %v1531
      %v2527 = vpop.f32.mrb[0].mxu0
      %v2528 = vadd.f32 0.0, %v2527
      %v2529 = vpop.f32.mrb[0].mxu0
      %v2530 = vpop.f32.mrb[0].mxu0
      %v2531 = vadd.f32 0.0, %v2530
      %v2532 = vpop.f32.mrb[0].mxu0
      %2533 = vmatprep.mubr.bf16.mxu0 0
      %2534 = vmatmul.mubr.bf16.gmra.mrb[0].mxu0 %v1534
      %v2535 = vpop.f32.mrb[0].mxu0
      %v2536 = vadd.f32 0.0, %v2535
      %v2537 = vpop.f32.mrb[0].mxu0
      %v2538 = vpop.f32.mrb[0].mxu0
      %v2539 = vadd.f32 0.0, %v2538
      %v2540 = vpop.f32.mrb[0].mxu0
      %2541 = vmatprep.mubr.bf16.mxu0 0
      %2542 = vmatmul.mubr.bf16.gmra.mrb[0].mxu0 %v1537
      %v2543 = vpop.f32.mrb[0].mxu0
      %v2544 = vadd.f32 0.0, %v2543
      %v2545 = vpop.f32.mrb[0].mxu0
      %v2546 = vpop.f32.mrb[0].mxu0
      %v2547 = vadd.f32 0.0, %v2546
      %v2548 = vpop.f32.mrb[0].mxu0
      %2549 = vmatprep.mubr.bf16.mxu0 0
      %2550 = vmatmul.mubr.bf16.gmra.mrb[0].mxu0 %v1540
      %v2551 = vpop.f32.mrb[0].mxu0
      %v2552 = vadd.f32 0.0, %v2551
      %v2553 = vpop.f32.mrb[0].mxu0
      %v2554 = vpop.f32.mrb[0].mxu0
      %v2555 = vadd.f32 0.0, %v2554
      %v2556 = vpop.f32.mrb[0].mxu0
      %2557 = vmatprep.mubr.bf16.mxu0 0
      %2558 = vmatmul.mubr.bf16.gmra.mrb[0].mxu0 %v1543
      %v2559 = vpop.f32.mrb[0].mxu0
      %v2560 = vadd.f32 0.0, %v2559
      %v2561 = vpop.f32.mrb[0].mxu0
      %v2562 = vpop.f32.mrb[0].mxu0
      %v2563 = vadd.f32 0.0, %v2562
      %v2564 = vpop.f32.mrb[0].mxu0
      %2565 = vmatprep.mubr.bf16.mxu0 0
      %2566 = vmatmul.mubr.bf16.gmra.mrb[0].mxu0 %v1546
      %v2567 = vpop.f32.mrb[0].mxu0
      %v2568 = vadd.f32 0.0, %v2567
      %v2569 = vpop.f32.mrb[0].mxu0
      %v2570 = vpop.f32.mrb[0].mxu0
      %v2571 = vadd.f32 0.0, %v2570
      %v2572 = vpop.f32.mrb[0].mxu0
      %2573 = vmatprep.mubr.bf16.mxu0 0
      %2574 = vmatmul.mubr.bf16.gmra.mrb[0].mxu0 %v2354
      %v2575 = vpop.f32.mrb[0].mxu0
      %v2576 = vadd.f32 0.0, %v2575
      %v2577 = vpop.f32.mrb[0].mxu0
      %v2578 = vpop.f32.mrb[0].mxu0
      %v2579 = vadd.f32 0.0, %v2578
      %v2580 = vpop.f32.mrb[0].mxu0
      %2581 = vdwg.mxu0
      %v2582 = vadd.f32 %v2318, %v2456
      %v2583 = vadd.f32 %v2319, %v2459
      %v2584 = vadd.f32 %v2320, %v2464
      %v2585 = vadd.f32 %v2321, %v2467
      %v2586 = vadd.f32 %v2322, %v2472
      %v2587 = vadd.f32 %v2323, %v2475
      %v2588 = vadd.f32 %v2324, %v2480
      %v2589 = vadd.f32 %v2325, %v2483
      %v2590 = vadd.f32 %v2326, %v2488
      %v2591 = vadd.f32 %v2327, %v2491
      %v2592 = vadd.f32 %v2328, %v2496
      %v2593 = vadd.f32 %v2329, %v2499
      %v2594 = vadd.f32 %v2330, %v2504
      %v2595 = vadd.f32 %v2331, %v2507
      %v2596 = vadd.f32 %v2332, %v2512
      %v2597 = vadd.f32 %v2333, %v2515
      %v2598 = vadd.f32 %v2334, %v2520
      %v2599 = vadd.f32 %v2335, %v2523
      %v2600 = vadd.f32 %v2336, %v2528
      %v2601 = vadd.f32 %v2337, %v2531
      %v2602 = vadd.f32 %v2338, %v2536
      %v2603 = vadd.f32 %v2339, %v2539
      %v2604 = vadd.f32 %v2340, %v2544
      %v2605 = vadd.f32 %v2341, %v2547
      %v2606 = vadd.f32 %v2342, %v2552
      %v2607 = vadd.f32 %v2343, %v2555
      %v2608 = vadd.f32 %v2344, %v2560
      %v2609 = vadd.f32 %v2345, %v2563
      %v2610 = vadd.f32 %v2346, %v2568
      %v2611 = vadd.f32 %v2347, %v2571
      %v2612 = vadd.f32 %v2348, %v2576
      %v2613 = vadd.f32 %v2349, %v2579
      %s2614 = scalar_lea.vmem %s4, 384
      %v2615 = vld [vmem:[%s2614] sm:$0xf]
      %v2616 = vld [vmem:[%s2614 + $0x4] sm:$0xf]
      %v2617 = vld [vmem:[%s2614 + $0x8] sm:$0xf]
      %v2618 = vld [vmem:[%s2614 + $0xc] sm:$0xf]
      %v2619 = vld [vmem:[%s2614 + $0x10] sm:$0xf]
      %v2620 = vld [vmem:[%s2614 + $0x14] sm:$0xf]
      %v2621 = vld [vmem:[%s2614 + $0x18] sm:$0xf]
      %v2622 = vld [vmem:[%s2614 + $0x1c] sm:$0xf]
      %v2623 = vld [vmem:[%s2614 + $0x20] sm:$0xf]
      %v2624 = vld [vmem:[%s2614 + $0x24] sm:$0xf]
      %v2625 = vld [vmem:[%s2614 + $0x28] sm:$0xf]
      %v2626 = vld [vmem:[%s2614 + $0x2c] sm:$0xf]
      %v2627 = vld [vmem:[%s2614 + $0x30] sm:$0xf]
      %v2628 = vld [vmem:[%s2614 + $0x34] sm:$0xf]
      %v2629 = vld [vmem:[%s2614 + $0x38] sm:$0xf]
      %v2630 = vld [vmem:[%s2614 + $0x3c] sm:$0xf]
      %v2647 = vunpack.c.l.b16 %v2615
      %v2648 = vunpack.c.l.b16 %v2616
      %v2649 = vunpack.c.l.b16 %v2617
      %v2650 = vunpack.c.l.b16 %v2618
      %v2651 = vunpack.c.l.b16 %v2619
      %v2652 = vunpack.c.l.b16 %v2620
      %v2653 = vunpack.c.l.b16 %v2621
      %v2654 = vunpack.c.l.b16 %v2622
      %v2655 = vunpack.c.l.b16 %v2623
      %v2656 = vunpack.c.l.b16 %v2624
      %v2657 = vunpack.c.l.b16 %v2625
      %v2658 = vunpack.c.l.b16 %v2626
      %v2659 = vunpack.c.l.b16 %v2627
      %v2660 = vunpack.c.l.b16 %v2628
      %v2661 = vunpack.c.l.b16 %v2629
      %v2662 = vunpack.c.l.b16 %v2630
      %v2663 = vpack.c.b16 %v2648, %v2647
      %v2664 = vpack.c.b16 %v2650, %v2649
      %v2665 = vpack.c.b16 %v2652, %v2651
      %v2666 = vpack.c.b16 %v2654, %v2653
      %v2667 = vpack.c.b16 %v2656, %v2655
      %v2668 = vpack.c.b16 %v2658, %v2657
      %v2669 = vpack.c.b16 %v2660, %v2659
      %v2670 = vpack.c.b16 %v2662, %v2661
      %2679 = vmatprep.subr.bf16.mxu0 0
      %2680 = vmatpush1.bf16.msra.mxu0 %v2663
      %2681 = vmatprep.subr.bf16.mxu0 0
      %2682 = vmatpush1.bf16.msra.mxu0 %v2664
      %2683 = vmatprep.subr.bf16.mxu0 0
      %2684 = vmatpush1.bf16.msra.mxu0 %v2665
      %2685 = vmatprep.subr.bf16.mxu0 0
      %2686 = vmatpush1.bf16.msra.mxu0 %v2666
      %2687 = vmatprep.subr.bf16.mxu0 0
      %2688 = vmatpush1.bf16.msra.mxu0 %v2667
      %2689 = vmatprep.subr.bf16.mxu0 0
      %2690 = vmatpush1.bf16.msra.mxu0 %v2668
      %2691 = vmatprep.subr.bf16.mxu0 0
      %2692 = vmatpush1.bf16.msra.mxu0 %v2669
      %2693 = vmatprep.subr.bf16.mxu0 0
      %2694 = vmatpush1.bf16.msra.mxu0 %v2670
      %2695 = vmatprep.subr.bf16.mxu0 0
      %2696 = vmatpush1.bf16.msra.mxu0 0
      %2697 = vmatprep.subr.bf16.mxu0 0
      %2698 = vmatpush1.bf16.msra.mxu0 0
      %2699 = vmatprep.subr.bf16.mxu0 0
      %2700 = vmatpush1.bf16.msra.mxu0 0
      %2701 = vmatprep.subr.bf16.mxu0 0
      %2702 = vmatpush1.bf16.msra.mxu0 0
      %2703 = vmatprep.subr.bf16.mxu0 0
      %2704 = vmatpush1.bf16.msra.mxu0 0
      %2705 = vmatprep.subr.bf16.mxu0 0
      %2706 = vmatpush1.bf16.msra.mxu0 0
      %2707 = vmatprep.subr.bf16.mxu0 0
      %2708 = vmatpush1.bf16.msra.mxu0 0
      %2709 = vmatprep.subr.bf16.mxu0 0
      %2710 = vmatpush1.bf16.msra.mxu0 0
      %2711 = vmatprep.mubr.bf16.mxu0 0
      %2712 = vmatmul.mubr.bf16.gmra.mrb[0].mxu0 %v774
      %v2713 = vpop.f32.mrb[0].mxu0
      %v2714 = vadd.f32 0.0, %v2713
      %v2715 = vpop.f32.mrb[0].mxu0
      %v2716 = vpop.f32.mrb[0].mxu0
      %v2717 = vadd.f32 0.0, %v2716
      %v2718 = vpop.f32.mrb[0].mxu0
      %2719 = vmatprep.mubr.bf16.mxu0 0
      %2720 = vmatmul.mubr.bf16.gmra.mrb[0].mxu0 %v776
      %v2721 = vpop.f32.mrb[0].mxu0
      %v2722 = vadd.f32 0.0, %v2721
      %v2723 = vpop.f32.mrb[0].mxu0
      %v2724 = vpop.f32.mrb[0].mxu0
      %v2725 = vadd.f32 0.0, %v2724
      %v2726 = vpop.f32.mrb[0].mxu0
      %2727 = vmatprep.mubr.bf16.mxu0 0
      %2728 = vmatmul.mubr.bf16.gmra.mrb[0].mxu0 %v778
      %v2729 = vpop.f32.mrb[0].mxu0
      %v2730 = vadd.f32 0.0, %v2729
      %v2731 = vpop.f32.mrb[0].mxu0
      %v2732 = vpop.f32.mrb[0].mxu0
      %v2733 = vadd.f32 0.0, %v2732
      %v2734 = vpop.f32.mrb[0].mxu0
      %2735 = vmatprep.mubr.bf16.mxu0 0
      %2736 = vmatmul.mubr.bf16.gmra.mrb[0].mxu0 %v780
      %v2737 = vpop.f32.mrb[0].mxu0
      %v2738 = vadd.f32 0.0, %v2737
      %v2739 = vpop.f32.mrb[0].mxu0
      %v2740 = vpop.f32.mrb[0].mxu0
      %v2741 = vadd.f32 0.0, %v2740
      %v2742 = vpop.f32.mrb[0].mxu0
      %2743 = vmatprep.mubr.bf16.mxu0 0
      %2744 = vmatmul.mubr.bf16.gmra.mrb[0].mxu0 %v782
      %v2745 = vpop.f32.mrb[0].mxu0
      %v2746 = vadd.f32 0.0, %v2745
      %v2747 = vpop.f32.mrb[0].mxu0
      %v2748 = vpop.f32.mrb[0].mxu0
      %v2749 = vadd.f32 0.0, %v2748
      %v2750 = vpop.f32.mrb[0].mxu0
      %2751 = vmatprep.mubr.bf16.mxu0 0
      %2752 = vmatmul.mubr.bf16.gmra.mrb[0].mxu0 %v784
      %v2753 = vpop.f32.mrb[0].mxu0
      %v2754 = vadd.f32 0.0, %v2753
      %v2755 = vpop.f32.mrb[0].mxu0
      %v2756 = vpop.f32.mrb[0].mxu0
      %v2757 = vadd.f32 0.0, %v2756
      %v2758 = vpop.f32.mrb[0].mxu0
      %2759 = vmatprep.mubr.bf16.mxu0 0
      %2760 = vmatmul.mubr.bf16.gmra.mrb[0].mxu0 %v786
      %v2761 = vpop.f32.mrb[0].mxu0
      %v2762 = vadd.f32 0.0, %v2761
      %v2763 = vpop.f32.mrb[0].mxu0
      %v2764 = vpop.f32.mrb[0].mxu0
      %v2765 = vadd.f32 0.0, %v2764
      %v2766 = vpop.f32.mrb[0].mxu0
      %2767 = vmatprep.mubr.bf16.mxu0 0
      %2768 = vmatmul.mubr.bf16.gmra.mrb[0].mxu0 %v788
      %v2769 = vpop.f32.mrb[0].mxu0
      %v2770 = vadd.f32 0.0, %v2769
      %v2771 = vpop.f32.mrb[0].mxu0
      %v2772 = vpop.f32.mrb[0].mxu0
      %v2773 = vadd.f32 0.0, %v2772
      %v2774 = vpop.f32.mrb[0].mxu0
      %2775 = vmatprep.mubr.bf16.mxu0 0
      %2776 = vmatmul.mubr.bf16.gmra.mrb[0].mxu0 %v790
      %v2777 = vpop.f32.mrb[0].mxu0
      %v2778 = vadd.f32 0.0, %v2777
      %v2779 = vpop.f32.mrb[0].mxu0
      %v2780 = vpop.f32.mrb[0].mxu0
      %v2781 = vadd.f32 0.0, %v2780
      %v2782 = vpop.f32.mrb[0].mxu0
      %2783 = vmatprep.mubr.bf16.mxu0 0
      %2784 = vmatmul.mubr.bf16.gmra.mrb[0].mxu0 %v792
      %v2785 = vpop.f32.mrb[0].mxu0
      %v2786 = vadd.f32 0.0, %v2785
      %v2787 = vpop.f32.mrb[0].mxu0
      %v2788 = vpop.f32.mrb[0].mxu0
      %v2789 = vadd.f32 0.0, %v2788
      %v2790 = vpop.f32.mrb[0].mxu0
      %2791 = vmatprep.mubr.bf16.mxu0 0
      %2792 = vmatmul.mubr.bf16.gmra.mrb[0].mxu0 %v794
      %v2793 = vpop.f32.mrb[0].mxu0
      %v2794 = vadd.f32 0.0, %v2793
      %v2795 = vpop.f32.mrb[0].mxu0
      %v2796 = vpop.f32.mrb[0].mxu0
      %v2797 = vadd.f32 0.0, %v2796
      %v2798 = vpop.f32.mrb[0].mxu0
      %2799 = vmatprep.mubr.bf16.mxu0 0
      %2800 = vmatmul.mubr.bf16.gmra.mrb[0].mxu0 %v796
      %v2801 = vpop.f32.mrb[0].mxu0
      %v2802 = vadd.f32 0.0, %v2801
      %v2803 = vpop.f32.mrb[0].mxu0
      %v2804 = vpop.f32.mrb[0].mxu0
      %v2805 = vadd.f32 0.0, %v2804
      %v2806 = vpop.f32.mrb[0].mxu0
      %2807 = vmatprep.mubr.bf16.mxu0 0
      %2808 = vmatmul.mubr.bf16.gmra.mrb[0].mxu0 %v798
      %v2809 = vpop.f32.mrb[0].mxu0
      %v2810 = vadd.f32 0.0, %v2809
      %v2811 = vpop.f32.mrb[0].mxu0
      %v2812 = vpop.f32.mrb[0].mxu0
      %v2813 = vadd.f32 0.0, %v2812
      %v2814 = vpop.f32.mrb[0].mxu0
      %2815 = vmatprep.mubr.bf16.mxu0 0
      %2816 = vmatmul.mubr.bf16.gmra.mrb[0].mxu0 %v800
      %v2817 = vpop.f32.mrb[0].mxu0
      %v2818 = vadd.f32 0.0, %v2817
      %v2819 = vpop.f32.mrb[0].mxu0
      %v2820 = vpop.f32.mrb[0].mxu0
      %v2821 = vadd.f32 0.0, %v2820
      %v2822 = vpop.f32.mrb[0].mxu0
      %2823 = vmatprep.mubr.bf16.mxu0 0
      %2824 = vmatmul.mubr.bf16.gmra.mrb[0].mxu0 %v802
      %v2825 = vpop.f32.mrb[0].mxu0
      %v2826 = vadd.f32 0.0, %v2825
      %v2827 = vpop.f32.mrb[0].mxu0
      %v2828 = vpop.f32.mrb[0].mxu0
      %v2829 = vadd.f32 0.0, %v2828
      %v2830 = vpop.f32.mrb[0].mxu0
      %2831 = vmatprep.mubr.bf16.mxu0 0
      %2832 = vmatmul.mubr.bf16.gmra.mrb[0].mxu0 %v804
      %v2833 = vpop.f32.mrb[0].mxu0
      %v2834 = vadd.f32 0.0, %v2833
      %v2835 = vpop.f32.mrb[0].mxu0
      %v2836 = vpop.f32.mrb[0].mxu0
      %v2837 = vadd.f32 0.0, %v2836
      %v2838 = vpop.f32.mrb[0].mxu0
      %2839 = vdwg.mxu0
      %v2840 = vadd.f32 %v2582, %v2714
      %v2841 = vadd.f32 %v2583, %v2717
      %v2842 = vadd.f32 %v2584, %v2722
      %v2843 = vadd.f32 %v2585, %v2725
      %v2844 = vadd.f32 %v2586, %v2730
      %v2845 = vadd.f32 %v2587, %v2733
      %v2846 = vadd.f32 %v2588, %v2738
      %v2847 = vadd.f32 %v2589, %v2741
      %v2848 = vadd.f32 %v2590, %v2746
      %v2849 = vadd.f32 %v2591, %v2749
      %v2850 = vadd.f32 %v2592, %v2754
      %v2851 = vadd.f32 %v2593, %v2757
      %v2852 = vadd.f32 %v2594, %v2762
      %v2853 = vadd.f32 %v2595, %v2765
      %v2854 = vadd.f32 %v2596, %v2770
      %v2855 = vadd.f32 %v2597, %v2773
      %v2856 = vadd.f32 %v2598, %v2778
      %v2857 = vadd.f32 %v2599, %v2781
      %v2858 = vadd.f32 %v2600, %v2786
      %v2859 = vadd.f32 %v2601, %v2789
      %v2860 = vadd.f32 %v2602, %v2794
      %v2861 = vadd.f32 %v2603, %v2797
      %v2862 = vadd.f32 %v2604, %v2802
      %v2863 = vadd.f32 %v2605, %v2805
      %v2864 = vadd.f32 %v2606, %v2810
      %v2865 = vadd.f32 %v2607, %v2813
      %v2866 = vadd.f32 %v2608, %v2818
      %v2867 = vadd.f32 %v2609, %v2821
      %v2868 = vadd.f32 %v2610, %v2826
      %v2869 = vadd.f32 %v2611, %v2829
      %v2870 = vadd.f32 %v2612, %v2834
      %v2871 = vadd.f32 %v2613, %v2837
      %v2873 = vshrl.u32 %v804, 16
      %v2875 = vshll.u32 %v804, 16
      %v2877 = vrot.slane %v2875, 1
      %v2878 = vor.u32 %v2873, %v2877
      %v2880 = vshll.u32 %v805, 16
      %v2882 = vrot.slane %v2880, 1
      %v2883 = vsel %vm822, %v2878, %v2882
      %s2885 = scalar_lea.vmem %s4, 448
      %v2886 = vld [vmem:[%s2885] sm:$0xf]
      %v2887 = vld [vmem:[%s2885 + $0x4] sm:$0xf]
      %v2888 = vld [vmem:[%s2885 + $0x8] sm:$0xf]
      %v2889 = vld [vmem:[%s2885 + $0xc] sm:$0xf]
      %v2890 = vld [vmem:[%s2885 + $0x10] sm:$0xf]
      %v2891 = vld [vmem:[%s2885 + $0x14] sm:$0xf]
      %v2892 = vld [vmem:[%s2885 + $0x18] sm:$0xf]
      %v2893 = vld [vmem:[%s2885 + $0x1c] sm:$0xf]
      %v2894 = vld [vmem:[%s2885 + $0x20] sm:$0xf]
      %v2895 = vld [vmem:[%s2885 + $0x24] sm:$0xf]
      %v2896 = vld [vmem:[%s2885 + $0x28] sm:$0xf]
      %v2897 = vld [vmem:[%s2885 + $0x2c] sm:$0xf]
      %v2898 = vld [vmem:[%s2885 + $0x30] sm:$0xf]
      %v2899 = vld [vmem:[%s2885 + $0x34] sm:$0xf]
      %v2900 = vld [vmem:[%s2885 + $0x38] sm:$0xf]
      %v2901 = vld [vmem:[%s2885 + $0x3c] sm:$0xf]
      %v2918 = vunpack.c.l.b16 %v2886
      %v2919 = vunpack.c.l.b16 %v2887
      %v2920 = vunpack.c.l.b16 %v2888
      %v2921 = vunpack.c.l.b16 %v2889
      %v2922 = vunpack.c.l.b16 %v2890
      %v2923 = vunpack.c.l.b16 %v2891
      %v2924 = vunpack.c.l.b16 %v2892
      %v2925 = vunpack.c.l.b16 %v2893
      %v2926 = vunpack.c.l.b16 %v2894
      %v2927 = vunpack.c.l.b16 %v2895
      %v2928 = vunpack.c.l.b16 %v2896
      %v2929 = vunpack.c.l.b16 %v2897
      %v2930 = vunpack.c.l.b16 %v2898
      %v2931 = vunpack.c.l.b16 %v2899
      %v2932 = vunpack.c.l.b16 %v2900
      %v2933 = vunpack.c.l.b16 %v2901
      %v2934 = vpack.c.b16 %v2919, %v2918
      %v2935 = vpack.c.b16 %v2921, %v2920
      %v2936 = vpack.c.b16 %v2923, %v2922
      %v2937 = vpack.c.b16 %v2925, %v2924
      %v2938 = vpack.c.b16 %v2927, %v2926
      %v2939 = vpack.c.b16 %v2929, %v2928
      %v2940 = vpack.c.b16 %v2931, %v2930
      %v2941 = vpack.c.b16 %v2933, %v2932
      %2950 = vmatprep.subr.bf16.mxu0 0
      %2951 = vmatpush1.bf16.msra.mxu0 %v2934
      %2952 = vmatprep.subr.bf16.mxu0 0
      %2953 = vmatpush1.bf16.msra.mxu0 %v2935
      %2954 = vmatprep.subr.bf16.mxu0 0
      %2955 = vmatpush1.bf16.msra.mxu0 %v2936
      %2956 = vmatprep.subr.bf16.mxu0 0
      %2957 = vmatpush1.bf16.msra.mxu0 %v2937
      %2958 = vmatprep.subr.bf16.mxu0 0
      %2959 = vmatpush1.bf16.msra.mxu0 %v2938
      %2960 = vmatprep.subr.bf16.mxu0 0
      %2961 = vmatpush1.bf16.msra.mxu0 %v2939
      %2962 = vmatprep.subr.bf16.mxu0 0
      %2963 = vmatpush1.bf16.msra.mxu0 %v2940
      %2964 = vmatprep.subr.bf16.mxu0 0
      %2965 = vmatpush1.bf16.msra.mxu0 %v2941
      %2966 = vmatprep.subr.bf16.mxu0 0
      %2967 = vmatpush1.bf16.msra.mxu0 0
      %2968 = vmatprep.subr.bf16.mxu0 0
      %2969 = vmatpush1.bf16.msra.mxu0 0
      %2970 = vmatprep.subr.bf16.mxu0 0
      %2971 = vmatpush1.bf16.msra.mxu0 0
      %2972 = vmatprep.subr.bf16.mxu0 0
      %2973 = vmatpush1.bf16.msra.mxu0 0
      %2974 = vmatprep.subr.bf16.mxu0 0
      %2975 = vmatpush1.bf16.msra.mxu0 0
      %2976 = vmatprep.subr.bf16.mxu0 0
      %2977 = vmatpush1.bf16.msra.mxu0 0
      %2978 = vmatprep.subr.bf16.mxu0 0
      %2979 = vmatpush1.bf16.msra.mxu0 0
      %2980 = vmatprep.subr.bf16.mxu0 0
      %2981 = vmatpush1.bf16.msra.mxu0 0
      %2982 = vmatprep.mubr.bf16.mxu0 0
      %2983 = vmatmul.mubr.bf16.gmra.mrb[0].mxu0 %v858
      %v2984 = vpop.f32.mrb[0].mxu0
      %v2985 = vadd.f32 0.0, %v2984
      %v2986 = vpop.f32.mrb[0].mxu0
      %v2987 = vpop.f32.mrb[0].mxu0
      %v2988 = vadd.f32 0.0, %v2987
      %v2989 = vpop.f32.mrb[0].mxu0
      %2990 = vmatprep.mubr.bf16.mxu0 0
      %2991 = vmatmul.mubr.bf16.gmra.mrb[0].mxu0 %v870
      %v2992 = vpop.f32.mrb[0].mxu0
      %v2993 = vadd.f32 0.0, %v2992
      %v2994 = vpop.f32.mrb[0].mxu0
      %v2995 = vpop.f32.mrb[0].mxu0
      %v2996 = vadd.f32 0.0, %v2995
      %v2997 = vpop.f32.mrb[0].mxu0
      %2998 = vmatprep.mubr.bf16.mxu0 0
      %2999 = vmatmul.mubr.bf16.gmra.mrb[0].mxu0 %v882
      %v3000 = vpop.f32.mrb[0].mxu0
      %v3001 = vadd.f32 0.0, %v3000
      %v3002 = vpop.f32.mrb[0].mxu0
      %v3003 = vpop.f32.mrb[0].mxu0
      %v3004 = vadd.f32 0.0, %v3003
      %v3005 = vpop.f32.mrb[0].mxu0
      %3006 = vmatprep.mubr.bf16.mxu0 0
      %3007 = vmatmul.mubr.bf16.gmra.mrb[0].mxu0 %v894
      %v3008 = vpop.f32.mrb[0].mxu0
      %v3009 = vadd.f32 0.0, %v3008
      %v3010 = vpop.f32.mrb[0].mxu0
      %v3011 = vpop.f32.mrb[0].mxu0
      %v3012 = vadd.f32 0.0, %v3011
      %v3013 = vpop.f32.mrb[0].mxu0
      %3014 = vmatprep.mubr.bf16.mxu0 0
      %3015 = vmatmul.mubr.bf16.gmra.mrb[0].mxu0 %v906
      %v3016 = vpop.f32.mrb[0].mxu0
      %v3017 = vadd.f32 0.0, %v3016
      %v3018 = vpop.f32.mrb[0].mxu0
      %v3019 = vpop.f32.mrb[0].mxu0
      %v3020 = vadd.f32 0.0, %v3019
      %v3021 = vpop.f32.mrb[0].mxu0
      %3022 = vmatprep.mubr.bf16.mxu0 0
      %3023 = vmatmul.mubr.bf16.gmra.mrb[0].mxu0 %v918
      %v3024 = vpop.f32.mrb[0].mxu0
      %v3025 = vadd.f32 0.0, %v3024
      %v3026 = vpop.f32.mrb[0].mxu0
      %v3027 = vpop.f32.mrb[0].mxu0
      %v3028 = vadd.f32 0.0, %v3027
      %v3029 = vpop.f32.mrb[0].mxu0
      %3030 = vmatprep.mubr.bf16.mxu0 0
      %3031 = vmatmul.mubr.bf16.gmra.mrb[0].mxu0 %v930
      %v3032 = vpop.f32.mrb[0].mxu0
      %v3033 = vadd.f32 0.0, %v3032
      %v3034 = vpop.f32.mrb[0].mxu0
      %v3035 = vpop.f32.mrb[0].mxu0
      %v3036 = vadd.f32 0.0, %v3035
      %v3037 = vpop.f32.mrb[0].mxu0
      %3038 = vmatprep.mubr.bf16.mxu0 0
      %3039 = vmatmul.mubr.bf16.gmra.mrb[0].mxu0 %v942
      %v3040 = vpop.f32.mrb[0].mxu0
      %v3041 = vadd.f32 0.0, %v3040
      %v3042 = vpop.f32.mrb[0].mxu0
      %v3043 = vpop.f32.mrb[0].mxu0
      %v3044 = vadd.f32 0.0, %v3043
      %v3045 = vpop.f32.mrb[0].mxu0
      %3046 = vmatprep.mubr.bf16.mxu0 0
      %3047 = vmatmul.mubr.bf16.gmra.mrb[0].mxu0 %v954
      %v3048 = vpop.f32.mrb[0].mxu0
      %v3049 = vadd.f32 0.0, %v3048
      %v3050 = vpop.f32.mrb[0].mxu0
      %v3051 = vpop.f32.mrb[0].mxu0
      %v3052 = vadd.f32 0.0, %v3051
      %v3053 = vpop.f32.mrb[0].mxu0
      %3054 = vmatprep.mubr.bf16.mxu0 0
      %3055 = vmatmul.mubr.bf16.gmra.mrb[0].mxu0 %v966
      %v3056 = vpop.f32.mrb[0].mxu0
      %v3057 = vadd.f32 0.0, %v3056
      %v3058 = vpop.f32.mrb[0].mxu0
      %v3059 = vpop.f32.mrb[0].mxu0
      %v3060 = vadd.f32 0.0, %v3059
      %v3061 = vpop.f32.mrb[0].mxu0
      %3062 = vmatprep.mubr.bf16.mxu0 0
      %3063 = vmatmul.mubr.bf16.gmra.mrb[0].mxu0 %v978
      %v3064 = vpop.f32.mrb[0].mxu0
      %v3065 = vadd.f32 0.0, %v3064
      %v3066 = vpop.f32.mrb[0].mxu0
      %v3067 = vpop.f32.mrb[0].mxu0
      %v3068 = vadd.f32 0.0, %v3067
      %v3069 = vpop.f32.mrb[0].mxu0
      %3070 = vmatprep.mubr.bf16.mxu0 0
      %3071 = vmatmul.mubr.bf16.gmra.mrb[0].mxu0 %v990
      %v3072 = vpop.f32.mrb[0].mxu0
      %v3073 = vadd.f32 0.0, %v3072
      %v3074 = vpop.f32.mrb[0].mxu0
      %v3075 = vpop.f32.mrb[0].mxu0
      %v3076 = vadd.f32 0.0, %v3075
      %v3077 = vpop.f32.mrb[0].mxu0
      %3078 = vmatprep.mubr.bf16.mxu0 0
      %3079 = vmatmul.mubr.bf16.gmra.mrb[0].mxu0 %v1002
      %v3080 = vpop.f32.mrb[0].mxu0
      %v3081 = vadd.f32 0.0, %v3080
      %v3082 = vpop.f32.mrb[0].mxu0
      %v3083 = vpop.f32.mrb[0].mxu0
      %v3084 = vadd.f32 0.0, %v3083
      %v3085 = vpop.f32.mrb[0].mxu0
      %3086 = vmatprep.mubr.bf16.mxu0 0
      %3087 = vmatmul.mubr.bf16.gmra.mrb[0].mxu0 %v1014
      %v3088 = vpop.f32.mrb[0].mxu0
      %v3089 = vadd.f32 0.0, %v3088
      %v3090 = vpop.f32.mrb[0].mxu0
      %v3091 = vpop.f32.mrb[0].mxu0
      %v3092 = vadd.f32 0.0, %v3091
      %v3093 = vpop.f32.mrb[0].mxu0
      %3094 = vmatprep.mubr.bf16.mxu0 0
      %3095 = vmatmul.mubr.bf16.gmra.mrb[0].mxu0 %v2090
      %v3096 = vpop.f32.mrb[0].mxu0
      %v3097 = vadd.f32 0.0, %v3096
      %v3098 = vpop.f32.mrb[0].mxu0
      %v3099 = vpop.f32.mrb[0].mxu0
      %v3100 = vadd.f32 0.0, %v3099
      %v3101 = vpop.f32.mrb[0].mxu0
      %3102 = vmatprep.mubr.bf16.mxu0 0
      %3103 = vmatmul.mubr.bf16.gmra.mrb[0].mxu0 %v2883
      %v3104 = vpop.f32.mrb[0].mxu0
      %v3105 = vadd.f32 0.0, %v3104
      %v3106 = vpop.f32.mrb[0].mxu0
      %v3107 = vpop.f32.mrb[0].mxu0
      %v3108 = vadd.f32 0.0, %v3107
      %v3109 = vpop.f32.mrb[0].mxu0
      %3110 = vdwg.mxu0
      %v3111 = vadd.f32 %v2840, %v2985
      %v3112 = vadd.f32 %v2841, %v2988
      %v3113 = vadd.f32 %v2842, %v2993
      %v3114 = vadd.f32 %v2843, %v2996
      %v3115 = vadd.f32 %v2844, %v3001
      %v3116 = vadd.f32 %v2845, %v3004
      %v3117 = vadd.f32 %v2846, %v3009
      %v3118 = vadd.f32 %v2847, %v3012
      %v3119 = vadd.f32 %v2848, %v3017
      %v3120 = vadd.f32 %v2849, %v3020
      %v3121 = vadd.f32 %v2850, %v3025
      %v3122 = vadd.f32 %v2851, %v3028
      %v3123 = vadd.f32 %v2852, %v3033
      %v3124 = vadd.f32 %v2853, %v3036
      %v3125 = vadd.f32 %v2854, %v3041
      %v3126 = vadd.f32 %v2855, %v3044
      %v3127 = vadd.f32 %v2856, %v3049
      %v3128 = vadd.f32 %v2857, %v3052
      %v3129 = vadd.f32 %v2858, %v3057
      %v3130 = vadd.f32 %v2859, %v3060
      %v3131 = vadd.f32 %v2860, %v3065
      %v3132 = vadd.f32 %v2861, %v3068
      %v3133 = vadd.f32 %v2862, %v3073
      %v3134 = vadd.f32 %v2863, %v3076
      %v3135 = vadd.f32 %v2864, %v3081
      %v3136 = vadd.f32 %v2865, %v3084
      %v3137 = vadd.f32 %v2866, %v3089
      %v3138 = vadd.f32 %v2867, %v3092
      %v3139 = vadd.f32 %v2868, %v3097
      %v3140 = vadd.f32 %v2869, %v3100
      %v3141 = vadd.f32 %v2870, %v3105
      %v3142 = vadd.f32 %v2871, %v3108
      %v3145 = vrot.slane %v804, 1
      %v3146 = vrot.slane %v805, 1
      %v3147 = vsel %vm1498, %v3145, %v3146
      %s3149 = scalar_lea.vmem %s4, 512
      %v3150 = vld [vmem:[%s3149] sm:$0xf]
      %v3151 = vld [vmem:[%s3149 + $0x4] sm:$0xf]
      %v3152 = vld [vmem:[%s3149 + $0x8] sm:$0xf]
      %v3153 = vld [vmem:[%s3149 + $0xc] sm:$0xf]
      %v3154 = vld [vmem:[%s3149 + $0x10] sm:$0xf]
      %v3155 = vld [vmem:[%s3149 + $0x14] sm:$0xf]
      %v3156 = vld [vmem:[%s3149 + $0x18] sm:$0xf]
      %v3157 = vld [vmem:[%s3149 + $0x1c] sm:$0xf]
      %v3158 = vld [vmem:[%s3149 + $0x20] sm:$0xf]
      %v3159 = vld [vmem:[%s3149 + $0x24] sm:$0xf]
      %v3160 = vld [vmem:[%s3149 + $0x28] sm:$0xf]
      %v3161 = vld [vmem:[%s3149 + $0x2c] sm:$0xf]
      %v3162 = vld [vmem:[%s3149 + $0x30] sm:$0xf]
      %v3163 = vld [vmem:[%s3149 + $0x34] sm:$0xf]
      %v3164 = vld [vmem:[%s3149 + $0x38] sm:$0xf]
      %v3165 = vld [vmem:[%s3149 + $0x3c] sm:$0xf]
      %v3182 = vunpack.c.l.b16 %v3150
      %v3183 = vunpack.c.l.b16 %v3151
      %v3184 = vunpack.c.l.b16 %v3152
      %v3185 = vunpack.c.l.b16 %v3153
      %v3186 = vunpack.c.l.b16 %v3154
      %v3187 = vunpack.c.l.b16 %v3155
      %v3188 = vunpack.c.l.b16 %v3156
      %v3189 = vunpack.c.l.b16 %v3157
      %v3190 = vunpack.c.l.b16 %v3158
      %v3191 = vunpack.c.l.b16 %v3159
      %v3192 = vunpack.c.l.b16 %v3160
      %v3193 = vunpack.c.l.b16 %v3161
      %v3194 = vunpack.c.l.b16 %v3162
      %v3195 = vunpack.c.l.b16 %v3163
      %v3196 = vunpack.c.l.b16 %v3164
      %v3197 = vunpack.c.l.b16 %v3165
      %v3198 = vpack.c.b16 %v3183, %v3182
      %v3199 = vpack.c.b16 %v3185, %v3184
      %v3200 = vpack.c.b16 %v3187, %v3186
      %v3201 = vpack.c.b16 %v3189, %v3188
      %v3202 = vpack.c.b16 %v3191, %v3190
      %v3203 = vpack.c.b16 %v3193, %v3192
      %v3204 = vpack.c.b16 %v3195, %v3194
      %v3205 = vpack.c.b16 %v3197, %v3196
      %3214 = vmatprep.subr.bf16.mxu0 0
      %3215 = vmatpush1.bf16.msra.mxu0 %v3198
      %3216 = vmatprep.subr.bf16.mxu0 0
      %3217 = vmatpush1.bf16.msra.mxu0 %v3199
      %3218 = vmatprep.subr.bf16.mxu0 0
      %3219 = vmatpush1.bf16.msra.mxu0 %v3200
      %3220 = vmatprep.subr.bf16.mxu0 0
      %3221 = vmatpush1.bf16.msra.mxu0 %v3201
      %3222 = vmatprep.subr.bf16.mxu0 0
      %3223 = vmatpush1.bf16.msra.mxu0 %v3202
      %3224 = vmatprep.subr.bf16.mxu0 0
      %3225 = vmatpush1.bf16.msra.mxu0 %v3203
      %3226 = vmatprep.subr.bf16.mxu0 0
      %3227 = vmatpush1.bf16.msra.mxu0 %v3204
      %3228 = vmatprep.subr.bf16.mxu0 0
      %3229 = vmatpush1.bf16.msra.mxu0 %v3205
      %3230 = vmatprep.subr.bf16.mxu0 0
      %3231 = vmatpush1.bf16.msra.mxu0 0
      %3232 = vmatprep.subr.bf16.mxu0 0
      %3233 = vmatpush1.bf16.msra.mxu0 0
      %3234 = vmatprep.subr.bf16.mxu0 0
      %3235 = vmatpush1.bf16.msra.mxu0 0
      %3236 = vmatprep.subr.bf16.mxu0 0
      %3237 = vmatpush1.bf16.msra.mxu0 0
      %3238 = vmatprep.subr.bf16.mxu0 0
      %3239 = vmatpush1.bf16.msra.mxu0 0
      %3240 = vmatprep.subr.bf16.mxu0 0
      %3241 = vmatpush1.bf16.msra.mxu0 0
      %3242 = vmatprep.subr.bf16.mxu0 0
      %3243 = vmatpush1.bf16.msra.mxu0 0
      %3244 = vmatprep.subr.bf16.mxu0 0
      %3245 = vmatpush1.bf16.msra.mxu0 0
      %3246 = vmatprep.mubr.bf16.mxu0 0
      %3247 = vmatmul.mubr.bf16.gmra.mrb[0].mxu0 %v1507
      %v3248 = vpop.f32.mrb[0].mxu0
      %v3249 = vadd.f32 0.0, %v3248
      %v3250 = vpop.f32.mrb[0].mxu0
      %v3251 = vpop.f32.mrb[0].mxu0
      %v3252 = vadd.f32 0.0, %v3251
      %v3253 = vpop.f32.mrb[0].mxu0
      %3254 = vmatprep.mubr.bf16.mxu0 0
      %3255 = vmatmul.mubr.bf16.gmra.mrb[0].mxu0 %v1510
      %v3256 = vpop.f32.mrb[0].mxu0
      %v3257 = vadd.f32 0.0, %v3256
      %v3258 = vpop.f32.mrb[0].mxu0
      %v3259 = vpop.f32.mrb[0].mxu0
      %v3260 = vadd.f32 0.0, %v3259
      %v3261 = vpop.f32.mrb[0].mxu0
      %3262 = vmatprep.mubr.bf16.mxu0 0
      %3263 = vmatmul.mubr.bf16.gmra.mrb[0].mxu0 %v1513
      %v3264 = vpop.f32.mrb[0].mxu0
      %v3265 = vadd.f32 0.0, %v3264
      %v3266 = vpop.f32.mrb[0].mxu0
      %v3267 = vpop.f32.mrb[0].mxu0
      %v3268 = vadd.f32 0.0, %v3267
      %v3269 = vpop.f32.mrb[0].mxu0
      %3270 = vmatprep.mubr.bf16.mxu0 0
      %3271 = vmatmul.mubr.bf16.gmra.mrb[0].mxu0 %v1516
      %v3272 = vpop.f32.mrb[0].mxu0
      %v3273 = vadd.f32 0.0, %v3272
      %v3274 = vpop.f32.mrb[0].mxu0
      %v3275 = vpop.f32.mrb[0].mxu0
      %v3276 = vadd.f32 0.0, %v3275
      %v3277 = vpop.f32.mrb[0].mxu0
      %3278 = vmatprep.mubr.bf16.mxu0 0
      %3279 = vmatmul.mubr.bf16.gmra.mrb[0].mxu0 %v1519
      %v3280 = vpop.f32.mrb[0].mxu0
      %v3281 = vadd.f32 0.0, %v3280
      %v3282 = vpop.f32.mrb[0].mxu0
      %v3283 = vpop.f32.mrb[0].mxu0
      %v3284 = vadd.f32 0.0, %v3283
      %v3285 = vpop.f32.mrb[0].mxu0
      %3286 = vmatprep.mubr.bf16.mxu0 0
      %3287 = vmatmul.mubr.bf16.gmra.mrb[0].mxu0 %v1522
      %v3288 = vpop.f32.mrb[0].mxu0
      %v3289 = vadd.f32 0.0, %v3288
      %v3290 = vpop.f32.mrb[0].mxu0
      %v3291 = vpop.f32.mrb[0].mxu0
      %v3292 = vadd.f32 0.0, %v3291
      %v3293 = vpop.f32.mrb[0].mxu0
      %3294 = vmatprep.mubr.bf16.mxu0 0
      %3295 = vmatmul.mubr.bf16.gmra.mrb[0].mxu0 %v1525
      %v3296 = vpop.f32.mrb[0].mxu0
      %v3297 = vadd.f32 0.0, %v3296
      %v3298 = vpop.f32.mrb[0].mxu0
      %v3299 = vpop.f32.mrb[0].mxu0
      %v3300 = vadd.f32 0.0, %v3299
      %v3301 = vpop.f32.mrb[0].mxu0
      %3302 = vmatprep.mubr.bf16.mxu0 0
      %3303 = vmatmul.mubr.bf16.gmra.mrb[0].mxu0 %v1528
      %v3304 = vpop.f32.mrb[0].mxu0
      %v3305 = vadd.f32 0.0, %v3304
      %v3306 = vpop.f32.mrb[0].mxu0
      %v3307 = vpop.f32.mrb[0].mxu0
      %v3308 = vadd.f32 0.0, %v3307
      %v3309 = vpop.f32.mrb[0].mxu0
      %3310 = vmatprep.mubr.bf16.mxu0 0
      %3311 = vmatmul.mubr.bf16.gmra.mrb[0].mxu0 %v1531
      %v3312 = vpop.f32.mrb[0].mxu0
      %v3313 = vadd.f32 0.0, %v3312
      %v3314 = vpop.f32.mrb[0].mxu0
      %v3315 = vpop.f32.mrb[0].mxu0
      %v3316 = vadd.f32 0.0, %v3315
      %v3317 = vpop.f32.mrb[0].mxu0
      %3318 = vmatprep.mubr.bf16.mxu0 0
      %3319 = vmatmul.mubr.bf16.gmra.mrb[0].mxu0 %v1534
      %v3320 = vpop.f32.mrb[0].mxu0
      %v3321 = vadd.f32 0.0, %v3320
      %v3322 = vpop.f32.mrb[0].mxu0
      %v3323 = vpop.f32.mrb[0].mxu0
      %v3324 = vadd.f32 0.0, %v3323
      %v3325 = vpop.f32.mrb[0].mxu0
      %3326 = vmatprep.mubr.bf16.mxu0 0
      %3327 = vmatmul.mubr.bf16.gmra.mrb[0].mxu0 %v1537
      %v3328 = vpop.f32.mrb[0].mxu0
      %v3329 = vadd.f32 0.0, %v3328
      %v3330 = vpop.f32.mrb[0].mxu0
      %v3331 = vpop.f32.mrb[0].mxu0
      %v3332 = vadd.f32 0.0, %v3331
      %v3333 = vpop.f32.mrb[0].mxu0
      %3334 = vmatprep.mubr.bf16.mxu0 0
      %3335 = vmatmul.mubr.bf16.gmra.mrb[0].mxu0 %v1540
      %v3336 = vpop.f32.mrb[0].mxu0
      %v3337 = vadd.f32 0.0, %v3336
      %v3338 = vpop.f32.mrb[0].mxu0
      %v3339 = vpop.f32.mrb[0].mxu0
      %v3340 = vadd.f32 0.0, %v3339
      %v3341 = vpop.f32.mrb[0].mxu0
      %3342 = vmatprep.mubr.bf16.mxu0 0
      %3343 = vmatmul.mubr.bf16.gmra.mrb[0].mxu0 %v1543
      %v3344 = vpop.f32.mrb[0].mxu0
      %v3345 = vadd.f32 0.0, %v3344
      %v3346 = vpop.f32.mrb[0].mxu0
      %v3347 = vpop.f32.mrb[0].mxu0
      %v3348 = vadd.f32 0.0, %v3347
      %v3349 = vpop.f32.mrb[0].mxu0
      %3350 = vmatprep.mubr.bf16.mxu0 0
      %3351 = vmatmul.mubr.bf16.gmra.mrb[0].mxu0 %v1546
      %v3352 = vpop.f32.mrb[0].mxu0
      %v3353 = vadd.f32 0.0, %v3352
      %v3354 = vpop.f32.mrb[0].mxu0
      %v3355 = vpop.f32.mrb[0].mxu0
      %v3356 = vadd.f32 0.0, %v3355
      %v3357 = vpop.f32.mrb[0].mxu0
      %3358 = vmatprep.mubr.bf16.mxu0 0
      %3359 = vmatmul.mubr.bf16.gmra.mrb[0].mxu0 %v2354
      %v3360 = vpop.f32.mrb[0].mxu0
      %v3361 = vadd.f32 0.0, %v3360
      %v3362 = vpop.f32.mrb[0].mxu0
      %v3363 = vpop.f32.mrb[0].mxu0
      %v3364 = vadd.f32 0.0, %v3363
      %v3365 = vpop.f32.mrb[0].mxu0
      %3366 = vmatprep.mubr.bf16.mxu0 0
      %3367 = vmatmul.mubr.bf16.gmra.mrb[0].mxu0 %v3147
      %v3368 = vpop.f32.mrb[0].mxu0
      %v3369 = vadd.f32 0.0, %v3368
      %v3370 = vpop.f32.mrb[0].mxu0
      %v3371 = vpop.f32.mrb[0].mxu0
      %v3372 = vadd.f32 0.0, %v3371
      %v3373 = vpop.f32.mrb[0].mxu0
      %3374 = vdwg.mxu0
      %v3375 = vadd.f32 %v3111, %v3249
      %v3376 = vadd.f32 %v3112, %v3252
      %v3377 = vadd.f32 %v3113, %v3257
      %v3378 = vadd.f32 %v3114, %v3260
      %v3379 = vadd.f32 %v3115, %v3265
      %v3380 = vadd.f32 %v3116, %v3268
      %v3381 = vadd.f32 %v3117, %v3273
      %v3382 = vadd.f32 %v3118, %v3276
      %v3383 = vadd.f32 %v3119, %v3281
      %v3384 = vadd.f32 %v3120, %v3284
      %v3385 = vadd.f32 %v3121, %v3289
      %v3386 = vadd.f32 %v3122, %v3292
      %v3387 = vadd.f32 %v3123, %v3297
      %v3388 = vadd.f32 %v3124, %v3300
      %v3389 = vadd.f32 %v3125, %v3305
      %v3390 = vadd.f32 %v3126, %v3308
      %v3391 = vadd.f32 %v3127, %v3313
      %v3392 = vadd.f32 %v3128, %v3316
      %v3393 = vadd.f32 %v3129, %v3321
      %v3394 = vadd.f32 %v3130, %v3324
      %v3395 = vadd.f32 %v3131, %v3329
      %v3396 = vadd.f32 %v3132, %v3332
      %v3397 = vadd.f32 %v3133, %v3337
      %v3398 = vadd.f32 %v3134, %v3340
      %v3399 = vadd.f32 %v3135, %v3345
      %v3400 = vadd.f32 %v3136, %v3348
      %v3401 = vadd.f32 %v3137, %v3353
      %v3402 = vadd.f32 %v3138, %v3356
      %v3403 = vadd.f32 %v3139, %v3361
      %v3404 = vadd.f32 %v3140, %v3364
      %v3405 = vadd.f32 %v3141, %v3369
      %v3406 = vadd.f32 %v3142, %v3372
      %v3407 = vadd.f32 %v3375, %v3376
      %v3408 = vadd.f32 %v3407, %v3377
      %v3409 = vadd.f32 %v3408, %v3378
      %v3410 = vadd.f32 %v3409, %v3379
      %v3411 = vadd.f32 %v3410, %v3380
      %v3412 = vadd.f32 %v3411, %v3381
      %v3413 = vadd.f32 %v3412, %v3382
      %v3414 = vadd.f32 %v3413, %v3383
      %v3415 = vadd.f32 %v3414, %v3384
      %v3416 = vadd.f32 %v3415, %v3385
      %v3417 = vadd.f32 %v3416, %v3386
      %v3418 = vadd.f32 %v3417, %v3387
      %v3419 = vadd.f32 %v3418, %v3388
      %v3420 = vadd.f32 %v3419, %v3389
      %v3421 = vadd.f32 %v3420, %v3390
      %v3422 = vadd.f32 %v3421, %v3391
      %v3423 = vadd.f32 %v3422, %v3392
      %v3424 = vadd.f32 %v3423, %v3393
      %v3425 = vadd.f32 %v3424, %v3394
      %v3426 = vadd.f32 %v3425, %v3395
      %v3427 = vadd.f32 %v3426, %v3396
      %v3428 = vadd.f32 %v3427, %v3397
      %v3429 = vadd.f32 %v3428, %v3398
      %v3430 = vadd.f32 %v3429, %v3399
      %v3431 = vadd.f32 %v3430, %v3400
      %v3432 = vadd.f32 %v3431, %v3401
      %v3433 = vadd.f32 %v3432, %v3402
      %v3434 = vadd.f32 %v3433, %v3403
      %v3435 = vadd.f32 %v3434, %v3404
      %v3436 = vadd.f32 %v3435, %v3405
      %v3437 = vadd.f32 %v3436, %v3406
      %v3438 = vrot.slane %v3437, 4
      %v3439 = vadd.f32 %v3437, %v3438
      %v3440 = vrot.slane %v3439, 2
      %v3441 = vadd.f32 %v3439, %v3440
      %v3442 = vrot.slane %v3441, 1
      %v3443 = vadd.f32 %v3441, %v3442
      %v3444 = vmul.f32 %v3375, %v3375
      %v3445 = vmul.f32 %v3376, %v3376
      %v3446 = vmul.f32 %v3377, %v3377
      %v3447 = vmul.f32 %v3378, %v3378
      %v3448 = vmul.f32 %v3379, %v3379
      %v3449 = vmul.f32 %v3380, %v3380
      %v3450 = vmul.f32 %v3381, %v3381
      %v3451 = vmul.f32 %v3382, %v3382
      %v3452 = vmul.f32 %v3383, %v3383
      %v3453 = vmul.f32 %v3384, %v3384
      %v3454 = vmul.f32 %v3385, %v3385
      %v3455 = vmul.f32 %v3386, %v3386
      %v3456 = vmul.f32 %v3387, %v3387
      %v3457 = vmul.f32 %v3388, %v3388
      %v3458 = vmul.f32 %v3389, %v3389
      %v3459 = vmul.f32 %v3390, %v3390
      %v3460 = vmul.f32 %v3391, %v3391
      %v3461 = vmul.f32 %v3392, %v3392
      %v3462 = vmul.f32 %v3393, %v3393
      %v3463 = vmul.f32 %v3394, %v3394
      %v3464 = vmul.f32 %v3395, %v3395
      %v3465 = vmul.f32 %v3396, %v3396
      %v3466 = vmul.f32 %v3397, %v3397
      %v3467 = vmul.f32 %v3398, %v3398
      %v3468 = vmul.f32 %v3399, %v3399
      %v3469 = vmul.f32 %v3400, %v3400
      %v3470 = vmul.f32 %v3401, %v3401
      %v3471 = vmul.f32 %v3402, %v3402
      %v3472 = vmul.f32 %v3403, %v3403
      %v3473 = vmul.f32 %v3404, %v3404
      %v3474 = vmul.f32 %v3405, %v3405
      %v3475 = vmul.f32 %v3406, %v3406
      %v3476 = vadd.f32 %v3444, %v3445
      %v3477 = vadd.f32 %v3476, %v3446
      %v3478 = vadd.f32 %v3477, %v3447
      %v3479 = vadd.f32 %v3478, %v3448
      %v3480 = vadd.f32 %v3479, %v3449
      %v3481 = vadd.f32 %v3480, %v3450
      %v3482 = vadd.f32 %v3481, %v3451
      %v3483 = vadd.f32 %v3482, %v3452
      %v3484 = vadd.f32 %v3483, %v3453
      %v3485 = vadd.f32 %v3484, %v3454
      %v3486 = vadd.f32 %v3485, %v3455
      %v3487 = vadd.f32 %v3486, %v3456
      %v3488 = vadd.f32 %v3487, %v3457
      %v3489 = vadd.f32 %v3488, %v3458
      %v3490 = vadd.f32 %v3489, %v3459
      %v3491 = vadd.f32 %v3490, %v3460
      %v3492 = vadd.f32 %v3491, %v3461
      %v3493 = vadd.f32 %v3492, %v3462
      %v3494 = vadd.f32 %v3493, %v3463
      %v3495 = vadd.f32 %v3494, %v3464
      %v3496 = vadd.f32 %v3495, %v3465
      %v3497 = vadd.f32 %v3496, %v3466
      %v3498 = vadd.f32 %v3497, %v3467
      %v3499 = vadd.f32 %v3498, %v3468
      %v3500 = vadd.f32 %v3499, %v3469
      %v3501 = vadd.f32 %v3500, %v3470
      %v3502 = vadd.f32 %v3501, %v3471
      %v3503 = vadd.f32 %v3502, %v3472
      %v3504 = vadd.f32 %v3503, %v3473
      %v3505 = vadd.f32 %v3504, %v3474
      %v3506 = vadd.f32 %v3505, %v3475
      %v3507 = vrot.slane %v3506, 4
      %v3508 = vadd.f32 %v3506, %v3507
      %v3509 = vrot.slane %v3508, 2
      %v3510 = vadd.f32 %v3508, %v3509
      %v3511 = vrot.slane %v3510, 1
      %v3512 = vadd.f32 %v3510, %v3511
      %vm3513 = vcmask 1040384
      %v3514 = vsel %vm3513, %v3443, %v3512
      %3515 = vst [vmem:[%s438] sm:$0x3] %v3514
      %v3516 = vpack.c.bf16 %v3376, %v3375
      %v3517 = vpack.c.bf16 %v3378, %v3377
      %v3518 = vpack.c.bf16 %v3380, %v3379
      %v3519 = vpack.c.bf16 %v3382, %v3381
      %v3520 = vpack.c.bf16 %v3384, %v3383
      %v3521 = vpack.c.bf16 %v3386, %v3385
      %v3522 = vpack.c.bf16 %v3388, %v3387
      %v3523 = vpack.c.bf16 %v3390, %v3389
      %v3524 = vpack.c.bf16 %v3392, %v3391
      %v3525 = vpack.c.bf16 %v3394, %v3393
      %v3526 = vpack.c.bf16 %v3396, %v3395
      %v3527 = vpack.c.bf16 %v3398, %v3397
      %v3528 = vpack.c.bf16 %v3400, %v3399
      %v3529 = vpack.c.bf16 %v3402, %v3401
      %v3530 = vpack.c.bf16 %v3404, %v3403
      %v3531 = vpack.c.bf16 %v3406, %v3405
      %v3548 = vunpack.c.l.b16 %v3516
      %v3549 = vunpack.c.h.b16 %v3516
      %v3550 = vunpack.c.l.b16 %v3517
      %v3551 = vunpack.c.h.b16 %v3517
      %v3552 = vunpack.c.l.b16 %v3518
      %v3553 = vunpack.c.h.b16 %v3518
      %v3554 = vunpack.c.l.b16 %v3519
      %v3555 = vunpack.c.h.b16 %v3519
      %v3556 = vunpack.c.l.b16 %v3520
      %v3557 = vunpack.c.h.b16 %v3520
      %v3558 = vunpack.c.l.b16 %v3521
      %v3559 = vunpack.c.h.b16 %v3521
      %v3560 = vunpack.c.l.b16 %v3522
      %v3561 = vunpack.c.h.b16 %v3522
      %v3562 = vunpack.c.l.b16 %v3523
      %v3563 = vunpack.c.h.b16 %v3523
      %v3564 = vunpack.c.l.b16 %v3524
      %v3565 = vunpack.c.h.b16 %v3524
      %v3566 = vunpack.c.l.b16 %v3525
      %v3567 = vunpack.c.h.b16 %v3525
      %v3568 = vunpack.c.l.b16 %v3526
      %v3569 = vunpack.c.h.b16 %v3526
      %v3570 = vunpack.c.l.b16 %v3527
      %v3571 = vunpack.c.h.b16 %v3527
      %v3572 = vunpack.c.l.b16 %v3528
      %v3573 = vunpack.c.h.b16 %v3528
      %v3574 = vunpack.c.l.b16 %v3529
      %v3575 = vunpack.c.h.b16 %v3529
      %v3576 = vunpack.c.l.b16 %v3530
      %v3577 = vunpack.c.h.b16 %v3530
      %v3578 = vunpack.c.l.b16 %v3531
      %v3579 = vunpack.c.h.b16 %v3531
      %v3580 = vpack.c.b16 %v3548, %v3548
      %v3581 = vpack.c.b16 %v3549, %v3549
      %v3582 = vpack.c.b16 %v3550, %v3550
      %v3583 = vpack.c.b16 %v3551, %v3551
      %v3584 = vpack.c.b16 %v3552, %v3552
      %v3585 = vpack.c.b16 %v3553, %v3553
      %v3586 = vpack.c.b16 %v3554, %v3554
      %v3587 = vpack.c.b16 %v3555, %v3555
      %v3588 = vpack.c.b16 %v3556, %v3556
      %v3589 = vpack.c.b16 %v3557, %v3557
      %v3590 = vpack.c.b16 %v3558, %v3558
      %v3591 = vpack.c.b16 %v3559, %v3559
      %v3592 = vpack.c.b16 %v3560, %v3560
      %v3593 = vpack.c.b16 %v3561, %v3561
      %v3594 = vpack.c.b16 %v3562, %v3562
      %v3595 = vpack.c.b16 %v3563, %v3563
      %v3596 = vpack.c.b16 %v3564, %v3564
      %v3597 = vpack.c.b16 %v3565, %v3565
      %v3598 = vpack.c.b16 %v3566, %v3566
      %v3599 = vpack.c.b16 %v3567, %v3567
      %v3600 = vpack.c.b16 %v3568, %v3568
      %v3601 = vpack.c.b16 %v3569, %v3569
      %v3602 = vpack.c.b16 %v3570, %v3570
      %v3603 = vpack.c.b16 %v3571, %v3571
      %v3604 = vpack.c.b16 %v3572, %v3572
      %v3605 = vpack.c.b16 %v3573, %v3573
      %v3606 = vpack.c.b16 %v3574, %v3574
      %v3607 = vpack.c.b16 %v3575, %v3575
      %v3608 = vpack.c.b16 %v3576, %v3576
      %v3609 = vpack.c.b16 %v3577, %v3577
      %v3610 = vpack.c.b16 %v3578, %v3578
      %v3611 = vpack.c.b16 %v3579, %v3579
      %3644 = vst [vmem:[%s430] sm:$0xf] %v3580
      %3645 = vst [vmem:[%s430 + $0x4] sm:$0xf] %v3581
      %3646 = vst [vmem:[%s430 + $0x8] sm:$0xf] %v3582
      %3647 = vst [vmem:[%s430 + $0xc] sm:$0xf] %v3583
      %3648 = vst [vmem:[%s430 + $0x10] sm:$0xf] %v3584
      %3649 = vst [vmem:[%s430 + $0x14] sm:$0xf] %v3585
      %3650 = vst [vmem:[%s430 + $0x18] sm:$0xf] %v3586
      %3651 = vst [vmem:[%s430 + $0x1c] sm:$0xf] %v3587
      %3652 = vst [vmem:[%s430 + $0x20] sm:$0xf] %v3588
      %3653 = vst [vmem:[%s430 + $0x24] sm:$0xf] %v3589
      %3654 = vst [vmem:[%s430 + $0x28] sm:$0xf] %v3590
      %3655 = vst [vmem:[%s430 + $0x2c] sm:$0xf] %v3591
      %3656 = vst [vmem:[%s430 + $0x30] sm:$0xf] %v3592
      %3657 = vst [vmem:[%s430 + $0x34] sm:$0xf] %v3593
      %3658 = vst [vmem:[%s430 + $0x38] sm:$0xf] %v3594
      %3659 = vst [vmem:[%s430 + $0x3c] sm:$0xf] %v3595
      %3660 = vst [vmem:[%s430 + $0x40] sm:$0xf] %v3596
      %3661 = vst [vmem:[%s430 + $0x44] sm:$0xf] %v3597
      %3662 = vst [vmem:[%s430 + $0x48] sm:$0xf] %v3598
      %3663 = vst [vmem:[%s430 + $0x4c] sm:$0xf] %v3599
      %3664 = vst [vmem:[%s430 + $0x50] sm:$0xf] %v3600
      %3665 = vst [vmem:[%s430 + $0x54] sm:$0xf] %v3601
      %3666 = vst [vmem:[%s430 + $0x58] sm:$0xf] %v3602
      %3667 = vst [vmem:[%s430 + $0x5c] sm:$0xf] %v3603
      %3668 = vst [vmem:[%s430 + $0x60] sm:$0xf] %v3604
      %3669 = vst [vmem:[%s430 + $0x64] sm:$0xf] %v3605
      %3670 = vst [vmem:[%s430 + $0x68] sm:$0xf] %v3606
      %3671 = vst [vmem:[%s430 + $0x6c] sm:$0xf] %v3607
      %3672 = vst [vmem:[%s430 + $0x70] sm:$0xf] %v3608
      %3673 = vst [vmem:[%s430 + $0x74] sm:$0xf] %v3609
      %3674 = vst [vmem:[%s430 + $0x78] sm:$0xf] %v3610
      %3675 = vst [vmem:[%s430 + $0x7c] sm:$0xf] %v3611
      %s3676 = smul.u32 16, %s23
      %p3677 = scmp.lt.s32.totalorder %s22, 1
      %s3678 = scalar_select %p3677, %s22, 1
      %p3679 = scmp.lt.s32.totalorder %s3676, 15
      %s3680 = scalar_select %p3679, %s3676, 15
      %s3681 = smul.addr %s3680, 2
      %s3682 = smul.addr %s3678, 32
      %s3683 = sadd.s32 %s3681, %s3682
      %s3684 = smul.addr %s3683, 4
      %s3685 = scalar_lea.vmem %s5, %s3684
      %p3686 = scmp.lt.s32.totalorder %s22, 1
      %s3687 = scalar_select %p3686, %s22, 1
      %p3688 = scmp.lt.s32.totalorder %s23, 0
      %s3689 = scalar_select %p3688, %s23, 0
      %s3690 = sadd.s32 %s3689, %s3687
      %s3691 = smul.addr %s3690, 2
      %s3692 = scalar_lea.vmem %s6, %s3691
      // Predicated region
      $region41: #{double_conv.4} parent=39 // pred_check
        %p3693 = pneg %p192
      $region42: #{double_conv.4} parent=39 // pred_check_branch
        %3695 = sbr.rel (%p3693) target = $region44
      $region43: #{double_conv.4} parent=39 // pred_region
        %s3696 = smul.u32 16, %s23
      $region44: #{double_conv.4} parent=39 // pred_fallthru
        _
      // Predicated region
      $region45: #{double_conv.4} parent=39 // pred_check
        %p3697 = pneg %p220
      $region46: #{double_conv.4} parent=39 // pred_check_branch
        %3699 = sbr.rel (%p3697) target = $region48
      $region47: #{double_conv.4} parent=39 // pred_region
        _
      $region48: #{double_conv.4} parent=39 // pred_fallthru
        _
    $region40: #{double_conv.4} parent=5 // pred_fallthru
      _
    %p3700 = scmp.le.s32.totalorder 2, %s13
    // Predicated region
    $region49: #{double_conv.4} parent=5 // pred_check
      %p3701 = pneg %p3700
    $region50: #{double_conv.4} parent=5 // pred_check_branch
      %3703 = sbr.rel (%p3701) target = $region52
    $region51: #{double_conv.4} parent=5 // pred_region
      %s3704 = ssub.s32 %s13, 2
      // Predicated region
      $region53: #{double_conv.4} parent=51 // pred_check
        %p3705 = pneg %p198
      $region54: #{double_conv.4} parent=51 // pred_check_branch
        %3707 = sbr.rel (%p3705) target = $region56
      $region55: #{double_conv.4} parent=51 // pred_region
        %s3708 = smul.u32 16, %s25
        %p3709 = scmp.lt.s32.totalorder %s24, 1
        %s3710 = scalar_select %p3709, %s24, 1
        %p3711 = scmp.lt.s32.totalorder %s3708, 15
        %s3712 = scalar_select %p3711, %s3708, 15
        %s3713 = smul.addr %s3712, 2
        %s3714 = smul.addr %s3710, 32
        %s3715 = sadd.s32 %s3713, %s3714
        %s3716 = smul.addr %s3715, 4
        %s3717 = scalar_lea.vmem %s5, %s3716
      $region56: #{double_conv.4} parent=51 // pred_fallthru
        _
      // Predicated region
      $region57: #{double_conv.4} parent=51 // pred_check
        %p3718 = pneg %p226
      $region58: #{double_conv.4} parent=51 // pred_check_branch
        %3720 = sbr.rel (%p3718) target = $region60
      $region59: #{double_conv.4} parent=51 // pred_region
        %p3721 = scmp.lt.s32.totalorder %s24, 1
        %s3722 = scalar_select %p3721, %s24, 1
        %p3723 = scmp.lt.s32.totalorder %s25, 0
        %s3724 = scalar_select %p3723, %s25, 0
        %s3725 = sadd.s32 %s3724, %s3722
        %s3726 = smul.addr %s3725, 2
        %s3727 = scalar_lea.vmem %s6, %s3726
      $region60: #{double_conv.4} parent=51 // pred_fallthru
        _
    $region52: #{double_conv.4} parent=5 // pred_fallthru
      _
  $region6: #{double_conv.4} parent=0 // loop_footer
    %s17 = sadd.s32 1, %s13
  $region7: #{double_conv.4} parent=0 // loop_footer_branch
    %12 = sbr.rel target = $region3
  $region8: #{double_conv.4} parent=0 // loop_exit
    _

</llo_original>
